<compile_context>
chip_gen: v7x
topology: tpu7x:2x2x1
jax: 0.10.0
libtpu: 0.0.40
codegen_flags: <defaults>
</compile_context>

<pallas_src>
import functools

import jax
import jax.numpy as jnp
from jax.experimental import pallas as pl
from jax.experimental.pallas import tpu as pltpu


# ---------------- fused per-point MLP + global max-pool + head ----------------

def _pointnet_stage_kernel(x_ref, w1_ref, b1_ref, w2_ref, b2_ref, w3_ref, b3_ref,
                           hw1_ref, hb1_ref, hw2_ref, hb2_ref, hw3_ref, hb3_ref,
                           o_ref, acc_ref, *, relu3, logsoftmax, n_valid, tn):
    """One point tile of:
         relu(x@w1+b1) -> relu(@w2+b2) -> (@w3+b3, optional relu)
         -> running max over points (VMEM accumulator)
       and, on the last tile of this batch row, the fused 3-layer head:
         relu(g@hw1+hb1) -> relu(@hw2+hb2) -> (@hw3+hb3, optional log_softmax)
    """
    t = pl.program_id(1)
    nt = pl.num_programs(1)

    @pl.when(t == 0)
    def _init():
        acc_ref[...] = jnp.full(acc_ref.shape, -jnp.inf, dtype=acc_ref.dtype)

    x = x_ref[0]                                                     # (tn, Cin) bf16
    h = jnp.dot(x, w1_ref[0], preferred_element_type=jnp.float32) + b1_ref[...]
    h = jnp.maximum(h, 0.0)
    h = jnp.dot(h.astype(jnp.bfloat16), w2_ref[...],
                preferred_element_type=jnp.float32) + b2_ref[...]
    h = jnp.maximum(h, 0.0)
    h = jnp.dot(h.astype(jnp.bfloat16), w3_ref[...],
                preferred_element_type=jnp.float32) + b3_ref[...]
    if relu3:
        h = jnp.maximum(h, 0.0)
    if n_valid is not None:
        # mask zero-padded point rows so they cannot affect the global max
        row = t * tn + jax.lax.broadcasted_iota(jnp.int32, (tn, 1), 0)
        h = jnp.where(row < n_valid, h, -jnp.inf)

    tile_max = jnp.max(h, axis=0, keepdims=True)                     # (1, C3)
    acc_ref[...] = jnp.maximum(acc_ref[...], tile_max)

    @pl.when(t == nt - 1)
    def _head():
        g = acc_ref[...]                                             # (1, C3) f32
        y = jnp.dot(g.astype(jnp.bfloat16), hw1_ref[...],
                    preferred_element_type=jnp.float32) + hb1_ref[...]
        y = jnp.maximum(y, 0.0)
        y = jnp.dot(y.astype(jnp.bfloat16), hw2_ref[...],
                    preferred_element_type=jnp.float32) + hb2_ref[...]
        y = jnp.maximum(y, 0.0)
        y = jnp.dot(y.astype(jnp.bfloat16), hw3_ref[...],
                    preferred_element_type=jnp.float32) + hb3_ref[...]
        if logsoftmax:
            z = y - jnp.max(y, axis=-1, keepdims=True)
            y = z - jnp.log(jnp.sum(jnp.exp(z), axis=-1, keepdims=True))
        o_ref[...] = y.reshape(o_ref.shape)


def _round_up(n, m):
    return ((n + m - 1) // m) * m


def pointnet_stage(xp, w1, b1, w2, b2, w3, b3,
                   hw1, hb1, hw2, hb2, hw3, hb3,
                   *, relu3, logsoftmax, tn=512):
    """xp: (B, N, Cin) bf16.  w1: (1 or B, Cin, C1) bf16 (per-batch only when the
    input transform has been folded in).  w2/w3/head weights: bf16, shared.
    Biases f32.  Returns (B, Nout) f32: the fused head applied to the global
    max-pooled point features."""
    B, N, Cin = xp.shape
    W1B, _, C1 = w1.shape
    C2, C3 = w2.shape[1], w3.shape[1]
    H1, H2, Nout = hw1.shape[1], hw2.shape[1], hw3.shape[1]

    # pick a point-tile size: large (MXU row fill + fewer grid steps), mult of 8
    tn = min(tn, _round_up(N, 8))
    tn = _round_up(tn, 8)
    n_pad = _round_up(N, tn)
    if n_pad != N:
        xp = jnp.pad(xp, ((0, 0), (0, n_pad - N), (0, 0)))
        n_valid = N
    else:
        n_valid = None

    w1_map = (lambda b, t: (b, 0, 0)) if W1B == B and B > 1 else (lambda b, t: (0, 0, 0))

    flops = (2 * B * n_pad * (Cin * C1 + C1 * C2 + C2 * C3)
             + 2 * B * (C3 * H1 + H1 * H2 + H2 * Nout))
    bytes_accessed = (B * n_pad * Cin * 2 + B * Nout * 4
                      + (W1B * Cin * C1 + C1 * C2 + C2 * C3
                         + C3 * H1 + H1 * H2 + H2 * Nout) * 2
                      + (C1 + C2 + C3 + H1 + H2 + Nout) * 4)
    transcendentals = B * Nout if logsoftmax else 0

    out = pl.pallas_call(
        functools.partial(_pointnet_stage_kernel, relu3=relu3,
                          logsoftmax=logsoftmax, n_valid=n_valid, tn=tn),
        out_shape=jax.ShapeDtypeStruct((B, 1, Nout), jnp.float32),
        grid=(B, n_pad // tn),
        in_specs=[
            pl.BlockSpec((1, tn, Cin), lambda b, t: (b, t, 0)),
            pl.BlockSpec((1, Cin, C1), w1_map),
            pl.BlockSpec((1, C1), lambda b, t: (0, 0)),
            pl.BlockSpec((C1, C2), lambda b, t: (0, 0)),
            pl.BlockSpec((1, C2), lambda b, t: (0, 0)),
            pl.BlockSpec((C2, C3), lambda b, t: (0, 0)),
            pl.BlockSpec((1, C3), lambda b, t: (0, 0)),
            pl.BlockSpec((C3, H1), lambda b, t: (0, 0)),
            pl.BlockSpec((1, H1), lambda b, t: (0, 0)),
            pl.BlockSpec((H1, H2), lambda b, t: (0, 0)),
            pl.BlockSpec((1, H2), lambda b, t: (0, 0)),
            pl.BlockSpec((H2, Nout), lambda b, t: (0, 0)),
            pl.BlockSpec((1, Nout), lambda b, t: (0, 0)),
        ],
        out_specs=pl.BlockSpec((1, 1, Nout), lambda b, t: (b, 0, 0)),
        scratch_shapes=[pltpu.VMEM((1, C3), jnp.float32)],
        compiler_params=pltpu.CompilerParams(
            dimension_semantics=("parallel", "arbitrary"),
            vmem_limit_bytes=32 * 1024 * 1024,   # safe on v5e/v6e/v7x
        ),
        cost_estimate=pl.CostEstimate(flops=flops,
                                      transcendentals=transcendentals,
                                      bytes_accessed=bytes_accessed),
    )(xp, w1, b1.reshape(1, C1), w2, b2.reshape(1, C2), w3, b3.reshape(1, C3),
      hw1, hb1.reshape(1, H1), hw2, hb2.reshape(1, H2), hw3, hb3.reshape(1, Nout))
    return out[:, 0, :]


# ------------------------- parameters (deterministic) -------------------------

def fold_bn(W, b, bn_params, eps=1e-5):
    """Fold inference-mode BatchNorm into the preceding conv1x1/linear layer.
    W: (C_out, C_in) torch layout, b: (C_out,). Returns (W_folded^T, b_folded)
    with W_folded^T in (C_in, C_out) layout, ready for x @ W."""
    gamma, beta, mean, var = bn_params
    s = gamma / jnp.sqrt(var + eps)
    Wf = W * s[:, None]
    bf = s * (b - mean) + beta
    return Wf.T, bf


def init_params(key):
    keys = iter(jax.random.split(key, 80))

    def lin(cout, cin, scale=0.05):
        W = scale * jax.random.normal(next(keys), (cout, cin), jnp.float32)
        b = scale * jax.random.normal(next(keys), (cout,), jnp.float32)
        return W, b

    def bn(c):
        gamma = 0.5 + jax.random.uniform(next(keys), (c,), jnp.float32)
        beta = 0.05 * jax.random.normal(next(keys), (c,), jnp.float32)
        mean = 0.05 * jax.random.normal(next(keys), (c,), jnp.float32)
        var = 0.5 + jax.random.uniform(next(keys), (c,), jnp.float32)
        return gamma, beta, mean, var

    p = {}
    # TNet (k=9): conv1/2/3 + bn1/2/3, fc1/2 + bn4/5, fc3 (no bn)
    p["stn.l1"] = fold_bn(*lin(64, 9), bn(64))
    p["stn.l2"] = fold_bn(*lin(128, 64), bn(128))
    p["stn.l3"] = fold_bn(*lin(1024, 128), bn(1024))
    p["stn.fc1"] = fold_bn(*lin(512, 1024), bn(512))
    p["stn.fc2"] = fold_bn(*lin(256, 512), bn(256))
    W, b = lin(81, 256)
    p["stn.fc3"] = (W.T, b)
    # PointNetEncoder: conv1/2/3 + bn1/2/3
    p["enc.l1"] = fold_bn(*lin(64, 9), bn(64))
    p["enc.l2"] = fold_bn(*lin(128, 64), bn(128))
    p["enc.l3"] = fold_bn(*lin(1024, 128), bn(1024))
    # Classification head
    p["cls.fc1"] = fold_bn(*lin(512, 1024), bn(512))
    p["cls.fc2"] = fold_bn(*lin(256, 512), bn(256))
    W, b = lin(40, 256)
    p["cls.fc3"] = (W.T, b)
    return p


# ------------------------------- forward pass -------------------------------

def pointnet_cls_forward(x, p, *, tn=512):
    """x: (B, 9, N) float32, NCW like the PyTorch module.
    Returns (log_softmax logits (B,40), trans (B,9,9), None)."""
    B, C, N = x.shape
    # transpose + bf16 cast once in the wrapper; kernels stream bf16 points
    xp = jnp.transpose(x, (0, 2, 1)).astype(jnp.bfloat16)            # (B, N, 9)
    bf = lambda a: a.astype(jnp.bfloat16)

    # --- stage 1: TNet (point MLP + max-pool + head), identity folded in bias ---
    w1, b1 = p["stn.l1"]; w2, b2 = p["stn.l2"]; w3, b3 = p["stn.l3"]
    fw1, fb1 = p["stn.fc1"]; fw2, fb2 = p["stn.fc2"]; fw3, fb3 = p["stn.fc3"]
    fb3_eff = fb3 + jnp.eye(C, dtype=jnp.float32).reshape(-1)
    trans = pointnet_stage(
        xp, bf(w1)[None], b1, bf(w2), b2, bf(w3), b3,
        bf(fw1), fb1, bf(fw2), fb2, bf(fw3), fb3_eff,
        relu3=True, logsoftmax=False, tn=tn).reshape(B, C, C)        # (B, 9, 9)

    # --- stage 2: encoder + classification head ---
    # fold the 9x9 transform into the first conv weight:
    #   (x @ trans) @ W1 == x @ (trans @ W1)   -> no bmm, no (B,N,9) intermediate
    ew1, eb1 = p["enc.l1"]; ew2, eb2 = p["enc.l2"]; ew3, eb3 = p["enc.l3"]
    cw1, cb1 = p["cls.fc1"]; cw2, cb2 = p["cls.fc2"]; cw3, cb3 = p["cls.fc3"]
    w1_eff = jnp.einsum("bij,jo->bio", trans, ew1).astype(jnp.bfloat16)  # (B, 9, 64)
    logp = pointnet_stage(
        xp, w1_eff, eb1, bf(ew2), eb2, bf(ew3), eb3,
        bf(cw1), cb1, bf(cw2), cb2, bf(cw3), cb3,
        relu3=False, logsoftmax=True, tn=tn)                         # (B, 40)

    trans_feat = None  # feature_transform=False in PointNetCls default
    return logp, trans, trans_feat


# ----------------------------------- main -----------------------------------

if __name__ == "__main__":
    key = jax.random.PRNGKey(0)
    kx, kp = jax.random.split(key)

    B, C, N = 2, 9, 256   # batch=2, 9 input point features, 256 points
    x = jax.random.normal(kx, (B, C, N), jnp.float32)
    params = init_params(kp)

    fwd = jax.jit(pointnet_cls_forward)
    logp, trans, trans_feat = fwd(x, params)
    jax.block_until_ready((logp, trans))

    assert logp.shape == (B, 40)
    assert trans.shape == (B, C, C)
    assert trans_feat is None
    assert bool(jnp.all(jnp.isfinite(logp)))
    # log_softmax rows must sum (in prob space) to ~1
    assert jnp.allclose(jnp.sum(jnp.exp(logp), axis=1), 1.0, atol=1e-4)
    print("KERNEL_OK")
</pallas_src>

<mosaic_0001>
module attributes {stable_mosaic.version = 11 : i64} {
  func.func @_pointnet_stage_kernel(%arg0: i32, %arg1: i32, %arg2: memref<1x256x9xbf16, #tpu.memory_space<vmem>>, %arg3: memref<1x9x64xbf16, #tpu.memory_space<vmem>>, %arg4: memref<1x64xf32, #tpu.memory_space<vmem>>, %arg5: memref<64x128xbf16, #tpu.memory_space<vmem>>, %arg6: memref<1x128xf32, #tpu.memory_space<vmem>>, %arg7: memref<128x1024xbf16, #tpu.memory_space<vmem>>, %arg8: memref<1x1024xf32, #tpu.memory_space<vmem>>, %arg9: memref<1024x512xbf16, #tpu.memory_space<vmem>>, %arg10: memref<1x512xf32, #tpu.memory_space<vmem>>, %arg11: memref<512x256xbf16, #tpu.memory_space<vmem>>, %arg12: memref<1x256xf32, #tpu.memory_space<vmem>>, %arg13: memref<256x81xbf16, #tpu.memory_space<vmem>>, %arg14: memref<1x81xf32, #tpu.memory_space<vmem>>, %arg15: memref<1x1x81xf32, #tpu.memory_space<vmem>>, %arg16: memref<1x1024xf32, #tpu.memory_space<vmem>>) attributes {dimension_semantics = [#tpu.dimension_semantics<parallel>, #tpu.dimension_semantics<arbitrary>], iteration_bounds = array<i64: 2, 1>, scalar_prefetch = 0 : i64, scratch_operands = 1 : i64, tpu.core_type = #tpu.core_type<tc>, window_params = [{transform_indices = @transform_0, window_bounds = array<i64: 1, 256, 9>}, {pipeline_mode = #tpu.pipeline_mode<synchronous>, transform_indices = @transform_1, window_bounds = array<i64: 1, 9, 64>}, {pipeline_mode = #tpu.pipeline_mode<synchronous>, transform_indices = @transform_2, window_bounds = array<i64: 1, 64>}, {pipeline_mode = #tpu.pipeline_mode<synchronous>, transform_indices = @transform_3, window_bounds = array<i64: 64, 128>}, {pipeline_mode = #tpu.pipeline_mode<synchronous>, transform_indices = @transform_4, window_bounds = array<i64: 1, 128>}, {pipeline_mode = #tpu.pipeline_mode<synchronous>, transform_indices = @transform_5, window_bounds = array<i64: 128, 1024>}, {pipeline_mode = #tpu.pipeline_mode<synchronous>, transform_indices = @transform_6, window_bounds = array<i64: 1, 1024>}, {pipeline_mode = #tpu.pipeline_mode<synchronous>, transform_indices = @transform_7, window_bounds = array<i64: 1024, 512>}, {pipeline_mode = #tpu.pipeline_mode<synchronous>, transform_indices = @transform_8, window_bounds = array<i64: 1, 512>}, {pipeline_mode = #tpu.pipeline_mode<synchronous>, transform_indices = @transform_9, window_bounds = array<i64: 512, 256>}, {pipeline_mode = #tpu.pipeline_mode<synchronous>, transform_indices = @transform_10, window_bounds = array<i64: 1, 256>}, {pipeline_mode = #tpu.pipeline_mode<synchronous>, transform_indices = @transform_11, window_bounds = array<i64: 256, 81>}, {pipeline_mode = #tpu.pipeline_mode<synchronous>, transform_indices = @transform_12, window_bounds = array<i64: 1, 81>}, {transform_indices = @transform_13, window_bounds = array<i64: 1, 1, 81>}]} {
    %c0_i32 = arith.constant 0 : i32
    %0 = arith.cmpi eq, %arg1, %c0_i32 : i32
    %1 = arith.extui %0 : i1 to i32
    %c0_i32_0 = arith.constant 0 : i32
    %2 = arith.cmpi ne, %1, %c0_i32_0 : i32
    scf.if %2 {
      %cst_28 = arith.constant 0xFF800000 : f32
      %37 = vector.broadcast %cst_28 : f32 to vector<1x1024xf32>
      %c0_29 = arith.constant 0 : index
      %c0_30 = arith.constant 0 : index
      %38 = vector.load %arg16[%c0_29, %c0_30] : memref<1x1024xf32, #tpu.memory_space<vmem>>, vector<1x1024xf32>
      tpu.vector_store %arg16[%c0_29, %c0_30], %37 {strides = array<i32>} : memref<1x1024xf32, #tpu.memory_space<vmem>>, vector<1x1024xf32>,
    } else {
    }
    %c0 = arith.constant 0 : index
    %c0_1 = arith.constant 0 : index
    %c0_2 = arith.constant 0 : index
    %3 = vector.load %arg2[%c0, %c0_1, %c0_2] : memref<1x256x9xbf16, #tpu.memory_space<vmem>>, vector<1x256x9xbf16>
    %4 = vector.shape_cast %3 : vector<1x256x9xbf16> to vector<256x9xbf16>
    %c0_3 = arith.constant 0 : index
    %c0_4 = arith.constant 0 : index
    %c0_5 = arith.constant 0 : index
    %5 = vector.load %arg3[%c0_3, %c0_4, %c0_5] : memref<1x9x64xbf16, #tpu.memory_space<vmem>>, vector<1x9x64xbf16>
    %6 = vector.shape_cast %5 : vector<1x9x64xbf16> to vector<9x64xbf16>
    %cst = arith.constant dense<0.000000e+00> : vector<256x64xf32>
    %7 = tpu.matmul %4, %6, %cst {dimension_numbers = #tpu.dot_dimension_numbers<[1], [0], [0], [1], [0, 0, 1, 1], [], []>} : vector<256x9xbf16>, vector<9x64xbf16>, vector<256x64xf32> -> vector<256x64xf32>
    %c0_6 = arith.constant 0 : index
    %c0_7 = arith.constant 0 : index
    %8 = vector.load %arg4[%c0_6, %c0_7] : memref<1x64xf32, #tpu.memory_space<vmem>>, vector<1x64xf32>
    %9 = vector.broadcast %8 : vector<1x64xf32> to vector<256x64xf32>
    %10 = arith.addf %7, %9 : vector<256x64xf32>
    %cst_8 = arith.constant 0.000000e+00 : f32
    %11 = vector.broadcast %cst_8 : f32 to vector<256x64xf32>
    %12 = arith.maximumf %10, %11 : vector<256x64xf32>
    %13 = arith.truncf %12 : vector<256x64xf32> to vector<256x64xbf16>
    %c0_9 = arith.constant 0 : index
    %c0_10 = arith.constant 0 : index
    %14 = vector.load %arg5[%c0_9, %c0_10] : memref<64x128xbf16, #tpu.memory_space<vmem>>, vector<64x128xbf16>
    %cst_11 = arith.constant dense<0.000000e+00> : vector<256x128xf32>
    %15 = tpu.matmul %13, %14, %cst_11 {dimension_numbers = #tpu.dot_dimension_numbers<[1], [0], [0], [1], [0, 0, 1, 1], [], []>} : vector<256x64xbf16>, vector<64x128xbf16>, vector<256x128xf32> -> vector<256x128xf32>
    %c0_12 = arith.constant 0 : index
    %c0_13 = arith.constant 0 : index
    %16 = vector.load %arg6[%c0_12, %c0_13] : memref<1x128xf32, #tpu.memory_space<vmem>>, vector<1x128xf32>
    %17 = vector.broadcast %16 : vector<1x128xf32> to vector<256x128xf32>
    %18 = arith.addf %15, %17 : vector<256x128xf32>
    %cst_14 = arith.constant 0.000000e+00 : f32
    %19 = vector.broadcast %cst_14 : f32 to vector<256x128xf32>
    %20 = arith.maximumf %18, %19 : vector<256x128xf32>
    %21 = arith.truncf %20 : vector<256x128xf32> to vector<256x128xbf16>
    %c0_15 = arith.constant 0 : index
    %c0_16 = arith.constant 0 : index
    %22 = vector.load %arg7[%c0_15, %c0_16] : memref<128x1024xbf16, #tpu.memory_space<vmem>>, vector<128x1024xbf16>
    %cst_17 = arith.constant dense<0.000000e+00> : vector<256x1024xf32>
    %23 = tpu.matmul %21, %22, %cst_17 {dimension_numbers = #tpu.dot_dimension_numbers<[1], [0], [0], [1], [0, 0, 1, 1], [], []>} : vector<256x128xbf16>, vector<128x1024xbf16>, vector<256x1024xf32> -> vector<256x1024xf32>
    %c0_18 = arith.constant 0 : index
    %c0_19 = arith.constant 0 : index
    %24 = vector.load %arg8[%c0_18, %c0_19] : memref<1x1024xf32, #tpu.memory_space<vmem>>, vector<1x1024xf32>
    %25 = vector.broadcast %24 : vector<1x1024xf32> to vector<256x1024xf32>
    %26 = arith.addf %23, %25 : vector<256x1024xf32>
    %cst_20 = arith.constant 0.000000e+00 : f32
    %27 = vector.broadcast %cst_20 : f32 to vector<256x1024xf32>
    %28 = arith.maximumf %26, %27 : vector<256x1024xf32>
    %cst_21 = arith.constant dense<0xFF800000> : vector<1024xf32>
    %29 = vector.multi_reduction <maximumf>, %28, %cst_21 [0] : vector<256x1024xf32> to vector<1024xf32>
    %30 = vector.shape_cast %29 : vector<1024xf32> to vector<1x1024xf32>
    %c0_22 = arith.constant 0 : index
    %c0_23 = arith.constant 0 : index
    %31 = vector.load %arg16[%c0_22, %c0_23] : memref<1x1024xf32, #tpu.memory_space<vmem>>, vector<1x1024xf32>
    %32 = arith.maximumf %31, %30 : vector<1x1024xf32>
    %c0_24 = arith.constant 0 : index
    %c0_25 = arith.constant 0 : index
    %33 = vector.load %arg16[%c0_24, %c0_25] : memref<1x1024xf32, #tpu.memory_space<vmem>>, vector<1x1024xf32>
    tpu.vector_store %arg16[%c0_24, %c0_25], %32 {strides = array<i32>} : memref<1x1024xf32, #tpu.memory_space<vmem>>, vector<1x1024xf32>,
    %c0_i32_26 = arith.constant 0 : i32
    %34 = arith.cmpi eq, %arg1, %c0_i32_26 : i32
    %35 = arith.extui %34 : i1 to i32
    %c0_i32_27 = arith.constant 0 : i32
    %36 = arith.cmpi ne, %35, %c0_i32_27 : i32
    scf.if %36 {
      %c0_28 = arith.constant 0 : index
      %c0_29 = arith.constant 0 : index
      %37 = vector.load %arg16[%c0_28, %c0_29] : memref<1x1024xf32, #tpu.memory_space<vmem>>, vector<1x1024xf32>
      %38 = arith.truncf %37 : vector<1x1024xf32> to vector<1x1024xbf16>
      %c0_30 = arith.constant 0 : index
      %c0_31 = arith.constant 0 : index
      %39 = vector.load %arg9[%c0_30, %c0_31] : memref<1024x512xbf16, #tpu.memory_space<vmem>>, vector<1024x512xbf16>
      %cst_32 = arith.constant dense<0.000000e+00> : vector<1x512xf32>
      %40 = tpu.matmul %38, %39, %cst_32 {dimension_numbers = #tpu.dot_dimension_numbers<[1], [0], [0], [1], [0, 0, 1, 1], [], []>} : vector<1x1024xbf16>, vector<1024x512xbf16>, vector<1x512xf32> -> vector<1x512xf32>
      %c0_33 = arith.constant 0 : index
      %c0_34 = arith.constant 0 : index
      %41 = vector.load %arg10[%c0_33, %c0_34] : memref<1x512xf32, #tpu.memory_space<vmem>>, vector<1x512xf32>
      %42 = arith.addf %40, %41 : vector<1x512xf32>
      %cst_35 = arith.constant 0.000000e+00 : f32
      %43 = vector.broadcast %cst_35 : f32 to vector<1x512xf32>
      %44 = arith.maximumf %42, %43 : vector<1x512xf32>
      %45 = arith.truncf %44 : vector<1x512xf32> to vector<1x512xbf16>
      %c0_36 = arith.constant 0 : index
      %c0_37 = arith.constant 0 : index
      %46 = vector.load %arg11[%c0_36, %c0_37] : memref<512x256xbf16, #tpu.memory_space<vmem>>, vector<512x256xbf16>
      %cst_38 = arith.constant dense<0.000000e+00> : vector<1x256xf32>
      %47 = tpu.matmul %45, %46, %cst_38 {dimension_numbers = #tpu.dot_dimension_numbers<[1], [0], [0], [1], [0, 0, 1, 1], [], []>} : vector<1x512xbf16>, vector<512x256xbf16>, vector<1x256xf32> -> vector<1x256xf32>
      %c0_39 = arith.constant 0 : index
      %c0_40 = arith.constant 0 : index
      %48 = vector.load %arg12[%c0_39, %c0_40] : memref<1x256xf32, #tpu.memory_space<vmem>>, vector<1x256xf32>
      %49 = arith.addf %47, %48 : vector<1x256xf32>
      %cst_41 = arith.constant 0.000000e+00 : f32
      %50 = vector.broadcast %cst_41 : f32 to vector<1x256xf32>
      %51 = arith.maximumf %49, %50 : vector<1x256xf32>
      %52 = arith.truncf %51 : vector<1x256xf32> to vector<1x256xbf16>
      %c0_42 = arith.constant 0 : index
      %c0_43 = arith.constant 0 : index
      %53 = vector.load %arg13[%c0_42, %c0_43] : memref<256x81xbf16, #tpu.memory_space<vmem>>, vector<256x81xbf16>
      %cst_44 = arith.constant dense<0.000000e+00> : vector<1x81xf32>
      %54 = tpu.matmul %52, %53, %cst_44 {dimension_numbers = #tpu.dot_dimension_numbers<[1], [0], [0], [1], [0, 0, 1, 1], [], []>} : vector<1x256xbf16>, vector<256x81xbf16>, vector<1x81xf32> -> vector<1x81xf32>
      %c0_45 = arith.constant 0 : index
      %c0_46 = arith.constant 0 : index
      %55 = vector.load %arg14[%c0_45, %c0_46] : memref<1x81xf32, #tpu.memory_space<vmem>>, vector<1x81xf32>
      %56 = arith.addf %54, %55 : vector<1x81xf32>
      %57 = vector.shape_cast %56 : vector<1x81xf32> to vector<1x1x81xf32>
      %c0_47 = arith.constant 0 : index
      %c0_48 = arith.constant 0 : index
      %c0_49 = arith.constant 0 : index
      %58 = vector.load %arg15[%c0_47, %c0_48, %c0_49] : memref<1x1x81xf32, #tpu.memory_space<vmem>>, vector<1x1x81xf32>
      tpu.vector_store %arg15[%c0_47, %c0_48, %c0_49], %57 {strides = array<i32>} : memref<1x1x81xf32, #tpu.memory_space<vmem>>, vector<1x1x81xf32>,
    } else {
    }
    return
  }
  func.func @transform_0(%arg0: i32, %arg1: i32) -> (i32, i32, i32) {
    %c0_i32 = arith.constant 0 : i32
    %c0_i32_0 = arith.constant 0 : i32
    return %arg0, %arg1, %c0_i32 : i32, i32, i32
  }
  func.func @transform_1(%arg0: i32, %arg1: i32) -> (i32, i32, i32) {
    %c0_i32 = arith.constant 0 : i32
    %c0_i32_0 = arith.constant 0 : i32
    %c0_i32_1 = arith.constant 0 : i32
    %c0_i32_2 = arith.constant 0 : i32
    return %c0_i32, %c0_i32_0, %c0_i32_1 : i32, i32, i32
  }
  func.func @transform_2(%arg0: i32, %arg1: i32) -> (i32, i32) {
    %c0_i32 = arith.constant 0 : i32
    %c0_i32_0 = arith.constant 0 : i32
    %c0_i32_1 = arith.constant 0 : i32
    return %c0_i32, %c0_i32_0 : i32, i32
  }
  func.func @transform_3(%arg0: i32, %arg1: i32) -> (i32, i32) {
    %c0_i32 = arith.constant 0 : i32
    %c0_i32_0 = arith.constant 0 : i32
    %c0_i32_1 = arith.constant 0 : i32
    return %c0_i32, %c0_i32_0 : i32, i32
  }
  func.func @transform_4(%arg0: i32, %arg1: i32) -> (i32, i32) {
    %c0_i32 = arith.constant 0 : i32
    %c0_i32_0 = arith.constant 0 : i32
    %c0_i32_1 = arith.constant 0 : i32
    return %c0_i32, %c0_i32_0 : i32, i32
  }
  func.func @transform_5(%arg0: i32, %arg1: i32) -> (i32, i32) {
    %c0_i32 = arith.constant 0 : i32
    %c0_i32_0 = arith.constant 0 : i32
    %c0_i32_1 = arith.constant 0 : i32
    return %c0_i32, %c0_i32_0 : i32, i32
  }
  func.func @transform_6(%arg0: i32, %arg1: i32) -> (i32, i32) {
    %c0_i32 = arith.constant 0 : i32
    %c0_i32_0 = arith.constant 0 : i32
    %c0_i32_1 = arith.constant 0 : i32
    return %c0_i32, %c0_i32_0 : i32, i32
  }
  func.func @transform_7(%arg0: i32, %arg1: i32) -> (i32, i32) {
    %c0_i32 = arith.constant 0 : i32
    %c0_i32_0 = arith.constant 0 : i32
    %c0_i32_1 = arith.constant 0 : i32
    return %c0_i32, %c0_i32_0 : i32, i32
  }
  func.func @transform_8(%arg0: i32, %arg1: i32) -> (i32, i32) {
    %c0_i32 = arith.constant 0 : i32
    %c0_i32_0 = arith.constant 0 : i32
    %c0_i32_1 = arith.constant 0 : i32
    return %c0_i32, %c0_i32_0 : i32, i32
  }
  func.func @transform_9(%arg0: i32, %arg1: i32) -> (i32, i32) {
    %c0_i32 = arith.constant 0 : i32
    %c0_i32_0 = arith.constant 0 : i32
    %c0_i32_1 = arith.constant 0 : i32
    return %c0_i32, %c0_i32_0 : i32, i32
  }
  func.func @transform_10(%arg0: i32, %arg1: i32) -> (i32, i32) {
    %c0_i32 = arith.constant 0 : i32
    %c0_i32_0 = arith.constant 0 : i32
    %c0_i32_1 = arith.constant 0 : i32
    return %c0_i32, %c0_i32_0 : i32, i32
  }
  func.func @transform_11(%arg0: i32, %arg1: i32) -> (i32, i32) {
    %c0_i32 = arith.constant 0 : i32
    %c0_i32_0 = arith.constant 0 : i32
    %c0_i32_1 = arith.constant 0 : i32
    return %c0_i32, %c0_i32_0 : i32, i32
  }
  func.func @transform_12(%arg0: i32, %arg1: i32) -> (i32, i32) {
    %c0_i32 = arith.constant 0 : i32
    %c0_i32_0 = arith.constant 0 : i32
    %c0_i32_1 = arith.constant 0 : i32
    return %c0_i32, %c0_i32_0 : i32, i32
  }
  func.func @transform_13(%arg0: i32, %arg1: i32) -> (i32, i32, i32) {
    %c0_i32 = arith.constant 0 : i32
    %c0_i32_0 = arith.constant 0 : i32
    %c0_i32_1 = arith.constant 0 : i32
    return %arg0, %c0_i32, %c0_i32_0 : i32, i32, i32
  }
}

module attributes {stable_mosaic.version = 11 : i64} {
  func.func @_pointnet_stage_kernel(%arg0: i32, %arg1: i32, %arg2: memref<1x256x9xbf16, #tpu.memory_space<vmem>>, %arg3: memref<1x9x64xbf16, #tpu.memory_space<vmem>>, %arg4: memref<1x64xf32, #tpu.memory_space<vmem>>, %arg5: memref<64x128xbf16, #tpu.memory_space<vmem>>, %arg6: memref<1x128xf32, #tpu.memory_space<vmem>>, %arg7: memref<128x1024xbf16, #tpu.memory_space<vmem>>, %arg8: memref<1x1024xf32, #tpu.memory_space<vmem>>, %arg9: memref<1024x512xbf16, #tpu.memory_space<vmem>>, %arg10: memref<1x512xf32, #tpu.memory_space<vmem>>, %arg11: memref<512x256xbf16, #tpu.memory_space<vmem>>, %arg12: memref<1x256xf32, #tpu.memory_space<vmem>>, %arg13: memref<256x40xbf16, #tpu.memory_space<vmem>>, %arg14: memref<1x40xf32, #tpu.memory_space<vmem>>, %arg15: memref<1x1x40xf32, #tpu.memory_space<vmem>>, %arg16: memref<1x1024xf32, #tpu.memory_space<vmem>>) attributes {dimension_semantics = [#tpu.dimension_semantics<parallel>, #tpu.dimension_semantics<arbitrary>], iteration_bounds = array<i64: 2, 1>, scalar_prefetch = 0 : i64, scratch_operands = 1 : i64, tpu.core_type = #tpu.core_type<tc>, window_params = [{transform_indices = @transform_0, window_bounds = array<i64: 1, 256, 9>}, {transform_indices = @transform_1, window_bounds = array<i64: 1, 9, 64>}, {pipeline_mode = #tpu.pipeline_mode<synchronous>, transform_indices = @transform_2, window_bounds = array<i64: 1, 64>}, {pipeline_mode = #tpu.pipeline_mode<synchronous>, transform_indices = @transform_3, window_bounds = array<i64: 64, 128>}, {pipeline_mode = #tpu.pipeline_mode<synchronous>, transform_indices = @transform_4, window_bounds = array<i64: 1, 128>}, {pipeline_mode = #tpu.pipeline_mode<synchronous>, transform_indices = @transform_5, window_bounds = array<i64: 128, 1024>}, {pipeline_mode = #tpu.pipeline_mode<synchronous>, transform_indices = @transform_6, window_bounds = array<i64: 1, 1024>}, {pipeline_mode = #tpu.pipeline_mode<synchronous>, transform_indices = @transform_7, window_bounds = array<i64: 1024, 512>}, {pipeline_mode = #tpu.pipeline_mode<synchronous>, transform_indices = @transform_8, window_bounds = array<i64: 1, 512>}, {pipeline_mode = #tpu.pipeline_mode<synchronous>, transform_indices = @transform_9, window_bounds = array<i64: 512, 256>}, {pipeline_mode = #tpu.pipeline_mode<synchronous>, transform_indices = @transform_10, window_bounds = array<i64: 1, 256>}, {pipeline_mode = #tpu.pipeline_mode<synchronous>, transform_indices = @transform_11, window_bounds = array<i64: 256, 40>}, {pipeline_mode = #tpu.pipeline_mode<synchronous>, transform_indices = @transform_12, window_bounds = array<i64: 1, 40>}, {transform_indices = @transform_13, window_bounds = array<i64: 1, 1, 40>}]} {
    %c0_i32 = arith.constant 0 : i32
    %0 = arith.cmpi eq, %arg1, %c0_i32 : i32
    %1 = arith.extui %0 : i1 to i32
    %c0_i32_0 = arith.constant 0 : i32
    %2 = arith.cmpi ne, %1, %c0_i32_0 : i32
    scf.if %2 {
      %cst_27 = arith.constant 0xFF800000 : f32
      %35 = vector.broadcast %cst_27 : f32 to vector<1x1024xf32>
      %c0_28 = arith.constant 0 : index
      %c0_29 = arith.constant 0 : index
      %36 = vector.load %arg16[%c0_28, %c0_29] : memref<1x1024xf32, #tpu.memory_space<vmem>>, vector<1x1024xf32>
      tpu.vector_store %arg16[%c0_28, %c0_29], %35 {strides = array<i32>} : memref<1x1024xf32, #tpu.memory_space<vmem>>, vector<1x1024xf32>,
    } else {
    }
    %c0 = arith.constant 0 : index
    %c0_1 = arith.constant 0 : index
    %c0_2 = arith.constant 0 : index
    %3 = vector.load %arg2[%c0, %c0_1, %c0_2] : memref<1x256x9xbf16, #tpu.memory_space<vmem>>, vector<1x256x9xbf16>
    %4 = vector.shape_cast %3 : vector<1x256x9xbf16> to vector<256x9xbf16>
    %c0_3 = arith.constant 0 : index
    %c0_4 = arith.constant 0 : index
    %c0_5 = arith.constant 0 : index
    %5 = vector.load %arg3[%c0_3, %c0_4, %c0_5] : memref<1x9x64xbf16, #tpu.memory_space<vmem>>, vector<1x9x64xbf16>
    %6 = vector.shape_cast %5 : vector<1x9x64xbf16> to vector<9x64xbf16>
    %cst = arith.constant dense<0.000000e+00> : vector<256x64xf32>
    %7 = tpu.matmul %4, %6, %cst {dimension_numbers = #tpu.dot_dimension_numbers<[1], [0], [0], [1], [0, 0, 1, 1], [], []>} : vector<256x9xbf16>, vector<9x64xbf16>, vector<256x64xf32> -> vector<256x64xf32>
    %c0_6 = arith.constant 0 : index
    %c0_7 = arith.constant 0 : index
    %8 = vector.load %arg4[%c0_6, %c0_7] : memref<1x64xf32, #tpu.memory_space<vmem>>, vector<1x64xf32>
    %9 = vector.broadcast %8 : vector<1x64xf32> to vector<256x64xf32>
    %10 = arith.addf %7, %9 : vector<256x64xf32>
    %cst_8 = arith.constant 0.000000e+00 : f32
    %11 = vector.broadcast %cst_8 : f32 to vector<256x64xf32>
    %12 = arith.maximumf %10, %11 : vector<256x64xf32>
    %13 = arith.truncf %12 : vector<256x64xf32> to vector<256x64xbf16>
    %c0_9 = arith.constant 0 : index
    %c0_10 = arith.constant 0 : index
    %14 = vector.load %arg5[%c0_9, %c0_10] : memref<64x128xbf16, #tpu.memory_space<vmem>>, vector<64x128xbf16>
    %cst_11 = arith.constant dense<0.000000e+00> : vector<256x128xf32>
    %15 = tpu.matmul %13, %14, %cst_11 {dimension_numbers = #tpu.dot_dimension_numbers<[1], [0], [0], [1], [0, 0, 1, 1], [], []>} : vector<256x64xbf16>, vector<64x128xbf16>, vector<256x128xf32> -> vector<256x128xf32>
    %c0_12 = arith.constant 0 : index
    %c0_13 = arith.constant 0 : index
    %16 = vector.load %arg6[%c0_12, %c0_13] : memref<1x128xf32, #tpu.memory_space<vmem>>, vector<1x128xf32>
    %17 = vector.broadcast %16 : vector<1x128xf32> to vector<256x128xf32>
    %18 = arith.addf %15, %17 : vector<256x128xf32>
    %cst_14 = arith.constant 0.000000e+00 : f32
    %19 = vector.broadcast %cst_14 : f32 to vector<256x128xf32>
    %20 = arith.maximumf %18, %19 : vector<256x128xf32>
    %21 = arith.truncf %20 : vector<256x128xf32> to vector<256x128xbf16>
    %c0_15 = arith.constant 0 : index
    %c0_16 = arith.constant 0 : index
    %22 = vector.load %arg7[%c0_15, %c0_16] : memref<128x1024xbf16, #tpu.memory_space<vmem>>, vector<128x1024xbf16>
    %cst_17 = arith.constant dense<0.000000e+00> : vector<256x1024xf32>
    %23 = tpu.matmul %21, %22, %cst_17 {dimension_numbers = #tpu.dot_dimension_numbers<[1], [0], [0], [1], [0, 0, 1, 1], [], []>} : vector<256x128xbf16>, vector<128x1024xbf16>, vector<256x1024xf32> -> vector<256x1024xf32>
    %c0_18 = arith.constant 0 : index
    %c0_19 = arith.constant 0 : index
    %24 = vector.load %arg8[%c0_18, %c0_19] : memref<1x1024xf32, #tpu.memory_space<vmem>>, vector<1x1024xf32>
    %25 = vector.broadcast %24 : vector<1x1024xf32> to vector<256x1024xf32>
    %26 = arith.addf %23, %25 : vector<256x1024xf32>
    %cst_20 = arith.constant dense<0xFF800000> : vector<1024xf32>
    %27 = vector.multi_reduction <maximumf>, %26, %cst_20 [0] : vector<256x1024xf32> to vector<1024xf32>
    %28 = vector.shape_cast %27 : vector<1024xf32> to vector<1x1024xf32>
    %c0_21 = arith.constant 0 : index
    %c0_22 = arith.constant 0 : index
    %29 = vector.load %arg16[%c0_21, %c0_22] : memref<1x1024xf32, #tpu.memory_space<vmem>>, vector<1x1024xf32>
    %30 = arith.maximumf %29, %28 : vector<1x1024xf32>
    %c0_23 = arith.constant 0 : index
    %c0_24 = arith.constant 0 : index
    %31 = vector.load %arg16[%c0_23, %c0_24] : memref<1x1024xf32, #tpu.memory_space<vmem>>, vector<1x1024xf32>
    tpu.vector_store %arg16[%c0_23, %c0_24], %30 {strides = array<i32>} : memref<1x1024xf32, #tpu.memory_space<vmem>>, vector<1x1024xf32>,
    %c0_i32_25 = arith.constant 0 : i32
    %32 = arith.cmpi eq, %arg1, %c0_i32_25 : i32
    %33 = arith.extui %32 : i1 to i32
    %c0_i32_26 = arith.constant 0 : i32
    %34 = arith.cmpi ne, %33, %c0_i32_26 : i32
    scf.if %34 {
      %c0_27 = arith.constant 0 : index
      %c0_28 = arith.constant 0 : index
      %35 = vector.load %arg16[%c0_27, %c0_28] : memref<1x1024xf32, #tpu.memory_space<vmem>>, vector<1x1024xf32>
      %36 = arith.truncf %35 : vector<1x1024xf32> to vector<1x1024xbf16>
      %c0_29 = arith.constant 0 : index
      %c0_30 = arith.constant 0 : index
      %37 = vector.load %arg9[%c0_29, %c0_30] : memref<1024x512xbf16, #tpu.memory_space<vmem>>, vector<1024x512xbf16>
      %cst_31 = arith.constant dense<0.000000e+00> : vector<1x512xf32>
      %38 = tpu.matmul %36, %37, %cst_31 {dimension_numbers = #tpu.dot_dimension_numbers<[1], [0], [0], [1], [0, 0, 1, 1], [], []>} : vector<1x1024xbf16>, vector<1024x512xbf16>, vector<1x512xf32> -> vector<1x512xf32>
      %c0_32 = arith.constant 0 : index
      %c0_33 = arith.constant 0 : index
      %39 = vector.load %arg10[%c0_32, %c0_33] : memref<1x512xf32, #tpu.memory_space<vmem>>, vector<1x512xf32>
      %40 = arith.addf %38, %39 : vector<1x512xf32>
      %cst_34 = arith.constant 0.000000e+00 : f32
      %41 = vector.broadcast %cst_34 : f32 to vector<1x512xf32>
      %42 = arith.maximumf %40, %41 : vector<1x512xf32>
      %43 = arith.truncf %42 : vector<1x512xf32> to vector<1x512xbf16>
      %c0_35 = arith.constant 0 : index
      %c0_36 = arith.constant 0 : index
      %44 = vector.load %arg11[%c0_35, %c0_36] : memref<512x256xbf16, #tpu.memory_space<vmem>>, vector<512x256xbf16>
      %cst_37 = arith.constant dense<0.000000e+00> : vector<1x256xf32>
      %45 = tpu.matmul %43, %44, %cst_37 {dimension_numbers = #tpu.dot_dimension_numbers<[1], [0], [0], [1], [0, 0, 1, 1], [], []>} : vector<1x512xbf16>, vector<512x256xbf16>, vector<1x256xf32> -> vector<1x256xf32>
      %c0_38 = arith.constant 0 : index
      %c0_39 = arith.constant 0 : index
      %46 = vector.load %arg12[%c0_38, %c0_39] : memref<1x256xf32, #tpu.memory_space<vmem>>, vector<1x256xf32>
      %47 = arith.addf %45, %46 : vector<1x256xf32>
      %cst_40 = arith.constant 0.000000e+00 : f32
      %48 = vector.broadcast %cst_40 : f32 to vector<1x256xf32>
      %49 = arith.maximumf %47, %48 : vector<1x256xf32>
      %50 = arith.truncf %49 : vector<1x256xf32> to vector<1x256xbf16>
      %c0_41 = arith.constant 0 : index
      %c0_42 = arith.constant 0 : index
      %51 = vector.load %arg13[%c0_41, %c0_42] : memref<256x40xbf16, #tpu.memory_space<vmem>>, vector<256x40xbf16>
      %cst_43 = arith.constant dense<0.000000e+00> : vector<1x40xf32>
      %52 = tpu.matmul %50, %51, %cst_43 {dimension_numbers = #tpu.dot_dimension_numbers<[1], [0], [0], [1], [0, 0, 1, 1], [], []>} : vector<1x256xbf16>, vector<256x40xbf16>, vector<1x40xf32> -> vector<1x40xf32>
      %c0_44 = arith.constant 0 : index
      %c0_45 = arith.constant 0 : index
      %53 = vector.load %arg14[%c0_44, %c0_45] : memref<1x40xf32, #tpu.memory_space<vmem>>, vector<1x40xf32>
      %54 = arith.addf %52, %53 : vector<1x40xf32>
      %cst_46 = arith.constant dense<0xFF800000> : vector<1xf32>
      %55 = vector.multi_reduction <maximumf>, %54, %cst_46 [1] : vector<1x40xf32> to vector<1xf32>
      %56 = vector.shape_cast %55 : vector<1xf32> to vector<1x1xf32>
      %57 = vector.broadcast %56 : vector<1x1xf32> to vector<1x40xf32>
      %58 = arith.subf %54, %57 : vector<1x40xf32>
      %59 = math.exp %58 : vector<1x40xf32>
      %cst_47 = arith.constant dense<0.000000e+00> : vector<1xf32>
      %60 = vector.multi_reduction <add>, %59, %cst_47 [1] : vector<1x40xf32> to vector<1xf32>
      %61 = vector.shape_cast %60 : vector<1xf32> to vector<1x1xf32>
      %62 = math.log %61 : vector<1x1xf32>
      %63 = vector.broadcast %62 : vector<1x1xf32> to vector<1x40xf32>
      %64 = arith.subf %58, %63 : vector<1x40xf32>
      %65 = vector.shape_cast %64 : vector<1x40xf32> to vector<1x1x40xf32>
      %c0_48 = arith.constant 0 : index
      %c0_49 = arith.constant 0 : index
      %c0_50 = arith.constant 0 : index
      %66 = vector.load %arg15[%c0_48, %c0_49, %c0_50] : memref<1x1x40xf32, #tpu.memory_space<vmem>>, vector<1x1x40xf32>
      tpu.vector_store %arg15[%c0_48, %c0_49, %c0_50], %65 {strides = array<i32>} : memref<1x1x40xf32, #tpu.memory_space<vmem>>, vector<1x1x40xf32>,
    } else {
    }
    return
  }
  func.func @transform_0(%arg0: i32, %arg1: i32) -> (i32, i32, i32) {
    %c0_i32 = arith.constant 0 : i32
    %c0_i32_0 = arith.constant 0 : i32
    return %arg0, %arg1, %c0_i32 : i32, i32, i32
  }
  func.func @transform_1(%arg0: i32, %arg1: i32) -> (i32, i32, i32) {
    %c0_i32 = arith.constant 0 : i32
    %c0_i32_0 = arith.constant 0 : i32
    %c0_i32_1 = arith.constant 0 : i32
    return %arg0, %c0_i32, %c0_i32_0 : i32, i32, i32
  }
  func.func @transform_2(%arg0: i32, %arg1: i32) -> (i32, i32) {
    %c0_i32 = arith.constant 0 : i32
    %c0_i32_0 = arith.constant 0 : i32
    %c0_i32_1 = arith.constant 0 : i32
    return %c0_i32, %c0_i32_0 : i32, i32
  }
  func.func @transform_3(%arg0: i32, %arg1: i32) -> (i32, i32) {
    %c0_i32 = arith.constant 0 : i32
    %c0_i32_0 = arith.constant 0 : i32
    %c0_i32_1 = arith.constant 0 : i32
    return %c0_i32, %c0_i32_0 : i32, i32
  }
  func.func @transform_4(%arg0: i32, %arg1: i32) -> (i32, i32) {
    %c0_i32 = arith.constant 0 : i32
    %c0_i32_0 = arith.constant 0 : i32
    %c0_i32_1 = arith.constant 0 : i32
    return %c0_i32, %c0_i32_0 : i32, i32
  }
  func.func @transform_5(%arg0: i32, %arg1: i32) -> (i32, i32) {
    %c0_i32 = arith.constant 0 : i32
    %c0_i32_0 = arith.constant 0 : i32
    %c0_i32_1 = arith.constant 0 : i32
    return %c0_i32, %c0_i32_0 : i32, i32
  }
  func.func @transform_6(%arg0: i32, %arg1: i32) -> (i32, i32) {
    %c0_i32 = arith.constant 0 : i32
    %c0_i32_0 = arith.constant 0 : i32
    %c0_i32_1 = arith.constant 0 : i32
    return %c0_i32, %c0_i32_0 : i32, i32
  }
  func.func @transform_7(%arg0: i32, %arg1: i32) -> (i32, i32) {
    %c0_i32 = arith.constant 0 : i32
    %c0_i32_0 = arith.constant 0 : i32
    %c0_i32_1 = arith.constant 0 : i32
    return %c0_i32, %c0_i32_0 : i32, i32
  }
  func.func @transform_8(%arg0: i32, %arg1: i32) -> (i32, i32) {
    %c0_i32 = arith.constant 0 : i32
    %c0_i32_0 = arith.constant 0 : i32
    %c0_i32_1 = arith.constant 0 : i32
    return %c0_i32, %c0_i32_0 : i32, i32
  }
  func.func @transform_9(%arg0: i32, %arg1: i32) -> (i32, i32) {
    %c0_i32 = arith.constant 0 : i32
    %c0_i32_0 = arith.constant 0 : i32
    %c0_i32_1 = arith.constant 0 : i32
    return %c0_i32, %c0_i32_0 : i32, i32
  }
  func.func @transform_10(%arg0: i32, %arg1: i32) -> (i32, i32) {
    %c0_i32 = arith.constant 0 : i32
    %c0_i32_0 = arith.constant 0 : i32
    %c0_i32_1 = arith.constant 0 : i32
    return %c0_i32, %c0_i32_0 : i32, i32
  }
  func.func @transform_11(%arg0: i32, %arg1: i32) -> (i32, i32) {
    %c0_i32 = arith.constant 0 : i32
    %c0_i32_0 = arith.constant 0 : i32
    %c0_i32_1 = arith.constant 0 : i32
    return %c0_i32, %c0_i32_0 : i32, i32
  }
  func.func @transform_12(%arg0: i32, %arg1: i32) -> (i32, i32) {
    %c0_i32 = arith.constant 0 : i32
    %c0_i32_0 = arith.constant 0 : i32
    %c0_i32_1 = arith.constant 0 : i32
    return %c0_i32, %c0_i32_0 : i32, i32
  }
  func.func @transform_13(%arg0: i32, %arg1: i32) -> (i32, i32, i32) {
    %c0_i32 = arith.constant 0 : i32
    %c0_i32_0 = arith.constant 0 : i32
    %c0_i32_1 = arith.constant 0 : i32
    return %arg0, %c0_i32, %c0_i32_0 : i32, i32, i32
  }
}

</mosaic_0001>

<llo_original>
// kernel: squeeze.2
$region0: #{squeeze.2}
  %s0 = inlined_call_operand.vmem [shape: f32[2,81], index: 0, kind: input, shape index: {}]
  %s1 = inlined_call_operand.vmem [shape: f32[2,9,9], index: 1, kind: output, shape index: {}]
  $region1: #{squeeze.2} parent=0
    #allocation0 [shape = 'u8[4096]{0}', space=vmem, size = 0x1000, scoped, tag = 'scoped mem for input reshape']
    %s3 = sshllo.u32 0, 2
    %v4 = vld [vmem:[%s0] sm:%s3]
    %5 = vst [vmem:[#allocation0] sm:%s3] %v4
    %v6 = vld [vmem:[#allocation0] sm:$0x3]
    %vm7 = vcmask 72704
    %8 = vst.msk [vmem:[%s1] ss:$16 sm:$0x3] %vm7, %v6
    %v9 = vld [vmem:[#allocation0] sm:$0x3]
    %10 = vrot.lane.b32.xlu0 %v9, 119
    %v11 = vpop.permute.xlu0 %10
    %vm12 = vcmask 72704
    %s13 = scalar_lea.vmem %s1, 1
    %14 = vst.msk [vmem:[%s13] ss:$16 sm:$0x3] %vm12, %v11
    %v15 = vld [vmem:[#allocation0] sm:$0x3]
    %16 = vrot.lane.b32.xlu0 %v15, 110
    %v17 = vpop.permute.xlu0 %16
    %vm18 = vcmask 72704
    %s19 = scalar_lea.vmem %s1, 2
    %20 = vst.msk [vmem:[%s19] ss:$16 sm:$0x3] %vm18, %v17
    %v21 = vld [vmem:[#allocation0] sm:$0x3]
    %22 = vrot.lane.b32.xlu0 %v21, 101
    %v23 = vpop.permute.xlu0 %22
    %vm24 = vcmask 72704
    %s25 = scalar_lea.vmem %s1, 3
    %26 = vst.msk [vmem:[%s25] ss:$16 sm:$0x3] %vm24, %v23
    %v27 = vld [vmem:[#allocation0] sm:$0x3]
    %28 = vrot.lane.b32.xlu0 %v27, 92
    %v29 = vpop.permute.xlu0 %28
    %vm30 = vcmask 72704
    %s31 = scalar_lea.vmem %s1, 4
    %32 = vst.msk [vmem:[%s31] ss:$16 sm:$0x3] %vm30, %v29
    %v33 = vld [vmem:[#allocation0] sm:$0x3]
    %34 = vrot.lane.b32.xlu0 %v33, 83
    %v35 = vpop.permute.xlu0 %34
    %vm36 = vcmask 72704
    %s37 = scalar_lea.vmem %s1, 5
    %38 = vst.msk [vmem:[%s37] ss:$16 sm:$0x3] %vm36, %v35
    %v39 = vld [vmem:[#allocation0] sm:$0x3]
    %40 = vrot.lane.b32.xlu0 %v39, 74
    %v41 = vpop.permute.xlu0 %40
    %vm42 = vcmask 72704
    %s43 = scalar_lea.vmem %s1, 6
    %44 = vst.msk [vmem:[%s43] ss:$16 sm:$0x3] %vm42, %v41
    %v45 = vld [vmem:[#allocation0] sm:$0x3]
    %46 = vrot.lane.b32.xlu0 %v45, 65
    %v47 = vpop.permute.xlu0 %46
    %vm48 = vcmask 72704
    %s49 = scalar_lea.vmem %s1, 7
    %50 = vst.msk [vmem:[%s49] ss:$16 sm:$0x3] %vm48, %v47
    %v51 = vld [vmem:[#allocation0] sm:$0x3]
    %52 = vrot.lane.b32.xlu0 %v51, 56
    %v53 = vpop.permute.xlu0 %52
    %vm54 = vcmask 72704
    %s55 = scalar_lea.vmem %s1, 8
    %56 = vst.msk [vmem:[%s55] ss:$16 sm:$0x3] %vm54, %v53

// kernel: pointnet_cls_forward.2
$region0: #{pointnet_cls_forward.2}
  #allocation0 [shape = 'u32[]', space=smem, size = 0x4, offset = 0x4, fixed_abs, tag = 'smem constant byte address 0x4 - core index']
  #allocation1 [shape = 'u32[144,128]{1,0:T(1,128)}', space=vmem, size = 0x12000, scoped, tag = 'internal scratch']
  #allocation2 [shape = 'f32[1,1024]{1,0:T(1,128)}', space=vmem, size = 0x1000, scoped, tag = 'scratch operand']
  %s0 = inlined_call_operand.vmem [shape: bf16[2,256,9], index: 0, kind: input, shape index: {}]
  %s1 = inlined_call_operand.vmem [shape: bf16[1,9,64], index: 1, kind: input, shape index: {}]
  %s2 = inlined_call_operand.vmem [shape: f32[1,64], index: 2, kind: input, shape index: {}]
  %s3 = inlined_call_operand.vmem [shape: bf16[64,128], index: 3, kind: input, shape index: {}]
  %s4 = inlined_call_operand.vmem [shape: f32[1,128], index: 4, kind: input, shape index: {}]
  %s5 = inlined_call_operand.vmem [shape: bf16[128,1024], index: 5, kind: input, shape index: {}]
  %s6 = inlined_call_operand.vmem [shape: f32[1,1024], index: 6, kind: input, shape index: {}]
  %s7 = inlined_call_operand.vmem [shape: bf16[1024,512], index: 7, kind: input, shape index: {}]
  %s8 = inlined_call_operand.vmem [shape: f32[1,512], index: 8, kind: input, shape index: {}]
  %s9 = inlined_call_operand.vmem [shape: bf16[512,256], index: 9, kind: input, shape index: {}]
  %s10 = inlined_call_operand.vmem [shape: f32[1,256], index: 10, kind: input, shape index: {}]
  %s11 = inlined_call_operand.vmem [shape: bf16[256,81], index: 11, kind: input, shape index: {}]
  %s12 = inlined_call_operand.vmem [shape: f32[1,81], index: 12, kind: input, shape index: {}]
  %s13 = inlined_call_operand.vmem [shape: f32[2,1,81], index: 13, kind: output, shape index: {}]
  %s14 = sld [smem:[#allocation0]]
  $region93: #{pointnet_cls_forward.2} parent=0
    _
  %s16 = ssub.s32 1, %s14
  %s17 = scalar_select 0, %s16, %s14
  loop: start=0, step=1, limit=4
  $region2: #{pointnet_cls_forward.2} parent=0 // loop_pre_header
    _
  $region3: #{pointnet_cls_forward.2} parent=0 // loop_header
    %s19 = sphi 0, %s23
    %p20 = scmp.ge.s32.totalorder %s19, 4
    %s26 = sphi 0, %s38
    %s27 = sphi 0, %s34
    %s28 = sphi 0, %s26
    %s29 = sphi 0, %s27
    %s30 = sphi 0, %s28
    %s31 = sphi 0, %s29
    %s43 = sphi 0, %s45
    %s46 = sphi 0, %s43
    %s47 = sphi 0, %s46
    %s63 = sphi 0, %s47
    %s67 = sphi 0, %s67
    %s69 = sphi 0, %s67
    %s70 = sphi 0, %s69
    %s84 = sphi 0, %s70
    %s88 = sphi 0, %s88
    %s90 = sphi 0, %s88
    %s91 = sphi 0, %s90
    %s105 = sphi 0, %s91
    %s109 = sphi 0, %s109
    %s111 = sphi 0, %s109
    %s112 = sphi 0, %s111
    %s126 = sphi 0, %s112
    %s130 = sphi 0, %s130
    %s132 = sphi 0, %s130
    %s133 = sphi 0, %s132
    %s147 = sphi 0, %s133
    %s151 = sphi 0, %s151
    %s153 = sphi 0, %s151
    %s154 = sphi 0, %s153
    %s168 = sphi 0, %s154
    %s172 = sphi 0, %s172
    %s174 = sphi 0, %s172
    %s175 = sphi 0, %s174
    %s189 = sphi 0, %s175
    %s193 = sphi 0, %s193
    %s195 = sphi 0, %s193
    %s196 = sphi 0, %s195
    %s210 = sphi 0, %s196
    %s214 = sphi 0, %s214
    %s216 = sphi 0, %s214
    %s217 = sphi 0, %s216
    %s231 = sphi 0, %s217
    %s235 = sphi 0, %s235
    %s237 = sphi 0, %s235
    %s238 = sphi 0, %s237
    %s252 = sphi 0, %s238
    %s256 = sphi 0, %s256
    %s258 = sphi 0, %s256
    %s259 = sphi 0, %s258
    %s273 = sphi 0, %s259
    %s277 = sphi 0, %s277
    %s279 = sphi 0, %s277
    %s280 = sphi 0, %s279
    %s294 = sphi 0, %s280
    %s298 = sphi 0, %s298
    %s300 = sphi 0, %s298
    %s301 = sphi 0, %s300
    %s315 = sphi 0, %s301
    %s321 = sphi 0, %s323
    %s324 = sphi 0, %s321
    %s325 = sphi 0, %s324
    %s341 = sphi 0, %s325
  $region4: #{pointnet_cls_forward.2} parent=0 // loop_header_branch
    %22 = sbr.rel (%p20) target = $region8
  $region5: #{pointnet_cls_forward.2} parent=0 // loop_body
    %s24 = ssub.s32 %s19, 1
    %s25 = ssub.s32 %s19, 2
    %s32 = sadd.s32 1, %s27
    %p33 = scmp.ge.s32.totalorder %s32, 1
    %s34 = scalar_select %p33, 0, %s32
    %s35 = sadd.s32 1, %s26
    %s36 = scalar_select %p33, %s35, %s26
    %p37 = scmp.ge.s32.totalorder %s36, 2
    %s38 = scalar_select %p37, 0, %s36
    %s39 = ssub.s32 %s26, %s38
    %s40 = ssub.s32 %s27, %s34
    %s41 = sor.u32 %s39, %s40
    %p42 = scmp.eq.s32.totalorder %s41, 0
    %s44 = sadd.s32 %s43, 1
    %s45 = scalar_select %p42, %s43, %s44
    %p48 = pneg %p42
    %p49 = scmp.eq.s32.totalorder %s19, 1
    %p50 = por %p48, %p49
    %p51 = scmp.ne.s32.totalorder %s43, %s46
    %p52 = scmp.eq.s32.totalorder %s19, 0
    %p53 = por %p51, %p52
    %p54 = scmp.ne.s32.totalorder %s43, %s46
    %p55 = scmp.eq.s32.totalorder %s24, 1
    %p56 = por %p54, %p55
    %p57 = scmp.ne.s32.totalorder %s46, %s47
    %p58 = scmp.eq.s32.totalorder %s24, 0
    %p59 = por %p57, %p58
    %p60 = scmp.ne.s32.totalorder %s46, %s47
    %p61 = scmp.eq.s32.totalorder %s25, 1
    %p62 = por %p60, %p61
    %p64 = scmp.ne.s32.totalorder %s47, %s63
    %p65 = scmp.eq.s32.totalorder %s25, 0
    %p66 = por %p64, %p65
    %s68 = sadd.s32 %s67, 1
    %p71 = scmp.eq.s32.totalorder %s19, 1
    %p72 = scmp.ne.s32.totalorder %s67, %s69
    %p73 = scmp.eq.s32.totalorder %s19, 0
    %p74 = por %p72, %p73
    %p75 = scmp.ne.s32.totalorder %s67, %s69
    %p76 = scmp.eq.s32.totalorder %s24, 1
    %p77 = por %p75, %p76
    %p78 = scmp.ne.s32.totalorder %s69, %s70
    %p79 = scmp.eq.s32.totalorder %s24, 0
    %p80 = por %p78, %p79
    %p81 = scmp.ne.s32.totalorder %s69, %s70
    %p82 = scmp.eq.s32.totalorder %s25, 1
    %p83 = por %p81, %p82
    %p85 = scmp.ne.s32.totalorder %s70, %s84
    %p86 = scmp.eq.s32.totalorder %s25, 0
    %p87 = por %p85, %p86
    %s89 = sadd.s32 %s88, 1
    %p92 = scmp.eq.s32.totalorder %s19, 1
    %p93 = scmp.ne.s32.totalorder %s88, %s90
    %p94 = scmp.eq.s32.totalorder %s19, 0
    %p95 = por %p93, %p94
    %p96 = scmp.ne.s32.totalorder %s88, %s90
    %p97 = scmp.eq.s32.totalorder %s24, 1
    %p98 = por %p96, %p97
    %p99 = scmp.ne.s32.totalorder %s90, %s91
    %p100 = scmp.eq.s32.totalorder %s24, 0
    %p101 = por %p99, %p100
    %p102 = scmp.ne.s32.totalorder %s90, %s91
    %p103 = scmp.eq.s32.totalorder %s25, 1
    %p104 = por %p102, %p103
    %p106 = scmp.ne.s32.totalorder %s91, %s105
    %p107 = scmp.eq.s32.totalorder %s25, 0
    %p108 = por %p106, %p107
    %s110 = sadd.s32 %s109, 1
    %p113 = scmp.eq.s32.totalorder %s19, 1
    %p114 = scmp.ne.s32.totalorder %s109, %s111
    %p115 = scmp.eq.s32.totalorder %s19, 0
    %p116 = por %p114, %p115
    %p117 = scmp.ne.s32.totalorder %s109, %s111
    %p118 = scmp.eq.s32.totalorder %s24, 1
    %p119 = por %p117, %p118
    %p120 = scmp.ne.s32.totalorder %s111, %s112
    %p121 = scmp.eq.s32.totalorder %s24, 0
    %p122 = por %p120, %p121
    %p123 = scmp.ne.s32.totalorder %s111, %s112
    %p124 = scmp.eq.s32.totalorder %s25, 1
    %p125 = por %p123, %p124
    %p127 = scmp.ne.s32.totalorder %s112, %s126
    %p128 = scmp.eq.s32.totalorder %s25, 0
    %p129 = por %p127, %p128
    %s131 = sadd.s32 %s130, 1
    %p134 = scmp.eq.s32.totalorder %s19, 1
    %p135 = scmp.ne.s32.totalorder %s130, %s132
    %p136 = scmp.eq.s32.totalorder %s19, 0
    %p137 = por %p135, %p136
    %p138 = scmp.ne.s32.totalorder %s130, %s132
    %p139 = scmp.eq.s32.totalorder %s24, 1
    %p140 = por %p138, %p139
    %p141 = scmp.ne.s32.totalorder %s132, %s133
    %p142 = scmp.eq.s32.totalorder %s24, 0
    %p143 = por %p141, %p142
    %p144 = scmp.ne.s32.totalorder %s132, %s133
    %p145 = scmp.eq.s32.totalorder %s25, 1
    %p146 = por %p144, %p145
    %p148 = scmp.ne.s32.totalorder %s133, %s147
    %p149 = scmp.eq.s32.totalorder %s25, 0
    %p150 = por %p148, %p149
    %s152 = sadd.s32 %s151, 1
    %p155 = scmp.eq.s32.totalorder %s19, 1
    %p156 = scmp.ne.s32.totalorder %s151, %s153
    %p157 = scmp.eq.s32.totalorder %s19, 0
    %p158 = por %p156, %p157
    %p159 = scmp.ne.s32.totalorder %s151, %s153
    %p160 = scmp.eq.s32.totalorder %s24, 1
    %p161 = por %p159, %p160
    %p162 = scmp.ne.s32.totalorder %s153, %s154
    %p163 = scmp.eq.s32.totalorder %s24, 0
    %p164 = por %p162, %p163
    %p165 = scmp.ne.s32.totalorder %s153, %s154
    %p166 = scmp.eq.s32.totalorder %s25, 1
    %p167 = por %p165, %p166
    %p169 = scmp.ne.s32.totalorder %s154, %s168
    %p170 = scmp.eq.s32.totalorder %s25, 0
    %p171 = por %p169, %p170
    %s173 = sadd.s32 %s172, 1
    %p176 = scmp.eq.s32.totalorder %s19, 1
    %p177 = scmp.ne.s32.totalorder %s172, %s174
    %p178 = scmp.eq.s32.totalorder %s19, 0
    %p179 = por %p177, %p178
    %p180 = scmp.ne.s32.totalorder %s172, %s174
    %p181 = scmp.eq.s32.totalorder %s24, 1
    %p182 = por %p180, %p181
    %p183 = scmp.ne.s32.totalorder %s174, %s175
    %p184 = scmp.eq.s32.totalorder %s24, 0
    %p185 = por %p183, %p184
    %p186 = scmp.ne.s32.totalorder %s174, %s175
    %p187 = scmp.eq.s32.totalorder %s25, 1
    %p188 = por %p186, %p187
    %p190 = scmp.ne.s32.totalorder %s175, %s189
    %p191 = scmp.eq.s32.totalorder %s25, 0
    %p192 = por %p190, %p191
    %s194 = sadd.s32 %s193, 1
    %p197 = scmp.eq.s32.totalorder %s19, 1
    %p198 = scmp.ne.s32.totalorder %s193, %s195
    %p199 = scmp.eq.s32.totalorder %s19, 0
    %p200 = por %p198, %p199
    %p201 = scmp.ne.s32.totalorder %s193, %s195
    %p202 = scmp.eq.s32.totalorder %s24, 1
    %p203 = por %p201, %p202
    %p204 = scmp.ne.s32.totalorder %s195, %s196
    %p205 = scmp.eq.s32.totalorder %s24, 0
    %p206 = por %p204, %p205
    %p207 = scmp.ne.s32.totalorder %s195, %s196
    %p208 = scmp.eq.s32.totalorder %s25, 1
    %p209 = por %p207, %p208
    %p211 = scmp.ne.s32.totalorder %s196, %s210
    %p212 = scmp.eq.s32.totalorder %s25, 0
    %p213 = por %p211, %p212
    %s215 = sadd.s32 %s214, 1
    %p218 = scmp.eq.s32.totalorder %s19, 1
    %p219 = scmp.ne.s32.totalorder %s214, %s216
    %p220 = scmp.eq.s32.totalorder %s19, 0
    %p221 = por %p219, %p220
    %p222 = scmp.ne.s32.totalorder %s214, %s216
    %p223 = scmp.eq.s32.totalorder %s24, 1
    %p224 = por %p222, %p223
    %p225 = scmp.ne.s32.totalorder %s216, %s217
    %p226 = scmp.eq.s32.totalorder %s24, 0
    %p227 = por %p225, %p226
    %p228 = scmp.ne.s32.totalorder %s216, %s217
    %p229 = scmp.eq.s32.totalorder %s25, 1
    %p230 = por %p228, %p229
    %p232 = scmp.ne.s32.totalorder %s217, %s231
    %p233 = scmp.eq.s32.totalorder %s25, 0
    %p234 = por %p232, %p233
    %s236 = sadd.s32 %s235, 1
    %p239 = scmp.eq.s32.totalorder %s19, 1
    %p240 = scmp.ne.s32.totalorder %s235, %s237
    %p241 = scmp.eq.s32.totalorder %s19, 0
    %p242 = por %p240, %p241
    %p243 = scmp.ne.s32.totalorder %s235, %s237
    %p244 = scmp.eq.s32.totalorder %s24, 1
    %p245 = por %p243, %p244
    %p246 = scmp.ne.s32.totalorder %s237, %s238
    %p247 = scmp.eq.s32.totalorder %s24, 0
    %p248 = por %p246, %p247
    %p249 = scmp.ne.s32.totalorder %s237, %s238
    %p250 = scmp.eq.s32.totalorder %s25, 1
    %p251 = por %p249, %p250
    %p253 = scmp.ne.s32.totalorder %s238, %s252
    %p254 = scmp.eq.s32.totalorder %s25, 0
    %p255 = por %p253, %p254
    %s257 = sadd.s32 %s256, 1
    %p260 = scmp.eq.s32.totalorder %s19, 1
    %p261 = scmp.ne.s32.totalorder %s256, %s258
    %p262 = scmp.eq.s32.totalorder %s19, 0
    %p263 = por %p261, %p262
    %p264 = scmp.ne.s32.totalorder %s256, %s258
    %p265 = scmp.eq.s32.totalorder %s24, 1
    %p266 = por %p264, %p265
    %p267 = scmp.ne.s32.totalorder %s258, %s259
    %p268 = scmp.eq.s32.totalorder %s24, 0
    %p269 = por %p267, %p268
    %p270 = scmp.ne.s32.totalorder %s258, %s259
    %p271 = scmp.eq.s32.totalorder %s25, 1
    %p272 = por %p270, %p271
    %p274 = scmp.ne.s32.totalorder %s259, %s273
    %p275 = scmp.eq.s32.totalorder %s25, 0
    %p276 = por %p274, %p275
    %s278 = sadd.s32 %s277, 1
    %p281 = scmp.eq.s32.totalorder %s19, 1
    %p282 = scmp.ne.s32.totalorder %s277, %s279
    %p283 = scmp.eq.s32.totalorder %s19, 0
    %p284 = por %p282, %p283
    %p285 = scmp.ne.s32.totalorder %s277, %s279
    %p286 = scmp.eq.s32.totalorder %s24, 1
    %p287 = por %p285, %p286
    %p288 = scmp.ne.s32.totalorder %s279, %s280
    %p289 = scmp.eq.s32.totalorder %s24, 0
    %p290 = por %p288, %p289
    %p291 = scmp.ne.s32.totalorder %s279, %s280
    %p292 = scmp.eq.s32.totalorder %s25, 1
    %p293 = por %p291, %p292
    %p295 = scmp.ne.s32.totalorder %s280, %s294
    %p296 = scmp.eq.s32.totalorder %s25, 0
    %p297 = por %p295, %p296
    %s299 = sadd.s32 %s298, 1
    %p302 = scmp.eq.s32.totalorder %s19, 1
    %p303 = scmp.ne.s32.totalorder %s298, %s300
    %p304 = scmp.eq.s32.totalorder %s19, 0
    %p305 = por %p303, %p304
    %p306 = scmp.ne.s32.totalorder %s298, %s300
    %p307 = scmp.eq.s32.totalorder %s24, 1
    %p308 = por %p306, %p307
    %p309 = scmp.ne.s32.totalorder %s300, %s301
    %p310 = scmp.eq.s32.totalorder %s24, 0
    %p311 = por %p309, %p310
    %p312 = scmp.ne.s32.totalorder %s300, %s301
    %p313 = scmp.eq.s32.totalorder %s25, 1
    %p314 = por %p312, %p313
    %p316 = scmp.ne.s32.totalorder %s301, %s315
    %p317 = scmp.eq.s32.totalorder %s25, 0
    %p318 = por %p316, %p317
    %s319 = ssub.s32 %s26, %s38
    %p320 = scmp.eq.s32.totalorder %s319, 0
    %s322 = sadd.s32 %s321, 1
    %s323 = scalar_select %p320, %s321, %s322
    %p326 = pneg %p320
    %p327 = scmp.eq.s32.totalorder %s19, 1
    %p328 = por %p326, %p327
    %p329 = scmp.ne.s32.totalorder %s321, %s324
    %p330 = scmp.eq.s32.totalorder %s19, 0
    %p331 = por %p329, %p330
    %p332 = scmp.ne.s32.totalorder %s321, %s324
    %p333 = scmp.eq.s32.totalorder %s24, 1
    %p334 = por %p332, %p333
    %p335 = scmp.ne.s32.totalorder %s324, %s325
    %p336 = scmp.eq.s32.totalorder %s24, 0
    %p337 = por %p335, %p336
    %p338 = scmp.ne.s32.totalorder %s324, %s325
    %p339 = scmp.eq.s32.totalorder %s25, 1
    %p340 = por %p338, %p339
    %p342 = scmp.ne.s32.totalorder %s325, %s341
    %p343 = scmp.eq.s32.totalorder %s25, 0
    %p344 = por %p342, %p343
    %p345 = scmp.le.s32.totalorder 1, %s19
    %p346 = scmp.lt.s32.totalorder %s19, 3
    %p347 = pnand %p345, %p346
    %p348 = pneg %p347
    // Predicated region
    $region9: #{pointnet_cls_forward.2} parent=5 // pred_check
      _
    $region10: #{pointnet_cls_forward.2} parent=5 // pred_check_branch
      %350 = sbr.rel (%p347) target = $region12
    $region11: #{pointnet_cls_forward.2} parent=5 // pred_region
      %s351 = ssub.s32 %s19, 1
      // Predicated region
      $region13: #{pointnet_cls_forward.2} parent=11 // pred_check
        %p352 = pneg %p80
      $region14: #{pointnet_cls_forward.2} parent=11 // pred_check_branch
        %354 = sbr.rel (%p352) target = $region16
      $region15: #{pointnet_cls_forward.2} parent=11 // pred_region
        _
      $region16: #{pointnet_cls_forward.2} parent=11 // pred_fallthru
        _
      // Predicated region
      $region17: #{pointnet_cls_forward.2} parent=11 // pred_check
        %p355 = pneg %p101
      $region18: #{pointnet_cls_forward.2} parent=11 // pred_check_branch
        %357 = sbr.rel (%p355) target = $region20
      $region19: #{pointnet_cls_forward.2} parent=11 // pred_region
        _
      $region20: #{pointnet_cls_forward.2} parent=11 // pred_fallthru
        _
      // Predicated region
      $region21: #{pointnet_cls_forward.2} parent=11 // pred_check
        %p358 = pneg %p122
      $region22: #{pointnet_cls_forward.2} parent=11 // pred_check_branch
        %360 = sbr.rel (%p358) target = $region24
      $region23: #{pointnet_cls_forward.2} parent=11 // pred_region
        _
      $region24: #{pointnet_cls_forward.2} parent=11 // pred_fallthru
        _
      // Predicated region
      $region25: #{pointnet_cls_forward.2} parent=11 // pred_check
        %p361 = pneg %p143
      $region26: #{pointnet_cls_forward.2} parent=11 // pred_check_branch
        %363 = sbr.rel (%p361) target = $region28
      $region27: #{pointnet_cls_forward.2} parent=11 // pred_region
        _
      $region28: #{pointnet_cls_forward.2} parent=11 // pred_fallthru
        _
      // Predicated region
      $region29: #{pointnet_cls_forward.2} parent=11 // pred_check
        %p364 = pneg %p164
      $region30: #{pointnet_cls_forward.2} parent=11 // pred_check_branch
        %366 = sbr.rel (%p364) target = $region32
      $region31: #{pointnet_cls_forward.2} parent=11 // pred_region
        _
      $region32: #{pointnet_cls_forward.2} parent=11 // pred_fallthru
        _
      // Predicated region
      $region33: #{pointnet_cls_forward.2} parent=11 // pred_check
        %p367 = pneg %p185
      $region34: #{pointnet_cls_forward.2} parent=11 // pred_check_branch
        %369 = sbr.rel (%p367) target = $region36
      $region35: #{pointnet_cls_forward.2} parent=11 // pred_region
        _
      $region36: #{pointnet_cls_forward.2} parent=11 // pred_fallthru
        _
      // Predicated region
      $region37: #{pointnet_cls_forward.2} parent=11 // pred_check
        %p370 = pneg %p206
      $region38: #{pointnet_cls_forward.2} parent=11 // pred_check_branch
        %372 = sbr.rel (%p370) target = $region40
      $region39: #{pointnet_cls_forward.2} parent=11 // pred_region
        _
      $region40: #{pointnet_cls_forward.2} parent=11 // pred_fallthru
        _
      // Predicated region
      $region41: #{pointnet_cls_forward.2} parent=11 // pred_check
        %p373 = pneg %p227
      $region42: #{pointnet_cls_forward.2} parent=11 // pred_check_branch
        %375 = sbr.rel (%p373) target = $region44
      $region43: #{pointnet_cls_forward.2} parent=11 // pred_region
        _
      $region44: #{pointnet_cls_forward.2} parent=11 // pred_fallthru
        _
      // Predicated region
      $region45: #{pointnet_cls_forward.2} parent=11 // pred_check
        %p376 = pneg %p248
      $region46: #{pointnet_cls_forward.2} parent=11 // pred_check_branch
        %378 = sbr.rel (%p376) target = $region48
      $region47: #{pointnet_cls_forward.2} parent=11 // pred_region
        _
      $region48: #{pointnet_cls_forward.2} parent=11 // pred_fallthru
        _
      // Predicated region
      $region49: #{pointnet_cls_forward.2} parent=11 // pred_check
        %p379 = pneg %p269
      $region50: #{pointnet_cls_forward.2} parent=11 // pred_check_branch
        %381 = sbr.rel (%p379) target = $region52
      $region51: #{pointnet_cls_forward.2} parent=11 // pred_region
        _
      $region52: #{pointnet_cls_forward.2} parent=11 // pred_fallthru
        _
      // Predicated region
      $region53: #{pointnet_cls_forward.2} parent=11 // pred_check
        %p382 = pneg %p290
      $region54: #{pointnet_cls_forward.2} parent=11 // pred_check_branch
        %384 = sbr.rel (%p382) target = $region56
      $region55: #{pointnet_cls_forward.2} parent=11 // pred_region
        _
      $region56: #{pointnet_cls_forward.2} parent=11 // pred_fallthru
        _
      // Predicated region
      $region57: #{pointnet_cls_forward.2} parent=11 // pred_check
        %p385 = pneg %p311
      $region58: #{pointnet_cls_forward.2} parent=11 // pred_check_branch
        %387 = sbr.rel (%p385) target = $region60
      $region59: #{pointnet_cls_forward.2} parent=11 // pred_region
        _
      $region60: #{pointnet_cls_forward.2} parent=11 // pred_fallthru
        _
    $region12: #{pointnet_cls_forward.2} parent=5 // pred_fallthru
      _
    %p388 = scmp.lt.s32.totalorder %s19, 2
    // Predicated region
    $region61: #{pointnet_cls_forward.2} parent=5 // pred_check
      %p389 = pneg %p388
    $region62: #{pointnet_cls_forward.2} parent=5 // pred_check_branch
      %391 = sbr.rel (%p389) target = $region64
    $region63: #{pointnet_cls_forward.2} parent=5 // pred_region
      // Predicated region
      $region65: #{pointnet_cls_forward.2} parent=63 // pred_check
        %p392 = pneg %p53
      $region66: #{pointnet_cls_forward.2} parent=63 // pred_check_branch
        %394 = sbr.rel (%p392) target = $region68
      $region67: #{pointnet_cls_forward.2} parent=63 // pred_region
        %s395 = smul.u32 32, %s27
        %p396 = scmp.lt.s32.totalorder %s26, 1
        %s397 = scalar_select %p396, %s26, 1
        %p398 = scmp.lt.s32.totalorder %s395, 31
        %s399 = scalar_select %p398, %s395, 31
        %s400 = smul.addr %s397, 32
        %s401 = sadd.s32 %s399, %s400
        %s402 = smul.addr %s401, 4
        %s403 = scalar_lea.vmem %s0, %s402
        %s404 = smul.u32 32, %s27
      $region68: #{pointnet_cls_forward.2} parent=63 // pred_fallthru
        _
    $region64: #{pointnet_cls_forward.2} parent=5 // pred_fallthru
      _
    %p405 = scmp.le.s32.totalorder 1, %s19
    %p406 = scmp.lt.s32.totalorder %s19, 3
    %p407 = pnand %p405, %p406
    %p408 = pneg %p407
    // Predicated region
    $region69: #{pointnet_cls_forward.2} parent=5 // pred_check
      _
    $region70: #{pointnet_cls_forward.2} parent=5 // pred_check_branch
      %410 = sbr.rel (%p407) target = $region72
    $region71: #{pointnet_cls_forward.2} parent=5 // pred_region
      %s411 = ssub.s32 %s19, 1
      %s412 = smul.u32 32, %s29
      %p413 = scmp.lt.s32.totalorder %s28, 1
      %s414 = scalar_select %p413, %s28, 1
      %p415 = scmp.lt.s32.totalorder %s412, 31
      %s416 = scalar_select %p415, %s412, 31
      %s417 = smul.addr %s414, 32
      %s418 = sadd.s32 %s416, %s417
      %s419 = smul.addr %s418, 4
      %s420 = scalar_lea.vmem %s0, %s419
      %p421 = pneg %p59
      %p422 = pneg %p56
      %p423 = pneg %p80
      %p424 = pneg %p77
      %p425 = pneg %p101
      %p426 = pneg %p98
      %p427 = pneg %p122
      %p428 = pneg %p119
      %p429 = pneg %p143
      %p430 = pneg %p140
      %p431 = pneg %p164
      %p432 = pneg %p161
      %p433 = pneg %p185
      %p434 = pneg %p182
      %p435 = pneg %p206
      %p436 = pneg %p203
      %p437 = pneg %p227
      %p438 = pneg %p224
      %p439 = pneg %p248
      %p440 = pneg %p245
      %p441 = pneg %p269
      %p442 = pneg %p266
      %p443 = pneg %p290
      %p444 = pneg %p287
      %p445 = pneg %p311
      %p446 = pneg %p308
      %p447 = pneg %p337
      %p448 = pneg %p334
      %p449 = scmp.lt.s32.totalorder %s28, 1
      %s450 = scalar_select %p449, %s28, 1
      %s451 = scalar_lea.vmem %s13, %s450
      %s452 = smul.u32 32, %s29
      %p453 = scmp.lt.s32.totalorder %s28, 1
      %s454 = scalar_select %p453, %s28, 1
      %p455 = scmp.lt.s32.totalorder %s452, 31
      %s456 = scalar_select %p455, %s452, 31
      %s457 = smul.addr %s454, 32
      %s458 = sadd.s32 %s456, %s457
      %s459 = smul.addr %s458, 4
      %s460 = scalar_lea.vmem %s0, %s459
      %s461 = smul.u32 32, %s29
      %p462 = scmp.lt.s32.totalorder %s28, 1
      %s463 = scalar_select %p462, %s28, 1
      %s464 = scalar_lea.vmem %s13, %s463
      %p466 = scmp.eq.s32.totalorder %s29, 0
      // Predicated region
      $region73: #{pointnet_cls_forward.2} parent=71 // pred_check
        %p467 = pneg %p466
      $region74: #{pointnet_cls_forward.2} parent=71 // pred_check_branch
        %469 = sbr.rel (%p467) target = $region76
      $region75: #{pointnet_cls_forward.2} parent=71 // pred_region
        %470 = vst [vmem:[#allocation2] sm:$0xff] -inf
      $region76: #{pointnet_cls_forward.2} parent=71 // pred_fallthru
        _
      %v471 = vld [vmem:[%s460] sm:$0xf]
      %v472 = vld [vmem:[%s460 + $0x4] sm:$0xf]
      %v473 = vld [vmem:[%s460 + $0x8] sm:$0xf]
      %v474 = vld [vmem:[%s460 + $0xc] sm:$0xf]
      %v475 = vld [vmem:[%s460 + $0x10] sm:$0xf]
      %v476 = vld [vmem:[%s460 + $0x14] sm:$0xf]
      %v477 = vld [vmem:[%s460 + $0x18] sm:$0xf]
      %v478 = vld [vmem:[%s460 + $0x1c] sm:$0xf]
      %v479 = vld [vmem:[%s460 + $0x20] sm:$0xf]
      %v480 = vld [vmem:[%s460 + $0x24] sm:$0xf]
      %v481 = vld [vmem:[%s460 + $0x28] sm:$0xf]
      %v482 = vld [vmem:[%s460 + $0x2c] sm:$0xf]
      %v483 = vld [vmem:[%s460 + $0x30] sm:$0xf]
      %v484 = vld [vmem:[%s460 + $0x34] sm:$0xf]
      %v485 = vld [vmem:[%s460 + $0x38] sm:$0xf]
      %v486 = vld [vmem:[%s460 + $0x3c] sm:$0xf]
      %v487 = vld [vmem:[%s460 + $0x40] sm:$0xf]
      %v488 = vld [vmem:[%s460 + $0x44] sm:$0xf]
      %v489 = vld [vmem:[%s460 + $0x48] sm:$0xf]
      %v490 = vld [vmem:[%s460 + $0x4c] sm:$0xf]
      %v491 = vld [vmem:[%s460 + $0x50] sm:$0xf]
      %v492 = vld [vmem:[%s460 + $0x54] sm:$0xf]
      %v493 = vld [vmem:[%s460 + $0x58] sm:$0xf]
      %v494 = vld [vmem:[%s460 + $0x5c] sm:$0xf]
      %v495 = vld [vmem:[%s460 + $0x60] sm:$0xf]
      %v496 = vld [vmem:[%s460 + $0x64] sm:$0xf]
      %v497 = vld [vmem:[%s460 + $0x68] sm:$0xf]
      %v498 = vld [vmem:[%s460 + $0x6c] sm:$0xf]
      %v499 = vld [vmem:[%s460 + $0x70] sm:$0xf]
      %v500 = vld [vmem:[%s460 + $0x74] sm:$0xf]
      %v501 = vld [vmem:[%s460 + $0x78] sm:$0xf]
      %v502 = vld [vmem:[%s460 + $0x7c] sm:$0xf]
      %v503 = vld [vmem:[%s1] sm:$0xf]
      %v504 = vld [vmem:[%s1 + $0x4] sm:$0x1]
      %v505 = vld [vmem:[%s2] sm:$0x1]
      %v507 = vlaneseq
      %v508 = vshrl.u32 %v507, 7
      %v509 = vsub.s32 0, %v508
      %v510 = vrot.slane %v505, %v509
      %v544 = vunpack.c.l.b16 %v471
      %v545 = vunpack.c.l.b16 %v472
      %v546 = vunpack.c.l.b16 %v473
      %v547 = vunpack.c.l.b16 %v474
      %v548 = vunpack.c.l.b16 %v475
      %v549 = vunpack.c.l.b16 %v476
      %v550 = vunpack.c.l.b16 %v477
      %v551 = vunpack.c.l.b16 %v478
      %v552 = vunpack.c.l.b16 %v479
      %v553 = vunpack.c.l.b16 %v480
      %v554 = vunpack.c.l.b16 %v481
      %v555 = vunpack.c.l.b16 %v482
      %v556 = vunpack.c.l.b16 %v483
      %v557 = vunpack.c.l.b16 %v484
      %v558 = vunpack.c.l.b16 %v485
      %v559 = vunpack.c.l.b16 %v486
      %v560 = vunpack.c.l.b16 %v487
      %v561 = vunpack.c.l.b16 %v488
      %v562 = vunpack.c.l.b16 %v489
      %v563 = vunpack.c.l.b16 %v490
      %v564 = vunpack.c.l.b16 %v491
      %v565 = vunpack.c.l.b16 %v492
      %v566 = vunpack.c.l.b16 %v493
      %v567 = vunpack.c.l.b16 %v494
      %v568 = vunpack.c.l.b16 %v495
      %v569 = vunpack.c.l.b16 %v496
      %v570 = vunpack.c.l.b16 %v497
      %v571 = vunpack.c.l.b16 %v498
      %v572 = vunpack.c.l.b16 %v499
      %v573 = vunpack.c.l.b16 %v500
      %v574 = vunpack.c.l.b16 %v501
      %v575 = vunpack.c.l.b16 %v502
      %v576 = vpack.c.b16 %v545, %v544
      %v577 = vpack.c.b16 %v547, %v546
      %v578 = vpack.c.b16 %v549, %v548
      %v579 = vpack.c.b16 %v551, %v550
      %v580 = vpack.c.b16 %v553, %v552
      %v581 = vpack.c.b16 %v555, %v554
      %v582 = vpack.c.b16 %v557, %v556
      %v583 = vpack.c.b16 %v559, %v558
      %v584 = vpack.c.b16 %v561, %v560
      %v585 = vpack.c.b16 %v563, %v562
      %v586 = vpack.c.b16 %v565, %v564
      %v587 = vpack.c.b16 %v567, %v566
      %v588 = vpack.c.b16 %v569, %v568
      %v589 = vpack.c.b16 %v571, %v570
      %v590 = vpack.c.b16 %v573, %v572
      %v591 = vpack.c.b16 %v575, %v574
      %v594 = vunpack.c.l.b16 %v503
      %v595 = vunpack.c.l.b16 %v504
      %v596 = vpack.c.b16 %v595, %v594
      %vm597 = vcmask 72704
      %v599 = vsel %vm597, %v576, 0
      %v602 = vsel %vm597, %v577, 0
      %v605 = vsel %vm597, %v578, 0
      %v608 = vsel %vm597, %v579, 0
      %v611 = vsel %vm597, %v580, 0
      %v614 = vsel %vm597, %v581, 0
      %v617 = vsel %vm597, %v582, 0
      %v620 = vsel %vm597, %v583, 0
      %v623 = vsel %vm597, %v584, 0
      %v626 = vsel %vm597, %v585, 0
      %v629 = vsel %vm597, %v586, 0
      %v632 = vsel %vm597, %v587, 0
      %v635 = vsel %vm597, %v588, 0
      %v638 = vsel %vm597, %v589, 0
      %v641 = vsel %vm597, %v590, 0
      %v644 = vsel %vm597, %v591, 0
      %vm646 = vcmask 1043456
      %vm647 = vcmask 1044480
      %v648 = vsel %vm646, 4294967295, 65535
      %v649 = vsel %vm647, %v648, 0
      %v651 = vand.u32 %v596, %v649
      %653 = vmatprep.subr.bf16.mxu0 0
      %654 = vmatpush1.bf16.msra.mxu0 %v651
      %655 = vmatprep.subr.bf16.mxu0 0
      %656 = vmatpush1.bf16.msra.mxu0 0
      %657 = vmatprep.subr.bf16.mxu0 0
      %658 = vmatpush1.bf16.msra.mxu0 0
      %659 = vmatprep.subr.bf16.mxu0 0
      %660 = vmatpush1.bf16.msra.mxu0 0
      %661 = vmatprep.subr.bf16.mxu0 0
      %662 = vmatpush1.bf16.msra.mxu0 0
      %663 = vmatprep.subr.bf16.mxu0 0
      %664 = vmatpush1.bf16.msra.mxu0 0
      %665 = vmatprep.subr.bf16.mxu0 0
      %666 = vmatpush1.bf16.msra.mxu0 0
      %667 = vmatprep.subr.bf16.mxu0 0
      %668 = vmatpush1.bf16.msra.mxu0 0
      %669 = vmatprep.subr.bf16.mxu0 0
      %670 = vmatpush1.bf16.msra.mxu0 0
      %671 = vmatprep.subr.bf16.mxu0 0
      %672 = vmatpush1.bf16.msra.mxu0 0
      %673 = vmatprep.subr.bf16.mxu0 0
      %674 = vmatpush1.bf16.msra.mxu0 0
      %675 = vmatprep.subr.bf16.mxu0 0
      %676 = vmatpush1.bf16.msra.mxu0 0
      %677 = vmatprep.subr.bf16.mxu0 0
      %678 = vmatpush1.bf16.msra.mxu0 0
      %679 = vmatprep.subr.bf16.mxu0 0
      %680 = vmatpush1.bf16.msra.mxu0 0
      %681 = vmatprep.subr.bf16.mxu0 0
      %682 = vmatpush1.bf16.msra.mxu0 0
      %683 = vmatprep.subr.bf16.mxu0 0
      %684 = vmatpush1.bf16.msra.mxu0 0
      %685 = vmatprep.mubr.bf16.mxu0 0
      %686 = vmatmul.mubr.bf16.gmra.mrb[0].mxu0 %v599
      %v687 = vpop.f32.mrb[0].mxu0
      %v688 = vadd.f32 %v510, %v687
      %v689 = vpop.f32.mrb[0].mxu0
      %v690 = vpop.f32.mrb[0].mxu0
      %v691 = vadd.f32 %v510, %v690
      %v692 = vpop.f32.mrb[0].mxu0
      %693 = vmatprep.mubr.bf16.mxu0 0
      %694 = vmatmul.mubr.bf16.gmra.mrb[0].mxu0 %v602
      %v695 = vpop.f32.mrb[0].mxu0
      %v696 = vadd.f32 %v510, %v695
      %v697 = vpop.f32.mrb[0].mxu0
      %v698 = vpop.f32.mrb[0].mxu0
      %v699 = vadd.f32 %v510, %v698
      %v700 = vpop.f32.mrb[0].mxu0
      %701 = vmatprep.mubr.bf16.mxu0 0
      %702 = vmatmul.mubr.bf16.gmra.mrb[0].mxu0 %v605
      %v703 = vpop.f32.mrb[0].mxu0
      %v704 = vadd.f32 %v510, %v703
      %v705 = vpop.f32.mrb[0].mxu0
      %v706 = vpop.f32.mrb[0].mxu0
      %v707 = vadd.f32 %v510, %v706
      %v708 = vpop.f32.mrb[0].mxu0
      %709 = vmatprep.mubr.bf16.mxu0 0
      %710 = vmatmul.mubr.bf16.gmra.mrb[0].mxu0 %v608
      %v711 = vpop.f32.mrb[0].mxu0
      %v712 = vadd.f32 %v510, %v711
      %v713 = vpop.f32.mrb[0].mxu0
      %v714 = vpop.f32.mrb[0].mxu0
      %v715 = vadd.f32 %v510, %v714
      %v716 = vpop.f32.mrb[0].mxu0
      %717 = vmatprep.mubr.bf16.mxu0 0
      %718 = vmatmul.mubr.bf16.gmra.mrb[0].mxu0 %v611
      %v719 = vpop.f32.mrb[0].mxu0
      %v720 = vadd.f32 %v510, %v719
      %v721 = vpop.f32.mrb[0].mxu0
      %v722 = vpop.f32.mrb[0].mxu0
      %v723 = vadd.f32 %v510, %v722
      %v724 = vpop.f32.mrb[0].mxu0
      %725 = vmatprep.mubr.bf16.mxu0 0
      %726 = vmatmul.mubr.bf16.gmra.mrb[0].mxu0 %v614
      %v727 = vpop.f32.mrb[0].mxu0
      %v728 = vadd.f32 %v510, %v727
      %v729 = vpop.f32.mrb[0].mxu0
      %v730 = vpop.f32.mrb[0].mxu0
      %v731 = vadd.f32 %v510, %v730
      %v732 = vpop.f32.mrb[0].mxu0
      %733 = vmatprep.mubr.bf16.mxu0 0
      %734 = vmatmul.mubr.bf16.gmra.mrb[0].mxu0 %v617
      %v735 = vpop.f32.mrb[0].mxu0
      %v736 = vadd.f32 %v510, %v735
      %v737 = vpop.f32.mrb[0].mxu0
      %v738 = vpop.f32.mrb[0].mxu0
      %v739 = vadd.f32 %v510, %v738
      %v740 = vpop.f32.mrb[0].mxu0
      %741 = vmatprep.mubr.bf16.mxu0 0
      %742 = vmatmul.mubr.bf16.gmra.mrb[0].mxu0 %v620
      %v743 = vpop.f32.mrb[0].mxu0
      %v744 = vadd.f32 %v510, %v743
      %v745 = vpop.f32.mrb[0].mxu0
      %v746 = vpop.f32.mrb[0].mxu0
      %v747 = vadd.f32 %v510, %v746
      %v748 = vpop.f32.mrb[0].mxu0
      %749 = vmatprep.mubr.bf16.mxu0 0
      %750 = vmatmul.mubr.bf16.gmra.mrb[0].mxu0 %v623
      %v751 = vpop.f32.mrb[0].mxu0
      %v752 = vadd.f32 %v510, %v751
      %v753 = vpop.f32.mrb[0].mxu0
      %v754 = vpop.f32.mrb[0].mxu0
      %v755 = vadd.f32 %v510, %v754
      %v756 = vpop.f32.mrb[0].mxu0
      %757 = vmatprep.mubr.bf16.mxu0 0
      %758 = vmatmul.mubr.bf16.gmra.mrb[0].mxu0 %v626
      %v759 = vpop.f32.mrb[0].mxu0
      %v760 = vadd.f32 %v510, %v759
      %v761 = vpop.f32.mrb[0].mxu0
      %v762 = vpop.f32.mrb[0].mxu0
      %v763 = vadd.f32 %v510, %v762
      %v764 = vpop.f32.mrb[0].mxu0
      %765 = vmatprep.mubr.bf16.mxu0 0
      %766 = vmatmul.mubr.bf16.gmra.mrb[0].mxu0 %v629
      %v767 = vpop.f32.mrb[0].mxu0
      %v768 = vadd.f32 %v510, %v767
      %v769 = vpop.f32.mrb[0].mxu0
      %v770 = vpop.f32.mrb[0].mxu0
      %v771 = vadd.f32 %v510, %v770
      %v772 = vpop.f32.mrb[0].mxu0
      %773 = vmatprep.mubr.bf16.mxu0 0
      %774 = vmatmul.mubr.bf16.gmra.mrb[0].mxu0 %v632
      %v775 = vpop.f32.mrb[0].mxu0
      %v776 = vadd.f32 %v510, %v775
      %v777 = vpop.f32.mrb[0].mxu0
      %v778 = vpop.f32.mrb[0].mxu0
      %v779 = vadd.f32 %v510, %v778
      %v780 = vpop.f32.mrb[0].mxu0
      %781 = vmatprep.mubr.bf16.mxu0 0
      %782 = vmatmul.mubr.bf16.gmra.mrb[0].mxu0 %v635
      %v783 = vpop.f32.mrb[0].mxu0
      %v784 = vadd.f32 %v510, %v783
      %v785 = vpop.f32.mrb[0].mxu0
      %v786 = vpop.f32.mrb[0].mxu0
      %v787 = vadd.f32 %v510, %v786
      %v788 = vpop.f32.mrb[0].mxu0
      %789 = vmatprep.mubr.bf16.mxu0 0
      %790 = vmatmul.mubr.bf16.gmra.mrb[0].mxu0 %v638
      %v791 = vpop.f32.mrb[0].mxu0
      %v792 = vadd.f32 %v510, %v791
      %v793 = vpop.f32.mrb[0].mxu0
      %v794 = vpop.f32.mrb[0].mxu0
      %v795 = vadd.f32 %v510, %v794
      %v796 = vpop.f32.mrb[0].mxu0
      %797 = vmatprep.mubr.bf16.mxu0 0
      %798 = vmatmul.mubr.bf16.gmra.mrb[0].mxu0 %v641
      %v799 = vpop.f32.mrb[0].mxu0
      %v800 = vadd.f32 %v510, %v799
      %v801 = vpop.f32.mrb[0].mxu0
      %v802 = vpop.f32.mrb[0].mxu0
      %v803 = vadd.f32 %v510, %v802
      %v804 = vpop.f32.mrb[0].mxu0
      %805 = vmatprep.mubr.bf16.mxu0 0
      %806 = vmatmul.mubr.bf16.gmra.mrb[0].mxu0 %v644
      %v807 = vpop.f32.mrb[0].mxu0
      %v808 = vadd.f32 %v510, %v807
      %v809 = vpop.f32.mrb[0].mxu0
      %v810 = vpop.f32.mrb[0].mxu0
      %v811 = vadd.f32 %v510, %v810
      %v812 = vpop.f32.mrb[0].mxu0
      %813 = vdwg.mxu0
      %v814 = vmax.f32 %v688, 0.0
      %v815 = vmax.f32 %v691, 0.0
      %v816 = vmax.f32 %v696, 0.0
      %v817 = vmax.f32 %v699, 0.0
      %v818 = vmax.f32 %v704, 0.0
      %v819 = vmax.f32 %v707, 0.0
      %v820 = vmax.f32 %v712, 0.0
      %v821 = vmax.f32 %v715, 0.0
      %v822 = vmax.f32 %v720, 0.0
      %v823 = vmax.f32 %v723, 0.0
      %v824 = vmax.f32 %v728, 0.0
      %v825 = vmax.f32 %v731, 0.0
      %v826 = vmax.f32 %v736, 0.0
      %v827 = vmax.f32 %v739, 0.0
      %v828 = vmax.f32 %v744, 0.0
      %v829 = vmax.f32 %v747, 0.0
      %v830 = vmax.f32 %v752, 0.0
      %v831 = vmax.f32 %v755, 0.0
      %v832 = vmax.f32 %v760, 0.0
      %v833 = vmax.f32 %v763, 0.0
      %v834 = vmax.f32 %v768, 0.0
      %v835 = vmax.f32 %v771, 0.0
      %v836 = vmax.f32 %v776, 0.0
      %v837 = vmax.f32 %v779, 0.0
      %v838 = vmax.f32 %v784, 0.0
      %v839 = vmax.f32 %v787, 0.0
      %v840 = vmax.f32 %v792, 0.0
      %v841 = vmax.f32 %v795, 0.0
      %v842 = vmax.f32 %v800, 0.0
      %v843 = vmax.f32 %v803, 0.0
      %v844 = vmax.f32 %v808, 0.0
      %v845 = vmax.f32 %v811, 0.0
      %v846 = vpack.c.bf16 %v815, %v814
      %v847 = vpack.c.bf16 %v817, %v816
      %v848 = vpack.c.bf16 %v819, %v818
      %v849 = vpack.c.bf16 %v821, %v820
      %v850 = vpack.c.bf16 %v823, %v822
      %v851 = vpack.c.bf16 %v825, %v824
      %v852 = vpack.c.bf16 %v827, %v826
      %v853 = vpack.c.bf16 %v829, %v828
      %v854 = vpack.c.bf16 %v831, %v830
      %v855 = vpack.c.bf16 %v833, %v832
      %v856 = vpack.c.bf16 %v835, %v834
      %v857 = vpack.c.bf16 %v837, %v836
      %v858 = vpack.c.bf16 %v839, %v838
      %v859 = vpack.c.bf16 %v841, %v840
      %v860 = vpack.c.bf16 %v843, %v842
      %v861 = vpack.c.bf16 %v845, %v844
      %v862 = vld [vmem:[%s3] sm:$0xf]
      %v863 = vld [vmem:[%s3 + $0x4] sm:$0xf]
      %v864 = vld [vmem:[%s3 + $0x8] sm:$0xf]
      %v865 = vld [vmem:[%s3 + $0xc] sm:$0xf]
      %v866 = vld [vmem:[%s3 + $0x10] sm:$0xf]
      %v867 = vld [vmem:[%s3 + $0x14] sm:$0xf]
      %v868 = vld [vmem:[%s3 + $0x18] sm:$0xf]
      %v869 = vld [vmem:[%s3 + $0x1c] sm:$0xf]
      %v870 = vld [vmem:[%s4] sm:$0x1]
      %v872 = vlaneseq
      %v873 = vshrl.u32 %v872, 7
      %v874 = vsub.s32 0, %v873
      %v875 = vrot.slane %v870, %v874
      %v885 = vunpack.c.l.b16 %v862
      %v886 = vunpack.c.l.b16 %v863
      %v887 = vunpack.c.l.b16 %v864
      %v888 = vunpack.c.l.b16 %v865
      %v889 = vunpack.c.l.b16 %v866
      %v890 = vunpack.c.l.b16 %v867
      %v891 = vunpack.c.l.b16 %v868
      %v892 = vunpack.c.l.b16 %v869
      %v893 = vpack.c.b16 %v886, %v885
      %v894 = vpack.c.b16 %v888, %v887
      %v895 = vpack.c.b16 %v890, %v889
      %v896 = vpack.c.b16 %v892, %v891
      %vm901 = vcmask 523264
      %v903 = vsel %vm901, %v846, 0
      %v906 = vsel %vm901, %v847, 0
      %v909 = vsel %vm901, %v848, 0
      %v912 = vsel %vm901, %v849, 0
      %v915 = vsel %vm901, %v850, 0
      %v918 = vsel %vm901, %v851, 0
      %v921 = vsel %vm901, %v852, 0
      %v924 = vsel %vm901, %v853, 0
      %v927 = vsel %vm901, %v854, 0
      %v930 = vsel %vm901, %v855, 0
      %v933 = vsel %vm901, %v856, 0
      %v936 = vsel %vm901, %v857, 0
      %v939 = vsel %vm901, %v858, 0
      %v942 = vsel %vm901, %v859, 0
      %v945 = vsel %vm901, %v860, 0
      %v948 = vsel %vm901, %v861, 0
      %950 = vmatprep.subr.bf16.mxu0 0
      %951 = vmatpush1.bf16.msra.mxu0 %v893
      %952 = vmatprep.subr.bf16.mxu0 0
      %953 = vmatpush1.bf16.msra.mxu0 %v894
      %954 = vmatprep.subr.bf16.mxu0 0
      %955 = vmatpush1.bf16.msra.mxu0 %v895
      %956 = vmatprep.subr.bf16.mxu0 0
      %957 = vmatpush1.bf16.msra.mxu0 %v896
      %958 = vmatprep.subr.bf16.mxu0 0
      %959 = vmatpush1.bf16.msra.mxu0 0
      %960 = vmatprep.subr.bf16.mxu0 0
      %961 = vmatpush1.bf16.msra.mxu0 0
      %962 = vmatprep.subr.bf16.mxu0 0
      %963 = vmatpush1.bf16.msra.mxu0 0
      %964 = vmatprep.subr.bf16.mxu0 0
      %965 = vmatpush1.bf16.msra.mxu0 0
      %966 = vmatprep.subr.bf16.mxu0 0
      %967 = vmatpush1.bf16.msra.mxu0 0
      %968 = vmatprep.subr.bf16.mxu0 0
      %969 = vmatpush1.bf16.msra.mxu0 0
      %970 = vmatprep.subr.bf16.mxu0 0
      %971 = vmatpush1.bf16.msra.mxu0 0
      %972 = vmatprep.subr.bf16.mxu0 0
      %973 = vmatpush1.bf16.msra.mxu0 0
      %974 = vmatprep.subr.bf16.mxu0 0
      %975 = vmatpush1.bf16.msra.mxu0 0
      %976 = vmatprep.subr.bf16.mxu0 0
      %977 = vmatpush1.bf16.msra.mxu0 0
      %978 = vmatprep.subr.bf16.mxu0 0
      %979 = vmatpush1.bf16.msra.mxu0 0
      %980 = vmatprep.subr.bf16.mxu0 0
      %981 = vmatpush1.bf16.msra.mxu0 0
      %982 = vmatprep.mubr.bf16.mxu0 0
      %983 = vmatmul.mubr.bf16.gmra.mrb[0].mxu0 %v903
      %v984 = vpop.f32.mrb[0].mxu0
      %v985 = vadd.f32 %v875, %v984
      %v986 = vpop.f32.mrb[0].mxu0
      %v987 = vpop.f32.mrb[0].mxu0
      %v988 = vadd.f32 %v875, %v987
      %v989 = vpop.f32.mrb[0].mxu0
      %990 = vmatprep.mubr.bf16.mxu0 0
      %991 = vmatmul.mubr.bf16.gmra.mrb[0].mxu0 %v906
      %v992 = vpop.f32.mrb[0].mxu0
      %v993 = vadd.f32 %v875, %v992
      %v994 = vpop.f32.mrb[0].mxu0
      %v995 = vpop.f32.mrb[0].mxu0
      %v996 = vadd.f32 %v875, %v995
      %v997 = vpop.f32.mrb[0].mxu0
      %998 = vmatprep.mubr.bf16.mxu0 0
      %999 = vmatmul.mubr.bf16.gmra.mrb[0].mxu0 %v909
      %v1000 = vpop.f32.mrb[0].mxu0
      %v1001 = vadd.f32 %v875, %v1000
      %v1002 = vpop.f32.mrb[0].mxu0
      %v1003 = vpop.f32.mrb[0].mxu0
      %v1004 = vadd.f32 %v875, %v1003
      %v1005 = vpop.f32.mrb[0].mxu0
      %1006 = vmatprep.mubr.bf16.mxu0 0
      %1007 = vmatmul.mubr.bf16.gmra.mrb[0].mxu0 %v912
      %v1008 = vpop.f32.mrb[0].mxu0
      %v1009 = vadd.f32 %v875, %v1008
      %v1010 = vpop.f32.mrb[0].mxu0
      %v1011 = vpop.f32.mrb[0].mxu0
      %v1012 = vadd.f32 %v875, %v1011
      %v1013 = vpop.f32.mrb[0].mxu0
      %1014 = vmatprep.mubr.bf16.mxu0 0
      %1015 = vmatmul.mubr.bf16.gmra.mrb[0].mxu0 %v915
      %v1016 = vpop.f32.mrb[0].mxu0
      %v1017 = vadd.f32 %v875, %v1016
      %v1018 = vpop.f32.mrb[0].mxu0
      %v1019 = vpop.f32.mrb[0].mxu0
      %v1020 = vadd.f32 %v875, %v1019
      %v1021 = vpop.f32.mrb[0].mxu0
      %1022 = vmatprep.mubr.bf16.mxu0 0
      %1023 = vmatmul.mubr.bf16.gmra.mrb[0].mxu0 %v918
      %v1024 = vpop.f32.mrb[0].mxu0
      %v1025 = vadd.f32 %v875, %v1024
      %v1026 = vpop.f32.mrb[0].mxu0
      %v1027 = vpop.f32.mrb[0].mxu0
      %v1028 = vadd.f32 %v875, %v1027
      %v1029 = vpop.f32.mrb[0].mxu0
      %1030 = vmatprep.mubr.bf16.mxu0 0
      %1031 = vmatmul.mubr.bf16.gmra.mrb[0].mxu0 %v921
      %v1032 = vpop.f32.mrb[0].mxu0
      %v1033 = vadd.f32 %v875, %v1032
      %v1034 = vpop.f32.mrb[0].mxu0
      %v1035 = vpop.f32.mrb[0].mxu0
      %v1036 = vadd.f32 %v875, %v1035
      %v1037 = vpop.f32.mrb[0].mxu0
      %1038 = vmatprep.mubr.bf16.mxu0 0
      %1039 = vmatmul.mubr.bf16.gmra.mrb[0].mxu0 %v924
      %v1040 = vpop.f32.mrb[0].mxu0
      %v1041 = vadd.f32 %v875, %v1040
      %v1042 = vpop.f32.mrb[0].mxu0
      %v1043 = vpop.f32.mrb[0].mxu0
      %v1044 = vadd.f32 %v875, %v1043
      %v1045 = vpop.f32.mrb[0].mxu0
      %1046 = vmatprep.mubr.bf16.mxu0 0
      %1047 = vmatmul.mubr.bf16.gmra.mrb[0].mxu0 %v927
      %v1048 = vpop.f32.mrb[0].mxu0
      %v1049 = vadd.f32 %v875, %v1048
      %v1050 = vpop.f32.mrb[0].mxu0
      %v1051 = vpop.f32.mrb[0].mxu0
      %v1052 = vadd.f32 %v875, %v1051
      %v1053 = vpop.f32.mrb[0].mxu0
      %1054 = vmatprep.mubr.bf16.mxu0 0
      %1055 = vmatmul.mubr.bf16.gmra.mrb[0].mxu0 %v930
      %v1056 = vpop.f32.mrb[0].mxu0
      %v1057 = vadd.f32 %v875, %v1056
      %v1058 = vpop.f32.mrb[0].mxu0
      %v1059 = vpop.f32.mrb[0].mxu0
      %v1060 = vadd.f32 %v875, %v1059
      %v1061 = vpop.f32.mrb[0].mxu0
      %1062 = vmatprep.mubr.bf16.mxu0 0
      %1063 = vmatmul.mubr.bf16.gmra.mrb[0].mxu0 %v933
      %v1064 = vpop.f32.mrb[0].mxu0
      %v1065 = vadd.f32 %v875, %v1064
      %v1066 = vpop.f32.mrb[0].mxu0
      %v1067 = vpop.f32.mrb[0].mxu0
      %v1068 = vadd.f32 %v875, %v1067
      %v1069 = vpop.f32.mrb[0].mxu0
      %1070 = vmatprep.mubr.bf16.mxu0 0
      %1071 = vmatmul.mubr.bf16.gmra.mrb[0].mxu0 %v936
      %v1072 = vpop.f32.mrb[0].mxu0
      %v1073 = vadd.f32 %v875, %v1072
      %v1074 = vpop.f32.mrb[0].mxu0
      %v1075 = vpop.f32.mrb[0].mxu0
      %v1076 = vadd.f32 %v875, %v1075
      %v1077 = vpop.f32.mrb[0].mxu0
      %1078 = vmatprep.mubr.bf16.mxu0 0
      %1079 = vmatmul.mubr.bf16.gmra.mrb[0].mxu0 %v939
      %v1080 = vpop.f32.mrb[0].mxu0
      %v1081 = vadd.f32 %v875, %v1080
      %v1082 = vpop.f32.mrb[0].mxu0
      %v1083 = vpop.f32.mrb[0].mxu0
      %v1084 = vadd.f32 %v875, %v1083
      %v1085 = vpop.f32.mrb[0].mxu0
      %1086 = vmatprep.mubr.bf16.mxu0 0
      %1087 = vmatmul.mubr.bf16.gmra.mrb[0].mxu0 %v942
      %v1088 = vpop.f32.mrb[0].mxu0
      %v1089 = vadd.f32 %v875, %v1088
      %v1090 = vpop.f32.mrb[0].mxu0
      %v1091 = vpop.f32.mrb[0].mxu0
      %v1092 = vadd.f32 %v875, %v1091
      %v1093 = vpop.f32.mrb[0].mxu0
      %1094 = vmatprep.mubr.bf16.mxu0 0
      %1095 = vmatmul.mubr.bf16.gmra.mrb[0].mxu0 %v945
      %v1096 = vpop.f32.mrb[0].mxu0
      %v1097 = vadd.f32 %v875, %v1096
      %v1098 = vpop.f32.mrb[0].mxu0
      %v1099 = vpop.f32.mrb[0].mxu0
      %v1100 = vadd.f32 %v875, %v1099
      %v1101 = vpop.f32.mrb[0].mxu0
      %1102 = vmatprep.mubr.bf16.mxu0 0
      %1103 = vmatmul.mubr.bf16.gmra.mrb[0].mxu0 %v948
      %v1104 = vpop.f32.mrb[0].mxu0
      %v1105 = vadd.f32 %v875, %v1104
      %v1106 = vpop.f32.mrb[0].mxu0
      %v1107 = vpop.f32.mrb[0].mxu0
      %v1108 = vadd.f32 %v875, %v1107
      %v1109 = vpop.f32.mrb[0].mxu0
      %1110 = vdwg.mxu0
      %v1111 = vmax.f32 %v985, 0.0
      %v1112 = vmax.f32 %v988, 0.0
      %v1113 = vmax.f32 %v993, 0.0
      %v1114 = vmax.f32 %v996, 0.0
      %v1115 = vmax.f32 %v1001, 0.0
      %v1116 = vmax.f32 %v1004, 0.0
      %v1117 = vmax.f32 %v1009, 0.0
      %v1118 = vmax.f32 %v1012, 0.0
      %v1119 = vmax.f32 %v1017, 0.0
      %v1120 = vmax.f32 %v1020, 0.0
      %v1121 = vmax.f32 %v1025, 0.0
      %v1122 = vmax.f32 %v1028, 0.0
      %v1123 = vmax.f32 %v1033, 0.0
      %v1124 = vmax.f32 %v1036, 0.0
      %v1125 = vmax.f32 %v1041, 0.0
      %v1126 = vmax.f32 %v1044, 0.0
      %v1127 = vmax.f32 %v1049, 0.0
      %v1128 = vmax.f32 %v1052, 0.0
      %v1129 = vmax.f32 %v1057, 0.0
      %v1130 = vmax.f32 %v1060, 0.0
      %v1131 = vmax.f32 %v1065, 0.0
      %v1132 = vmax.f32 %v1068, 0.0
      %v1133 = vmax.f32 %v1073, 0.0
      %v1134 = vmax.f32 %v1076, 0.0
      %v1135 = vmax.f32 %v1081, 0.0
      %v1136 = vmax.f32 %v1084, 0.0
      %v1137 = vmax.f32 %v1089, 0.0
      %v1138 = vmax.f32 %v1092, 0.0
      %v1139 = vmax.f32 %v1097, 0.0
      %v1140 = vmax.f32 %v1100, 0.0
      %v1141 = vmax.f32 %v1105, 0.0
      %v1142 = vmax.f32 %v1108, 0.0
      %v1143 = vpack.c.bf16 %v1112, %v1111
      %v1144 = vpack.c.bf16 %v1114, %v1113
      %v1145 = vpack.c.bf16 %v1116, %v1115
      %v1146 = vpack.c.bf16 %v1118, %v1117
      %v1147 = vpack.c.bf16 %v1120, %v1119
      %v1148 = vpack.c.bf16 %v1122, %v1121
      %v1149 = vpack.c.bf16 %v1124, %v1123
      %v1150 = vpack.c.bf16 %v1126, %v1125
      %v1151 = vpack.c.bf16 %v1128, %v1127
      %v1152 = vpack.c.bf16 %v1130, %v1129
      %v1153 = vpack.c.bf16 %v1132, %v1131
      %v1154 = vpack.c.bf16 %v1134, %v1133
      %v1155 = vpack.c.bf16 %v1136, %v1135
      %v1156 = vpack.c.bf16 %v1138, %v1137
      %v1157 = vpack.c.bf16 %v1140, %v1139
      %v1158 = vpack.c.bf16 %v1142, %v1141
      %v1159 = vld [vmem:[%s5] sm:$0xff]
      %v1160 = vld [vmem:[%s5 + $0x8] sm:$0xff]
      %v1161 = vld [vmem:[%s5 + $0x10] sm:$0xff]
      %v1162 = vld [vmem:[%s5 + $0x18] sm:$0xff]
      %v1163 = vld [vmem:[%s5 + $0x20] sm:$0xff]
      %v1164 = vld [vmem:[%s5 + $0x28] sm:$0xff]
      %v1165 = vld [vmem:[%s5 + $0x30] sm:$0xff]
      %v1166 = vld [vmem:[%s5 + $0x38] sm:$0xff]
      %v1167 = vld [vmem:[%s5 + $0x40] sm:$0xff]
      %v1168 = vld [vmem:[%s5 + $0x48] sm:$0xff]
      %v1169 = vld [vmem:[%s5 + $0x50] sm:$0xff]
      %v1170 = vld [vmem:[%s5 + $0x58] sm:$0xff]
      %v1171 = vld [vmem:[%s5 + $0x60] sm:$0xff]
      %v1172 = vld [vmem:[%s5 + $0x68] sm:$0xff]
      %v1173 = vld [vmem:[%s5 + $0x70] sm:$0xff]
      %v1174 = vld [vmem:[%s5 + $0x78] sm:$0xff]
      %v1175 = vld [vmem:[%s5 + $0x80] sm:$0xff]
      %v1176 = vld [vmem:[%s5 + $0x88] sm:$0xff]
      %v1177 = vld [vmem:[%s5 + $0x90] sm:$0xff]
      %v1178 = vld [vmem:[%s5 + $0x98] sm:$0xff]
      %v1179 = vld [vmem:[%s5 + $0xa0] sm:$0xff]
      %v1180 = vld [vmem:[%s5 + $0xa8] sm:$0xff]
      %v1181 = vld [vmem:[%s5 + $0xb0] sm:$0xff]
      %v1182 = vld [vmem:[%s5 + $0xb8] sm:$0xff]
      %v1183 = vld [vmem:[%s5 + $0xc0] sm:$0xff]
      %v1184 = vld [vmem:[%s5 + $0xc8] sm:$0xff]
      %v1185 = vld [vmem:[%s5 + $0xd0] sm:$0xff]
      %v1186 = vld [vmem:[%s5 + $0xd8] sm:$0xff]
      %v1187 = vld [vmem:[%s5 + $0xe0] sm:$0xff]
      %v1188 = vld [vmem:[%s5 + $0xe8] sm:$0xff]
      %v1189 = vld [vmem:[%s5 + $0xf0] sm:$0xff]
      %v1190 = vld [vmem:[%s5 + $0xf8] sm:$0xff]
      %v1191 = vld [vmem:[%s5 + $0x100] sm:$0xff]
      %v1192 = vld [vmem:[%s5 + $0x108] sm:$0xff]
      %v1193 = vld [vmem:[%s5 + $0x110] sm:$0xff]
      %v1194 = vld [vmem:[%s5 + $0x118] sm:$0xff]
      %v1195 = vld [vmem:[%s5 + $0x120] sm:$0xff]
      %v1196 = vld [vmem:[%s5 + $0x128] sm:$0xff]
      %v1197 = vld [vmem:[%s5 + $0x130] sm:$0xff]
      %v1198 = vld [vmem:[%s5 + $0x138] sm:$0xff]
      %v1199 = vld [vmem:[%s5 + $0x140] sm:$0xff]
      %v1200 = vld [vmem:[%s5 + $0x148] sm:$0xff]
      %v1201 = vld [vmem:[%s5 + $0x150] sm:$0xff]
      %v1202 = vld [vmem:[%s5 + $0x158] sm:$0xff]
      %v1203 = vld [vmem:[%s5 + $0x160] sm:$0xff]
      %v1204 = vld [vmem:[%s5 + $0x168] sm:$0xff]
      %v1205 = vld [vmem:[%s5 + $0x170] sm:$0xff]
      %v1206 = vld [vmem:[%s5 + $0x178] sm:$0xff]
      %v1207 = vld [vmem:[%s5 + $0x180] sm:$0xff]
      %v1208 = vld [vmem:[%s5 + $0x188] sm:$0xff]
      %v1209 = vld [vmem:[%s5 + $0x190] sm:$0xff]
      %v1210 = vld [vmem:[%s5 + $0x198] sm:$0xff]
      %v1211 = vld [vmem:[%s5 + $0x1a0] sm:$0xff]
      %v1212 = vld [vmem:[%s5 + $0x1a8] sm:$0xff]
      %v1213 = vld [vmem:[%s5 + $0x1b0] sm:$0xff]
      %v1214 = vld [vmem:[%s5 + $0x1b8] sm:$0xff]
      %v1215 = vld [vmem:[%s5 + $0x1c0] sm:$0xff]
      %v1216 = vld [vmem:[%s5 + $0x1c8] sm:$0xff]
      %v1217 = vld [vmem:[%s5 + $0x1d0] sm:$0xff]
      %v1218 = vld [vmem:[%s5 + $0x1d8] sm:$0xff]
      %v1219 = vld [vmem:[%s5 + $0x1e0] sm:$0xff]
      %v1220 = vld [vmem:[%s5 + $0x1e8] sm:$0xff]
      %v1221 = vld [vmem:[%s5 + $0x1f0] sm:$0xff]
      %v1222 = vld [vmem:[%s5 + $0x1f8] sm:$0xff]
      %v1223 = vld [vmem:[%s6] sm:$0xff]
      %v1225 = vlaneseq
      %v1226 = vshrl.u32 %v1225, 7
      %v1227 = vsub.s32 0, %v1226
      %v1228 = vrot.slane %v1223, %v1227
      %v1229 = vlaneseq
      %v1230 = vshrl.u32 %v1229, 7
      %v1231 = vsub.s32 1, %v1230
      %v1232 = vrot.slane %v1223, %v1231
      %v1233 = vlaneseq
      %v1234 = vshrl.u32 %v1233, 7
      %v1235 = vsub.s32 2, %v1234
      %v1236 = vrot.slane %v1223, %v1235
      %v1237 = vlaneseq
      %v1238 = vshrl.u32 %v1237, 7
      %v1239 = vsub.s32 3, %v1238
      %v1240 = vrot.slane %v1223, %v1239
      %v1241 = vlaneseq
      %v1242 = vshrl.u32 %v1241, 7
      %v1243 = vsub.s32 4, %v1242
      %v1244 = vrot.slane %v1223, %v1243
      %v1245 = vlaneseq
      %v1246 = vshrl.u32 %v1245, 7
      %v1247 = vsub.s32 5, %v1246
      %v1248 = vrot.slane %v1223, %v1247
      %v1249 = vlaneseq
      %v1250 = vshrl.u32 %v1249, 7
      %v1251 = vsub.s32 6, %v1250
      %v1252 = vrot.slane %v1223, %v1251
      %v1253 = vlaneseq
      %v1254 = vshrl.u32 %v1253, 7
      %v1255 = vsub.s32 7, %v1254
      %v1256 = vrot.slane %v1223, %v1255
      %v1329 = vunpack.c.l.b16 %v1159
      %v1330 = vunpack.c.h.b16 %v1159
      %v1331 = vunpack.c.l.b16 %v1160
      %v1332 = vunpack.c.h.b16 %v1160
      %v1333 = vunpack.c.l.b16 %v1161
      %v1334 = vunpack.c.h.b16 %v1161
      %v1335 = vunpack.c.l.b16 %v1162
      %v1336 = vunpack.c.h.b16 %v1162
      %v1337 = vunpack.c.l.b16 %v1163
      %v1338 = vunpack.c.h.b16 %v1163
      %v1339 = vunpack.c.l.b16 %v1164
      %v1340 = vunpack.c.h.b16 %v1164
      %v1341 = vunpack.c.l.b16 %v1165
      %v1342 = vunpack.c.h.b16 %v1165
      %v1343 = vunpack.c.l.b16 %v1166
      %v1344 = vunpack.c.h.b16 %v1166
      %v1345 = vunpack.c.l.b16 %v1167
      %v1346 = vunpack.c.h.b16 %v1167
      %v1347 = vunpack.c.l.b16 %v1168
      %v1348 = vunpack.c.h.b16 %v1168
      %v1349 = vunpack.c.l.b16 %v1169
      %v1350 = vunpack.c.h.b16 %v1169
      %v1351 = vunpack.c.l.b16 %v1170
      %v1352 = vunpack.c.h.b16 %v1170
      %v1353 = vunpack.c.l.b16 %v1171
      %v1354 = vunpack.c.h.b16 %v1171
      %v1355 = vunpack.c.l.b16 %v1172
      %v1356 = vunpack.c.h.b16 %v1172
      %v1357 = vunpack.c.l.b16 %v1173
      %v1358 = vunpack.c.h.b16 %v1173
      %v1359 = vunpack.c.l.b16 %v1174
      %v1360 = vunpack.c.h.b16 %v1174
      %v1361 = vunpack.c.l.b16 %v1175
      %v1362 = vunpack.c.h.b16 %v1175
      %v1363 = vunpack.c.l.b16 %v1176
      %v1364 = vunpack.c.h.b16 %v1176
      %v1365 = vunpack.c.l.b16 %v1177
      %v1366 = vunpack.c.h.b16 %v1177
      %v1367 = vunpack.c.l.b16 %v1178
      %v1368 = vunpack.c.h.b16 %v1178
      %v1369 = vunpack.c.l.b16 %v1179
      %v1370 = vunpack.c.h.b16 %v1179
      %v1371 = vunpack.c.l.b16 %v1180
      %v1372 = vunpack.c.h.b16 %v1180
      %v1373 = vunpack.c.l.b16 %v1181
      %v1374 = vunpack.c.h.b16 %v1181
      %v1375 = vunpack.c.l.b16 %v1182
      %v1376 = vunpack.c.h.b16 %v1182
      %v1377 = vunpack.c.l.b16 %v1183
      %v1378 = vunpack.c.h.b16 %v1183
      %v1379 = vunpack.c.l.b16 %v1184
      %v1380 = vunpack.c.h.b16 %v1184
      %v1381 = vunpack.c.l.b16 %v1185
      %v1382 = vunpack.c.h.b16 %v1185
      %v1383 = vunpack.c.l.b16 %v1186
      %v1384 = vunpack.c.h.b16 %v1186
      %v1385 = vunpack.c.l.b16 %v1187
      %v1386 = vunpack.c.h.b16 %v1187
      %v1387 = vunpack.c.l.b16 %v1188
      %v1388 = vunpack.c.h.b16 %v1188
      %v1389 = vunpack.c.l.b16 %v1189
      %v1390 = vunpack.c.h.b16 %v1189
      %v1391 = vunpack.c.l.b16 %v1190
      %v1392 = vunpack.c.h.b16 %v1190
      %v1393 = vunpack.c.l.b16 %v1191
      %v1394 = vunpack.c.h.b16 %v1191
      %v1395 = vunpack.c.l.b16 %v1192
      %v1396 = vunpack.c.h.b16 %v1192
      %v1397 = vunpack.c.l.b16 %v1193
      %v1398 = vunpack.c.h.b16 %v1193
      %v1399 = vunpack.c.l.b16 %v1194
      %v1400 = vunpack.c.h.b16 %v1194
      %v1401 = vunpack.c.l.b16 %v1195
      %v1402 = vunpack.c.h.b16 %v1195
      %v1403 = vunpack.c.l.b16 %v1196
      %v1404 = vunpack.c.h.b16 %v1196
      %v1405 = vunpack.c.l.b16 %v1197
      %v1406 = vunpack.c.h.b16 %v1197
      %v1407 = vunpack.c.l.b16 %v1198
      %v1408 = vunpack.c.h.b16 %v1198
      %v1409 = vunpack.c.l.b16 %v1199
      %v1410 = vunpack.c.h.b16 %v1199
      %v1411 = vunpack.c.l.b16 %v1200
      %v1412 = vunpack.c.h.b16 %v1200
      %v1413 = vunpack.c.l.b16 %v1201
      %v1414 = vunpack.c.h.b16 %v1201
      %v1415 = vunpack.c.l.b16 %v1202
      %v1416 = vunpack.c.h.b16 %v1202
      %v1417 = vunpack.c.l.b16 %v1203
      %v1418 = vunpack.c.h.b16 %v1203
      %v1419 = vunpack.c.l.b16 %v1204
      %v1420 = vunpack.c.h.b16 %v1204
      %v1421 = vunpack.c.l.b16 %v1205
      %v1422 = vunpack.c.h.b16 %v1205
      %v1423 = vunpack.c.l.b16 %v1206
      %v1424 = vunpack.c.h.b16 %v1206
      %v1425 = vunpack.c.l.b16 %v1207
      %v1426 = vunpack.c.h.b16 %v1207
      %v1427 = vunpack.c.l.b16 %v1208
      %v1428 = vunpack.c.h.b16 %v1208
      %v1429 = vunpack.c.l.b16 %v1209
      %v1430 = vunpack.c.h.b16 %v1209
      %v1431 = vunpack.c.l.b16 %v1210
      %v1432 = vunpack.c.h.b16 %v1210
      %v1433 = vunpack.c.l.b16 %v1211
      %v1434 = vunpack.c.h.b16 %v1211
      %v1435 = vunpack.c.l.b16 %v1212
      %v1436 = vunpack.c.h.b16 %v1212
      %v1437 = vunpack.c.l.b16 %v1213
      %v1438 = vunpack.c.h.b16 %v1213
      %v1439 = vunpack.c.l.b16 %v1214
      %v1440 = vunpack.c.h.b16 %v1214
      %v1441 = vunpack.c.l.b16 %v1215
      %v1442 = vunpack.c.h.b16 %v1215
      %v1443 = vunpack.c.l.b16 %v1216
      %v1444 = vunpack.c.h.b16 %v1216
      %v1445 = vunpack.c.l.b16 %v1217
      %v1446 = vunpack.c.h.b16 %v1217
      %v1447 = vunpack.c.l.b16 %v1218
      %v1448 = vunpack.c.h.b16 %v1218
      %v1449 = vunpack.c.l.b16 %v1219
      %v1450 = vunpack.c.h.b16 %v1219
      %v1451 = vunpack.c.l.b16 %v1220
      %v1452 = vunpack.c.h.b16 %v1220
      %v1453 = vunpack.c.l.b16 %v1221
      %v1454 = vunpack.c.h.b16 %v1221
      %v1455 = vunpack.c.l.b16 %v1222
      %v1456 = vunpack.c.h.b16 %v1222
      %v1457 = vpack.c.b16 %v1337, %v1329
      %v1458 = vpack.c.b16 %v1338, %v1330
      %v1459 = vpack.c.b16 %v1339, %v1331
      %v1460 = vpack.c.b16 %v1340, %v1332
      %v1461 = vpack.c.b16 %v1341, %v1333
      %v1462 = vpack.c.b16 %v1342, %v1334
      %v1463 = vpack.c.b16 %v1343, %v1335
      %v1464 = vpack.c.b16 %v1344, %v1336
      %v1465 = vpack.c.b16 %v1353, %v1345
      %v1466 = vpack.c.b16 %v1354, %v1346
      %v1467 = vpack.c.b16 %v1355, %v1347
      %v1468 = vpack.c.b16 %v1356, %v1348
      %v1469 = vpack.c.b16 %v1357, %v1349
      %v1470 = vpack.c.b16 %v1358, %v1350
      %v1471 = vpack.c.b16 %v1359, %v1351
      %v1472 = vpack.c.b16 %v1360, %v1352
      %v1473 = vpack.c.b16 %v1369, %v1361
      %v1474 = vpack.c.b16 %v1370, %v1362
      %v1475 = vpack.c.b16 %v1371, %v1363
      %v1476 = vpack.c.b16 %v1372, %v1364
      %v1477 = vpack.c.b16 %v1373, %v1365
      %v1478 = vpack.c.b16 %v1374, %v1366
      %v1479 = vpack.c.b16 %v1375, %v1367
      %v1480 = vpack.c.b16 %v1376, %v1368
      %v1481 = vpack.c.b16 %v1385, %v1377
      %v1482 = vpack.c.b16 %v1386, %v1378
      %v1483 = vpack.c.b16 %v1387, %v1379
      %v1484 = vpack.c.b16 %v1388, %v1380
      %v1485 = vpack.c.b16 %v1389, %v1381
      %v1486 = vpack.c.b16 %v1390, %v1382
      %v1487 = vpack.c.b16 %v1391, %v1383
      %v1488 = vpack.c.b16 %v1392, %v1384
      %v1489 = vpack.c.b16 %v1401, %v1393
      %v1490 = vpack.c.b16 %v1402, %v1394
      %v1491 = vpack.c.b16 %v1403, %v1395
      %v1492 = vpack.c.b16 %v1404, %v1396
      %v1493 = vpack.c.b16 %v1405, %v1397
      %v1494 = vpack.c.b16 %v1406, %v1398
      %v1495 = vpack.c.b16 %v1407, %v1399
      %v1496 = vpack.c.b16 %v1408, %v1400
      %v1497 = vpack.c.b16 %v1417, %v1409
      %v1498 = vpack.c.b16 %v1418, %v1410
      %v1499 = vpack.c.b16 %v1419, %v1411
      %v1500 = vpack.c.b16 %v1420, %v1412
      %v1501 = vpack.c.b16 %v1421, %v1413
      %v1502 = vpack.c.b16 %v1422, %v1414
      %v1503 = vpack.c.b16 %v1423, %v1415
      %v1504 = vpack.c.b16 %v1424, %v1416
      %v1505 = vpack.c.b16 %v1433, %v1425
      %v1506 = vpack.c.b16 %v1434, %v1426
      %v1507 = vpack.c.b16 %v1435, %v1427
      %v1508 = vpack.c.b16 %v1436, %v1428
      %v1509 = vpack.c.b16 %v1437, %v1429
      %v1510 = vpack.c.b16 %v1438, %v1430
      %v1511 = vpack.c.b16 %v1439, %v1431
      %v1512 = vpack.c.b16 %v1440, %v1432
      %v1513 = vpack.c.b16 %v1449, %v1441
      %v1514 = vpack.c.b16 %v1450, %v1442
      %v1515 = vpack.c.b16 %v1451, %v1443
      %v1516 = vpack.c.b16 %v1452, %v1444
      %v1517 = vpack.c.b16 %v1453, %v1445
      %v1518 = vpack.c.b16 %v1454, %v1446
      %v1519 = vpack.c.b16 %v1455, %v1447
      %v1520 = vpack.c.b16 %v1456, %v1448
      %1585 = vmatprep.subr.bf16.mxu0 %v1458
      %1586 = vmatpush1.bf16.msra.mxu0 %v1457
      %1587 = vmatprep.subr.bf16.mxu0 %v1466
      %1588 = vmatpush1.bf16.msra.mxu0 %v1465
      %1589 = vmatprep.subr.bf16.mxu0 %v1474
      %1590 = vmatpush1.bf16.msra.mxu0 %v1473
      %1591 = vmatprep.subr.bf16.mxu0 %v1482
      %1592 = vmatpush1.bf16.msra.mxu0 %v1481
      %1593 = vmatprep.subr.bf16.mxu0 %v1490
      %1594 = vmatpush1.bf16.msra.mxu0 %v1489
      %1595 = vmatprep.subr.bf16.mxu0 %v1498
      %1596 = vmatpush1.bf16.msra.mxu0 %v1497
      %1597 = vmatprep.subr.bf16.mxu0 %v1506
      %1598 = vmatpush1.bf16.msra.mxu0 %v1505
      %1599 = vmatprep.subr.bf16.mxu0 %v1514
      %1600 = vmatpush1.bf16.msra.mxu0 %v1513
      %1601 = vmatprep.subr.bf16.mxu0 0
      %1602 = vmatpush1.bf16.msra.mxu0 0
      %1603 = vmatprep.subr.bf16.mxu0 0
      %1604 = vmatpush1.bf16.msra.mxu0 0
      %1605 = vmatprep.subr.bf16.mxu0 0
      %1606 = vmatpush1.bf16.msra.mxu0 0
      %1607 = vmatprep.subr.bf16.mxu0 0
      %1608 = vmatpush1.bf16.msra.mxu0 0
      %1609 = vmatprep.subr.bf16.mxu0 0
      %1610 = vmatpush1.bf16.msra.mxu0 0
      %1611 = vmatprep.subr.bf16.mxu0 0
      %1612 = vmatpush1.bf16.msra.mxu0 0
      %1613 = vmatprep.subr.bf16.mxu0 0
      %1614 = vmatpush1.bf16.msra.mxu0 0
      %1615 = vmatprep.subr.bf16.mxu0 0
      %1616 = vmatpush1.bf16.msra.mxu0 0
      %1617 = vmatprep.mubr.bf16.mxu0 0
      %1618 = vmatmul.mubr.bf16.gmra.mrb[0].mxu0 %v1143
      %v1619 = vpop.f32.mrb[0].mxu0
      %v1620 = vadd.f32 %v1228, %v1619
      %v1621 = vpop.f32.mrb[0].mxu0
      %v1622 = vadd.f32 %v1232, %v1621
      %v1623 = vpop.f32.mrb[0].mxu0
      %v1624 = vadd.f32 %v1228, %v1623
      %v1625 = vpop.f32.mrb[0].mxu0
      %v1626 = vadd.f32 %v1232, %v1625
      %1627 = vmatprep.mubr.bf16.mxu0 0
      %1628 = vmatmul.mubr.bf16.gmra.mrb[0].mxu0 %v1144
      %v1629 = vpop.f32.mrb[0].mxu0
      %v1630 = vadd.f32 %v1228, %v1629
      %v1631 = vpop.f32.mrb[0].mxu0
      %v1632 = vadd.f32 %v1232, %v1631
      %v1633 = vpop.f32.mrb[0].mxu0
      %v1634 = vadd.f32 %v1228, %v1633
      %v1635 = vpop.f32.mrb[0].mxu0
      %v1636 = vadd.f32 %v1232, %v1635
      %1637 = vmatprep.mubr.bf16.mxu0 0
      %1638 = vmatmul.mubr.bf16.gmra.mrb[0].mxu0 %v1145
      %v1639 = vpop.f32.mrb[0].mxu0
      %v1640 = vadd.f32 %v1228, %v1639
      %v1641 = vpop.f32.mrb[0].mxu0
      %v1642 = vadd.f32 %v1232, %v1641
      %v1643 = vpop.f32.mrb[0].mxu0
      %v1644 = vadd.f32 %v1228, %v1643
      %v1645 = vpop.f32.mrb[0].mxu0
      %v1646 = vadd.f32 %v1232, %v1645
      %1647 = vmatprep.mubr.bf16.mxu0 0
      %1648 = vmatmul.mubr.bf16.gmra.mrb[0].mxu0 %v1146
      %v1649 = vpop.f32.mrb[0].mxu0
      %v1650 = vadd.f32 %v1228, %v1649
      %v1651 = vpop.f32.mrb[0].mxu0
      %v1652 = vadd.f32 %v1232, %v1651
      %v1653 = vpop.f32.mrb[0].mxu0
      %v1654 = vadd.f32 %v1228, %v1653
      %v1655 = vpop.f32.mrb[0].mxu0
      %v1656 = vadd.f32 %v1232, %v1655
      %1657 = vmatprep.mubr.bf16.mxu0 0
      %1658 = vmatmul.mubr.bf16.gmra.mrb[0].mxu0 %v1147
      %v1659 = vpop.f32.mrb[0].mxu0
      %v1660 = vadd.f32 %v1228, %v1659
      %v1661 = vpop.f32.mrb[0].mxu0
      %v1662 = vadd.f32 %v1232, %v1661
      %v1663 = vpop.f32.mrb[0].mxu0
      %v1664 = vadd.f32 %v1228, %v1663
      %v1665 = vpop.f32.mrb[0].mxu0
      %v1666 = vadd.f32 %v1232, %v1665
      %1667 = vmatprep.mubr.bf16.mxu0 0
      %1668 = vmatmul.mubr.bf16.gmra.mrb[0].mxu0 %v1148
      %v1669 = vpop.f32.mrb[0].mxu0
      %v1670 = vadd.f32 %v1228, %v1669
      %v1671 = vpop.f32.mrb[0].mxu0
      %v1672 = vadd.f32 %v1232, %v1671
      %v1673 = vpop.f32.mrb[0].mxu0
      %v1674 = vadd.f32 %v1228, %v1673
      %v1675 = vpop.f32.mrb[0].mxu0
      %v1676 = vadd.f32 %v1232, %v1675
      %1677 = vmatprep.mubr.bf16.mxu0 0
      %1678 = vmatmul.mubr.bf16.gmra.mrb[0].mxu0 %v1149
      %v1679 = vpop.f32.mrb[0].mxu0
      %v1680 = vadd.f32 %v1228, %v1679
      %v1681 = vpop.f32.mrb[0].mxu0
      %v1682 = vadd.f32 %v1232, %v1681
      %v1683 = vpop.f32.mrb[0].mxu0
      %v1684 = vadd.f32 %v1228, %v1683
      %v1685 = vpop.f32.mrb[0].mxu0
      %v1686 = vadd.f32 %v1232, %v1685
      %1687 = vmatprep.mubr.bf16.mxu0 0
      %1688 = vmatmul.mubr.bf16.gmra.mrb[0].mxu0 %v1150
      %v1689 = vpop.f32.mrb[0].mxu0
      %v1690 = vadd.f32 %v1228, %v1689
      %v1691 = vpop.f32.mrb[0].mxu0
      %v1692 = vadd.f32 %v1232, %v1691
      %v1693 = vpop.f32.mrb[0].mxu0
      %v1694 = vadd.f32 %v1228, %v1693
      %v1695 = vpop.f32.mrb[0].mxu0
      %v1696 = vadd.f32 %v1232, %v1695
      %1697 = vmatprep.mubr.bf16.mxu0 0
      %1698 = vmatmul.mubr.bf16.gmra.mrb[0].mxu0 %v1151
      %v1699 = vpop.f32.mrb[0].mxu0
      %v1700 = vadd.f32 %v1228, %v1699
      %v1701 = vpop.f32.mrb[0].mxu0
      %v1702 = vadd.f32 %v1232, %v1701
      %v1703 = vpop.f32.mrb[0].mxu0
      %v1704 = vadd.f32 %v1228, %v1703
      %v1705 = vpop.f32.mrb[0].mxu0
      %v1706 = vadd.f32 %v1232, %v1705
      %1707 = vmatprep.mubr.bf16.mxu0 0
      %1708 = vmatmul.mubr.bf16.gmra.mrb[0].mxu0 %v1152
      %v1709 = vpop.f32.mrb[0].mxu0
      %v1710 = vadd.f32 %v1228, %v1709
      %v1711 = vpop.f32.mrb[0].mxu0
      %v1712 = vadd.f32 %v1232, %v1711
      %v1713 = vpop.f32.mrb[0].mxu0
      %v1714 = vadd.f32 %v1228, %v1713
      %v1715 = vpop.f32.mrb[0].mxu0
      %v1716 = vadd.f32 %v1232, %v1715
      %1717 = vmatprep.mubr.bf16.mxu0 0
      %1718 = vmatmul.mubr.bf16.gmra.mrb[0].mxu0 %v1153
      %v1719 = vpop.f32.mrb[0].mxu0
      %v1720 = vadd.f32 %v1228, %v1719
      %v1721 = vpop.f32.mrb[0].mxu0
      %v1722 = vadd.f32 %v1232, %v1721
      %v1723 = vpop.f32.mrb[0].mxu0
      %v1724 = vadd.f32 %v1228, %v1723
      %v1725 = vpop.f32.mrb[0].mxu0
      %v1726 = vadd.f32 %v1232, %v1725
      %1727 = vmatprep.mubr.bf16.mxu0 0
      %1728 = vmatmul.mubr.bf16.gmra.mrb[0].mxu0 %v1154
      %v1729 = vpop.f32.mrb[0].mxu0
      %v1730 = vadd.f32 %v1228, %v1729
      %v1731 = vpop.f32.mrb[0].mxu0
      %v1732 = vadd.f32 %v1232, %v1731
      %v1733 = vpop.f32.mrb[0].mxu0
      %v1734 = vadd.f32 %v1228, %v1733
      %v1735 = vpop.f32.mrb[0].mxu0
      %v1736 = vadd.f32 %v1232, %v1735
      %1737 = vmatprep.mubr.bf16.mxu0 0
      %1738 = vmatmul.mubr.bf16.gmra.mrb[0].mxu0 %v1155
      %v1739 = vpop.f32.mrb[0].mxu0
      %v1740 = vadd.f32 %v1228, %v1739
      %v1741 = vpop.f32.mrb[0].mxu0
      %v1742 = vadd.f32 %v1232, %v1741
      %v1743 = vpop.f32.mrb[0].mxu0
      %v1744 = vadd.f32 %v1228, %v1743
      %v1745 = vpop.f32.mrb[0].mxu0
      %v1746 = vadd.f32 %v1232, %v1745
      %1747 = vmatprep.mubr.bf16.mxu0 0
      %1748 = vmatmul.mubr.bf16.gmra.mrb[0].mxu0 %v1156
      %v1749 = vpop.f32.mrb[0].mxu0
      %v1750 = vadd.f32 %v1228, %v1749
      %v1751 = vpop.f32.mrb[0].mxu0
      %v1752 = vadd.f32 %v1232, %v1751
      %v1753 = vpop.f32.mrb[0].mxu0
      %v1754 = vadd.f32 %v1228, %v1753
      %v1755 = vpop.f32.mrb[0].mxu0
      %v1756 = vadd.f32 %v1232, %v1755
      %1757 = vmatprep.mubr.bf16.mxu0 0
      %1758 = vmatmul.mubr.bf16.gmra.mrb[0].mxu0 %v1157
      %v1759 = vpop.f32.mrb[0].mxu0
      %v1760 = vadd.f32 %v1228, %v1759
      %v1761 = vpop.f32.mrb[0].mxu0
      %v1762 = vadd.f32 %v1232, %v1761
      %v1763 = vpop.f32.mrb[0].mxu0
      %v1764 = vadd.f32 %v1228, %v1763
      %v1765 = vpop.f32.mrb[0].mxu0
      %v1766 = vadd.f32 %v1232, %v1765
      %1767 = vmatprep.mubr.bf16.mxu0 0
      %1768 = vmatmul.mubr.bf16.gmra.mrb[0].mxu0 %v1158
      %v1769 = vpop.f32.mrb[0].mxu0
      %v1770 = vadd.f32 %v1228, %v1769
      %v1771 = vpop.f32.mrb[0].mxu0
      %v1772 = vadd.f32 %v1232, %v1771
      %v1773 = vpop.f32.mrb[0].mxu0
      %v1774 = vadd.f32 %v1228, %v1773
      %v1775 = vpop.f32.mrb[0].mxu0
      %v1776 = vadd.f32 %v1232, %v1775
      %1777 = vdwg.mxu0
      %1778 = vmatprep.subr.bf16.mxu0 %v1460
      %1779 = vmatpush1.bf16.msra.mxu0 %v1459
      %1780 = vmatprep.subr.bf16.mxu0 %v1468
      %1781 = vmatpush1.bf16.msra.mxu0 %v1467
      %1782 = vmatprep.subr.bf16.mxu0 %v1476
      %1783 = vmatpush1.bf16.msra.mxu0 %v1475
      %1784 = vmatprep.subr.bf16.mxu0 %v1484
      %1785 = vmatpush1.bf16.msra.mxu0 %v1483
      %1786 = vmatprep.subr.bf16.mxu0 %v1492
      %1787 = vmatpush1.bf16.msra.mxu0 %v1491
      %1788 = vmatprep.subr.bf16.mxu0 %v1500
      %1789 = vmatpush1.bf16.msra.mxu0 %v1499
      %1790 = vmatprep.subr.bf16.mxu0 %v1508
      %1791 = vmatpush1.bf16.msra.mxu0 %v1507
      %1792 = vmatprep.subr.bf16.mxu0 %v1516
      %1793 = vmatpush1.bf16.msra.mxu0 %v1515
      %1794 = vmatprep.subr.bf16.mxu0 0
      %1795 = vmatpush1.bf16.msra.mxu0 0
      %1796 = vmatprep.subr.bf16.mxu0 0
      %1797 = vmatpush1.bf16.msra.mxu0 0
      %1798 = vmatprep.subr.bf16.mxu0 0
      %1799 = vmatpush1.bf16.msra.mxu0 0
      %1800 = vmatprep.subr.bf16.mxu0 0
      %1801 = vmatpush1.bf16.msra.mxu0 0
      %1802 = vmatprep.subr.bf16.mxu0 0
      %1803 = vmatpush1.bf16.msra.mxu0 0
      %1804 = vmatprep.subr.bf16.mxu0 0
      %1805 = vmatpush1.bf16.msra.mxu0 0
      %1806 = vmatprep.subr.bf16.mxu0 0
      %1807 = vmatpush1.bf16.msra.mxu0 0
      %1808 = vmatprep.subr.bf16.mxu0 0
      %1809 = vmatpush1.bf16.msra.mxu0 0
      %1810 = vmatprep.mubr.bf16.mxu0 0
      %1811 = vmatmul.mubr.bf16.gmra.mrb[0].mxu0 %v1143
      %v1812 = vpop.f32.mrb[0].mxu0
      %v1813 = vadd.f32 %v1236, %v1812
      %v1814 = vpop.f32.mrb[0].mxu0
      %v1815 = vadd.f32 %v1240, %v1814
      %v1816 = vpop.f32.mrb[0].mxu0
      %v1817 = vadd.f32 %v1236, %v1816
      %v1818 = vpop.f32.mrb[0].mxu0
      %v1819 = vadd.f32 %v1240, %v1818
      %1820 = vmatprep.mubr.bf16.mxu0 0
      %1821 = vmatmul.mubr.bf16.gmra.mrb[0].mxu0 %v1144
      %v1822 = vpop.f32.mrb[0].mxu0
      %v1823 = vadd.f32 %v1236, %v1822
      %v1824 = vpop.f32.mrb[0].mxu0
      %v1825 = vadd.f32 %v1240, %v1824
      %v1826 = vpop.f32.mrb[0].mxu0
      %v1827 = vadd.f32 %v1236, %v1826
      %v1828 = vpop.f32.mrb[0].mxu0
      %v1829 = vadd.f32 %v1240, %v1828
      %1830 = vmatprep.mubr.bf16.mxu0 0
      %1831 = vmatmul.mubr.bf16.gmra.mrb[0].mxu0 %v1145
      %v1832 = vpop.f32.mrb[0].mxu0
      %v1833 = vadd.f32 %v1236, %v1832
      %v1834 = vpop.f32.mrb[0].mxu0
      %v1835 = vadd.f32 %v1240, %v1834
      %v1836 = vpop.f32.mrb[0].mxu0
      %v1837 = vadd.f32 %v1236, %v1836
      %v1838 = vpop.f32.mrb[0].mxu0
      %v1839 = vadd.f32 %v1240, %v1838
      %1840 = vmatprep.mubr.bf16.mxu0 0
      %1841 = vmatmul.mubr.bf16.gmra.mrb[0].mxu0 %v1146
      %v1842 = vpop.f32.mrb[0].mxu0
      %v1843 = vadd.f32 %v1236, %v1842
      %v1844 = vpop.f32.mrb[0].mxu0
      %v1845 = vadd.f32 %v1240, %v1844
      %v1846 = vpop.f32.mrb[0].mxu0
      %v1847 = vadd.f32 %v1236, %v1846
      %v1848 = vpop.f32.mrb[0].mxu0
      %v1849 = vadd.f32 %v1240, %v1848
      %1850 = vmatprep.mubr.bf16.mxu0 0
      %1851 = vmatmul.mubr.bf16.gmra.mrb[0].mxu0 %v1147
      %v1852 = vpop.f32.mrb[0].mxu0
      %v1853 = vadd.f32 %v1236, %v1852
      %v1854 = vpop.f32.mrb[0].mxu0
      %v1855 = vadd.f32 %v1240, %v1854
      %v1856 = vpop.f32.mrb[0].mxu0
      %v1857 = vadd.f32 %v1236, %v1856
      %v1858 = vpop.f32.mrb[0].mxu0
      %v1859 = vadd.f32 %v1240, %v1858
      %1860 = vmatprep.mubr.bf16.mxu0 0
      %1861 = vmatmul.mubr.bf16.gmra.mrb[0].mxu0 %v1148
      %v1862 = vpop.f32.mrb[0].mxu0
      %v1863 = vadd.f32 %v1236, %v1862
      %v1864 = vpop.f32.mrb[0].mxu0
      %v1865 = vadd.f32 %v1240, %v1864
      %v1866 = vpop.f32.mrb[0].mxu0
      %v1867 = vadd.f32 %v1236, %v1866
      %v1868 = vpop.f32.mrb[0].mxu0
      %v1869 = vadd.f32 %v1240, %v1868
      %1870 = vmatprep.mubr.bf16.mxu0 0
      %1871 = vmatmul.mubr.bf16.gmra.mrb[0].mxu0 %v1149
      %v1872 = vpop.f32.mrb[0].mxu0
      %v1873 = vadd.f32 %v1236, %v1872
      %v1874 = vpop.f32.mrb[0].mxu0
      %v1875 = vadd.f32 %v1240, %v1874
      %v1876 = vpop.f32.mrb[0].mxu0
      %v1877 = vadd.f32 %v1236, %v1876
      %v1878 = vpop.f32.mrb[0].mxu0
      %v1879 = vadd.f32 %v1240, %v1878
      %1880 = vmatprep.mubr.bf16.mxu0 0
      %1881 = vmatmul.mubr.bf16.gmra.mrb[0].mxu0 %v1150
      %v1882 = vpop.f32.mrb[0].mxu0
      %v1883 = vadd.f32 %v1236, %v1882
      %v1884 = vpop.f32.mrb[0].mxu0
      %v1885 = vadd.f32 %v1240, %v1884
      %v1886 = vpop.f32.mrb[0].mxu0
      %v1887 = vadd.f32 %v1236, %v1886
      %v1888 = vpop.f32.mrb[0].mxu0
      %v1889 = vadd.f32 %v1240, %v1888
      %1890 = vmatprep.mubr.bf16.mxu0 0
      %1891 = vmatmul.mubr.bf16.gmra.mrb[0].mxu0 %v1151
      %v1892 = vpop.f32.mrb[0].mxu0
      %v1893 = vadd.f32 %v1236, %v1892
      %v1894 = vpop.f32.mrb[0].mxu0
      %v1895 = vadd.f32 %v1240, %v1894
      %v1896 = vpop.f32.mrb[0].mxu0
      %v1897 = vadd.f32 %v1236, %v1896
      %v1898 = vpop.f32.mrb[0].mxu0
      %v1899 = vadd.f32 %v1240, %v1898
      %1900 = vmatprep.mubr.bf16.mxu0 0
      %1901 = vmatmul.mubr.bf16.gmra.mrb[0].mxu0 %v1152
      %v1902 = vpop.f32.mrb[0].mxu0
      %v1903 = vadd.f32 %v1236, %v1902
      %v1904 = vpop.f32.mrb[0].mxu0
      %v1905 = vadd.f32 %v1240, %v1904
      %v1906 = vpop.f32.mrb[0].mxu0
      %v1907 = vadd.f32 %v1236, %v1906
      %v1908 = vpop.f32.mrb[0].mxu0
      %v1909 = vadd.f32 %v1240, %v1908
      %1910 = vmatprep.mubr.bf16.mxu0 0
      %1911 = vmatmul.mubr.bf16.gmra.mrb[0].mxu0 %v1153
      %v1912 = vpop.f32.mrb[0].mxu0
      %v1913 = vadd.f32 %v1236, %v1912
      %v1914 = vpop.f32.mrb[0].mxu0
      %v1915 = vadd.f32 %v1240, %v1914
      %v1916 = vpop.f32.mrb[0].mxu0
      %v1917 = vadd.f32 %v1236, %v1916
      %v1918 = vpop.f32.mrb[0].mxu0
      %v1919 = vadd.f32 %v1240, %v1918
      %1920 = vmatprep.mubr.bf16.mxu0 0
      %1921 = vmatmul.mubr.bf16.gmra.mrb[0].mxu0 %v1154
      %v1922 = vpop.f32.mrb[0].mxu0
      %v1923 = vadd.f32 %v1236, %v1922
      %v1924 = vpop.f32.mrb[0].mxu0
      %v1925 = vadd.f32 %v1240, %v1924
      %v1926 = vpop.f32.mrb[0].mxu0
      %v1927 = vadd.f32 %v1236, %v1926
      %v1928 = vpop.f32.mrb[0].mxu0
      %v1929 = vadd.f32 %v1240, %v1928
      %1930 = vmatprep.mubr.bf16.mxu0 0
      %1931 = vmatmul.mubr.bf16.gmra.mrb[0].mxu0 %v1155
      %v1932 = vpop.f32.mrb[0].mxu0
      %v1933 = vadd.f32 %v1236, %v1932
      %v1934 = vpop.f32.mrb[0].mxu0
      %v1935 = vadd.f32 %v1240, %v1934
      %v1936 = vpop.f32.mrb[0].mxu0
      %v1937 = vadd.f32 %v1236, %v1936
      %v1938 = vpop.f32.mrb[0].mxu0
      %v1939 = vadd.f32 %v1240, %v1938
      %1940 = vmatprep.mubr.bf16.mxu0 0
      %1941 = vmatmul.mubr.bf16.gmra.mrb[0].mxu0 %v1156
      %v1942 = vpop.f32.mrb[0].mxu0
      %v1943 = vadd.f32 %v1236, %v1942
      %v1944 = vpop.f32.mrb[0].mxu0
      %v1945 = vadd.f32 %v1240, %v1944
      %v1946 = vpop.f32.mrb[0].mxu0
      %v1947 = vadd.f32 %v1236, %v1946
      %v1948 = vpop.f32.mrb[0].mxu0
      %v1949 = vadd.f32 %v1240, %v1948
      %1950 = vmatprep.mubr.bf16.mxu0 0
      %1951 = vmatmul.mubr.bf16.gmra.mrb[0].mxu0 %v1157
      %v1952 = vpop.f32.mrb[0].mxu0
      %v1953 = vadd.f32 %v1236, %v1952
      %v1954 = vpop.f32.mrb[0].mxu0
      %v1955 = vadd.f32 %v1240, %v1954
      %v1956 = vpop.f32.mrb[0].mxu0
      %v1957 = vadd.f32 %v1236, %v1956
      %v1958 = vpop.f32.mrb[0].mxu0
      %v1959 = vadd.f32 %v1240, %v1958
      %1960 = vmatprep.mubr.bf16.mxu0 0
      %1961 = vmatmul.mubr.bf16.gmra.mrb[0].mxu0 %v1158
      %v1962 = vpop.f32.mrb[0].mxu0
      %v1963 = vadd.f32 %v1236, %v1962
      %v1964 = vpop.f32.mrb[0].mxu0
      %v1965 = vadd.f32 %v1240, %v1964
      %v1966 = vpop.f32.mrb[0].mxu0
      %v1967 = vadd.f32 %v1236, %v1966
      %v1968 = vpop.f32.mrb[0].mxu0
      %v1969 = vadd.f32 %v1240, %v1968
      %1970 = vdwg.mxu0
      %1971 = vmatprep.subr.bf16.mxu0 %v1462
      %1972 = vmatpush1.bf16.msra.mxu0 %v1461
      %1973 = vmatprep.subr.bf16.mxu0 %v1470
      %1974 = vmatpush1.bf16.msra.mxu0 %v1469
      %1975 = vmatprep.subr.bf16.mxu0 %v1478
      %1976 = vmatpush1.bf16.msra.mxu0 %v1477
      %1977 = vmatprep.subr.bf16.mxu0 %v1486
      %1978 = vmatpush1.bf16.msra.mxu0 %v1485
      %1979 = vmatprep.subr.bf16.mxu0 %v1494
      %1980 = vmatpush1.bf16.msra.mxu0 %v1493
      %1981 = vmatprep.subr.bf16.mxu0 %v1502
      %1982 = vmatpush1.bf16.msra.mxu0 %v1501
      %1983 = vmatprep.subr.bf16.mxu0 %v1510
      %1984 = vmatpush1.bf16.msra.mxu0 %v1509
      %1985 = vmatprep.subr.bf16.mxu0 %v1518
      %1986 = vmatpush1.bf16.msra.mxu0 %v1517
      %1987 = vmatprep.subr.bf16.mxu0 0
      %1988 = vmatpush1.bf16.msra.mxu0 0
      %1989 = vmatprep.subr.bf16.mxu0 0
      %1990 = vmatpush1.bf16.msra.mxu0 0
      %1991 = vmatprep.subr.bf16.mxu0 0
      %1992 = vmatpush1.bf16.msra.mxu0 0
      %1993 = vmatprep.subr.bf16.mxu0 0
      %1994 = vmatpush1.bf16.msra.mxu0 0
      %1995 = vmatprep.subr.bf16.mxu0 0
      %1996 = vmatpush1.bf16.msra.mxu0 0
      %1997 = vmatprep.subr.bf16.mxu0 0
      %1998 = vmatpush1.bf16.msra.mxu0 0
      %1999 = vmatprep.subr.bf16.mxu0 0
      %2000 = vmatpush1.bf16.msra.mxu0 0
      %2001 = vmatprep.subr.bf16.mxu0 0
      %2002 = vmatpush1.bf16.msra.mxu0 0
      %2003 = vmatprep.mubr.bf16.mxu0 0
      %2004 = vmatmul.mubr.bf16.gmra.mrb[0].mxu0 %v1143
      %v2005 = vpop.f32.mrb[0].mxu0
      %v2006 = vadd.f32 %v1244, %v2005
      %v2007 = vpop.f32.mrb[0].mxu0
      %v2008 = vadd.f32 %v1248, %v2007
      %v2009 = vpop.f32.mrb[0].mxu0
      %v2010 = vadd.f32 %v1244, %v2009
      %v2011 = vpop.f32.mrb[0].mxu0
      %v2012 = vadd.f32 %v1248, %v2011
      %2013 = vmatprep.mubr.bf16.mxu0 0
      %2014 = vmatmul.mubr.bf16.gmra.mrb[0].mxu0 %v1144
      %v2015 = vpop.f32.mrb[0].mxu0
      %v2016 = vadd.f32 %v1244, %v2015
      %v2017 = vpop.f32.mrb[0].mxu0
      %v2018 = vadd.f32 %v1248, %v2017
      %v2019 = vpop.f32.mrb[0].mxu0
      %v2020 = vadd.f32 %v1244, %v2019
      %v2021 = vpop.f32.mrb[0].mxu0
      %v2022 = vadd.f32 %v1248, %v2021
      %2023 = vmatprep.mubr.bf16.mxu0 0
      %2024 = vmatmul.mubr.bf16.gmra.mrb[0].mxu0 %v1145
      %v2025 = vpop.f32.mrb[0].mxu0
      %v2026 = vadd.f32 %v1244, %v2025
      %v2027 = vpop.f32.mrb[0].mxu0
      %v2028 = vadd.f32 %v1248, %v2027
      %v2029 = vpop.f32.mrb[0].mxu0
      %v2030 = vadd.f32 %v1244, %v2029
      %v2031 = vpop.f32.mrb[0].mxu0
      %v2032 = vadd.f32 %v1248, %v2031
      %2033 = vmatprep.mubr.bf16.mxu0 0
      %2034 = vmatmul.mubr.bf16.gmra.mrb[0].mxu0 %v1146
      %v2035 = vpop.f32.mrb[0].mxu0
      %v2036 = vadd.f32 %v1244, %v2035
      %v2037 = vpop.f32.mrb[0].mxu0
      %v2038 = vadd.f32 %v1248, %v2037
      %v2039 = vpop.f32.mrb[0].mxu0
      %v2040 = vadd.f32 %v1244, %v2039
      %v2041 = vpop.f32.mrb[0].mxu0
      %v2042 = vadd.f32 %v1248, %v2041
      %2043 = vmatprep.mubr.bf16.mxu0 0
      %2044 = vmatmul.mubr.bf16.gmra.mrb[0].mxu0 %v1147
      %v2045 = vpop.f32.mrb[0].mxu0
      %v2046 = vadd.f32 %v1244, %v2045
      %v2047 = vpop.f32.mrb[0].mxu0
      %v2048 = vadd.f32 %v1248, %v2047
      %v2049 = vpop.f32.mrb[0].mxu0
      %v2050 = vadd.f32 %v1244, %v2049
      %v2051 = vpop.f32.mrb[0].mxu0
      %v2052 = vadd.f32 %v1248, %v2051
      %2053 = vmatprep.mubr.bf16.mxu0 0
      %2054 = vmatmul.mubr.bf16.gmra.mrb[0].mxu0 %v1148
      %v2055 = vpop.f32.mrb[0].mxu0
      %v2056 = vadd.f32 %v1244, %v2055
      %v2057 = vpop.f32.mrb[0].mxu0
      %v2058 = vadd.f32 %v1248, %v2057
      %v2059 = vpop.f32.mrb[0].mxu0
      %v2060 = vadd.f32 %v1244, %v2059
      %v2061 = vpop.f32.mrb[0].mxu0
      %v2062 = vadd.f32 %v1248, %v2061
      %2063 = vmatprep.mubr.bf16.mxu0 0
      %2064 = vmatmul.mubr.bf16.gmra.mrb[0].mxu0 %v1149
      %v2065 = vpop.f32.mrb[0].mxu0
      %v2066 = vadd.f32 %v1244, %v2065
      %v2067 = vpop.f32.mrb[0].mxu0
      %v2068 = vadd.f32 %v1248, %v2067
      %v2069 = vpop.f32.mrb[0].mxu0
      %v2070 = vadd.f32 %v1244, %v2069
      %v2071 = vpop.f32.mrb[0].mxu0
      %v2072 = vadd.f32 %v1248, %v2071
      %2073 = vmatprep.mubr.bf16.mxu0 0
      %2074 = vmatmul.mubr.bf16.gmra.mrb[0].mxu0 %v1150
      %v2075 = vpop.f32.mrb[0].mxu0
      %v2076 = vadd.f32 %v1244, %v2075
      %v2077 = vpop.f32.mrb[0].mxu0
      %v2078 = vadd.f32 %v1248, %v2077
      %v2079 = vpop.f32.mrb[0].mxu0
      %v2080 = vadd.f32 %v1244, %v2079
      %v2081 = vpop.f32.mrb[0].mxu0
      %v2082 = vadd.f32 %v1248, %v2081
      %2083 = vmatprep.mubr.bf16.mxu0 0
      %2084 = vmatmul.mubr.bf16.gmra.mrb[0].mxu0 %v1151
      %v2085 = vpop.f32.mrb[0].mxu0
      %v2086 = vadd.f32 %v1244, %v2085
      %v2087 = vpop.f32.mrb[0].mxu0
      %v2088 = vadd.f32 %v1248, %v2087
      %v2089 = vpop.f32.mrb[0].mxu0
      %v2090 = vadd.f32 %v1244, %v2089
      %v2091 = vpop.f32.mrb[0].mxu0
      %v2092 = vadd.f32 %v1248, %v2091
      %2093 = vmatprep.mubr.bf16.mxu0 0
      %2094 = vmatmul.mubr.bf16.gmra.mrb[0].mxu0 %v1152
      %v2095 = vpop.f32.mrb[0].mxu0
      %v2096 = vadd.f32 %v1244, %v2095
      %v2097 = vpop.f32.mrb[0].mxu0
      %v2098 = vadd.f32 %v1248, %v2097
      %v2099 = vpop.f32.mrb[0].mxu0
      %v2100 = vadd.f32 %v1244, %v2099
      %v2101 = vpop.f32.mrb[0].mxu0
      %v2102 = vadd.f32 %v1248, %v2101
      %2103 = vmatprep.mubr.bf16.mxu0 0
      %2104 = vmatmul.mubr.bf16.gmra.mrb[0].mxu0 %v1153
      %v2105 = vpop.f32.mrb[0].mxu0
      %v2106 = vadd.f32 %v1244, %v2105
      %v2107 = vpop.f32.mrb[0].mxu0
      %v2108 = vadd.f32 %v1248, %v2107
      %v2109 = vpop.f32.mrb[0].mxu0
      %v2110 = vadd.f32 %v1244, %v2109
      %v2111 = vpop.f32.mrb[0].mxu0
      %v2112 = vadd.f32 %v1248, %v2111
      %2113 = vmatprep.mubr.bf16.mxu0 0
      %2114 = vmatmul.mubr.bf16.gmra.mrb[0].mxu0 %v1154
      %v2115 = vpop.f32.mrb[0].mxu0
      %v2116 = vadd.f32 %v1244, %v2115
      %v2117 = vpop.f32.mrb[0].mxu0
      %v2118 = vadd.f32 %v1248, %v2117
      %v2119 = vpop.f32.mrb[0].mxu0
      %v2120 = vadd.f32 %v1244, %v2119
      %v2121 = vpop.f32.mrb[0].mxu0
      %v2122 = vadd.f32 %v1248, %v2121
      %2123 = vmatprep.mubr.bf16.mxu0 0
      %2124 = vmatmul.mubr.bf16.gmra.mrb[0].mxu0 %v1155
      %v2125 = vpop.f32.mrb[0].mxu0
      %v2126 = vadd.f32 %v1244, %v2125
      %v2127 = vpop.f32.mrb[0].mxu0
      %v2128 = vadd.f32 %v1248, %v2127
      %v2129 = vpop.f32.mrb[0].mxu0
      %v2130 = vadd.f32 %v1244, %v2129
      %v2131 = vpop.f32.mrb[0].mxu0
      %v2132 = vadd.f32 %v1248, %v2131
      %2133 = vmatprep.mubr.bf16.mxu0 0
      %2134 = vmatmul.mubr.bf16.gmra.mrb[0].mxu0 %v1156
      %v2135 = vpop.f32.mrb[0].mxu0
      %v2136 = vadd.f32 %v1244, %v2135
      %v2137 = vpop.f32.mrb[0].mxu0
      %v2138 = vadd.f32 %v1248, %v2137
      %v2139 = vpop.f32.mrb[0].mxu0
      %v2140 = vadd.f32 %v1244, %v2139
      %v2141 = vpop.f32.mrb[0].mxu0
      %v2142 = vadd.f32 %v1248, %v2141
      %2143 = vmatprep.mubr.bf16.mxu0 0
      %2144 = vmatmul.mubr.bf16.gmra.mrb[0].mxu0 %v1157
      %v2145 = vpop.f32.mrb[0].mxu0
      %v2146 = vadd.f32 %v1244, %v2145
      %v2147 = vpop.f32.mrb[0].mxu0
      %v2148 = vadd.f32 %v1248, %v2147
      %v2149 = vpop.f32.mrb[0].mxu0
      %v2150 = vadd.f32 %v1244, %v2149
      %v2151 = vpop.f32.mrb[0].mxu0
      %v2152 = vadd.f32 %v1248, %v2151
      %2153 = vmatprep.mubr.bf16.mxu0 0
      %2154 = vmatmul.mubr.bf16.gmra.mrb[0].mxu0 %v1158
      %v2155 = vpop.f32.mrb[0].mxu0
      %v2156 = vadd.f32 %v1244, %v2155
      %v2157 = vpop.f32.mrb[0].mxu0
      %v2158 = vadd.f32 %v1248, %v2157
      %v2159 = vpop.f32.mrb[0].mxu0
      %v2160 = vadd.f32 %v1244, %v2159
      %v2161 = vpop.f32.mrb[0].mxu0
      %v2162 = vadd.f32 %v1248, %v2161
      %2163 = vdwg.mxu0
      %2164 = vmatprep.subr.bf16.mxu0 %v1464
      %2165 = vmatpush1.bf16.msra.mxu0 %v1463
      %2166 = vmatprep.subr.bf16.mxu0 %v1472
      %2167 = vmatpush1.bf16.msra.mxu0 %v1471
      %2168 = vmatprep.subr.bf16.mxu0 %v1480
      %2169 = vmatpush1.bf16.msra.mxu0 %v1479
      %2170 = vmatprep.subr.bf16.mxu0 %v1488
      %2171 = vmatpush1.bf16.msra.mxu0 %v1487
      %2172 = vmatprep.subr.bf16.mxu0 %v1496
      %2173 = vmatpush1.bf16.msra.mxu0 %v1495
      %2174 = vmatprep.subr.bf16.mxu0 %v1504
      %2175 = vmatpush1.bf16.msra.mxu0 %v1503
      %2176 = vmatprep.subr.bf16.mxu0 %v1512
      %2177 = vmatpush1.bf16.msra.mxu0 %v1511
      %2178 = vmatprep.subr.bf16.mxu0 %v1520
      %2179 = vmatpush1.bf16.msra.mxu0 %v1519
      %2180 = vmatprep.subr.bf16.mxu0 0
      %2181 = vmatpush1.bf16.msra.mxu0 0
      %2182 = vmatprep.subr.bf16.mxu0 0
      %2183 = vmatpush1.bf16.msra.mxu0 0
      %2184 = vmatprep.subr.bf16.mxu0 0
      %2185 = vmatpush1.bf16.msra.mxu0 0
      %2186 = vmatprep.subr.bf16.mxu0 0
      %2187 = vmatpush1.bf16.msra.mxu0 0
      %2188 = vmatprep.subr.bf16.mxu0 0
      %2189 = vmatpush1.bf16.msra.mxu0 0
      %2190 = vmatprep.subr.bf16.mxu0 0
      %2191 = vmatpush1.bf16.msra.mxu0 0
      %2192 = vmatprep.subr.bf16.mxu0 0
      %2193 = vmatpush1.bf16.msra.mxu0 0
      %2194 = vmatprep.subr.bf16.mxu0 0
      %2195 = vmatpush1.bf16.msra.mxu0 0
      %2196 = vmatprep.mubr.bf16.mxu0 0
      %2197 = vmatmul.mubr.bf16.gmra.mrb[0].mxu0 %v1143
      %v2198 = vpop.f32.mrb[0].mxu0
      %v2199 = vadd.f32 %v1252, %v2198
      %v2200 = vpop.f32.mrb[0].mxu0
      %v2201 = vadd.f32 %v1256, %v2200
      %v2202 = vpop.f32.mrb[0].mxu0
      %v2203 = vadd.f32 %v1252, %v2202
      %v2204 = vpop.f32.mrb[0].mxu0
      %v2205 = vadd.f32 %v1256, %v2204
      %2206 = vmatprep.mubr.bf16.mxu0 0
      %2207 = vmatmul.mubr.bf16.gmra.mrb[0].mxu0 %v1144
      %v2208 = vpop.f32.mrb[0].mxu0
      %v2209 = vadd.f32 %v1252, %v2208
      %v2210 = vpop.f32.mrb[0].mxu0
      %v2211 = vadd.f32 %v1256, %v2210
      %v2212 = vpop.f32.mrb[0].mxu0
      %v2213 = vadd.f32 %v1252, %v2212
      %v2214 = vpop.f32.mrb[0].mxu0
      %v2215 = vadd.f32 %v1256, %v2214
      %2216 = vmatprep.mubr.bf16.mxu0 0
      %2217 = vmatmul.mubr.bf16.gmra.mrb[0].mxu0 %v1145
      %v2218 = vpop.f32.mrb[0].mxu0
      %v2219 = vadd.f32 %v1252, %v2218
      %v2220 = vpop.f32.mrb[0].mxu0
      %v2221 = vadd.f32 %v1256, %v2220
      %v2222 = vpop.f32.mrb[0].mxu0
      %v2223 = vadd.f32 %v1252, %v2222
      %v2224 = vpop.f32.mrb[0].mxu0
      %v2225 = vadd.f32 %v1256, %v2224
      %2226 = vmatprep.mubr.bf16.mxu0 0
      %2227 = vmatmul.mubr.bf16.gmra.mrb[0].mxu0 %v1146
      %v2228 = vpop.f32.mrb[0].mxu0
      %v2229 = vadd.f32 %v1252, %v2228
      %v2230 = vpop.f32.mrb[0].mxu0
      %v2231 = vadd.f32 %v1256, %v2230
      %v2232 = vpop.f32.mrb[0].mxu0
      %v2233 = vadd.f32 %v1252, %v2232
      %v2234 = vpop.f32.mrb[0].mxu0
      %v2235 = vadd.f32 %v1256, %v2234
      %2236 = vmatprep.mubr.bf16.mxu0 0
      %2237 = vmatmul.mubr.bf16.gmra.mrb[0].mxu0 %v1147
      %v2238 = vpop.f32.mrb[0].mxu0
      %v2239 = vadd.f32 %v1252, %v2238
      %v2240 = vpop.f32.mrb[0].mxu0
      %v2241 = vadd.f32 %v1256, %v2240
      %v2242 = vpop.f32.mrb[0].mxu0
      %v2243 = vadd.f32 %v1252, %v2242
      %v2244 = vpop.f32.mrb[0].mxu0
      %v2245 = vadd.f32 %v1256, %v2244
      %2246 = vmatprep.mubr.bf16.mxu0 0
      %2247 = vmatmul.mubr.bf16.gmra.mrb[0].mxu0 %v1148
      %v2248 = vpop.f32.mrb[0].mxu0
      %v2249 = vadd.f32 %v1252, %v2248
      %v2250 = vpop.f32.mrb[0].mxu0
      %v2251 = vadd.f32 %v1256, %v2250
      %v2252 = vpop.f32.mrb[0].mxu0
      %v2253 = vadd.f32 %v1252, %v2252
      %v2254 = vpop.f32.mrb[0].mxu0
      %v2255 = vadd.f32 %v1256, %v2254
      %2256 = vmatprep.mubr.bf16.mxu0 0
      %2257 = vmatmul.mubr.bf16.gmra.mrb[0].mxu0 %v1149
      %v2258 = vpop.f32.mrb[0].mxu0
      %v2259 = vadd.f32 %v1252, %v2258
      %v2260 = vpop.f32.mrb[0].mxu0
      %v2261 = vadd.f32 %v1256, %v2260
      %v2262 = vpop.f32.mrb[0].mxu0
      %v2263 = vadd.f32 %v1252, %v2262
      %v2264 = vpop.f32.mrb[0].mxu0
      %v2265 = vadd.f32 %v1256, %v2264
      %2266 = vmatprep.mubr.bf16.mxu0 0
      %2267 = vmatmul.mubr.bf16.gmra.mrb[0].mxu0 %v1150
      %v2268 = vpop.f32.mrb[0].mxu0
      %v2269 = vadd.f32 %v1252, %v2268
      %v2270 = vpop.f32.mrb[0].mxu0
      %v2271 = vadd.f32 %v1256, %v2270
      %v2272 = vpop.f32.mrb[0].mxu0
      %v2273 = vadd.f32 %v1252, %v2272
      %v2274 = vpop.f32.mrb[0].mxu0
      %v2275 = vadd.f32 %v1256, %v2274
      %2276 = vmatprep.mubr.bf16.mxu0 0
      %2277 = vmatmul.mubr.bf16.gmra.mrb[0].mxu0 %v1151
      %v2278 = vpop.f32.mrb[0].mxu0
      %v2279 = vadd.f32 %v1252, %v2278
      %v2280 = vpop.f32.mrb[0].mxu0
      %v2281 = vadd.f32 %v1256, %v2280
      %v2282 = vpop.f32.mrb[0].mxu0
      %v2283 = vadd.f32 %v1252, %v2282
      %v2284 = vpop.f32.mrb[0].mxu0
      %v2285 = vadd.f32 %v1256, %v2284
      %2286 = vmatprep.mubr.bf16.mxu0 0
      %2287 = vmatmul.mubr.bf16.gmra.mrb[0].mxu0 %v1152
      %v2288 = vpop.f32.mrb[0].mxu0
      %v2289 = vadd.f32 %v1252, %v2288
      %v2290 = vpop.f32.mrb[0].mxu0
      %v2291 = vadd.f32 %v1256, %v2290
      %v2292 = vpop.f32.mrb[0].mxu0
      %v2293 = vadd.f32 %v1252, %v2292
      %v2294 = vpop.f32.mrb[0].mxu0
      %v2295 = vadd.f32 %v1256, %v2294
      %2296 = vmatprep.mubr.bf16.mxu0 0
      %2297 = vmatmul.mubr.bf16.gmra.mrb[0].mxu0 %v1153
      %v2298 = vpop.f32.mrb[0].mxu0
      %v2299 = vadd.f32 %v1252, %v2298
      %v2300 = vpop.f32.mrb[0].mxu0
      %v2301 = vadd.f32 %v1256, %v2300
      %v2302 = vpop.f32.mrb[0].mxu0
      %v2303 = vadd.f32 %v1252, %v2302
      %v2304 = vpop.f32.mrb[0].mxu0
      %v2305 = vadd.f32 %v1256, %v2304
      %2306 = vmatprep.mubr.bf16.mxu0 0
      %2307 = vmatmul.mubr.bf16.gmra.mrb[0].mxu0 %v1154
      %v2308 = vpop.f32.mrb[0].mxu0
      %v2309 = vadd.f32 %v1252, %v2308
      %v2310 = vpop.f32.mrb[0].mxu0
      %v2311 = vadd.f32 %v1256, %v2310
      %v2312 = vpop.f32.mrb[0].mxu0
      %v2313 = vadd.f32 %v1252, %v2312
      %v2314 = vpop.f32.mrb[0].mxu0
      %v2315 = vadd.f32 %v1256, %v2314
      %2316 = vmatprep.mubr.bf16.mxu0 0
      %2317 = vmatmul.mubr.bf16.gmra.mrb[0].mxu0 %v1155
      %v2318 = vpop.f32.mrb[0].mxu0
      %v2319 = vadd.f32 %v1252, %v2318
      %v2320 = vpop.f32.mrb[0].mxu0
      %v2321 = vadd.f32 %v1256, %v2320
      %v2322 = vpop.f32.mrb[0].mxu0
      %v2323 = vadd.f32 %v1252, %v2322
      %v2324 = vpop.f32.mrb[0].mxu0
      %v2325 = vadd.f32 %v1256, %v2324
      %2326 = vmatprep.mubr.bf16.mxu0 0
      %2327 = vmatmul.mubr.bf16.gmra.mrb[0].mxu0 %v1156
      %v2328 = vpop.f32.mrb[0].mxu0
      %v2329 = vadd.f32 %v1252, %v2328
      %v2330 = vpop.f32.mrb[0].mxu0
      %v2331 = vadd.f32 %v1256, %v2330
      %v2332 = vpop.f32.mrb[0].mxu0
      %v2333 = vadd.f32 %v1252, %v2332
      %v2334 = vpop.f32.mrb[0].mxu0
      %v2335 = vadd.f32 %v1256, %v2334
      %2336 = vmatprep.mubr.bf16.mxu0 0
      %2337 = vmatmul.mubr.bf16.gmra.mrb[0].mxu0 %v1157
      %v2338 = vpop.f32.mrb[0].mxu0
      %v2339 = vadd.f32 %v1252, %v2338
      %v2340 = vpop.f32.mrb[0].mxu0
      %v2341 = vadd.f32 %v1256, %v2340
      %v2342 = vpop.f32.mrb[0].mxu0
      %v2343 = vadd.f32 %v1252, %v2342
      %v2344 = vpop.f32.mrb[0].mxu0
      %v2345 = vadd.f32 %v1256, %v2344
      %2346 = vmatprep.mubr.bf16.mxu0 0
      %2347 = vmatmul.mubr.bf16.gmra.mrb[0].mxu0 %v1158
      %v2348 = vpop.f32.mrb[0].mxu0
      %v2349 = vadd.f32 %v1252, %v2348
      %v2350 = vpop.f32.mrb[0].mxu0
      %v2351 = vadd.f32 %v1256, %v2350
      %v2352 = vpop.f32.mrb[0].mxu0
      %v2353 = vadd.f32 %v1252, %v2352
      %v2354 = vpop.f32.mrb[0].mxu0
      %v2355 = vadd.f32 %v1256, %v2354
      %2356 = vdwg.mxu0
      %v2357 = vmax.f32 %v1620, 0.0
      %v2358 = vmax.f32 %v1622, 0.0
      %v2359 = vmax.f32 %v1813, 0.0
      %v2360 = vmax.f32 %v1815, 0.0
      %v2361 = vmax.f32 %v2006, 0.0
      %v2362 = vmax.f32 %v2008, 0.0
      %v2363 = vmax.f32 %v2199, 0.0
      %v2364 = vmax.f32 %v2201, 0.0
      %v2365 = vmax.f32 %v1624, 0.0
      %v2366 = vmax.f32 %v1626, 0.0
      %v2367 = vmax.f32 %v1817, 0.0
      %v2368 = vmax.f32 %v1819, 0.0
      %v2369 = vmax.f32 %v2010, 0.0
      %v2370 = vmax.f32 %v2012, 0.0
      %v2371 = vmax.f32 %v2203, 0.0
      %v2372 = vmax.f32 %v2205, 0.0
      %v2373 = vmax.f32 %v1630, 0.0
      %v2374 = vmax.f32 %v1632, 0.0
      %v2375 = vmax.f32 %v1823, 0.0
      %v2376 = vmax.f32 %v1825, 0.0
      %v2377 = vmax.f32 %v2016, 0.0
      %v2378 = vmax.f32 %v2018, 0.0
      %v2379 = vmax.f32 %v2209, 0.0
      %v2380 = vmax.f32 %v2211, 0.0
      %v2381 = vmax.f32 %v1634, 0.0
      %v2382 = vmax.f32 %v1636, 0.0
      %v2383 = vmax.f32 %v1827, 0.0
      %v2384 = vmax.f32 %v1829, 0.0
      %v2385 = vmax.f32 %v2020, 0.0
      %v2386 = vmax.f32 %v2022, 0.0
      %v2387 = vmax.f32 %v2213, 0.0
      %v2388 = vmax.f32 %v2215, 0.0
      %v2389 = vmax.f32 %v1640, 0.0
      %v2390 = vmax.f32 %v1642, 0.0
      %v2391 = vmax.f32 %v1833, 0.0
      %v2392 = vmax.f32 %v1835, 0.0
      %v2393 = vmax.f32 %v2026, 0.0
      %v2394 = vmax.f32 %v2028, 0.0
      %v2395 = vmax.f32 %v2219, 0.0
      %v2396 = vmax.f32 %v2221, 0.0
      %v2397 = vmax.f32 %v1644, 0.0
      %v2398 = vmax.f32 %v1646, 0.0
      %v2399 = vmax.f32 %v1837, 0.0
      %v2400 = vmax.f32 %v1839, 0.0
      %v2401 = vmax.f32 %v2030, 0.0
      %v2402 = vmax.f32 %v2032, 0.0
      %v2403 = vmax.f32 %v2223, 0.0
      %v2404 = vmax.f32 %v2225, 0.0
      %v2405 = vmax.f32 %v1650, 0.0
      %v2406 = vmax.f32 %v1652, 0.0
      %v2407 = vmax.f32 %v1843, 0.0
      %v2408 = vmax.f32 %v1845, 0.0
      %v2409 = vmax.f32 %v2036, 0.0
      %v2410 = vmax.f32 %v2038, 0.0
      %v2411 = vmax.f32 %v2229, 0.0
      %v2412 = vmax.f32 %v2231, 0.0
      %v2413 = vmax.f32 %v1654, 0.0
      %v2414 = vmax.f32 %v1656, 0.0
      %v2415 = vmax.f32 %v1847, 0.0
      %v2416 = vmax.f32 %v1849, 0.0
      %v2417 = vmax.f32 %v2040, 0.0
      %v2418 = vmax.f32 %v2042, 0.0
      %v2419 = vmax.f32 %v2233, 0.0
      %v2420 = vmax.f32 %v2235, 0.0
      %v2421 = vmax.f32 %v1660, 0.0
      %v2422 = vmax.f32 %v1662, 0.0
      %v2423 = vmax.f32 %v1853, 0.0
      %v2424 = vmax.f32 %v1855, 0.0
      %v2425 = vmax.f32 %v2046, 0.0
      %v2426 = vmax.f32 %v2048, 0.0
      %v2427 = vmax.f32 %v2239, 0.0
      %v2428 = vmax.f32 %v2241, 0.0
      %v2429 = vmax.f32 %v1664, 0.0
      %v2430 = vmax.f32 %v1666, 0.0
      %v2431 = vmax.f32 %v1857, 0.0
      %v2432 = vmax.f32 %v1859, 0.0
      %v2433 = vmax.f32 %v2050, 0.0
      %v2434 = vmax.f32 %v2052, 0.0
      %v2435 = vmax.f32 %v2243, 0.0
      %v2436 = vmax.f32 %v2245, 0.0
      %v2437 = vmax.f32 %v1670, 0.0
      %v2438 = vmax.f32 %v1672, 0.0
      %v2439 = vmax.f32 %v1863, 0.0
      %v2440 = vmax.f32 %v1865, 0.0
      %v2441 = vmax.f32 %v2056, 0.0
      %v2442 = vmax.f32 %v2058, 0.0
      %v2443 = vmax.f32 %v2249, 0.0
      %v2444 = vmax.f32 %v2251, 0.0
      %v2445 = vmax.f32 %v1674, 0.0
      %v2446 = vmax.f32 %v1676, 0.0
      %v2447 = vmax.f32 %v1867, 0.0
      %v2448 = vmax.f32 %v1869, 0.0
      %v2449 = vmax.f32 %v2060, 0.0
      %v2450 = vmax.f32 %v2062, 0.0
      %v2451 = vmax.f32 %v2253, 0.0
      %v2452 = vmax.f32 %v2255, 0.0
      %v2453 = vmax.f32 %v1680, 0.0
      %v2454 = vmax.f32 %v1682, 0.0
      %v2455 = vmax.f32 %v1873, 0.0
      %v2456 = vmax.f32 %v1875, 0.0
      %v2457 = vmax.f32 %v2066, 0.0
      %v2458 = vmax.f32 %v2068, 0.0
      %v2459 = vmax.f32 %v2259, 0.0
      %v2460 = vmax.f32 %v2261, 0.0
      %v2461 = vmax.f32 %v1684, 0.0
      %v2462 = vmax.f32 %v1686, 0.0
      %v2463 = vmax.f32 %v1877, 0.0
      %v2464 = vmax.f32 %v1879, 0.0
      %v2465 = vmax.f32 %v2070, 0.0
      %v2466 = vmax.f32 %v2072, 0.0
      %v2467 = vmax.f32 %v2263, 0.0
      %v2468 = vmax.f32 %v2265, 0.0
      %v2469 = vmax.f32 %v1690, 0.0
      %v2470 = vmax.f32 %v1692, 0.0
      %v2471 = vmax.f32 %v1883, 0.0
      %v2472 = vmax.f32 %v1885, 0.0
      %v2473 = vmax.f32 %v2076, 0.0
      %v2474 = vmax.f32 %v2078, 0.0
      %v2475 = vmax.f32 %v2269, 0.0
      %v2476 = vmax.f32 %v2271, 0.0
      %v2477 = vmax.f32 %v1694, 0.0
      %v2478 = vmax.f32 %v1696, 0.0
      %v2479 = vmax.f32 %v1887, 0.0
      %v2480 = vmax.f32 %v1889, 0.0
      %v2481 = vmax.f32 %v2080, 0.0
      %v2482 = vmax.f32 %v2082, 0.0
      %v2483 = vmax.f32 %v2273, 0.0
      %v2484 = vmax.f32 %v2275, 0.0
      %v2485 = vmax.f32 %v1700, 0.0
      %v2486 = vmax.f32 %v1702, 0.0
      %v2487 = vmax.f32 %v1893, 0.0
      %v2488 = vmax.f32 %v1895, 0.0
      %v2489 = vmax.f32 %v2086, 0.0
      %v2490 = vmax.f32 %v2088, 0.0
      %v2491 = vmax.f32 %v2279, 0.0
      %v2492 = vmax.f32 %v2281, 0.0
      %v2493 = vmax.f32 %v1704, 0.0
      %v2494 = vmax.f32 %v1706, 0.0
      %v2495 = vmax.f32 %v1897, 0.0
      %v2496 = vmax.f32 %v1899, 0.0
      %v2497 = vmax.f32 %v2090, 0.0
      %v2498 = vmax.f32 %v2092, 0.0
      %v2499 = vmax.f32 %v2283, 0.0
      %v2500 = vmax.f32 %v2285, 0.0
      %v2501 = vmax.f32 %v1710, 0.0
      %v2502 = vmax.f32 %v1712, 0.0
      %v2503 = vmax.f32 %v1903, 0.0
      %v2504 = vmax.f32 %v1905, 0.0
      %v2505 = vmax.f32 %v2096, 0.0
      %v2506 = vmax.f32 %v2098, 0.0
      %v2507 = vmax.f32 %v2289, 0.0
      %v2508 = vmax.f32 %v2291, 0.0
      %v2509 = vmax.f32 %v1714, 0.0
      %v2510 = vmax.f32 %v1716, 0.0
      %v2511 = vmax.f32 %v1907, 0.0
      %v2512 = vmax.f32 %v1909, 0.0
      %v2513 = vmax.f32 %v2100, 0.0
      %v2514 = vmax.f32 %v2102, 0.0
      %v2515 = vmax.f32 %v2293, 0.0
      %v2516 = vmax.f32 %v2295, 0.0
      %v2517 = vmax.f32 %v1720, 0.0
      %v2518 = vmax.f32 %v1722, 0.0
      %v2519 = vmax.f32 %v1913, 0.0
      %v2520 = vmax.f32 %v1915, 0.0
      %v2521 = vmax.f32 %v2106, 0.0
      %v2522 = vmax.f32 %v2108, 0.0
      %v2523 = vmax.f32 %v2299, 0.0
      %v2524 = vmax.f32 %v2301, 0.0
      %v2525 = vmax.f32 %v1724, 0.0
      %v2526 = vmax.f32 %v1726, 0.0
      %v2527 = vmax.f32 %v1917, 0.0
      %v2528 = vmax.f32 %v1919, 0.0
      %v2529 = vmax.f32 %v2110, 0.0
      %v2530 = vmax.f32 %v2112, 0.0
      %v2531 = vmax.f32 %v2303, 0.0
      %v2532 = vmax.f32 %v2305, 0.0
      %v2533 = vmax.f32 %v1730, 0.0
      %v2534 = vmax.f32 %v1732, 0.0
      %v2535 = vmax.f32 %v1923, 0.0
      %v2536 = vmax.f32 %v1925, 0.0
      %v2537 = vmax.f32 %v2116, 0.0
      %v2538 = vmax.f32 %v2118, 0.0
      %v2539 = vmax.f32 %v2309, 0.0
      %v2540 = vmax.f32 %v2311, 0.0
      %v2541 = vmax.f32 %v1734, 0.0
      %v2542 = vmax.f32 %v1736, 0.0
      %v2543 = vmax.f32 %v1927, 0.0
      %v2544 = vmax.f32 %v1929, 0.0
      %v2545 = vmax.f32 %v2120, 0.0
      %v2546 = vmax.f32 %v2122, 0.0
      %v2547 = vmax.f32 %v2313, 0.0
      %v2548 = vmax.f32 %v2315, 0.0
      %v2549 = vmax.f32 %v1740, 0.0
      %v2550 = vmax.f32 %v1742, 0.0
      %v2551 = vmax.f32 %v1933, 0.0
      %v2552 = vmax.f32 %v1935, 0.0
      %v2553 = vmax.f32 %v2126, 0.0
      %v2554 = vmax.f32 %v2128, 0.0
      %v2555 = vmax.f32 %v2319, 0.0
      %v2556 = vmax.f32 %v2321, 0.0
      %v2557 = vmax.f32 %v1744, 0.0
      %v2558 = vmax.f32 %v1746, 0.0
      %v2559 = vmax.f32 %v1937, 0.0
      %v2560 = vmax.f32 %v1939, 0.0
      %v2561 = vmax.f32 %v2130, 0.0
      %v2562 = vmax.f32 %v2132, 0.0
      %v2563 = vmax.f32 %v2323, 0.0
      %v2564 = vmax.f32 %v2325, 0.0
      %v2565 = vmax.f32 %v1750, 0.0
      %v2566 = vmax.f32 %v1752, 0.0
      %v2567 = vmax.f32 %v1943, 0.0
      %v2568 = vmax.f32 %v1945, 0.0
      %v2569 = vmax.f32 %v2136, 0.0
      %v2570 = vmax.f32 %v2138, 0.0
      %v2571 = vmax.f32 %v2329, 0.0
      %v2572 = vmax.f32 %v2331, 0.0
      %v2573 = vmax.f32 %v1754, 0.0
      %v2574 = vmax.f32 %v1756, 0.0
      %v2575 = vmax.f32 %v1947, 0.0
      %v2576 = vmax.f32 %v1949, 0.0
      %v2577 = vmax.f32 %v2140, 0.0
      %v2578 = vmax.f32 %v2142, 0.0
      %v2579 = vmax.f32 %v2333, 0.0
      %v2580 = vmax.f32 %v2335, 0.0
      %v2581 = vmax.f32 %v1760, 0.0
      %v2582 = vmax.f32 %v1762, 0.0
      %v2583 = vmax.f32 %v1953, 0.0
      %v2584 = vmax.f32 %v1955, 0.0
      %v2585 = vmax.f32 %v2146, 0.0
      %v2586 = vmax.f32 %v2148, 0.0
      %v2587 = vmax.f32 %v2339, 0.0
      %v2588 = vmax.f32 %v2341, 0.0
      %v2589 = vmax.f32 %v1764, 0.0
      %v2590 = vmax.f32 %v1766, 0.0
      %v2591 = vmax.f32 %v1957, 0.0
      %v2592 = vmax.f32 %v1959, 0.0
      %v2593 = vmax.f32 %v2150, 0.0
      %v2594 = vmax.f32 %v2152, 0.0
      %v2595 = vmax.f32 %v2343, 0.0
      %v2596 = vmax.f32 %v2345, 0.0
      %v2597 = vmax.f32 %v1770, 0.0
      %v2598 = vmax.f32 %v1772, 0.0
      %v2599 = vmax.f32 %v1963, 0.0
      %v2600 = vmax.f32 %v1965, 0.0
      %v2601 = vmax.f32 %v2156, 0.0
      %v2602 = vmax.f32 %v2158, 0.0
      %v2603 = vmax.f32 %v2349, 0.0
      %v2604 = vmax.f32 %v2351, 0.0
      %v2605 = vmax.f32 %v1774, 0.0
      %v2606 = vmax.f32 %v1776, 0.0
      %v2607 = vmax.f32 %v1967, 0.0
      %v2608 = vmax.f32 %v1969, 0.0
      %v2609 = vmax.f32 %v2160, 0.0
      %v2610 = vmax.f32 %v2162, 0.0
      %v2611 = vmax.f32 %v2353, 0.0
      %v2612 = vmax.f32 %v2355, 0.0
      %v2613 = vmax.f32 %v2357, %v2365
      %v2614 = vmax.f32 %v2613, %v2373
      %v2615 = vmax.f32 %v2614, %v2381
      %v2616 = vmax.f32 %v2615, %v2389
      %v2617 = vmax.f32 %v2616, %v2397
      %v2618 = vmax.f32 %v2617, %v2405
      %v2619 = vmax.f32 %v2618, %v2413
      %v2620 = vmax.f32 %v2619, %v2421
      %v2621 = vmax.f32 %v2620, %v2429
      %v2622 = vmax.f32 %v2621, %v2437
      %v2623 = vmax.f32 %v2622, %v2445
      %v2624 = vmax.f32 %v2623, %v2453
      %v2625 = vmax.f32 %v2624, %v2461
      %v2626 = vmax.f32 %v2625, %v2469
      %v2627 = vmax.f32 %v2626, %v2477
      %v2628 = vmax.f32 %v2627, %v2485
      %v2629 = vmax.f32 %v2628, %v2493
      %v2630 = vmax.f32 %v2629, %v2501
      %v2631 = vmax.f32 %v2630, %v2509
      %v2632 = vmax.f32 %v2631, %v2517
      %v2633 = vmax.f32 %v2632, %v2525
      %v2634 = vmax.f32 %v2633, %v2533
      %v2635 = vmax.f32 %v2634, %v2541
      %v2636 = vmax.f32 %v2635, %v2549
      %v2637 = vmax.f32 %v2636, %v2557
      %v2638 = vmax.f32 %v2637, %v2565
      %v2639 = vmax.f32 %v2638, %v2573
      %v2640 = vmax.f32 %v2639, %v2581
      %v2641 = vmax.f32 %v2640, %v2589
      %v2642 = vmax.f32 %v2641, %v2597
      %v2643 = vmax.f32 %v2642, %v2605
      %v2644 = vrot.slane %v2643, 4
      %v2645 = vmax.f32 %v2643, %v2644
      %v2646 = vrot.slane %v2645, 2
      %v2647 = vmax.f32 %v2645, %v2646
      %v2648 = vrot.slane %v2647, 1
      %v2649 = vmax.f32 %v2647, %v2648
      %v2650 = vmax.f32 %v2358, %v2366
      %v2651 = vmax.f32 %v2650, %v2374
      %v2652 = vmax.f32 %v2651, %v2382
      %v2653 = vmax.f32 %v2652, %v2390
      %v2654 = vmax.f32 %v2653, %v2398
      %v2655 = vmax.f32 %v2654, %v2406
      %v2656 = vmax.f32 %v2655, %v2414
      %v2657 = vmax.f32 %v2656, %v2422
      %v2658 = vmax.f32 %v2657, %v2430
      %v2659 = vmax.f32 %v2658, %v2438
      %v2660 = vmax.f32 %v2659, %v2446
      %v2661 = vmax.f32 %v2660, %v2454
      %v2662 = vmax.f32 %v2661, %v2462
      %v2663 = vmax.f32 %v2662, %v2470
      %v2664 = vmax.f32 %v2663, %v2478
      %v2665 = vmax.f32 %v2664, %v2486
      %v2666 = vmax.f32 %v2665, %v2494
      %v2667 = vmax.f32 %v2666, %v2502
      %v2668 = vmax.f32 %v2667, %v2510
      %v2669 = vmax.f32 %v2668, %v2518
      %v2670 = vmax.f32 %v2669, %v2526
      %v2671 = vmax.f32 %v2670, %v2534
      %v2672 = vmax.f32 %v2671, %v2542
      %v2673 = vmax.f32 %v2672, %v2550
      %v2674 = vmax.f32 %v2673, %v2558
      %v2675 = vmax.f32 %v2674, %v2566
      %v2676 = vmax.f32 %v2675, %v2574
      %v2677 = vmax.f32 %v2676, %v2582
      %v2678 = vmax.f32 %v2677, %v2590
      %v2679 = vmax.f32 %v2678, %v2598
      %v2680 = vmax.f32 %v2679, %v2606
      %v2681 = vrot.slane %v2680, 4
      %v2682 = vmax.f32 %v2680, %v2681
      %v2683 = vrot.slane %v2682, 2
      %v2684 = vmax.f32 %v2682, %v2683
      %v2685 = vrot.slane %v2684, 1
      %v2686 = vmax.f32 %v2684, %v2685
      %v2687 = vmax.f32 %v2359, %v2367
      %v2688 = vmax.f32 %v2687, %v2375
      %v2689 = vmax.f32 %v2688, %v2383
      %v2690 = vmax.f32 %v2689, %v2391
      %v2691 = vmax.f32 %v2690, %v2399
      %v2692 = vmax.f32 %v2691, %v2407
      %v2693 = vmax.f32 %v2692, %v2415
      %v2694 = vmax.f32 %v2693, %v2423
      %v2695 = vmax.f32 %v2694, %v2431
      %v2696 = vmax.f32 %v2695, %v2439
      %v2697 = vmax.f32 %v2696, %v2447
      %v2698 = vmax.f32 %v2697, %v2455
      %v2699 = vmax.f32 %v2698, %v2463
      %v2700 = vmax.f32 %v2699, %v2471
      %v2701 = vmax.f32 %v2700, %v2479
      %v2702 = vmax.f32 %v2701, %v2487
      %v2703 = vmax.f32 %v2702, %v2495
      %v2704 = vmax.f32 %v2703, %v2503
      %v2705 = vmax.f32 %v2704, %v2511
      %v2706 = vmax.f32 %v2705, %v2519
      %v2707 = vmax.f32 %v2706, %v2527
      %v2708 = vmax.f32 %v2707, %v2535
      %v2709 = vmax.f32 %v2708, %v2543
      %v2710 = vmax.f32 %v2709, %v2551
      %v2711 = vmax.f32 %v2710, %v2559
      %v2712 = vmax.f32 %v2711, %v2567
      %v2713 = vmax.f32 %v2712, %v2575
      %v2714 = vmax.f32 %v2713, %v2583
      %v2715 = vmax.f32 %v2714, %v2591
      %v2716 = vmax.f32 %v2715, %v2599
      %v2717 = vmax.f32 %v2716, %v2607
      %v2718 = vrot.slane %v2717, 4
      %v2719 = vmax.f32 %v2717, %v2718
      %v2720 = vrot.slane %v2719, 2
      %v2721 = vmax.f32 %v2719, %v2720
      %v2722 = vrot.slane %v2721, 1
      %v2723 = vmax.f32 %v2721, %v2722
      %v2724 = vmax.f32 %v2360, %v2368
      %v2725 = vmax.f32 %v2724, %v2376
      %v2726 = vmax.f32 %v2725, %v2384
      %v2727 = vmax.f32 %v2726, %v2392
      %v2728 = vmax.f32 %v2727, %v2400
      %v2729 = vmax.f32 %v2728, %v2408
      %v2730 = vmax.f32 %v2729, %v2416
      %v2731 = vmax.f32 %v2730, %v2424
      %v2732 = vmax.f32 %v2731, %v2432
      %v2733 = vmax.f32 %v2732, %v2440
      %v2734 = vmax.f32 %v2733, %v2448
      %v2735 = vmax.f32 %v2734, %v2456
      %v2736 = vmax.f32 %v2735, %v2464
      %v2737 = vmax.f32 %v2736, %v2472
      %v2738 = vmax.f32 %v2737, %v2480
      %v2739 = vmax.f32 %v2738, %v2488
      %v2740 = vmax.f32 %v2739, %v2496
      %v2741 = vmax.f32 %v2740, %v2504
      %v2742 = vmax.f32 %v2741, %v2512
      %v2743 = vmax.f32 %v2742, %v2520
      %v2744 = vmax.f32 %v2743, %v2528
      %v2745 = vmax.f32 %v2744, %v2536
      %v2746 = vmax.f32 %v2745, %v2544
      %v2747 = vmax.f32 %v2746, %v2552
      %v2748 = vmax.f32 %v2747, %v2560
      %v2749 = vmax.f32 %v2748, %v2568
      %v2750 = vmax.f32 %v2749, %v2576
      %v2751 = vmax.f32 %v2750, %v2584
      %v2752 = vmax.f32 %v2751, %v2592
      %v2753 = vmax.f32 %v2752, %v2600
      %v2754 = vmax.f32 %v2753, %v2608
      %v2755 = vrot.slane %v2754, 4
      %v2756 = vmax.f32 %v2754, %v2755
      %v2757 = vrot.slane %v2756, 2
      %v2758 = vmax.f32 %v2756, %v2757
      %v2759 = vrot.slane %v2758, 1
      %v2760 = vmax.f32 %v2758, %v2759
      %v2761 = vmax.f32 %v2361, %v2369
      %v2762 = vmax.f32 %v2761, %v2377
      %v2763 = vmax.f32 %v2762, %v2385
      %v2764 = vmax.f32 %v2763, %v2393
      %v2765 = vmax.f32 %v2764, %v2401
      %v2766 = vmax.f32 %v2765, %v2409
      %v2767 = vmax.f32 %v2766, %v2417
      %v2768 = vmax.f32 %v2767, %v2425
      %v2769 = vmax.f32 %v2768, %v2433
      %v2770 = vmax.f32 %v2769, %v2441
      %v2771 = vmax.f32 %v2770, %v2449
      %v2772 = vmax.f32 %v2771, %v2457
      %v2773 = vmax.f32 %v2772, %v2465
      %v2774 = vmax.f32 %v2773, %v2473
      %v2775 = vmax.f32 %v2774, %v2481
      %v2776 = vmax.f32 %v2775, %v2489
      %v2777 = vmax.f32 %v2776, %v2497
      %v2778 = vmax.f32 %v2777, %v2505
      %v2779 = vmax.f32 %v2778, %v2513
      %v2780 = vmax.f32 %v2779, %v2521
      %v2781 = vmax.f32 %v2780, %v2529
      %v2782 = vmax.f32 %v2781, %v2537
      %v2783 = vmax.f32 %v2782, %v2545
      %v2784 = vmax.f32 %v2783, %v2553
      %v2785 = vmax.f32 %v2784, %v2561
      %v2786 = vmax.f32 %v2785, %v2569
      %v2787 = vmax.f32 %v2786, %v2577
      %v2788 = vmax.f32 %v2787, %v2585
      %v2789 = vmax.f32 %v2788, %v2593
      %v2790 = vmax.f32 %v2789, %v2601
      %v2791 = vmax.f32 %v2790, %v2609
      %v2792 = vrot.slane %v2791, 4
      %v2793 = vmax.f32 %v2791, %v2792
      %v2794 = vrot.slane %v2793, 2
      %v2795 = vmax.f32 %v2793, %v2794
      %v2796 = vrot.slane %v2795, 1
      %v2797 = vmax.f32 %v2795, %v2796
      %v2798 = vmax.f32 %v2362, %v2370
      %v2799 = vmax.f32 %v2798, %v2378
      %v2800 = vmax.f32 %v2799, %v2386
      %v2801 = vmax.f32 %v2800, %v2394
      %v2802 = vmax.f32 %v2801, %v2402
      %v2803 = vmax.f32 %v2802, %v2410
      %v2804 = vmax.f32 %v2803, %v2418
      %v2805 = vmax.f32 %v2804, %v2426
      %v2806 = vmax.f32 %v2805, %v2434
      %v2807 = vmax.f32 %v2806, %v2442
      %v2808 = vmax.f32 %v2807, %v2450
      %v2809 = vmax.f32 %v2808, %v2458
      %v2810 = vmax.f32 %v2809, %v2466
      %v2811 = vmax.f32 %v2810, %v2474
      %v2812 = vmax.f32 %v2811, %v2482
      %v2813 = vmax.f32 %v2812, %v2490
      %v2814 = vmax.f32 %v2813, %v2498
      %v2815 = vmax.f32 %v2814, %v2506
      %v2816 = vmax.f32 %v2815, %v2514
      %v2817 = vmax.f32 %v2816, %v2522
      %v2818 = vmax.f32 %v2817, %v2530
      %v2819 = vmax.f32 %v2818, %v2538
      %v2820 = vmax.f32 %v2819, %v2546
      %v2821 = vmax.f32 %v2820, %v2554
      %v2822 = vmax.f32 %v2821, %v2562
      %v2823 = vmax.f32 %v2822, %v2570
      %v2824 = vmax.f32 %v2823, %v2578
      %v2825 = vmax.f32 %v2824, %v2586
      %v2826 = vmax.f32 %v2825, %v2594
      %v2827 = vmax.f32 %v2826, %v2602
      %v2828 = vmax.f32 %v2827, %v2610
      %v2829 = vrot.slane %v2828, 4
      %v2830 = vmax.f32 %v2828, %v2829
      %v2831 = vrot.slane %v2830, 2
      %v2832 = vmax.f32 %v2830, %v2831
      %v2833 = vrot.slane %v2832, 1
      %v2834 = vmax.f32 %v2832, %v2833
      %v2835 = vmax.f32 %v2363, %v2371
      %v2836 = vmax.f32 %v2835, %v2379
      %v2837 = vmax.f32 %v2836, %v2387
      %v2838 = vmax.f32 %v2837, %v2395
      %v2839 = vmax.f32 %v2838, %v2403
      %v2840 = vmax.f32 %v2839, %v2411
      %v2841 = vmax.f32 %v2840, %v2419
      %v2842 = vmax.f32 %v2841, %v2427
      %v2843 = vmax.f32 %v2842, %v2435
      %v2844 = vmax.f32 %v2843, %v2443
      %v2845 = vmax.f32 %v2844, %v2451
      %v2846 = vmax.f32 %v2845, %v2459
      %v2847 = vmax.f32 %v2846, %v2467
      %v2848 = vmax.f32 %v2847, %v2475
      %v2849 = vmax.f32 %v2848, %v2483
      %v2850 = vmax.f32 %v2849, %v2491
      %v2851 = vmax.f32 %v2850, %v2499
      %v2852 = vmax.f32 %v2851, %v2507
      %v2853 = vmax.f32 %v2852, %v2515
      %v2854 = vmax.f32 %v2853, %v2523
      %v2855 = vmax.f32 %v2854, %v2531
      %v2856 = vmax.f32 %v2855, %v2539
      %v2857 = vmax.f32 %v2856, %v2547
      %v2858 = vmax.f32 %v2857, %v2555
      %v2859 = vmax.f32 %v2858, %v2563
      %v2860 = vmax.f32 %v2859, %v2571
      %v2861 = vmax.f32 %v2860, %v2579
      %v2862 = vmax.f32 %v2861, %v2587
      %v2863 = vmax.f32 %v2862, %v2595
      %v2864 = vmax.f32 %v2863, %v2603
      %v2865 = vmax.f32 %v2864, %v2611
      %v2866 = vrot.slane %v2865, 4
      %v2867 = vmax.f32 %v2865, %v2866
      %v2868 = vrot.slane %v2867, 2
      %v2869 = vmax.f32 %v2867, %v2868
      %v2870 = vrot.slane %v2869, 1
      %v2871 = vmax.f32 %v2869, %v2870
      %v2872 = vmax.f32 %v2364, %v2372
      %v2873 = vmax.f32 %v2872, %v2380
      %v2874 = vmax.f32 %v2873, %v2388
      %v2875 = vmax.f32 %v2874, %v2396
      %v2876 = vmax.f32 %v2875, %v2404
      %v2877 = vmax.f32 %v2876, %v2412
      %v2878 = vmax.f32 %v2877, %v2420
      %v2879 = vmax.f32 %v2878, %v2428
      %v2880 = vmax.f32 %v2879, %v2436
      %v2881 = vmax.f32 %v2880, %v2444
      %v2882 = vmax.f32 %v2881, %v2452
      %v2883 = vmax.f32 %v2882, %v2460
      %v2884 = vmax.f32 %v2883, %v2468
      %v2885 = vmax.f32 %v2884, %v2476
      %v2886 = vmax.f32 %v2885, %v2484
      %v2887 = vmax.f32 %v2886, %v2492
      %v2888 = vmax.f32 %v2887, %v2500
      %v2889 = vmax.f32 %v2888, %v2508
      %v2890 = vmax.f32 %v2889, %v2516
      %v2891 = vmax.f32 %v2890, %v2524
      %v2892 = vmax.f32 %v2891, %v2532
      %v2893 = vmax.f32 %v2892, %v2540
      %v2894 = vmax.f32 %v2893, %v2548
      %v2895 = vmax.f32 %v2894, %v2556
      %v2896 = vmax.f32 %v2895, %v2564
      %v2897 = vmax.f32 %v2896, %v2572
      %v2898 = vmax.f32 %v2897, %v2580
      %v2899 = vmax.f32 %v2898, %v2588
      %v2900 = vmax.f32 %v2899, %v2596
      %v2901 = vmax.f32 %v2900, %v2604
      %v2902 = vmax.f32 %v2901, %v2612
      %v2903 = vrot.slane %v2902, 4
      %v2904 = vmax.f32 %v2902, %v2903
      %v2905 = vrot.slane %v2904, 2
      %v2906 = vmax.f32 %v2904, %v2905
      %v2907 = vrot.slane %v2906, 1
      %v2908 = vmax.f32 %v2906, %v2907
      %v2909 = vld [vmem:[#allocation2] sm:$0xff]
      %v2918 = vcombine.low %v2649, %v2686
      %v2919 = vcombine.low %v2723, %v2760
      %v2920 = vcombine.low %v2797, %v2834
      %v2921 = vcombine.low %v2871, %v2908
      %v2923 = vunpack.c.l.s4 1966171168
      %v2924 = vunpack.c.0.s8 %v2923
      %v2925 = vlaneseq
      %v2926 = vshrl.u32 %v2925, 7
      %v2927 = vsub.s32 %v2924, %v2926
      %v2928 = vrot.slane %v2918, %v2927
      %v2930 = vunpack.c.l.s4 1966171168
      %v2931 = vunpack.c.0.s8 %v2930
      %v2932 = vlaneseq
      %v2933 = vshrl.u32 %v2932, 7
      %v2934 = vsub.s32 %v2931, %v2933
      %v2935 = vrot.slane %v2919, %v2934
      %v2937 = vunpack.c.l.s4 1966171168
      %v2938 = vunpack.c.0.s8 %v2937
      %v2939 = vlaneseq
      %v2940 = vshrl.u32 %v2939, 7
      %v2941 = vsub.s32 %v2938, %v2940
      %v2942 = vrot.slane %v2920, %v2941
      %v2944 = vunpack.c.l.s4 1966171168
      %v2945 = vunpack.c.0.s8 %v2944
      %v2946 = vlaneseq
      %v2947 = vshrl.u32 %v2946, 7
      %v2948 = vsub.s32 %v2945, %v2947
      %v2949 = vrot.slane %v2921, %v2948
      %v2950 = vcombine.low %v2928, %v2935
      %v2951 = vcombine.low %v2942, %v2949
      %v2953 = vunpack.c.l.s4 1966171168
      %v2954 = vunpack.c.0.s8 %v2953
      %v2955 = vlaneseq
      %v2956 = vshrl.u32 %v2955, 7
      %v2957 = vsub.s32 %v2954, %v2956
      %v2958 = vrot.slane %v2950, %v2957
      %v2960 = vunpack.c.l.s4 1966171168
      %v2961 = vunpack.c.0.s8 %v2960
      %v2962 = vlaneseq
      %v2963 = vshrl.u32 %v2962, 7
      %v2964 = vsub.s32 %v2961, %v2963
      %v2965 = vrot.slane %v2951, %v2964
      %v2966 = vcombine.low %v2958, %v2965
      %v2968 = vmax.f32 %v2909, %v2966
      %2969 = vst [vmem:[#allocation2] sm:$0xff] %v2968
      // Predicated region
      $region77: #{pointnet_cls_forward.2} parent=71 // pred_check
        %p2970 = pneg %p466
      $region78: #{pointnet_cls_forward.2} parent=71 // pred_check_branch
        %2972 = sbr.rel (%p2970) target = $region80
      $region79: #{pointnet_cls_forward.2} parent=71 // pred_region
        %v2973 = vld [vmem:[#allocation2] sm:$0xff]
        %v2975 = vlaneseq
        %v2976 = vshrl.u32 %v2975, 7
        %v2977 = vsub.s32 0, %v2976
        %v2978 = vrot.slane %v2973, %v2977
        %v2979 = vlaneseq
        %v2980 = vshrl.u32 %v2979, 7
        %v2981 = vsub.s32 1, %v2980
        %v2982 = vrot.slane %v2973, %v2981
        %v2983 = vlaneseq
        %v2984 = vshrl.u32 %v2983, 7
        %v2985 = vsub.s32 2, %v2984
        %v2986 = vrot.slane %v2973, %v2985
        %v2987 = vlaneseq
        %v2988 = vshrl.u32 %v2987, 7
        %v2989 = vsub.s32 3, %v2988
        %v2990 = vrot.slane %v2973, %v2989
        %v2991 = vlaneseq
        %v2992 = vshrl.u32 %v2991, 7
        %v2993 = vsub.s32 4, %v2992
        %v2994 = vrot.slane %v2973, %v2993
        %v2995 = vlaneseq
        %v2996 = vshrl.u32 %v2995, 7
        %v2997 = vsub.s32 5, %v2996
        %v2998 = vrot.slane %v2973, %v2997
        %v2999 = vlaneseq
        %v3000 = vshrl.u32 %v2999, 7
        %v3001 = vsub.s32 6, %v3000
        %v3002 = vrot.slane %v2973, %v3001
        %v3003 = vlaneseq
        %v3004 = vshrl.u32 %v3003, 7
        %v3005 = vsub.s32 7, %v3004
        %v3006 = vrot.slane %v2973, %v3005
        %v3015 = vpack.c.bf16 %v2978, %v2978
        %v3016 = vpack.c.bf16 %v2982, %v2982
        %v3017 = vpack.c.bf16 %v2986, %v2986
        %v3018 = vpack.c.bf16 %v2990, %v2990
        %v3019 = vpack.c.bf16 %v2994, %v2994
        %v3020 = vpack.c.bf16 %v2998, %v2998
        %v3021 = vpack.c.bf16 %v3002, %v3002
        %v3022 = vpack.c.bf16 %v3006, %v3006
        %v3023 = vld [vmem:[%s7] sm:$0xff]
        %v3024 = vld [vmem:[%s7 + $0x8] sm:$0xff]
        %v3025 = vld [vmem:[%s7 + $0x10] sm:$0xff]
        %v3026 = vld [vmem:[%s7 + $0x18] sm:$0xff]
        %v3027 = vld [vmem:[%s7 + $0x20] sm:$0xff]
        %v3028 = vld [vmem:[%s7 + $0x28] sm:$0xff]
        %v3029 = vld [vmem:[%s7 + $0x30] sm:$0xff]
        %v3030 = vld [vmem:[%s7 + $0x38] sm:$0xff]
        %v3031 = vld [vmem:[%s7 + $0x40] sm:$0xff]
        %v3032 = vld [vmem:[%s7 + $0x48] sm:$0xff]
        %v3033 = vld [vmem:[%s7 + $0x50] sm:$0xff]
        %v3034 = vld [vmem:[%s7 + $0x58] sm:$0xff]
        %v3035 = vld [vmem:[%s7 + $0x60] sm:$0xff]
        %v3036 = vld [vmem:[%s7 + $0x68] sm:$0xff]
        %v3037 = vld [vmem:[%s7 + $0x70] sm:$0xff]
        %v3038 = vld [vmem:[%s7 + $0x78] sm:$0xff]
        %v3039 = vld [vmem:[%s7 + $0x80] sm:$0xff]
        %v3040 = vld [vmem:[%s7 + $0x88] sm:$0xff]
        %v3041 = vld [vmem:[%s7 + $0x90] sm:$0xff]
        %v3042 = vld [vmem:[%s7 + $0x98] sm:$0xff]
        %v3043 = vld [vmem:[%s7 + $0xa0] sm:$0xff]
        %v3044 = vld [vmem:[%s7 + $0xa8] sm:$0xff]
        %v3045 = vld [vmem:[%s7 + $0xb0] sm:$0xff]
        %v3046 = vld [vmem:[%s7 + $0xb8] sm:$0xff]
        %v3047 = vld [vmem:[%s7 + $0xc0] sm:$0xff]
        %v3048 = vld [vmem:[%s7 + $0xc8] sm:$0xff]
        %v3049 = vld [vmem:[%s7 + $0xd0] sm:$0xff]
        %v3050 = vld [vmem:[%s7 + $0xd8] sm:$0xff]
        %v3051 = vld [vmem:[%s7 + $0xe0] sm:$0xff]
        %v3052 = vld [vmem:[%s7 + $0xe8] sm:$0xff]
        %v3053 = vld [vmem:[%s7 + $0xf0] sm:$0xff]
        %v3054 = vld [vmem:[%s7 + $0xf8] sm:$0xff]
        %v3055 = vld [vmem:[%s7 + $0x100] sm:$0xff]
        %v3056 = vld [vmem:[%s7 + $0x108] sm:$0xff]
        %v3057 = vld [vmem:[%s7 + $0x110] sm:$0xff]
        %v3058 = vld [vmem:[%s7 + $0x118] sm:$0xff]
        %v3059 = vld [vmem:[%s7 + $0x120] sm:$0xff]
        %v3060 = vld [vmem:[%s7 + $0x128] sm:$0xff]
        %v3061 = vld [vmem:[%s7 + $0x130] sm:$0xff]
        %v3062 = vld [vmem:[%s7 + $0x138] sm:$0xff]
        %v3063 = vld [vmem:[%s7 + $0x140] sm:$0xff]
        %v3064 = vld [vmem:[%s7 + $0x148] sm:$0xff]
        %v3065 = vld [vmem:[%s7 + $0x150] sm:$0xff]
        %v3066 = vld [vmem:[%s7 + $0x158] sm:$0xff]
        %v3067 = vld [vmem:[%s7 + $0x160] sm:$0xff]
        %v3068 = vld [vmem:[%s7 + $0x168] sm:$0xff]
        %v3069 = vld [vmem:[%s7 + $0x170] sm:$0xff]
        %v3070 = vld [vmem:[%s7 + $0x178] sm:$0xff]
        %v3071 = vld [vmem:[%s7 + $0x180] sm:$0xff]
        %v3072 = vld [vmem:[%s7 + $0x188] sm:$0xff]
        %v3073 = vld [vmem:[%s7 + $0x190] sm:$0xff]
        %v3074 = vld [vmem:[%s7 + $0x198] sm:$0xff]
        %v3075 = vld [vmem:[%s7 + $0x1a0] sm:$0xff]
        %v3076 = vld [vmem:[%s7 + $0x1a8] sm:$0xff]
        %v3077 = vld [vmem:[%s7 + $0x1b0] sm:$0xff]
        %v3078 = vld [vmem:[%s7 + $0x1b8] sm:$0xff]
        %v3079 = vld [vmem:[%s7 + $0x1c0] sm:$0xff]
        %v3080 = vld [vmem:[%s7 + $0x1c8] sm:$0xff]
        %v3081 = vld [vmem:[%s7 + $0x1d0] sm:$0xff]
        %v3082 = vld [vmem:[%s7 + $0x1d8] sm:$0xff]
        %v3083 = vld [vmem:[%s7 + $0x1e0] sm:$0xff]
        %v3084 = vld [vmem:[%s7 + $0x1e8] sm:$0xff]
        %v3085 = vld [vmem:[%s7 + $0x1f0] sm:$0xff]
        %v3086 = vld [vmem:[%s7 + $0x1f8] sm:$0xff]
        %v3087 = vld [vmem:[%s7 + $0x200] sm:$0xff]
        %v3088 = vld [vmem:[%s7 + $0x208] sm:$0xff]
        %v3089 = vld [vmem:[%s7 + $0x210] sm:$0xff]
        %v3090 = vld [vmem:[%s7 + $0x218] sm:$0xff]
        %v3091 = vld [vmem:[%s7 + $0x220] sm:$0xff]
        %v3092 = vld [vmem:[%s7 + $0x228] sm:$0xff]
        %v3093 = vld [vmem:[%s7 + $0x230] sm:$0xff]
        %v3094 = vld [vmem:[%s7 + $0x238] sm:$0xff]
        %v3095 = vld [vmem:[%s7 + $0x240] sm:$0xff]
        %v3096 = vld [vmem:[%s7 + $0x248] sm:$0xff]
        %v3097 = vld [vmem:[%s7 + $0x250] sm:$0xff]
        %v3098 = vld [vmem:[%s7 + $0x258] sm:$0xff]
        %v3099 = vld [vmem:[%s7 + $0x260] sm:$0xff]
        %v3100 = vld [vmem:[%s7 + $0x268] sm:$0xff]
        %v3101 = vld [vmem:[%s7 + $0x270] sm:$0xff]
        %v3102 = vld [vmem:[%s7 + $0x278] sm:$0xff]
        %v3103 = vld [vmem:[%s7 + $0x280] sm:$0xff]
        %v3104 = vld [vmem:[%s7 + $0x288] sm:$0xff]
        %v3105 = vld [vmem:[%s7 + $0x290] sm:$0xff]
        %v3106 = vld [vmem:[%s7 + $0x298] sm:$0xff]
        %v3107 = vld [vmem:[%s7 + $0x2a0] sm:$0xff]
        %v3108 = vld [vmem:[%s7 + $0x2a8] sm:$0xff]
        %v3109 = vld [vmem:[%s7 + $0x2b0] sm:$0xff]
        %v3110 = vld [vmem:[%s7 + $0x2b8] sm:$0xff]
        %v3111 = vld [vmem:[%s7 + $0x2c0] sm:$0xff]
        %v3112 = vld [vmem:[%s7 + $0x2c8] sm:$0xff]
        %v3113 = vld [vmem:[%s7 + $0x2d0] sm:$0xff]
        %v3114 = vld [vmem:[%s7 + $0x2d8] sm:$0xff]
        %v3115 = vld [vmem:[%s7 + $0x2e0] sm:$0xff]
        %v3116 = vld [vmem:[%s7 + $0x2e8] sm:$0xff]
        %v3117 = vld [vmem:[%s7 + $0x2f0] sm:$0xff]
        %v3118 = vld [vmem:[%s7 + $0x2f8] sm:$0xff]
        %v3119 = vld [vmem:[%s7 + $0x300] sm:$0xff]
        %v3120 = vld [vmem:[%s7 + $0x308] sm:$0xff]
        %v3121 = vld [vmem:[%s7 + $0x310] sm:$0xff]
        %v3122 = vld [vmem:[%s7 + $0x318] sm:$0xff]
        %v3123 = vld [vmem:[%s7 + $0x320] sm:$0xff]
        %v3124 = vld [vmem:[%s7 + $0x328] sm:$0xff]
        %v3125 = vld [vmem:[%s7 + $0x330] sm:$0xff]
        %v3126 = vld [vmem:[%s7 + $0x338] sm:$0xff]
        %v3127 = vld [vmem:[%s7 + $0x340] sm:$0xff]
        %v3128 = vld [vmem:[%s7 + $0x348] sm:$0xff]
        %v3129 = vld [vmem:[%s7 + $0x350] sm:$0xff]
        %v3130 = vld [vmem:[%s7 + $0x358] sm:$0xff]
        %v3131 = vld [vmem:[%s7 + $0x360] sm:$0xff]
        %v3132 = vld [vmem:[%s7 + $0x368] sm:$0xff]
        %v3133 = vld [vmem:[%s7 + $0x370] sm:$0xff]
        %v3134 = vld [vmem:[%s7 + $0x378] sm:$0xff]
        %v3135 = vld [vmem:[%s7 + $0x380] sm:$0xff]
        %v3136 = vld [vmem:[%s7 + $0x388] sm:$0xff]
        %v3137 = vld [vmem:[%s7 + $0x390] sm:$0xff]
        %v3138 = vld [vmem:[%s7 + $0x398] sm:$0xff]
        %v3139 = vld [vmem:[%s7 + $0x3a0] sm:$0xff]
        %v3140 = vld [vmem:[%s7 + $0x3a8] sm:$0xff]
        %v3141 = vld [vmem:[%s7 + $0x3b0] sm:$0xff]
        %v3142 = vld [vmem:[%s7 + $0x3b8] sm:$0xff]
        %v3143 = vld [vmem:[%s7 + $0x3c0] sm:$0xff]
        %v3144 = vld [vmem:[%s7 + $0x3c8] sm:$0xff]
        %v3145 = vld [vmem:[%s7 + $0x3d0] sm:$0xff]
        %v3146 = vld [vmem:[%s7 + $0x3d8] sm:$0xff]
        %v3147 = vld [vmem:[%s7 + $0x3e0] sm:$0xff]
        %v3148 = vld [vmem:[%s7 + $0x3e8] sm:$0xff]
        %v3149 = vld [vmem:[%s7 + $0x3f0] sm:$0xff]
        %v3150 = vld [vmem:[%s7 + $0x3f8] sm:$0xff]
        %v3151 = vld [vmem:[%s7 + $0x400] sm:$0xff]
        %v3152 = vld [vmem:[%s7 + $0x408] sm:$0xff]
        %v3153 = vld [vmem:[%s7 + $0x410] sm:$0xff]
        %v3154 = vld [vmem:[%s7 + $0x418] sm:$0xff]
        %v3155 = vld [vmem:[%s7 + $0x420] sm:$0xff]
        %v3156 = vld [vmem:[%s7 + $0x428] sm:$0xff]
        %v3157 = vld [vmem:[%s7 + $0x430] sm:$0xff]
        %v3158 = vld [vmem:[%s7 + $0x438] sm:$0xff]
        %v3159 = vld [vmem:[%s7 + $0x440] sm:$0xff]
        %v3160 = vld [vmem:[%s7 + $0x448] sm:$0xff]
        %v3161 = vld [vmem:[%s7 + $0x450] sm:$0xff]
        %v3162 = vld [vmem:[%s7 + $0x458] sm:$0xff]
        %v3163 = vld [vmem:[%s7 + $0x460] sm:$0xff]
        %v3164 = vld [vmem:[%s7 + $0x468] sm:$0xff]
        %v3165 = vld [vmem:[%s7 + $0x470] sm:$0xff]
        %v3166 = vld [vmem:[%s7 + $0x478] sm:$0xff]
        %v3167 = vld [vmem:[%s7 + $0x480] sm:$0xff]
        %v3168 = vld [vmem:[%s7 + $0x488] sm:$0xff]
        %v3169 = vld [vmem:[%s7 + $0x490] sm:$0xff]
        %v3170 = vld [vmem:[%s7 + $0x498] sm:$0xff]
        %v3171 = vld [vmem:[%s7 + $0x4a0] sm:$0xff]
        %v3172 = vld [vmem:[%s7 + $0x4a8] sm:$0xff]
        %v3173 = vld [vmem:[%s7 + $0x4b0] sm:$0xff]
        %v3174 = vld [vmem:[%s7 + $0x4b8] sm:$0xff]
        %v3175 = vld [vmem:[%s7 + $0x4c0] sm:$0xff]
        %v3176 = vld [vmem:[%s7 + $0x4c8] sm:$0xff]
        %v3177 = vld [vmem:[%s7 + $0x4d0] sm:$0xff]
        %v3178 = vld [vmem:[%s7 + $0x4d8] sm:$0xff]
        %v3179 = vld [vmem:[%s7 + $0x4e0] sm:$0xff]
        %v3180 = vld [vmem:[%s7 + $0x4e8] sm:$0xff]
        %v3181 = vld [vmem:[%s7 + $0x4f0] sm:$0xff]
        %v3182 = vld [vmem:[%s7 + $0x4f8] sm:$0xff]
        %v3183 = vld [vmem:[%s7 + $0x500] sm:$0xff]
        %v3184 = vld [vmem:[%s7 + $0x508] sm:$0xff]
        %v3185 = vld [vmem:[%s7 + $0x510] sm:$0xff]
        %v3186 = vld [vmem:[%s7 + $0x518] sm:$0xff]
        %v3187 = vld [vmem:[%s7 + $0x520] sm:$0xff]
        %v3188 = vld [vmem:[%s7 + $0x528] sm:$0xff]
        %v3189 = vld [vmem:[%s7 + $0x530] sm:$0xff]
        %v3190 = vld [vmem:[%s7 + $0x538] sm:$0xff]
        %v3191 = vld [vmem:[%s7 + $0x540] sm:$0xff]
        %v3192 = vld [vmem:[%s7 + $0x548] sm:$0xff]
        %v3193 = vld [vmem:[%s7 + $0x550] sm:$0xff]
        %v3194 = vld [vmem:[%s7 + $0x558] sm:$0xff]
        %v3195 = vld [vmem:[%s7 + $0x560] sm:$0xff]
        %v3196 = vld [vmem:[%s7 + $0x568] sm:$0xff]
        %v3197 = vld [vmem:[%s7 + $0x570] sm:$0xff]
        %v3198 = vld [vmem:[%s7 + $0x578] sm:$0xff]
        %v3199 = vld [vmem:[%s7 + $0x580] sm:$0xff]
        %v3200 = vld [vmem:[%s7 + $0x588] sm:$0xff]
        %v3201 = vld [vmem:[%s7 + $0x590] sm:$0xff]
        %v3202 = vld [vmem:[%s7 + $0x598] sm:$0xff]
        %v3203 = vld [vmem:[%s7 + $0x5a0] sm:$0xff]
        %v3204 = vld [vmem:[%s7 + $0x5a8] sm:$0xff]
        %v3205 = vld [vmem:[%s7 + $0x5b0] sm:$0xff]
        %v3206 = vld [vmem:[%s7 + $0x5b8] sm:$0xff]
        %v3207 = vld [vmem:[%s7 + $0x5c0] sm:$0xff]
        %v3208 = vld [vmem:[%s7 + $0x5c8] sm:$0xff]
        %v3209 = vld [vmem:[%s7 + $0x5d0] sm:$0xff]
        %v3210 = vld [vmem:[%s7 + $0x5d8] sm:$0xff]
        %v3211 = vld [vmem:[%s7 + $0x5e0] sm:$0xff]
        %v3212 = vld [vmem:[%s7 + $0x5e8] sm:$0xff]
        %v3213 = vld [vmem:[%s7 + $0x5f0] sm:$0xff]
        %v3214 = vld [vmem:[%s7 + $0x5f8] sm:$0xff]
        %v3215 = vld [vmem:[%s7 + $0x600] sm:$0xff]
        %v3216 = vld [vmem:[%s7 + $0x608] sm:$0xff]
        %v3217 = vld [vmem:[%s7 + $0x610] sm:$0xff]
        %v3218 = vld [vmem:[%s7 + $0x618] sm:$0xff]
        %v3219 = vld [vmem:[%s7 + $0x620] sm:$0xff]
        %v3220 = vld [vmem:[%s7 + $0x628] sm:$0xff]
        %v3221 = vld [vmem:[%s7 + $0x630] sm:$0xff]
        %v3222 = vld [vmem:[%s7 + $0x638] sm:$0xff]
        %v3223 = vld [vmem:[%s7 + $0x640] sm:$0xff]
        %v3224 = vld [vmem:[%s7 + $0x648] sm:$0xff]
        %v3225 = vld [vmem:[%s7 + $0x650] sm:$0xff]
        %v3226 = vld [vmem:[%s7 + $0x658] sm:$0xff]
        %v3227 = vld [vmem:[%s7 + $0x660] sm:$0xff]
        %v3228 = vld [vmem:[%s7 + $0x668] sm:$0xff]
        %v3229 = vld [vmem:[%s7 + $0x670] sm:$0xff]
        %v3230 = vld [vmem:[%s7 + $0x678] sm:$0xff]
        %v3231 = vld [vmem:[%s7 + $0x680] sm:$0xff]
        %v3232 = vld [vmem:[%s7 + $0x688] sm:$0xff]
        %v3233 = vld [vmem:[%s7 + $0x690] sm:$0xff]
        %v3234 = vld [vmem:[%s7 + $0x698] sm:$0xff]
        %v3235 = vld [vmem:[%s7 + $0x6a0] sm:$0xff]
        %v3236 = vld [vmem:[%s7 + $0x6a8] sm:$0xff]
        %v3237 = vld [vmem:[%s7 + $0x6b0] sm:$0xff]
        %v3238 = vld [vmem:[%s7 + $0x6b8] sm:$0xff]
        %v3239 = vld [vmem:[%s7 + $0x6c0] sm:$0xff]
        %v3240 = vld [vmem:[%s7 + $0x6c8] sm:$0xff]
        %v3241 = vld [vmem:[%s7 + $0x6d0] sm:$0xff]
        %v3242 = vld [vmem:[%s7 + $0x6d8] sm:$0xff]
        %v3243 = vld [vmem:[%s7 + $0x6e0] sm:$0xff]
        %v3244 = vld [vmem:[%s7 + $0x6e8] sm:$0xff]
        %v3245 = vld [vmem:[%s7 + $0x6f0] sm:$0xff]
        %v3246 = vld [vmem:[%s7 + $0x6f8] sm:$0xff]
        %v3247 = vld [vmem:[%s7 + $0x700] sm:$0xff]
        %v3248 = vld [vmem:[%s7 + $0x708] sm:$0xff]
        %v3249 = vld [vmem:[%s7 + $0x710] sm:$0xff]
        %v3250 = vld [vmem:[%s7 + $0x718] sm:$0xff]
        %v3251 = vld [vmem:[%s7 + $0x720] sm:$0xff]
        %v3252 = vld [vmem:[%s7 + $0x728] sm:$0xff]
        %v3253 = vld [vmem:[%s7 + $0x730] sm:$0xff]
        %v3254 = vld [vmem:[%s7 + $0x738] sm:$0xff]
        %v3255 = vld [vmem:[%s7 + $0x740] sm:$0xff]
        %v3256 = vld [vmem:[%s7 + $0x748] sm:$0xff]
        %v3257 = vld [vmem:[%s7 + $0x750] sm:$0xff]
        %v3258 = vld [vmem:[%s7 + $0x758] sm:$0xff]
        %v3259 = vld [vmem:[%s7 + $0x760] sm:$0xff]
        %v3260 = vld [vmem:[%s7 + $0x768] sm:$0xff]
        %v3261 = vld [vmem:[%s7 + $0x770] sm:$0xff]
        %v3262 = vld [vmem:[%s7 + $0x778] sm:$0xff]
        %v3263 = vld [vmem:[%s7 + $0x780] sm:$0xff]
        %v3264 = vld [vmem:[%s7 + $0x788] sm:$0xff]
        %v3265 = vld [vmem:[%s7 + $0x790] sm:$0xff]
        %v3266 = vld [vmem:[%s7 + $0x798] sm:$0xff]
        %v3267 = vld [vmem:[%s7 + $0x7a0] sm:$0xff]
        %v3268 = vld [vmem:[%s7 + $0x7a8] sm:$0xff]
        %v3269 = vld [vmem:[%s7 + $0x7b0] sm:$0xff]
        %v3270 = vld [vmem:[%s7 + $0x7b8] sm:$0xff]
        %v3271 = vld [vmem:[%s7 + $0x7c0] sm:$0xff]
        %v3272 = vld [vmem:[%s7 + $0x7c8] sm:$0xff]
        %v3273 = vld [vmem:[%s7 + $0x7d0] sm:$0xff]
        %v3274 = vld [vmem:[%s7 + $0x7d8] sm:$0xff]
        %v3275 = vld [vmem:[%s7 + $0x7e0] sm:$0xff]
        %v3276 = vld [vmem:[%s7 + $0x7e8] sm:$0xff]
        %v3277 = vld [vmem:[%s7 + $0x7f0] sm:$0xff]
        %v3278 = vld [vmem:[%s7 + $0x7f8] sm:$0xff]
        %v3279 = vld [vmem:[%s8] sm:$0xf]
        %v3536 = vunpack.c.l.b16 %v3023
        %v3537 = vunpack.c.h.b16 %v3023
        %v3538 = vunpack.c.l.b16 %v3024
        %v3539 = vunpack.c.h.b16 %v3024
        %v3540 = vunpack.c.l.b16 %v3025
        %v3541 = vunpack.c.h.b16 %v3025
        %v3542 = vunpack.c.l.b16 %v3026
        %v3543 = vunpack.c.h.b16 %v3026
        %v3544 = vunpack.c.l.b16 %v3027
        %v3545 = vunpack.c.h.b16 %v3027
        %v3546 = vunpack.c.l.b16 %v3028
        %v3547 = vunpack.c.h.b16 %v3028
        %v3548 = vunpack.c.l.b16 %v3029
        %v3549 = vunpack.c.h.b16 %v3029
        %v3550 = vunpack.c.l.b16 %v3030
        %v3551 = vunpack.c.h.b16 %v3030
        %v3552 = vunpack.c.l.b16 %v3031
        %v3553 = vunpack.c.h.b16 %v3031
        %v3554 = vunpack.c.l.b16 %v3032
        %v3555 = vunpack.c.h.b16 %v3032
        %v3556 = vunpack.c.l.b16 %v3033
        %v3557 = vunpack.c.h.b16 %v3033
        %v3558 = vunpack.c.l.b16 %v3034
        %v3559 = vunpack.c.h.b16 %v3034
        %v3560 = vunpack.c.l.b16 %v3035
        %v3561 = vunpack.c.h.b16 %v3035
        %v3562 = vunpack.c.l.b16 %v3036
        %v3563 = vunpack.c.h.b16 %v3036
        %v3564 = vunpack.c.l.b16 %v3037
        %v3565 = vunpack.c.h.b16 %v3037
        %v3566 = vunpack.c.l.b16 %v3038
        %v3567 = vunpack.c.h.b16 %v3038
        %v3568 = vunpack.c.l.b16 %v3039
        %v3569 = vunpack.c.h.b16 %v3039
        %v3570 = vunpack.c.l.b16 %v3040
        %v3571 = vunpack.c.h.b16 %v3040
        %v3572 = vunpack.c.l.b16 %v3041
        %v3573 = vunpack.c.h.b16 %v3041
        %v3574 = vunpack.c.l.b16 %v3042
        %v3575 = vunpack.c.h.b16 %v3042
        %v3576 = vunpack.c.l.b16 %v3043
        %v3577 = vunpack.c.h.b16 %v3043
        %v3578 = vunpack.c.l.b16 %v3044
        %v3579 = vunpack.c.h.b16 %v3044
        %v3580 = vunpack.c.l.b16 %v3045
        %v3581 = vunpack.c.h.b16 %v3045
        %v3582 = vunpack.c.l.b16 %v3046
        %v3583 = vunpack.c.h.b16 %v3046
        %v3584 = vunpack.c.l.b16 %v3047
        %v3585 = vunpack.c.h.b16 %v3047
        %v3586 = vunpack.c.l.b16 %v3048
        %v3587 = vunpack.c.h.b16 %v3048
        %v3588 = vunpack.c.l.b16 %v3049
        %v3589 = vunpack.c.h.b16 %v3049
        %v3590 = vunpack.c.l.b16 %v3050
        %v3591 = vunpack.c.h.b16 %v3050
        %v3592 = vunpack.c.l.b16 %v3051
        %v3593 = vunpack.c.h.b16 %v3051
        %v3594 = vunpack.c.l.b16 %v3052
        %v3595 = vunpack.c.h.b16 %v3052
        %v3596 = vunpack.c.l.b16 %v3053
        %v3597 = vunpack.c.h.b16 %v3053
        %v3598 = vunpack.c.l.b16 %v3054
        %v3599 = vunpack.c.h.b16 %v3054
        %v3600 = vunpack.c.l.b16 %v3055
        %v3601 = vunpack.c.h.b16 %v3055
        %v3602 = vunpack.c.l.b16 %v3056
        %v3603 = vunpack.c.h.b16 %v3056
        %v3604 = vunpack.c.l.b16 %v3057
        %v3605 = vunpack.c.h.b16 %v3057
        %v3606 = vunpack.c.l.b16 %v3058
        %v3607 = vunpack.c.h.b16 %v3058
        %v3608 = vunpack.c.l.b16 %v3059
        %v3609 = vunpack.c.h.b16 %v3059
        %v3610 = vunpack.c.l.b16 %v3060
        %v3611 = vunpack.c.h.b16 %v3060
        %v3612 = vunpack.c.l.b16 %v3061
        %v3613 = vunpack.c.h.b16 %v3061
        %v3614 = vunpack.c.l.b16 %v3062
        %v3615 = vunpack.c.h.b16 %v3062
        %v3616 = vunpack.c.l.b16 %v3063
        %v3617 = vunpack.c.h.b16 %v3063
        %v3618 = vunpack.c.l.b16 %v3064
        %v3619 = vunpack.c.h.b16 %v3064
        %v3620 = vunpack.c.l.b16 %v3065
        %v3621 = vunpack.c.h.b16 %v3065
        %v3622 = vunpack.c.l.b16 %v3066
        %v3623 = vunpack.c.h.b16 %v3066
        %v3624 = vunpack.c.l.b16 %v3067
        %v3625 = vunpack.c.h.b16 %v3067
        %v3626 = vunpack.c.l.b16 %v3068
        %v3627 = vunpack.c.h.b16 %v3068
        %v3628 = vunpack.c.l.b16 %v3069
        %v3629 = vunpack.c.h.b16 %v3069
        %v3630 = vunpack.c.l.b16 %v3070
        %v3631 = vunpack.c.h.b16 %v3070
        %v3632 = vunpack.c.l.b16 %v3071
        %v3633 = vunpack.c.h.b16 %v3071
        %v3634 = vunpack.c.l.b16 %v3072
        %v3635 = vunpack.c.h.b16 %v3072
        %v3636 = vunpack.c.l.b16 %v3073
        %v3637 = vunpack.c.h.b16 %v3073
        %v3638 = vunpack.c.l.b16 %v3074
        %v3639 = vunpack.c.h.b16 %v3074
        %v3640 = vunpack.c.l.b16 %v3075
        %v3641 = vunpack.c.h.b16 %v3075
        %v3642 = vunpack.c.l.b16 %v3076
        %v3643 = vunpack.c.h.b16 %v3076
        %v3644 = vunpack.c.l.b16 %v3077
        %v3645 = vunpack.c.h.b16 %v3077
        %v3646 = vunpack.c.l.b16 %v3078
        %v3647 = vunpack.c.h.b16 %v3078
        %v3648 = vunpack.c.l.b16 %v3079
        %v3649 = vunpack.c.h.b16 %v3079
        %v3650 = vunpack.c.l.b16 %v3080
        %v3651 = vunpack.c.h.b16 %v3080
        %v3652 = vunpack.c.l.b16 %v3081
        %v3653 = vunpack.c.h.b16 %v3081
        %v3654 = vunpack.c.l.b16 %v3082
        %v3655 = vunpack.c.h.b16 %v3082
        %v3656 = vunpack.c.l.b16 %v3083
        %v3657 = vunpack.c.h.b16 %v3083
        %v3658 = vunpack.c.l.b16 %v3084
        %v3659 = vunpack.c.h.b16 %v3084
        %v3660 = vunpack.c.l.b16 %v3085
        %v3661 = vunpack.c.h.b16 %v3085
        %v3662 = vunpack.c.l.b16 %v3086
        %v3663 = vunpack.c.h.b16 %v3086
        %v3664 = vunpack.c.l.b16 %v3087
        %v3665 = vunpack.c.h.b16 %v3087
        %v3666 = vunpack.c.l.b16 %v3088
        %v3667 = vunpack.c.h.b16 %v3088
        %v3668 = vunpack.c.l.b16 %v3089
        %v3669 = vunpack.c.h.b16 %v3089
        %v3670 = vunpack.c.l.b16 %v3090
        %v3671 = vunpack.c.h.b16 %v3090
        %v3672 = vunpack.c.l.b16 %v3091
        %v3673 = vunpack.c.h.b16 %v3091
        %v3674 = vunpack.c.l.b16 %v3092
        %v3675 = vunpack.c.h.b16 %v3092
        %v3676 = vunpack.c.l.b16 %v3093
        %v3677 = vunpack.c.h.b16 %v3093
        %v3678 = vunpack.c.l.b16 %v3094
        %v3679 = vunpack.c.h.b16 %v3094
        %v3680 = vunpack.c.l.b16 %v3095
        %v3681 = vunpack.c.h.b16 %v3095
        %v3682 = vunpack.c.l.b16 %v3096
        %v3683 = vunpack.c.h.b16 %v3096
        %v3684 = vunpack.c.l.b16 %v3097
        %v3685 = vunpack.c.h.b16 %v3097
        %v3686 = vunpack.c.l.b16 %v3098
        %v3687 = vunpack.c.h.b16 %v3098
        %v3688 = vunpack.c.l.b16 %v3099
        %v3689 = vunpack.c.h.b16 %v3099
        %v3690 = vunpack.c.l.b16 %v3100
        %v3691 = vunpack.c.h.b16 %v3100
        %v3692 = vunpack.c.l.b16 %v3101
        %v3693 = vunpack.c.h.b16 %v3101
        %v3694 = vunpack.c.l.b16 %v3102
        %v3695 = vunpack.c.h.b16 %v3102
        %v3696 = vunpack.c.l.b16 %v3103
        %v3697 = vunpack.c.h.b16 %v3103
        %v3698 = vunpack.c.l.b16 %v3104
        %v3699 = vunpack.c.h.b16 %v3104
        %v3700 = vunpack.c.l.b16 %v3105
        %v3701 = vunpack.c.h.b16 %v3105
        %v3702 = vunpack.c.l.b16 %v3106
        %v3703 = vunpack.c.h.b16 %v3106
        %v3704 = vunpack.c.l.b16 %v3107
        %v3705 = vunpack.c.h.b16 %v3107
        %v3706 = vunpack.c.l.b16 %v3108
        %v3707 = vunpack.c.h.b16 %v3108
        %v3708 = vunpack.c.l.b16 %v3109
        %v3709 = vunpack.c.h.b16 %v3109
        %v3710 = vunpack.c.l.b16 %v3110
        %v3711 = vunpack.c.h.b16 %v3110
        %v3712 = vunpack.c.l.b16 %v3111
        %v3713 = vunpack.c.h.b16 %v3111
        %v3714 = vunpack.c.l.b16 %v3112
        %v3715 = vunpack.c.h.b16 %v3112
        %v3716 = vunpack.c.l.b16 %v3113
        %v3717 = vunpack.c.h.b16 %v3113
        %v3718 = vunpack.c.l.b16 %v3114
        %v3719 = vunpack.c.h.b16 %v3114
        %v3720 = vunpack.c.l.b16 %v3115
        %v3721 = vunpack.c.h.b16 %v3115
        %v3722 = vunpack.c.l.b16 %v3116
        %v3723 = vunpack.c.h.b16 %v3116
        %v3724 = vunpack.c.l.b16 %v3117
        %v3725 = vunpack.c.h.b16 %v3117
        %v3726 = vunpack.c.l.b16 %v3118
        %v3727 = vunpack.c.h.b16 %v3118
        %v3728 = vunpack.c.l.b16 %v3119
        %v3729 = vunpack.c.h.b16 %v3119
        %v3730 = vunpack.c.l.b16 %v3120
        %v3731 = vunpack.c.h.b16 %v3120
        %v3732 = vunpack.c.l.b16 %v3121
        %v3733 = vunpack.c.h.b16 %v3121
        %v3734 = vunpack.c.l.b16 %v3122
        %v3735 = vunpack.c.h.b16 %v3122
        %v3736 = vunpack.c.l.b16 %v3123
        %v3737 = vunpack.c.h.b16 %v3123
        %v3738 = vunpack.c.l.b16 %v3124
        %v3739 = vunpack.c.h.b16 %v3124
        %v3740 = vunpack.c.l.b16 %v3125
        %v3741 = vunpack.c.h.b16 %v3125
        %v3742 = vunpack.c.l.b16 %v3126
        %v3743 = vunpack.c.h.b16 %v3126
        %v3744 = vunpack.c.l.b16 %v3127
        %v3745 = vunpack.c.h.b16 %v3127
        %v3746 = vunpack.c.l.b16 %v3128
        %v3747 = vunpack.c.h.b16 %v3128
        %v3748 = vunpack.c.l.b16 %v3129
        %v3749 = vunpack.c.h.b16 %v3129
        %v3750 = vunpack.c.l.b16 %v3130
        %v3751 = vunpack.c.h.b16 %v3130
        %v3752 = vunpack.c.l.b16 %v3131
        %v3753 = vunpack.c.h.b16 %v3131
        %v3754 = vunpack.c.l.b16 %v3132
        %v3755 = vunpack.c.h.b16 %v3132
        %v3756 = vunpack.c.l.b16 %v3133
        %v3757 = vunpack.c.h.b16 %v3133
        %v3758 = vunpack.c.l.b16 %v3134
        %v3759 = vunpack.c.h.b16 %v3134
        %v3760 = vunpack.c.l.b16 %v3135
        %v3761 = vunpack.c.h.b16 %v3135
        %v3762 = vunpack.c.l.b16 %v3136
        %v3763 = vunpack.c.h.b16 %v3136
        %v3764 = vunpack.c.l.b16 %v3137
        %v3765 = vunpack.c.h.b16 %v3137
        %v3766 = vunpack.c.l.b16 %v3138
        %v3767 = vunpack.c.h.b16 %v3138
        %v3768 = vunpack.c.l.b16 %v3139
        %v3769 = vunpack.c.h.b16 %v3139
        %v3770 = vunpack.c.l.b16 %v3140
        %v3771 = vunpack.c.h.b16 %v3140
        %v3772 = vunpack.c.l.b16 %v3141
        %v3773 = vunpack.c.h.b16 %v3141
        %v3774 = vunpack.c.l.b16 %v3142
        %v3775 = vunpack.c.h.b16 %v3142
        %v3776 = vunpack.c.l.b16 %v3143
        %v3777 = vunpack.c.h.b16 %v3143
        %v3778 = vunpack.c.l.b16 %v3144
        %v3779 = vunpack.c.h.b16 %v3144
        %v3780 = vunpack.c.l.b16 %v3145
        %v3781 = vunpack.c.h.b16 %v3145
        %v3782 = vunpack.c.l.b16 %v3146
        %v3783 = vunpack.c.h.b16 %v3146
        %v3784 = vunpack.c.l.b16 %v3147
        %v3785 = vunpack.c.h.b16 %v3147
        %v3786 = vunpack.c.l.b16 %v3148
        %v3787 = vunpack.c.h.b16 %v3148
        %v3788 = vunpack.c.l.b16 %v3149
        %v3789 = vunpack.c.h.b16 %v3149
        %v3790 = vunpack.c.l.b16 %v3150
        %v3791 = vunpack.c.h.b16 %v3150
        %v3792 = vunpack.c.l.b16 %v3151
        %v3793 = vunpack.c.h.b16 %v3151
        %v3794 = vunpack.c.l.b16 %v3152
        %v3795 = vunpack.c.h.b16 %v3152
        %v3796 = vunpack.c.l.b16 %v3153
        %v3797 = vunpack.c.h.b16 %v3153
        %v3798 = vunpack.c.l.b16 %v3154
        %v3799 = vunpack.c.h.b16 %v3154
        %v3800 = vunpack.c.l.b16 %v3155
        %v3801 = vunpack.c.h.b16 %v3155
        %v3802 = vunpack.c.l.b16 %v3156
        %v3803 = vunpack.c.h.b16 %v3156
        %v3804 = vunpack.c.l.b16 %v3157
        %v3805 = vunpack.c.h.b16 %v3157
        %v3806 = vunpack.c.l.b16 %v3158
        %v3807 = vunpack.c.h.b16 %v3158
        %v3808 = vunpack.c.l.b16 %v3159
        %v3809 = vunpack.c.h.b16 %v3159
        %v3810 = vunpack.c.l.b16 %v3160
        %v3811 = vunpack.c.h.b16 %v3160
        %v3812 = vunpack.c.l.b16 %v3161
        %v3813 = vunpack.c.h.b16 %v3161
        %v3814 = vunpack.c.l.b16 %v3162
        %v3815 = vunpack.c.h.b16 %v3162
        %v3816 = vunpack.c.l.b16 %v3163
        %v3817 = vunpack.c.h.b16 %v3163
        %v3818 = vunpack.c.l.b16 %v3164
        %v3819 = vunpack.c.h.b16 %v3164
        %v3820 = vunpack.c.l.b16 %v3165
        %v3821 = vunpack.c.h.b16 %v3165
        %v3822 = vunpack.c.l.b16 %v3166
        %v3823 = vunpack.c.h.b16 %v3166
        %v3824 = vunpack.c.l.b16 %v3167
        %v3825 = vunpack.c.h.b16 %v3167
        %v3826 = vunpack.c.l.b16 %v3168
        %v3827 = vunpack.c.h.b16 %v3168
        %v3828 = vunpack.c.l.b16 %v3169
        %v3829 = vunpack.c.h.b16 %v3169
        %v3830 = vunpack.c.l.b16 %v3170
        %v3831 = vunpack.c.h.b16 %v3170
        %v3832 = vunpack.c.l.b16 %v3171
        %v3833 = vunpack.c.h.b16 %v3171
        %v3834 = vunpack.c.l.b16 %v3172
        %v3835 = vunpack.c.h.b16 %v3172
        %v3836 = vunpack.c.l.b16 %v3173
        %v3837 = vunpack.c.h.b16 %v3173
        %v3838 = vunpack.c.l.b16 %v3174
        %v3839 = vunpack.c.h.b16 %v3174
        %v3840 = vunpack.c.l.b16 %v3175
        %v3841 = vunpack.c.h.b16 %v3175
        %v3842 = vunpack.c.l.b16 %v3176
        %v3843 = vunpack.c.h.b16 %v3176
        %v3844 = vunpack.c.l.b16 %v3177
        %v3845 = vunpack.c.h.b16 %v3177
        %v3846 = vunpack.c.l.b16 %v3178
        %v3847 = vunpack.c.h.b16 %v3178
        %v3848 = vunpack.c.l.b16 %v3179
        %v3849 = vunpack.c.h.b16 %v3179
        %v3850 = vunpack.c.l.b16 %v3180
        %v3851 = vunpack.c.h.b16 %v3180
        %v3852 = vunpack.c.l.b16 %v3181
        %v3853 = vunpack.c.h.b16 %v3181
        %v3854 = vunpack.c.l.b16 %v3182
        %v3855 = vunpack.c.h.b16 %v3182
        %v3856 = vunpack.c.l.b16 %v3183
        %v3857 = vunpack.c.h.b16 %v3183
        %v3858 = vunpack.c.l.b16 %v3184
        %v3859 = vunpack.c.h.b16 %v3184
        %v3860 = vunpack.c.l.b16 %v3185
        %v3861 = vunpack.c.h.b16 %v3185
        %v3862 = vunpack.c.l.b16 %v3186
        %v3863 = vunpack.c.h.b16 %v3186
        %v3864 = vunpack.c.l.b16 %v3187
        %v3865 = vunpack.c.h.b16 %v3187
        %v3866 = vunpack.c.l.b16 %v3188
        %v3867 = vunpack.c.h.b16 %v3188
        %v3868 = vunpack.c.l.b16 %v3189
        %v3869 = vunpack.c.h.b16 %v3189
        %v3870 = vunpack.c.l.b16 %v3190
        %v3871 = vunpack.c.h.b16 %v3190
        %v3872 = vunpack.c.l.b16 %v3191
        %v3873 = vunpack.c.h.b16 %v3191
        %v3874 = vunpack.c.l.b16 %v3192
        %v3875 = vunpack.c.h.b16 %v3192
        %v3876 = vunpack.c.l.b16 %v3193
        %v3877 = vunpack.c.h.b16 %v3193
        %v3878 = vunpack.c.l.b16 %v3194
        %v3879 = vunpack.c.h.b16 %v3194
        %v3880 = vunpack.c.l.b16 %v3195
        %v3881 = vunpack.c.h.b16 %v3195
        %v3882 = vunpack.c.l.b16 %v3196
        %v3883 = vunpack.c.h.b16 %v3196
        %v3884 = vunpack.c.l.b16 %v3197
        %v3885 = vunpack.c.h.b16 %v3197
        %v3886 = vunpack.c.l.b16 %v3198
        %v3887 = vunpack.c.h.b16 %v3198
        %v3888 = vunpack.c.l.b16 %v3199
        %v3889 = vunpack.c.h.b16 %v3199
        %v3890 = vunpack.c.l.b16 %v3200
        %v3891 = vunpack.c.h.b16 %v3200
        %v3892 = vunpack.c.l.b16 %v3201
        %v3893 = vunpack.c.h.b16 %v3201
        %v3894 = vunpack.c.l.b16 %v3202
        %v3895 = vunpack.c.h.b16 %v3202
        %v3896 = vunpack.c.l.b16 %v3203
        %v3897 = vunpack.c.h.b16 %v3203
        %v3898 = vunpack.c.l.b16 %v3204
        %v3899 = vunpack.c.h.b16 %v3204
        %v3900 = vunpack.c.l.b16 %v3205
        %v3901 = vunpack.c.h.b16 %v3205
        %v3902 = vunpack.c.l.b16 %v3206
        %v3903 = vunpack.c.h.b16 %v3206
        %v3904 = vunpack.c.l.b16 %v3207
        %v3905 = vunpack.c.h.b16 %v3207
        %v3906 = vunpack.c.l.b16 %v3208
        %v3907 = vunpack.c.h.b16 %v3208
        %v3908 = vunpack.c.l.b16 %v3209
        %v3909 = vunpack.c.h.b16 %v3209
        %v3910 = vunpack.c.l.b16 %v3210
        %v3911 = vunpack.c.h.b16 %v3210
        %v3912 = vunpack.c.l.b16 %v3211
        %v3913 = vunpack.c.h.b16 %v3211
        %v3914 = vunpack.c.l.b16 %v3212
        %v3915 = vunpack.c.h.b16 %v3212
        %v3916 = vunpack.c.l.b16 %v3213
        %v3917 = vunpack.c.h.b16 %v3213
        %v3918 = vunpack.c.l.b16 %v3214
        %v3919 = vunpack.c.h.b16 %v3214
        %v3920 = vunpack.c.l.b16 %v3215
        %v3921 = vunpack.c.h.b16 %v3215
        %v3922 = vunpack.c.l.b16 %v3216
        %v3923 = vunpack.c.h.b16 %v3216
        %v3924 = vunpack.c.l.b16 %v3217
        %v3925 = vunpack.c.h.b16 %v3217
        %v3926 = vunpack.c.l.b16 %v3218
        %v3927 = vunpack.c.h.b16 %v3218
        %v3928 = vunpack.c.l.b16 %v3219
        %v3929 = vunpack.c.h.b16 %v3219
        %v3930 = vunpack.c.l.b16 %v3220
        %v3931 = vunpack.c.h.b16 %v3220
        %v3932 = vunpack.c.l.b16 %v3221
        %v3933 = vunpack.c.h.b16 %v3221
        %v3934 = vunpack.c.l.b16 %v3222
        %v3935 = vunpack.c.h.b16 %v3222
        %v3936 = vunpack.c.l.b16 %v3223
        %v3937 = vunpack.c.h.b16 %v3223
        %v3938 = vunpack.c.l.b16 %v3224
        %v3939 = vunpack.c.h.b16 %v3224
        %v3940 = vunpack.c.l.b16 %v3225
        %v3941 = vunpack.c.h.b16 %v3225
        %v3942 = vunpack.c.l.b16 %v3226
        %v3943 = vunpack.c.h.b16 %v3226
        %v3944 = vunpack.c.l.b16 %v3227
        %v3945 = vunpack.c.h.b16 %v3227
        %v3946 = vunpack.c.l.b16 %v3228
        %v3947 = vunpack.c.h.b16 %v3228
        %v3948 = vunpack.c.l.b16 %v3229
        %v3949 = vunpack.c.h.b16 %v3229
        %v3950 = vunpack.c.l.b16 %v3230
        %v3951 = vunpack.c.h.b16 %v3230
        %v3952 = vunpack.c.l.b16 %v3231
        %v3953 = vunpack.c.h.b16 %v3231
        %v3954 = vunpack.c.l.b16 %v3232
        %v3955 = vunpack.c.h.b16 %v3232
        %v3956 = vunpack.c.l.b16 %v3233
        %v3957 = vunpack.c.h.b16 %v3233
        %v3958 = vunpack.c.l.b16 %v3234
        %v3959 = vunpack.c.h.b16 %v3234
        %v3960 = vunpack.c.l.b16 %v3235
        %v3961 = vunpack.c.h.b16 %v3235
        %v3962 = vunpack.c.l.b16 %v3236
        %v3963 = vunpack.c.h.b16 %v3236
        %v3964 = vunpack.c.l.b16 %v3237
        %v3965 = vunpack.c.h.b16 %v3237
        %v3966 = vunpack.c.l.b16 %v3238
        %v3967 = vunpack.c.h.b16 %v3238
        %v3968 = vunpack.c.l.b16 %v3239
        %v3969 = vunpack.c.h.b16 %v3239
        %v3970 = vunpack.c.l.b16 %v3240
        %v3971 = vunpack.c.h.b16 %v3240
        %v3972 = vunpack.c.l.b16 %v3241
        %v3973 = vunpack.c.h.b16 %v3241
        %v3974 = vunpack.c.l.b16 %v3242
        %v3975 = vunpack.c.h.b16 %v3242
        %v3976 = vunpack.c.l.b16 %v3243
        %v3977 = vunpack.c.h.b16 %v3243
        %v3978 = vunpack.c.l.b16 %v3244
        %v3979 = vunpack.c.h.b16 %v3244
        %v3980 = vunpack.c.l.b16 %v3245
        %v3981 = vunpack.c.h.b16 %v3245
        %v3982 = vunpack.c.l.b16 %v3246
        %v3983 = vunpack.c.h.b16 %v3246
        %v3984 = vunpack.c.l.b16 %v3247
        %v3985 = vunpack.c.h.b16 %v3247
        %v3986 = vunpack.c.l.b16 %v3248
        %v3987 = vunpack.c.h.b16 %v3248
        %v3988 = vunpack.c.l.b16 %v3249
        %v3989 = vunpack.c.h.b16 %v3249
        %v3990 = vunpack.c.l.b16 %v3250
        %v3991 = vunpack.c.h.b16 %v3250
        %v3992 = vunpack.c.l.b16 %v3251
        %v3993 = vunpack.c.h.b16 %v3251
        %v3994 = vunpack.c.l.b16 %v3252
        %v3995 = vunpack.c.h.b16 %v3252
        %v3996 = vunpack.c.l.b16 %v3253
        %v3997 = vunpack.c.h.b16 %v3253
        %v3998 = vunpack.c.l.b16 %v3254
        %v3999 = vunpack.c.h.b16 %v3254
        %v4000 = vunpack.c.l.b16 %v3255
        %v4001 = vunpack.c.h.b16 %v3255
        %v4002 = vunpack.c.l.b16 %v3256
        %v4003 = vunpack.c.h.b16 %v3256
        %v4004 = vunpack.c.l.b16 %v3257
        %v4005 = vunpack.c.h.b16 %v3257
        %v4006 = vunpack.c.l.b16 %v3258
        %v4007 = vunpack.c.h.b16 %v3258
        %v4008 = vunpack.c.l.b16 %v3259
        %v4009 = vunpack.c.h.b16 %v3259
        %v4010 = vunpack.c.l.b16 %v3260
        %v4011 = vunpack.c.h.b16 %v3260
        %v4012 = vunpack.c.l.b16 %v3261
        %v4013 = vunpack.c.h.b16 %v3261
        %v4014 = vunpack.c.l.b16 %v3262
        %v4015 = vunpack.c.h.b16 %v3262
        %v4016 = vunpack.c.l.b16 %v3263
        %v4017 = vunpack.c.h.b16 %v3263
        %v4018 = vunpack.c.l.b16 %v3264
        %v4019 = vunpack.c.h.b16 %v3264
        %v4020 = vunpack.c.l.b16 %v3265
        %v4021 = vunpack.c.h.b16 %v3265
        %v4022 = vunpack.c.l.b16 %v3266
        %v4023 = vunpack.c.h.b16 %v3266
        %v4024 = vunpack.c.l.b16 %v3267
        %v4025 = vunpack.c.h.b16 %v3267
        %v4026 = vunpack.c.l.b16 %v3268
        %v4027 = vunpack.c.h.b16 %v3268
        %v4028 = vunpack.c.l.b16 %v3269
        %v4029 = vunpack.c.h.b16 %v3269
        %v4030 = vunpack.c.l.b16 %v3270
        %v4031 = vunpack.c.h.b16 %v3270
        %v4032 = vunpack.c.l.b16 %v3271
        %v4033 = vunpack.c.h.b16 %v3271
        %v4034 = vunpack.c.l.b16 %v3272
        %v4035 = vunpack.c.h.b16 %v3272
        %v4036 = vunpack.c.l.b16 %v3273
        %v4037 = vunpack.c.h.b16 %v3273
        %v4038 = vunpack.c.l.b16 %v3274
        %v4039 = vunpack.c.h.b16 %v3274
        %v4040 = vunpack.c.l.b16 %v3275
        %v4041 = vunpack.c.h.b16 %v3275
        %v4042 = vunpack.c.l.b16 %v3276
        %v4043 = vunpack.c.h.b16 %v3276
        %v4044 = vunpack.c.l.b16 %v3277
        %v4045 = vunpack.c.h.b16 %v3277
        %v4046 = vunpack.c.l.b16 %v3278
        %v4047 = vunpack.c.h.b16 %v3278
        %v4048 = vpack.c.b16 %v3540, %v3536
        %v4049 = vpack.c.b16 %v3541, %v3537
        %v4050 = vpack.c.b16 %v3542, %v3538
        %v4051 = vpack.c.b16 %v3543, %v3539
        %v4052 = vpack.c.b16 %v3548, %v3544
        %v4053 = vpack.c.b16 %v3549, %v3545
        %v4054 = vpack.c.b16 %v3550, %v3546
        %v4055 = vpack.c.b16 %v3551, %v3547
        %v4056 = vpack.c.b16 %v3556, %v3552
        %v4057 = vpack.c.b16 %v3557, %v3553
        %v4058 = vpack.c.b16 %v3558, %v3554
        %v4059 = vpack.c.b16 %v3559, %v3555
        %v4060 = vpack.c.b16 %v3564, %v3560
        %v4061 = vpack.c.b16 %v3565, %v3561
        %v4062 = vpack.c.b16 %v3566, %v3562
        %v4063 = vpack.c.b16 %v3567, %v3563
        %v4064 = vpack.c.b16 %v3572, %v3568
        %v4065 = vpack.c.b16 %v3573, %v3569
        %v4066 = vpack.c.b16 %v3574, %v3570
        %v4067 = vpack.c.b16 %v3575, %v3571
        %v4068 = vpack.c.b16 %v3580, %v3576
        %v4069 = vpack.c.b16 %v3581, %v3577
        %v4070 = vpack.c.b16 %v3582, %v3578
        %v4071 = vpack.c.b16 %v3583, %v3579
        %v4072 = vpack.c.b16 %v3588, %v3584
        %v4073 = vpack.c.b16 %v3589, %v3585
        %v4074 = vpack.c.b16 %v3590, %v3586
        %v4075 = vpack.c.b16 %v3591, %v3587
        %v4076 = vpack.c.b16 %v3596, %v3592
        %v4077 = vpack.c.b16 %v3597, %v3593
        %v4078 = vpack.c.b16 %v3598, %v3594
        %v4079 = vpack.c.b16 %v3599, %v3595
        %v4080 = vpack.c.b16 %v3604, %v3600
        %v4081 = vpack.c.b16 %v3605, %v3601
        %v4082 = vpack.c.b16 %v3606, %v3602
        %v4083 = vpack.c.b16 %v3607, %v3603
        %v4084 = vpack.c.b16 %v3612, %v3608
        %v4085 = vpack.c.b16 %v3613, %v3609
        %v4086 = vpack.c.b16 %v3614, %v3610
        %v4087 = vpack.c.b16 %v3615, %v3611
        %v4088 = vpack.c.b16 %v3620, %v3616
        %v4089 = vpack.c.b16 %v3621, %v3617
        %v4090 = vpack.c.b16 %v3622, %v3618
        %v4091 = vpack.c.b16 %v3623, %v3619
        %v4092 = vpack.c.b16 %v3628, %v3624
        %v4093 = vpack.c.b16 %v3629, %v3625
        %v4094 = vpack.c.b16 %v3630, %v3626
        %v4095 = vpack.c.b16 %v3631, %v3627
        %v4096 = vpack.c.b16 %v3636, %v3632
        %v4097 = vpack.c.b16 %v3637, %v3633
        %v4098 = vpack.c.b16 %v3638, %v3634
        %v4099 = vpack.c.b16 %v3639, %v3635
        %v4100 = vpack.c.b16 %v3644, %v3640
        %v4101 = vpack.c.b16 %v3645, %v3641
        %v4102 = vpack.c.b16 %v3646, %v3642
        %v4103 = vpack.c.b16 %v3647, %v3643
        %v4104 = vpack.c.b16 %v3652, %v3648
        %v4105 = vpack.c.b16 %v3653, %v3649
        %v4106 = vpack.c.b16 %v3654, %v3650
        %v4107 = vpack.c.b16 %v3655, %v3651
        %v4108 = vpack.c.b16 %v3660, %v3656
        %v4109 = vpack.c.b16 %v3661, %v3657
        %v4110 = vpack.c.b16 %v3662, %v3658
        %v4111 = vpack.c.b16 %v3663, %v3659
        %v4112 = vpack.c.b16 %v3668, %v3664
        %v4113 = vpack.c.b16 %v3669, %v3665
        %v4114 = vpack.c.b16 %v3670, %v3666
        %v4115 = vpack.c.b16 %v3671, %v3667
        %v4116 = vpack.c.b16 %v3676, %v3672
        %v4117 = vpack.c.b16 %v3677, %v3673
        %v4118 = vpack.c.b16 %v3678, %v3674
        %v4119 = vpack.c.b16 %v3679, %v3675
        %v4120 = vpack.c.b16 %v3684, %v3680
        %v4121 = vpack.c.b16 %v3685, %v3681
        %v4122 = vpack.c.b16 %v3686, %v3682
        %v4123 = vpack.c.b16 %v3687, %v3683
        %v4124 = vpack.c.b16 %v3692, %v3688
        %v4125 = vpack.c.b16 %v3693, %v3689
        %v4126 = vpack.c.b16 %v3694, %v3690
        %v4127 = vpack.c.b16 %v3695, %v3691
        %v4128 = vpack.c.b16 %v3700, %v3696
        %v4129 = vpack.c.b16 %v3701, %v3697
        %v4130 = vpack.c.b16 %v3702, %v3698
        %v4131 = vpack.c.b16 %v3703, %v3699
        %v4132 = vpack.c.b16 %v3708, %v3704
        %v4133 = vpack.c.b16 %v3709, %v3705
        %v4134 = vpack.c.b16 %v3710, %v3706
        %v4135 = vpack.c.b16 %v3711, %v3707
        %v4136 = vpack.c.b16 %v3716, %v3712
        %v4137 = vpack.c.b16 %v3717, %v3713
        %v4138 = vpack.c.b16 %v3718, %v3714
        %v4139 = vpack.c.b16 %v3719, %v3715
        %v4140 = vpack.c.b16 %v3724, %v3720
        %v4141 = vpack.c.b16 %v3725, %v3721
        %v4142 = vpack.c.b16 %v3726, %v3722
        %v4143 = vpack.c.b16 %v3727, %v3723
        %v4144 = vpack.c.b16 %v3732, %v3728
        %v4145 = vpack.c.b16 %v3733, %v3729
        %v4146 = vpack.c.b16 %v3734, %v3730
        %v4147 = vpack.c.b16 %v3735, %v3731
        %v4148 = vpack.c.b16 %v3740, %v3736
        %v4149 = vpack.c.b16 %v3741, %v3737
        %v4150 = vpack.c.b16 %v3742, %v3738
        %v4151 = vpack.c.b16 %v3743, %v3739
        %v4152 = vpack.c.b16 %v3748, %v3744
        %v4153 = vpack.c.b16 %v3749, %v3745
        %v4154 = vpack.c.b16 %v3750, %v3746
        %v4155 = vpack.c.b16 %v3751, %v3747
        %v4156 = vpack.c.b16 %v3756, %v3752
        %v4157 = vpack.c.b16 %v3757, %v3753
        %v4158 = vpack.c.b16 %v3758, %v3754
        %v4159 = vpack.c.b16 %v3759, %v3755
        %v4160 = vpack.c.b16 %v3764, %v3760
        %v4161 = vpack.c.b16 %v3765, %v3761
        %v4162 = vpack.c.b16 %v3766, %v3762
        %v4163 = vpack.c.b16 %v3767, %v3763
        %v4164 = vpack.c.b16 %v3772, %v3768
        %v4165 = vpack.c.b16 %v3773, %v3769
        %v4166 = vpack.c.b16 %v3774, %v3770
        %v4167 = vpack.c.b16 %v3775, %v3771
        %v4168 = vpack.c.b16 %v3780, %v3776
        %v4169 = vpack.c.b16 %v3781, %v3777
        %v4170 = vpack.c.b16 %v3782, %v3778
        %v4171 = vpack.c.b16 %v3783, %v3779
        %v4172 = vpack.c.b16 %v3788, %v3784
        %v4173 = vpack.c.b16 %v3789, %v3785
        %v4174 = vpack.c.b16 %v3790, %v3786
        %v4175 = vpack.c.b16 %v3791, %v3787
        %v4176 = vpack.c.b16 %v3796, %v3792
        %v4177 = vpack.c.b16 %v3797, %v3793
        %v4178 = vpack.c.b16 %v3798, %v3794
        %v4179 = vpack.c.b16 %v3799, %v3795
        %v4180 = vpack.c.b16 %v3804, %v3800
        %v4181 = vpack.c.b16 %v3805, %v3801
        %v4182 = vpack.c.b16 %v3806, %v3802
        %v4183 = vpack.c.b16 %v3807, %v3803
        %v4184 = vpack.c.b16 %v3812, %v3808
        %v4185 = vpack.c.b16 %v3813, %v3809
        %v4186 = vpack.c.b16 %v3814, %v3810
        %v4187 = vpack.c.b16 %v3815, %v3811
        %v4188 = vpack.c.b16 %v3820, %v3816
        %v4189 = vpack.c.b16 %v3821, %v3817
        %v4190 = vpack.c.b16 %v3822, %v3818
        %v4191 = vpack.c.b16 %v3823, %v3819
        %v4192 = vpack.c.b16 %v3828, %v3824
        %v4193 = vpack.c.b16 %v3829, %v3825
        %v4194 = vpack.c.b16 %v3830, %v3826
        %v4195 = vpack.c.b16 %v3831, %v3827
        %v4196 = vpack.c.b16 %v3836, %v3832
        %v4197 = vpack.c.b16 %v3837, %v3833
        %v4198 = vpack.c.b16 %v3838, %v3834
        %v4199 = vpack.c.b16 %v3839, %v3835
        %v4200 = vpack.c.b16 %v3844, %v3840
        %v4201 = vpack.c.b16 %v3845, %v3841
        %v4202 = vpack.c.b16 %v3846, %v3842
        %v4203 = vpack.c.b16 %v3847, %v3843
        %v4204 = vpack.c.b16 %v3852, %v3848
        %v4205 = vpack.c.b16 %v3853, %v3849
        %v4206 = vpack.c.b16 %v3854, %v3850
        %v4207 = vpack.c.b16 %v3855, %v3851
        %v4208 = vpack.c.b16 %v3860, %v3856
        %v4209 = vpack.c.b16 %v3861, %v3857
        %v4210 = vpack.c.b16 %v3862, %v3858
        %v4211 = vpack.c.b16 %v3863, %v3859
        %v4212 = vpack.c.b16 %v3868, %v3864
        %v4213 = vpack.c.b16 %v3869, %v3865
        %v4214 = vpack.c.b16 %v3870, %v3866
        %v4215 = vpack.c.b16 %v3871, %v3867
        %v4216 = vpack.c.b16 %v3876, %v3872
        %v4217 = vpack.c.b16 %v3877, %v3873
        %v4218 = vpack.c.b16 %v3878, %v3874
        %v4219 = vpack.c.b16 %v3879, %v3875
        %v4220 = vpack.c.b16 %v3884, %v3880
        %v4221 = vpack.c.b16 %v3885, %v3881
        %v4222 = vpack.c.b16 %v3886, %v3882
        %v4223 = vpack.c.b16 %v3887, %v3883
        %v4224 = vpack.c.b16 %v3892, %v3888
        %v4225 = vpack.c.b16 %v3893, %v3889
        %v4226 = vpack.c.b16 %v3894, %v3890
        %v4227 = vpack.c.b16 %v3895, %v3891
        %v4228 = vpack.c.b16 %v3900, %v3896
        %v4229 = vpack.c.b16 %v3901, %v3897
        %v4230 = vpack.c.b16 %v3902, %v3898
        %v4231 = vpack.c.b16 %v3903, %v3899
        %v4232 = vpack.c.b16 %v3908, %v3904
        %v4233 = vpack.c.b16 %v3909, %v3905
        %v4234 = vpack.c.b16 %v3910, %v3906
        %v4235 = vpack.c.b16 %v3911, %v3907
        %v4236 = vpack.c.b16 %v3916, %v3912
        %v4237 = vpack.c.b16 %v3917, %v3913
        %v4238 = vpack.c.b16 %v3918, %v3914
        %v4239 = vpack.c.b16 %v3919, %v3915
        %v4240 = vpack.c.b16 %v3924, %v3920
        %v4241 = vpack.c.b16 %v3925, %v3921
        %v4242 = vpack.c.b16 %v3926, %v3922
        %v4243 = vpack.c.b16 %v3927, %v3923
        %v4244 = vpack.c.b16 %v3932, %v3928
        %v4245 = vpack.c.b16 %v3933, %v3929
        %v4246 = vpack.c.b16 %v3934, %v3930
        %v4247 = vpack.c.b16 %v3935, %v3931
        %v4248 = vpack.c.b16 %v3940, %v3936
        %v4249 = vpack.c.b16 %v3941, %v3937
        %v4250 = vpack.c.b16 %v3942, %v3938
        %v4251 = vpack.c.b16 %v3943, %v3939
        %v4252 = vpack.c.b16 %v3948, %v3944
        %v4253 = vpack.c.b16 %v3949, %v3945
        %v4254 = vpack.c.b16 %v3950, %v3946
        %v4255 = vpack.c.b16 %v3951, %v3947
        %v4256 = vpack.c.b16 %v3956, %v3952
        %v4257 = vpack.c.b16 %v3957, %v3953
        %v4258 = vpack.c.b16 %v3958, %v3954
        %v4259 = vpack.c.b16 %v3959, %v3955
        %v4260 = vpack.c.b16 %v3964, %v3960
        %v4261 = vpack.c.b16 %v3965, %v3961
        %v4262 = vpack.c.b16 %v3966, %v3962
        %v4263 = vpack.c.b16 %v3967, %v3963
        %v4264 = vpack.c.b16 %v3972, %v3968
        %v4265 = vpack.c.b16 %v3973, %v3969
        %v4266 = vpack.c.b16 %v3974, %v3970
        %v4267 = vpack.c.b16 %v3975, %v3971
        %v4268 = vpack.c.b16 %v3980, %v3976
        %v4269 = vpack.c.b16 %v3981, %v3977
        %v4270 = vpack.c.b16 %v3982, %v3978
        %v4271 = vpack.c.b16 %v3983, %v3979
        %v4272 = vpack.c.b16 %v3988, %v3984
        %v4273 = vpack.c.b16 %v3989, %v3985
        %v4274 = vpack.c.b16 %v3990, %v3986
        %v4275 = vpack.c.b16 %v3991, %v3987
        %v4276 = vpack.c.b16 %v3996, %v3992
        %v4277 = vpack.c.b16 %v3997, %v3993
        %v4278 = vpack.c.b16 %v3998, %v3994
        %v4279 = vpack.c.b16 %v3999, %v3995
        %v4280 = vpack.c.b16 %v4004, %v4000
        %v4281 = vpack.c.b16 %v4005, %v4001
        %v4282 = vpack.c.b16 %v4006, %v4002
        %v4283 = vpack.c.b16 %v4007, %v4003
        %v4284 = vpack.c.b16 %v4012, %v4008
        %v4285 = vpack.c.b16 %v4013, %v4009
        %v4286 = vpack.c.b16 %v4014, %v4010
        %v4287 = vpack.c.b16 %v4015, %v4011
        %v4288 = vpack.c.b16 %v4020, %v4016
        %v4289 = vpack.c.b16 %v4021, %v4017
        %v4290 = vpack.c.b16 %v4022, %v4018
        %v4291 = vpack.c.b16 %v4023, %v4019
        %v4292 = vpack.c.b16 %v4028, %v4024
        %v4293 = vpack.c.b16 %v4029, %v4025
        %v4294 = vpack.c.b16 %v4030, %v4026
        %v4295 = vpack.c.b16 %v4031, %v4027
        %v4296 = vpack.c.b16 %v4036, %v4032
        %v4297 = vpack.c.b16 %v4037, %v4033
        %v4298 = vpack.c.b16 %v4038, %v4034
        %v4299 = vpack.c.b16 %v4039, %v4035
        %v4300 = vpack.c.b16 %v4044, %v4040
        %v4301 = vpack.c.b16 %v4045, %v4041
        %v4302 = vpack.c.b16 %v4046, %v4042
        %v4303 = vpack.c.b16 %v4047, %v4043
        %v4561 = vlaneseq
        %v4562 = vshrl.u32 %v4561, 7
        %v4563 = vsub.s32 0, %v4562
        %v4564 = vrot.slane %v3279, %v4563
        %v4565 = vlaneseq
        %v4566 = vshrl.u32 %v4565, 7
        %v4567 = vsub.s32 1, %v4566
        %v4568 = vrot.slane %v3279, %v4567
        %v4569 = vlaneseq
        %v4570 = vshrl.u32 %v4569, 7
        %v4571 = vsub.s32 2, %v4570
        %v4572 = vrot.slane %v3279, %v4571
        %v4573 = vlaneseq
        %v4574 = vshrl.u32 %v4573, 7
        %v4575 = vsub.s32 3, %v4574
        %v4576 = vrot.slane %v3279, %v4575
        %4581 = vmatprep.subr.bf16.mxu0 %v4049
        %4582 = vmatpush1.bf16.msra.mxu0 %v4048
        %4583 = vmatprep.subr.bf16.mxu0 %v4053
        %4584 = vmatpush1.bf16.msra.mxu0 %v4052
        %4585 = vmatprep.subr.bf16.mxu0 %v4057
        %4586 = vmatpush1.bf16.msra.mxu0 %v4056
        %4587 = vmatprep.subr.bf16.mxu0 %v4061
        %4588 = vmatpush1.bf16.msra.mxu0 %v4060
        %4589 = vmatprep.subr.bf16.mxu0 %v4065
        %4590 = vmatpush1.bf16.msra.mxu0 %v4064
        %4591 = vmatprep.subr.bf16.mxu0 %v4069
        %4592 = vmatpush1.bf16.msra.mxu0 %v4068
        %4593 = vmatprep.subr.bf16.mxu0 %v4073
        %4594 = vmatpush1.bf16.msra.mxu0 %v4072
        %4595 = vmatprep.subr.bf16.mxu0 %v4077
        %4596 = vmatpush1.bf16.msra.mxu0 %v4076
        %4597 = vmatprep.subr.bf16.mxu0 %v4081
        %4598 = vmatpush1.bf16.msra.mxu0 %v4080
        %4599 = vmatprep.subr.bf16.mxu0 %v4085
        %4600 = vmatpush1.bf16.msra.mxu0 %v4084
        %4601 = vmatprep.subr.bf16.mxu0 %v4089
        %4602 = vmatpush1.bf16.msra.mxu0 %v4088
        %4603 = vmatprep.subr.bf16.mxu0 %v4093
        %4604 = vmatpush1.bf16.msra.mxu0 %v4092
        %4605 = vmatprep.subr.bf16.mxu0 %v4097
        %4606 = vmatpush1.bf16.msra.mxu0 %v4096
        %4607 = vmatprep.subr.bf16.mxu0 %v4101
        %4608 = vmatpush1.bf16.msra.mxu0 %v4100
        %4609 = vmatprep.subr.bf16.mxu0 %v4105
        %4610 = vmatpush1.bf16.msra.mxu0 %v4104
        %4611 = vmatprep.subr.bf16.mxu0 %v4109
        %4612 = vmatpush1.bf16.msra.mxu0 %v4108
        %4613 = vmatprep.mubr.bf16.mxu0 %v3016
        %4614 = vmatmul.mubr.bf16.gmra.mrb[0].mxu0 %v3015
        %v4615 = vpop.f32.mrb[0].mxu0
        %v4616 = vadd.f32 %v4564, %v4615
        %v4617 = vpop.f32.mrb[0].mxu0
        %v4618 = vadd.f32 %v4568, %v4617
        %v4619 = vpop.f32.mrb[0].mxu0
        %v4620 = vpop.f32.mrb[0].mxu0
        %4621 = vdwg.mxu0
        %4622 = vmatprep.subr.bf16.mxu0 %v4113
        %4623 = vmatpush1.bf16.msra.mxu0 %v4112
        %4624 = vmatprep.subr.bf16.mxu0 %v4117
        %4625 = vmatpush1.bf16.msra.mxu0 %v4116
        %4626 = vmatprep.subr.bf16.mxu0 %v4121
        %4627 = vmatpush1.bf16.msra.mxu0 %v4120
        %4628 = vmatprep.subr.bf16.mxu0 %v4125
        %4629 = vmatpush1.bf16.msra.mxu0 %v4124
        %4630 = vmatprep.subr.bf16.mxu0 %v4129
        %4631 = vmatpush1.bf16.msra.mxu0 %v4128
        %4632 = vmatprep.subr.bf16.mxu0 %v4133
        %4633 = vmatpush1.bf16.msra.mxu0 %v4132
        %4634 = vmatprep.subr.bf16.mxu0 %v4137
        %4635 = vmatpush1.bf16.msra.mxu0 %v4136
        %4636 = vmatprep.subr.bf16.mxu0 %v4141
        %4637 = vmatpush1.bf16.msra.mxu0 %v4140
        %4638 = vmatprep.subr.bf16.mxu0 %v4145
        %4639 = vmatpush1.bf16.msra.mxu0 %v4144
        %4640 = vmatprep.subr.bf16.mxu0 %v4149
        %4641 = vmatpush1.bf16.msra.mxu0 %v4148
        %4642 = vmatprep.subr.bf16.mxu0 %v4153
        %4643 = vmatpush1.bf16.msra.mxu0 %v4152
        %4644 = vmatprep.subr.bf16.mxu0 %v4157
        %4645 = vmatpush1.bf16.msra.mxu0 %v4156
        %4646 = vmatprep.subr.bf16.mxu0 %v4161
        %4647 = vmatpush1.bf16.msra.mxu0 %v4160
        %4648 = vmatprep.subr.bf16.mxu0 %v4165
        %4649 = vmatpush1.bf16.msra.mxu0 %v4164
        %4650 = vmatprep.subr.bf16.mxu0 %v4169
        %4651 = vmatpush1.bf16.msra.mxu0 %v4168
        %4652 = vmatprep.subr.bf16.mxu0 %v4173
        %4653 = vmatpush1.bf16.msra.mxu0 %v4172
        %4654 = vmatprep.mubr.bf16.mxu0 %v3018
        %4655 = vmatmul.mubr.bf16.gmra.mrb[0].mxu0 %v3017
        %v4656 = vpop.f32.mrb[0].mxu0
        %v4657 = vadd.f32 %v4616, %v4656
        %v4658 = vpop.f32.mrb[0].mxu0
        %v4659 = vadd.f32 %v4618, %v4658
        %v4660 = vpop.f32.mrb[0].mxu0
        %v4661 = vpop.f32.mrb[0].mxu0
        %4662 = vdwg.mxu0
        %4663 = vmatprep.subr.bf16.mxu0 %v4177
        %4664 = vmatpush1.bf16.msra.mxu0 %v4176
        %4665 = vmatprep.subr.bf16.mxu0 %v4181
        %4666 = vmatpush1.bf16.msra.mxu0 %v4180
        %4667 = vmatprep.subr.bf16.mxu0 %v4185
        %4668 = vmatpush1.bf16.msra.mxu0 %v4184
        %4669 = vmatprep.subr.bf16.mxu0 %v4189
        %4670 = vmatpush1.bf16.msra.mxu0 %v4188
        %4671 = vmatprep.subr.bf16.mxu0 %v4193
        %4672 = vmatpush1.bf16.msra.mxu0 %v4192
        %4673 = vmatprep.subr.bf16.mxu0 %v4197
        %4674 = vmatpush1.bf16.msra.mxu0 %v4196
        %4675 = vmatprep.subr.bf16.mxu0 %v4201
        %4676 = vmatpush1.bf16.msra.mxu0 %v4200
        %4677 = vmatprep.subr.bf16.mxu0 %v4205
        %4678 = vmatpush1.bf16.msra.mxu0 %v4204
        %4679 = vmatprep.subr.bf16.mxu0 %v4209
        %4680 = vmatpush1.bf16.msra.mxu0 %v4208
        %4681 = vmatprep.subr.bf16.mxu0 %v4213
        %4682 = vmatpush1.bf16.msra.mxu0 %v4212
        %4683 = vmatprep.subr.bf16.mxu0 %v4217
        %4684 = vmatpush1.bf16.msra.mxu0 %v4216
        %4685 = vmatprep.subr.bf16.mxu0 %v4221
        %4686 = vmatpush1.bf16.msra.mxu0 %v4220
        %4687 = vmatprep.subr.bf16.mxu0 %v4225
        %4688 = vmatpush1.bf16.msra.mxu0 %v4224
        %4689 = vmatprep.subr.bf16.mxu0 %v4229
        %4690 = vmatpush1.bf16.msra.mxu0 %v4228
        %4691 = vmatprep.subr.bf16.mxu0 %v4233
        %4692 = vmatpush1.bf16.msra.mxu0 %v4232
        %4693 = vmatprep.subr.bf16.mxu0 %v4237
        %4694 = vmatpush1.bf16.msra.mxu0 %v4236
        %4695 = vmatprep.mubr.bf16.mxu0 %v3020
        %4696 = vmatmul.mubr.bf16.gmra.mrb[0].mxu0 %v3019
        %v4697 = vpop.f32.mrb[0].mxu0
        %v4698 = vadd.f32 %v4657, %v4697
        %v4699 = vpop.f32.mrb[0].mxu0
        %v4700 = vadd.f32 %v4659, %v4699
        %v4701 = vpop.f32.mrb[0].mxu0
        %v4702 = vpop.f32.mrb[0].mxu0
        %4703 = vdwg.mxu0
        %4704 = vmatprep.subr.bf16.mxu0 %v4241
        %4705 = vmatpush1.bf16.msra.mxu0 %v4240
        %4706 = vmatprep.subr.bf16.mxu0 %v4245
        %4707 = vmatpush1.bf16.msra.mxu0 %v4244
        %4708 = vmatprep.subr.bf16.mxu0 %v4249
        %4709 = vmatpush1.bf16.msra.mxu0 %v4248
        %4710 = vmatprep.subr.bf16.mxu0 %v4253
        %4711 = vmatpush1.bf16.msra.mxu0 %v4252
        %4712 = vmatprep.subr.bf16.mxu0 %v4257
        %4713 = vmatpush1.bf16.msra.mxu0 %v4256
        %4714 = vmatprep.subr.bf16.mxu0 %v4261
        %4715 = vmatpush1.bf16.msra.mxu0 %v4260
        %4716 = vmatprep.subr.bf16.mxu0 %v4265
        %4717 = vmatpush1.bf16.msra.mxu0 %v4264
        %4718 = vmatprep.subr.bf16.mxu0 %v4269
        %4719 = vmatpush1.bf16.msra.mxu0 %v4268
        %4720 = vmatprep.subr.bf16.mxu0 %v4273
        %4721 = vmatpush1.bf16.msra.mxu0 %v4272
        %4722 = vmatprep.subr.bf16.mxu0 %v4277
        %4723 = vmatpush1.bf16.msra.mxu0 %v4276
        %4724 = vmatprep.subr.bf16.mxu0 %v4281
        %4725 = vmatpush1.bf16.msra.mxu0 %v4280
        %4726 = vmatprep.subr.bf16.mxu0 %v4285
        %4727 = vmatpush1.bf16.msra.mxu0 %v4284
        %4728 = vmatprep.subr.bf16.mxu0 %v4289
        %4729 = vmatpush1.bf16.msra.mxu0 %v4288
        %4730 = vmatprep.subr.bf16.mxu0 %v4293
        %4731 = vmatpush1.bf16.msra.mxu0 %v4292
        %4732 = vmatprep.subr.bf16.mxu0 %v4297
        %4733 = vmatpush1.bf16.msra.mxu0 %v4296
        %4734 = vmatprep.subr.bf16.mxu0 %v4301
        %4735 = vmatpush1.bf16.msra.mxu0 %v4300
        %4736 = vmatprep.mubr.bf16.mxu0 %v3022
        %4737 = vmatmul.mubr.bf16.gmra.mrb[0].mxu0 %v3021
        %v4738 = vpop.f32.mrb[0].mxu0
        %v4739 = vadd.f32 %v4698, %v4738
        %v4740 = vpop.f32.mrb[0].mxu0
        %v4741 = vadd.f32 %v4700, %v4740
        %v4742 = vpop.f32.mrb[0].mxu0
        %v4743 = vpop.f32.mrb[0].mxu0
        %4744 = vdwg.mxu0
        %4745 = vmatprep.subr.bf16.mxu0 %v4051
        %4746 = vmatpush1.bf16.msra.mxu0 %v4050
        %4747 = vmatprep.subr.bf16.mxu0 %v4055
        %4748 = vmatpush1.bf16.msra.mxu0 %v4054
        %4749 = vmatprep.subr.bf16.mxu0 %v4059
        %4750 = vmatpush1.bf16.msra.mxu0 %v4058
        %4751 = vmatprep.subr.bf16.mxu0 %v4063
        %4752 = vmatpush1.bf16.msra.mxu0 %v4062
        %4753 = vmatprep.subr.bf16.mxu0 %v4067
        %4754 = vmatpush1.bf16.msra.mxu0 %v4066
        %4755 = vmatprep.subr.bf16.mxu0 %v4071
        %4756 = vmatpush1.bf16.msra.mxu0 %v4070
        %4757 = vmatprep.subr.bf16.mxu0 %v4075
        %4758 = vmatpush1.bf16.msra.mxu0 %v4074
        %4759 = vmatprep.subr.bf16.mxu0 %v4079
        %4760 = vmatpush1.bf16.msra.mxu0 %v4078
        %4761 = vmatprep.subr.bf16.mxu0 %v4083
        %4762 = vmatpush1.bf16.msra.mxu0 %v4082
        %4763 = vmatprep.subr.bf16.mxu0 %v4087
        %4764 = vmatpush1.bf16.msra.mxu0 %v4086
        %4765 = vmatprep.subr.bf16.mxu0 %v4091
        %4766 = vmatpush1.bf16.msra.mxu0 %v4090
        %4767 = vmatprep.subr.bf16.mxu0 %v4095
        %4768 = vmatpush1.bf16.msra.mxu0 %v4094
        %4769 = vmatprep.subr.bf16.mxu0 %v4099
        %4770 = vmatpush1.bf16.msra.mxu0 %v4098
        %4771 = vmatprep.subr.bf16.mxu0 %v4103
        %4772 = vmatpush1.bf16.msra.mxu0 %v4102
        %4773 = vmatprep.subr.bf16.mxu0 %v4107
        %4774 = vmatpush1.bf16.msra.mxu0 %v4106
        %4775 = vmatprep.subr.bf16.mxu0 %v4111
        %4776 = vmatpush1.bf16.msra.mxu0 %v4110
        %4777 = vmatprep.mubr.bf16.mxu0 %v3016
        %4778 = vmatmul.mubr.bf16.gmra.mrb[0].mxu0 %v3015
        %v4779 = vpop.f32.mrb[0].mxu0
        %v4780 = vadd.f32 %v4572, %v4779
        %v4781 = vpop.f32.mrb[0].mxu0
        %v4782 = vadd.f32 %v4576, %v4781
        %v4783 = vpop.f32.mrb[0].mxu0
        %v4784 = vpop.f32.mrb[0].mxu0
        %4785 = vdwg.mxu0
        %4786 = vmatprep.subr.bf16.mxu0 %v4115
        %4787 = vmatpush1.bf16.msra.mxu0 %v4114
        %4788 = vmatprep.subr.bf16.mxu0 %v4119
        %4789 = vmatpush1.bf16.msra.mxu0 %v4118
        %4790 = vmatprep.subr.bf16.mxu0 %v4123
        %4791 = vmatpush1.bf16.msra.mxu0 %v4122
        %4792 = vmatprep.subr.bf16.mxu0 %v4127
        %4793 = vmatpush1.bf16.msra.mxu0 %v4126
        %4794 = vmatprep.subr.bf16.mxu0 %v4131
        %4795 = vmatpush1.bf16.msra.mxu0 %v4130
        %4796 = vmatprep.subr.bf16.mxu0 %v4135
        %4797 = vmatpush1.bf16.msra.mxu0 %v4134
        %4798 = vmatprep.subr.bf16.mxu0 %v4139
        %4799 = vmatpush1.bf16.msra.mxu0 %v4138
        %4800 = vmatprep.subr.bf16.mxu0 %v4143
        %4801 = vmatpush1.bf16.msra.mxu0 %v4142
        %4802 = vmatprep.subr.bf16.mxu0 %v4147
        %4803 = vmatpush1.bf16.msra.mxu0 %v4146
        %4804 = vmatprep.subr.bf16.mxu0 %v4151
        %4805 = vmatpush1.bf16.msra.mxu0 %v4150
        %4806 = vmatprep.subr.bf16.mxu0 %v4155
        %4807 = vmatpush1.bf16.msra.mxu0 %v4154
        %4808 = vmatprep.subr.bf16.mxu0 %v4159
        %4809 = vmatpush1.bf16.msra.mxu0 %v4158
        %4810 = vmatprep.subr.bf16.mxu0 %v4163
        %4811 = vmatpush1.bf16.msra.mxu0 %v4162
        %4812 = vmatprep.subr.bf16.mxu0 %v4167
        %4813 = vmatpush1.bf16.msra.mxu0 %v4166
        %4814 = vmatprep.subr.bf16.mxu0 %v4171
        %4815 = vmatpush1.bf16.msra.mxu0 %v4170
        %4816 = vmatprep.subr.bf16.mxu0 %v4175
        %4817 = vmatpush1.bf16.msra.mxu0 %v4174
        %4818 = vmatprep.mubr.bf16.mxu0 %v3018
        %4819 = vmatmul.mubr.bf16.gmra.mrb[0].mxu0 %v3017
        %v4820 = vpop.f32.mrb[0].mxu0
        %v4821 = vadd.f32 %v4780, %v4820
        %v4822 = vpop.f32.mrb[0].mxu0
        %v4823 = vadd.f32 %v4782, %v4822
        %v4824 = vpop.f32.mrb[0].mxu0
        %v4825 = vpop.f32.mrb[0].mxu0
        %4826 = vdwg.mxu0
        %4827 = vmatprep.subr.bf16.mxu0 %v4179
        %4828 = vmatpush1.bf16.msra.mxu0 %v4178
        %4829 = vmatprep.subr.bf16.mxu0 %v4183
        %4830 = vmatpush1.bf16.msra.mxu0 %v4182
        %4831 = vmatprep.subr.bf16.mxu0 %v4187
        %4832 = vmatpush1.bf16.msra.mxu0 %v4186
        %4833 = vmatprep.subr.bf16.mxu0 %v4191
        %4834 = vmatpush1.bf16.msra.mxu0 %v4190
        %4835 = vmatprep.subr.bf16.mxu0 %v4195
        %4836 = vmatpush1.bf16.msra.mxu0 %v4194
        %4837 = vmatprep.subr.bf16.mxu0 %v4199
        %4838 = vmatpush1.bf16.msra.mxu0 %v4198
        %4839 = vmatprep.subr.bf16.mxu0 %v4203
        %4840 = vmatpush1.bf16.msra.mxu0 %v4202
        %4841 = vmatprep.subr.bf16.mxu0 %v4207
        %4842 = vmatpush1.bf16.msra.mxu0 %v4206
        %4843 = vmatprep.subr.bf16.mxu0 %v4211
        %4844 = vmatpush1.bf16.msra.mxu0 %v4210
        %4845 = vmatprep.subr.bf16.mxu0 %v4215
        %4846 = vmatpush1.bf16.msra.mxu0 %v4214
        %4847 = vmatprep.subr.bf16.mxu0 %v4219
        %4848 = vmatpush1.bf16.msra.mxu0 %v4218
        %4849 = vmatprep.subr.bf16.mxu0 %v4223
        %4850 = vmatpush1.bf16.msra.mxu0 %v4222
        %4851 = vmatprep.subr.bf16.mxu0 %v4227
        %4852 = vmatpush1.bf16.msra.mxu0 %v4226
        %4853 = vmatprep.subr.bf16.mxu0 %v4231
        %4854 = vmatpush1.bf16.msra.mxu0 %v4230
        %4855 = vmatprep.subr.bf16.mxu0 %v4235
        %4856 = vmatpush1.bf16.msra.mxu0 %v4234
        %4857 = vmatprep.subr.bf16.mxu0 %v4239
        %4858 = vmatpush1.bf16.msra.mxu0 %v4238
        %4859 = vmatprep.mubr.bf16.mxu0 %v3020
        %4860 = vmatmul.mubr.bf16.gmra.mrb[0].mxu0 %v3019
        %v4861 = vpop.f32.mrb[0].mxu0
        %v4862 = vadd.f32 %v4821, %v4861
        %v4863 = vpop.f32.mrb[0].mxu0
        %v4864 = vadd.f32 %v4823, %v4863
        %v4865 = vpop.f32.mrb[0].mxu0
        %v4866 = vpop.f32.mrb[0].mxu0
        %4867 = vdwg.mxu0
        %4868 = vmatprep.subr.bf16.mxu0 %v4243
        %4869 = vmatpush1.bf16.msra.mxu0 %v4242
        %4870 = vmatprep.subr.bf16.mxu0 %v4247
        %4871 = vmatpush1.bf16.msra.mxu0 %v4246
        %4872 = vmatprep.subr.bf16.mxu0 %v4251
        %4873 = vmatpush1.bf16.msra.mxu0 %v4250
        %4874 = vmatprep.subr.bf16.mxu0 %v4255
        %4875 = vmatpush1.bf16.msra.mxu0 %v4254
        %4876 = vmatprep.subr.bf16.mxu0 %v4259
        %4877 = vmatpush1.bf16.msra.mxu0 %v4258
        %4878 = vmatprep.subr.bf16.mxu0 %v4263
        %4879 = vmatpush1.bf16.msra.mxu0 %v4262
        %4880 = vmatprep.subr.bf16.mxu0 %v4267
        %4881 = vmatpush1.bf16.msra.mxu0 %v4266
        %4882 = vmatprep.subr.bf16.mxu0 %v4271
        %4883 = vmatpush1.bf16.msra.mxu0 %v4270
        %4884 = vmatprep.subr.bf16.mxu0 %v4275
        %4885 = vmatpush1.bf16.msra.mxu0 %v4274
        %4886 = vmatprep.subr.bf16.mxu0 %v4279
        %4887 = vmatpush1.bf16.msra.mxu0 %v4278
        %4888 = vmatprep.subr.bf16.mxu0 %v4283
        %4889 = vmatpush1.bf16.msra.mxu0 %v4282
        %4890 = vmatprep.subr.bf16.mxu0 %v4287
        %4891 = vmatpush1.bf16.msra.mxu0 %v4286
        %4892 = vmatprep.subr.bf16.mxu0 %v4291
        %4893 = vmatpush1.bf16.msra.mxu0 %v4290
        %4894 = vmatprep.subr.bf16.mxu0 %v4295
        %4895 = vmatpush1.bf16.msra.mxu0 %v4294
        %4896 = vmatprep.subr.bf16.mxu0 %v4299
        %4897 = vmatpush1.bf16.msra.mxu0 %v4298
        %4898 = vmatprep.subr.bf16.mxu0 %v4303
        %4899 = vmatpush1.bf16.msra.mxu0 %v4302
        %4900 = vmatprep.mubr.bf16.mxu0 %v3022
        %4901 = vmatmul.mubr.bf16.gmra.mrb[0].mxu0 %v3021
        %v4902 = vpop.f32.mrb[0].mxu0
        %v4903 = vadd.f32 %v4862, %v4902
        %v4904 = vpop.f32.mrb[0].mxu0
        %v4905 = vadd.f32 %v4864, %v4904
        %v4906 = vpop.f32.mrb[0].mxu0
        %v4907 = vpop.f32.mrb[0].mxu0
        %4908 = vdwg.mxu0
        %v4909 = vmax.f32 %v4739, 0.0
        %v4910 = vmax.f32 %v4741, 0.0
        %v4911 = vmax.f32 %v4903, 0.0
        %v4912 = vmax.f32 %v4905, 0.0
        %v4913 = vpack.c.bf16 %v4909, %v4909
        %v4914 = vpack.c.bf16 %v4910, %v4910
        %v4915 = vpack.c.bf16 %v4911, %v4911
        %v4916 = vpack.c.bf16 %v4912, %v4912
        %v4917 = vld [vmem:[%s9] sm:$0xff]
        %v4918 = vld [vmem:[%s9 + $0x8] sm:$0xff]
        %v4919 = vld [vmem:[%s9 + $0x10] sm:$0xff]
        %v4920 = vld [vmem:[%s9 + $0x18] sm:$0xff]
        %v4921 = vld [vmem:[%s9 + $0x20] sm:$0xff]
        %v4922 = vld [vmem:[%s9 + $0x28] sm:$0xff]
        %v4923 = vld [vmem:[%s9 + $0x30] sm:$0xff]
        %v4924 = vld [vmem:[%s9 + $0x38] sm:$0xff]
        %v4925 = vld [vmem:[%s9 + $0x40] sm:$0xff]
        %v4926 = vld [vmem:[%s9 + $0x48] sm:$0xff]
        %v4927 = vld [vmem:[%s9 + $0x50] sm:$0xff]
        %v4928 = vld [vmem:[%s9 + $0x58] sm:$0xff]
        %v4929 = vld [vmem:[%s9 + $0x60] sm:$0xff]
        %v4930 = vld [vmem:[%s9 + $0x68] sm:$0xff]
        %v4931 = vld [vmem:[%s9 + $0x70] sm:$0xff]
        %v4932 = vld [vmem:[%s9 + $0x78] sm:$0xff]
        %v4933 = vld [vmem:[%s9 + $0x80] sm:$0xff]
        %v4934 = vld [vmem:[%s9 + $0x88] sm:$0xff]
        %v4935 = vld [vmem:[%s9 + $0x90] sm:$0xff]
        %v4936 = vld [vmem:[%s9 + $0x98] sm:$0xff]
        %v4937 = vld [vmem:[%s9 + $0xa0] sm:$0xff]
        %v4938 = vld [vmem:[%s9 + $0xa8] sm:$0xff]
        %v4939 = vld [vmem:[%s9 + $0xb0] sm:$0xff]
        %v4940 = vld [vmem:[%s9 + $0xb8] sm:$0xff]
        %v4941 = vld [vmem:[%s9 + $0xc0] sm:$0xff]
        %v4942 = vld [vmem:[%s9 + $0xc8] sm:$0xff]
        %v4943 = vld [vmem:[%s9 + $0xd0] sm:$0xff]
        %v4944 = vld [vmem:[%s9 + $0xd8] sm:$0xff]
        %v4945 = vld [vmem:[%s9 + $0xe0] sm:$0xff]
        %v4946 = vld [vmem:[%s9 + $0xe8] sm:$0xff]
        %v4947 = vld [vmem:[%s9 + $0xf0] sm:$0xff]
        %v4948 = vld [vmem:[%s9 + $0xf8] sm:$0xff]
        %v4949 = vld [vmem:[%s9 + $0x100] sm:$0xff]
        %v4950 = vld [vmem:[%s9 + $0x108] sm:$0xff]
        %v4951 = vld [vmem:[%s9 + $0x110] sm:$0xff]
        %v4952 = vld [vmem:[%s9 + $0x118] sm:$0xff]
        %v4953 = vld [vmem:[%s9 + $0x120] sm:$0xff]
        %v4954 = vld [vmem:[%s9 + $0x128] sm:$0xff]
        %v4955 = vld [vmem:[%s9 + $0x130] sm:$0xff]
        %v4956 = vld [vmem:[%s9 + $0x138] sm:$0xff]
        %v4957 = vld [vmem:[%s9 + $0x140] sm:$0xff]
        %v4958 = vld [vmem:[%s9 + $0x148] sm:$0xff]
        %v4959 = vld [vmem:[%s9 + $0x150] sm:$0xff]
        %v4960 = vld [vmem:[%s9 + $0x158] sm:$0xff]
        %v4961 = vld [vmem:[%s9 + $0x160] sm:$0xff]
        %v4962 = vld [vmem:[%s9 + $0x168] sm:$0xff]
        %v4963 = vld [vmem:[%s9 + $0x170] sm:$0xff]
        %v4964 = vld [vmem:[%s9 + $0x178] sm:$0xff]
        %v4965 = vld [vmem:[%s9 + $0x180] sm:$0xff]
        %v4966 = vld [vmem:[%s9 + $0x188] sm:$0xff]
        %v4967 = vld [vmem:[%s9 + $0x190] sm:$0xff]
        %v4968 = vld [vmem:[%s9 + $0x198] sm:$0xff]
        %v4969 = vld [vmem:[%s9 + $0x1a0] sm:$0xff]
        %v4970 = vld [vmem:[%s9 + $0x1a8] sm:$0xff]
        %v4971 = vld [vmem:[%s9 + $0x1b0] sm:$0xff]
        %v4972 = vld [vmem:[%s9 + $0x1b8] sm:$0xff]
        %v4973 = vld [vmem:[%s9 + $0x1c0] sm:$0xff]
        %v4974 = vld [vmem:[%s9 + $0x1c8] sm:$0xff]
        %v4975 = vld [vmem:[%s9 + $0x1d0] sm:$0xff]
        %v4976 = vld [vmem:[%s9 + $0x1d8] sm:$0xff]
        %v4977 = vld [vmem:[%s9 + $0x1e0] sm:$0xff]
        %v4978 = vld [vmem:[%s9 + $0x1e8] sm:$0xff]
        %v4979 = vld [vmem:[%s9 + $0x1f0] sm:$0xff]
        %v4980 = vld [vmem:[%s9 + $0x1f8] sm:$0xff]
        %v4981 = vld [vmem:[%s10] sm:$0x3]
        %v5046 = vunpack.c.l.b16 %v4917
        %v5047 = vunpack.c.h.b16 %v4917
        %v5048 = vunpack.c.l.b16 %v4918
        %v5049 = vunpack.c.h.b16 %v4918
        %v5050 = vunpack.c.l.b16 %v4919
        %v5051 = vunpack.c.h.b16 %v4919
        %v5052 = vunpack.c.l.b16 %v4920
        %v5053 = vunpack.c.h.b16 %v4920
        %v5054 = vunpack.c.l.b16 %v4921
        %v5055 = vunpack.c.h.b16 %v4921
        %v5056 = vunpack.c.l.b16 %v4922
        %v5057 = vunpack.c.h.b16 %v4922
        %v5058 = vunpack.c.l.b16 %v4923
        %v5059 = vunpack.c.h.b16 %v4923
        %v5060 = vunpack.c.l.b16 %v4924
        %v5061 = vunpack.c.h.b16 %v4924
        %v5062 = vunpack.c.l.b16 %v4925
        %v5063 = vunpack.c.h.b16 %v4925
        %v5064 = vunpack.c.l.b16 %v4926
        %v5065 = vunpack.c.h.b16 %v4926
        %v5066 = vunpack.c.l.b16 %v4927
        %v5067 = vunpack.c.h.b16 %v4927
        %v5068 = vunpack.c.l.b16 %v4928
        %v5069 = vunpack.c.h.b16 %v4928
        %v5070 = vunpack.c.l.b16 %v4929
        %v5071 = vunpack.c.h.b16 %v4929
        %v5072 = vunpack.c.l.b16 %v4930
        %v5073 = vunpack.c.h.b16 %v4930
        %v5074 = vunpack.c.l.b16 %v4931
        %v5075 = vunpack.c.h.b16 %v4931
        %v5076 = vunpack.c.l.b16 %v4932
        %v5077 = vunpack.c.h.b16 %v4932
        %v5078 = vunpack.c.l.b16 %v4933
        %v5079 = vunpack.c.h.b16 %v4933
        %v5080 = vunpack.c.l.b16 %v4934
        %v5081 = vunpack.c.h.b16 %v4934
        %v5082 = vunpack.c.l.b16 %v4935
        %v5083 = vunpack.c.h.b16 %v4935
        %v5084 = vunpack.c.l.b16 %v4936
        %v5085 = vunpack.c.h.b16 %v4936
        %v5086 = vunpack.c.l.b16 %v4937
        %v5087 = vunpack.c.h.b16 %v4937
        %v5088 = vunpack.c.l.b16 %v4938
        %v5089 = vunpack.c.h.b16 %v4938
        %v5090 = vunpack.c.l.b16 %v4939
        %v5091 = vunpack.c.h.b16 %v4939
        %v5092 = vunpack.c.l.b16 %v4940
        %v5093 = vunpack.c.h.b16 %v4940
        %v5094 = vunpack.c.l.b16 %v4941
        %v5095 = vunpack.c.h.b16 %v4941
        %v5096 = vunpack.c.l.b16 %v4942
        %v5097 = vunpack.c.h.b16 %v4942
        %v5098 = vunpack.c.l.b16 %v4943
        %v5099 = vunpack.c.h.b16 %v4943
        %v5100 = vunpack.c.l.b16 %v4944
        %v5101 = vunpack.c.h.b16 %v4944
        %v5102 = vunpack.c.l.b16 %v4945
        %v5103 = vunpack.c.h.b16 %v4945
        %v5104 = vunpack.c.l.b16 %v4946
        %v5105 = vunpack.c.h.b16 %v4946
        %v5106 = vunpack.c.l.b16 %v4947
        %v5107 = vunpack.c.h.b16 %v4947
        %v5108 = vunpack.c.l.b16 %v4948
        %v5109 = vunpack.c.h.b16 %v4948
        %v5110 = vunpack.c.l.b16 %v4949
        %v5111 = vunpack.c.h.b16 %v4949
        %v5112 = vunpack.c.l.b16 %v4950
        %v5113 = vunpack.c.h.b16 %v4950
        %v5114 = vunpack.c.l.b16 %v4951
        %v5115 = vunpack.c.h.b16 %v4951
        %v5116 = vunpack.c.l.b16 %v4952
        %v5117 = vunpack.c.h.b16 %v4952
        %v5118 = vunpack.c.l.b16 %v4953
        %v5119 = vunpack.c.h.b16 %v4953
        %v5120 = vunpack.c.l.b16 %v4954
        %v5121 = vunpack.c.h.b16 %v4954
        %v5122 = vunpack.c.l.b16 %v4955
        %v5123 = vunpack.c.h.b16 %v4955
        %v5124 = vunpack.c.l.b16 %v4956
        %v5125 = vunpack.c.h.b16 %v4956
        %v5126 = vunpack.c.l.b16 %v4957
        %v5127 = vunpack.c.h.b16 %v4957
        %v5128 = vunpack.c.l.b16 %v4958
        %v5129 = vunpack.c.h.b16 %v4958
        %v5130 = vunpack.c.l.b16 %v4959
        %v5131 = vunpack.c.h.b16 %v4959
        %v5132 = vunpack.c.l.b16 %v4960
        %v5133 = vunpack.c.h.b16 %v4960
        %v5134 = vunpack.c.l.b16 %v4961
        %v5135 = vunpack.c.h.b16 %v4961
        %v5136 = vunpack.c.l.b16 %v4962
        %v5137 = vunpack.c.h.b16 %v4962
        %v5138 = vunpack.c.l.b16 %v4963
        %v5139 = vunpack.c.h.b16 %v4963
        %v5140 = vunpack.c.l.b16 %v4964
        %v5141 = vunpack.c.h.b16 %v4964
        %v5142 = vunpack.c.l.b16 %v4965
        %v5143 = vunpack.c.h.b16 %v4965
        %v5144 = vunpack.c.l.b16 %v4966
        %v5145 = vunpack.c.h.b16 %v4966
        %v5146 = vunpack.c.l.b16 %v4967
        %v5147 = vunpack.c.h.b16 %v4967
        %v5148 = vunpack.c.l.b16 %v4968
        %v5149 = vunpack.c.h.b16 %v4968
        %v5150 = vunpack.c.l.b16 %v4969
        %v5151 = vunpack.c.h.b16 %v4969
        %v5152 = vunpack.c.l.b16 %v4970
        %v5153 = vunpack.c.h.b16 %v4970
        %v5154 = vunpack.c.l.b16 %v4971
        %v5155 = vunpack.c.h.b16 %v4971
        %v5156 = vunpack.c.l.b16 %v4972
        %v5157 = vunpack.c.h.b16 %v4972
        %v5158 = vunpack.c.l.b16 %v4973
        %v5159 = vunpack.c.h.b16 %v4973
        %v5160 = vunpack.c.l.b16 %v4974
        %v5161 = vunpack.c.h.b16 %v4974
        %v5162 = vunpack.c.l.b16 %v4975
        %v5163 = vunpack.c.h.b16 %v4975
        %v5164 = vunpack.c.l.b16 %v4976
        %v5165 = vunpack.c.h.b16 %v4976
        %v5166 = vunpack.c.l.b16 %v4977
        %v5167 = vunpack.c.h.b16 %v4977
        %v5168 = vunpack.c.l.b16 %v4978
        %v5169 = vunpack.c.h.b16 %v4978
        %v5170 = vunpack.c.l.b16 %v4979
        %v5171 = vunpack.c.h.b16 %v4979
        %v5172 = vunpack.c.l.b16 %v4980
        %v5173 = vunpack.c.h.b16 %v4980
        %v5174 = vpack.c.b16 %v5048, %v5046
        %v5175 = vpack.c.b16 %v5049, %v5047
        %v5176 = vpack.c.b16 %v5052, %v5050
        %v5177 = vpack.c.b16 %v5053, %v5051
        %v5178 = vpack.c.b16 %v5056, %v5054
        %v5179 = vpack.c.b16 %v5057, %v5055
        %v5180 = vpack.c.b16 %v5060, %v5058
        %v5181 = vpack.c.b16 %v5061, %v5059
        %v5182 = vpack.c.b16 %v5064, %v5062
        %v5183 = vpack.c.b16 %v5065, %v5063
        %v5184 = vpack.c.b16 %v5068, %v5066
        %v5185 = vpack.c.b16 %v5069, %v5067
        %v5186 = vpack.c.b16 %v5072, %v5070
        %v5187 = vpack.c.b16 %v5073, %v5071
        %v5188 = vpack.c.b16 %v5076, %v5074
        %v5189 = vpack.c.b16 %v5077, %v5075
        %v5190 = vpack.c.b16 %v5080, %v5078
        %v5191 = vpack.c.b16 %v5081, %v5079
        %v5192 = vpack.c.b16 %v5084, %v5082
        %v5193 = vpack.c.b16 %v5085, %v5083
        %v5194 = vpack.c.b16 %v5088, %v5086
        %v5195 = vpack.c.b16 %v5089, %v5087
        %v5196 = vpack.c.b16 %v5092, %v5090
        %v5197 = vpack.c.b16 %v5093, %v5091
        %v5198 = vpack.c.b16 %v5096, %v5094
        %v5199 = vpack.c.b16 %v5097, %v5095
        %v5200 = vpack.c.b16 %v5100, %v5098
        %v5201 = vpack.c.b16 %v5101, %v5099
        %v5202 = vpack.c.b16 %v5104, %v5102
        %v5203 = vpack.c.b16 %v5105, %v5103
        %v5204 = vpack.c.b16 %v5108, %v5106
        %v5205 = vpack.c.b16 %v5109, %v5107
        %v5206 = vpack.c.b16 %v5112, %v5110
        %v5207 = vpack.c.b16 %v5113, %v5111
        %v5208 = vpack.c.b16 %v5116, %v5114
        %v5209 = vpack.c.b16 %v5117, %v5115
        %v5210 = vpack.c.b16 %v5120, %v5118
        %v5211 = vpack.c.b16 %v5121, %v5119
        %v5212 = vpack.c.b16 %v5124, %v5122
        %v5213 = vpack.c.b16 %v5125, %v5123
        %v5214 = vpack.c.b16 %v5128, %v5126
        %v5215 = vpack.c.b16 %v5129, %v5127
        %v5216 = vpack.c.b16 %v5132, %v5130
        %v5217 = vpack.c.b16 %v5133, %v5131
        %v5218 = vpack.c.b16 %v5136, %v5134
        %v5219 = vpack.c.b16 %v5137, %v5135
        %v5220 = vpack.c.b16 %v5140, %v5138
        %v5221 = vpack.c.b16 %v5141, %v5139
        %v5222 = vpack.c.b16 %v5144, %v5142
        %v5223 = vpack.c.b16 %v5145, %v5143
        %v5224 = vpack.c.b16 %v5148, %v5146
        %v5225 = vpack.c.b16 %v5149, %v5147
        %v5226 = vpack.c.b16 %v5152, %v5150
        %v5227 = vpack.c.b16 %v5153, %v5151
        %v5228 = vpack.c.b16 %v5156, %v5154
        %v5229 = vpack.c.b16 %v5157, %v5155
        %v5230 = vpack.c.b16 %v5160, %v5158
        %v5231 = vpack.c.b16 %v5161, %v5159
        %v5232 = vpack.c.b16 %v5164, %v5162
        %v5233 = vpack.c.b16 %v5165, %v5163
        %v5234 = vpack.c.b16 %v5168, %v5166
        %v5235 = vpack.c.b16 %v5169, %v5167
        %v5236 = vpack.c.b16 %v5172, %v5170
        %v5237 = vpack.c.b16 %v5173, %v5171
        %v5303 = vlaneseq
        %v5304 = vshrl.u32 %v5303, 7
        %v5305 = vsub.s32 0, %v5304
        %v5306 = vrot.slane %v4981, %v5305
        %v5307 = vlaneseq
        %v5308 = vshrl.u32 %v5307, 7
        %v5309 = vsub.s32 1, %v5308
        %v5310 = vrot.slane %v4981, %v5309
        %5313 = vmatprep.subr.bf16.mxu0 %v5175
        %5314 = vmatpush1.bf16.msra.mxu0 %v5174
        %5315 = vmatprep.subr.bf16.mxu0 %v5177
        %5316 = vmatpush1.bf16.msra.mxu0 %v5176
        %5317 = vmatprep.subr.bf16.mxu0 %v5179
        %5318 = vmatpush1.bf16.msra.mxu0 %v5178
        %5319 = vmatprep.subr.bf16.mxu0 %v5181
        %5320 = vmatpush1.bf16.msra.mxu0 %v5180
        %5321 = vmatprep.subr.bf16.mxu0 %v5183
        %5322 = vmatpush1.bf16.msra.mxu0 %v5182
        %5323 = vmatprep.subr.bf16.mxu0 %v5185
        %5324 = vmatpush1.bf16.msra.mxu0 %v5184
        %5325 = vmatprep.subr.bf16.mxu0 %v5187
        %5326 = vmatpush1.bf16.msra.mxu0 %v5186
        %5327 = vmatprep.subr.bf16.mxu0 %v5189
        %5328 = vmatpush1.bf16.msra.mxu0 %v5188
        %5329 = vmatprep.subr.bf16.mxu0 %v5191
        %5330 = vmatpush1.bf16.msra.mxu0 %v5190
        %5331 = vmatprep.subr.bf16.mxu0 %v5193
        %5332 = vmatpush1.bf16.msra.mxu0 %v5192
        %5333 = vmatprep.subr.bf16.mxu0 %v5195
        %5334 = vmatpush1.bf16.msra.mxu0 %v5194
        %5335 = vmatprep.subr.bf16.mxu0 %v5197
        %5336 = vmatpush1.bf16.msra.mxu0 %v5196
        %5337 = vmatprep.subr.bf16.mxu0 %v5199
        %5338 = vmatpush1.bf16.msra.mxu0 %v5198
        %5339 = vmatprep.subr.bf16.mxu0 %v5201
        %5340 = vmatpush1.bf16.msra.mxu0 %v5200
        %5341 = vmatprep.subr.bf16.mxu0 %v5203
        %5342 = vmatpush1.bf16.msra.mxu0 %v5202
        %5343 = vmatprep.subr.bf16.mxu0 %v5205
        %5344 = vmatpush1.bf16.msra.mxu0 %v5204
        %5345 = vmatprep.mubr.bf16.mxu0 %v4914
        %5346 = vmatmul.mubr.bf16.gmra.mrb[0].mxu0 %v4913
        %v5347 = vpop.f32.mrb[0].mxu0
        %v5348 = vadd.f32 %v5306, %v5347
        %v5349 = vpop.f32.mrb[0].mxu0
        %v5350 = vadd.f32 %v5310, %v5349
        %v5351 = vpop.f32.mrb[0].mxu0
        %v5352 = vpop.f32.mrb[0].mxu0
        %5353 = vdwg.mxu0
        %5354 = vmatprep.subr.bf16.mxu0 %v5207
        %5355 = vmatpush1.bf16.msra.mxu0 %v5206
        %5356 = vmatprep.subr.bf16.mxu0 %v5209
        %5357 = vmatpush1.bf16.msra.mxu0 %v5208
        %5358 = vmatprep.subr.bf16.mxu0 %v5211
        %5359 = vmatpush1.bf16.msra.mxu0 %v5210
        %5360 = vmatprep.subr.bf16.mxu0 %v5213
        %5361 = vmatpush1.bf16.msra.mxu0 %v5212
        %5362 = vmatprep.subr.bf16.mxu0 %v5215
        %5363 = vmatpush1.bf16.msra.mxu0 %v5214
        %5364 = vmatprep.subr.bf16.mxu0 %v5217
        %5365 = vmatpush1.bf16.msra.mxu0 %v5216
        %5366 = vmatprep.subr.bf16.mxu0 %v5219
        %5367 = vmatpush1.bf16.msra.mxu0 %v5218
        %5368 = vmatprep.subr.bf16.mxu0 %v5221
        %5369 = vmatpush1.bf16.msra.mxu0 %v5220
        %5370 = vmatprep.subr.bf16.mxu0 %v5223
        %5371 = vmatpush1.bf16.msra.mxu0 %v5222
        %5372 = vmatprep.subr.bf16.mxu0 %v5225
        %5373 = vmatpush1.bf16.msra.mxu0 %v5224
        %5374 = vmatprep.subr.bf16.mxu0 %v5227
        %5375 = vmatpush1.bf16.msra.mxu0 %v5226
        %5376 = vmatprep.subr.bf16.mxu0 %v5229
        %5377 = vmatpush1.bf16.msra.mxu0 %v5228
        %5378 = vmatprep.subr.bf16.mxu0 %v5231
        %5379 = vmatpush1.bf16.msra.mxu0 %v5230
        %5380 = vmatprep.subr.bf16.mxu0 %v5233
        %5381 = vmatpush1.bf16.msra.mxu0 %v5232
        %5382 = vmatprep.subr.bf16.mxu0 %v5235
        %5383 = vmatpush1.bf16.msra.mxu0 %v5234
        %5384 = vmatprep.subr.bf16.mxu0 %v5237
        %5385 = vmatpush1.bf16.msra.mxu0 %v5236
        %5386 = vmatprep.mubr.bf16.mxu0 %v4916
        %5387 = vmatmul.mubr.bf16.gmra.mrb[0].mxu0 %v4915
        %v5388 = vpop.f32.mrb[0].mxu0
        %v5389 = vadd.f32 %v5348, %v5388
        %v5390 = vpop.f32.mrb[0].mxu0
        %v5391 = vadd.f32 %v5350, %v5390
        %v5392 = vpop.f32.mrb[0].mxu0
        %v5393 = vpop.f32.mrb[0].mxu0
        %5394 = vdwg.mxu0
        %v5395 = vmax.f32 %v5389, 0.0
        %v5396 = vmax.f32 %v5391, 0.0
        %v5397 = vpack.c.bf16 %v5395, %v5395
        %v5398 = vpack.c.bf16 %v5396, %v5396
        %v5399 = vld [vmem:[%s11] sm:$0xf]
        %v5400 = vld [vmem:[%s11 + $0x4] sm:$0xf]
        %v5401 = vld [vmem:[%s11 + $0x8] sm:$0xf]
        %v5402 = vld [vmem:[%s11 + $0xc] sm:$0xf]
        %v5403 = vld [vmem:[%s11 + $0x10] sm:$0xf]
        %v5404 = vld [vmem:[%s11 + $0x14] sm:$0xf]
        %v5405 = vld [vmem:[%s11 + $0x18] sm:$0xf]
        %v5406 = vld [vmem:[%s11 + $0x1c] sm:$0xf]
        %v5407 = vld [vmem:[%s11 + $0x20] sm:$0xf]
        %v5408 = vld [vmem:[%s11 + $0x24] sm:$0xf]
        %v5409 = vld [vmem:[%s11 + $0x28] sm:$0xf]
        %v5410 = vld [vmem:[%s11 + $0x2c] sm:$0xf]
        %v5411 = vld [vmem:[%s11 + $0x30] sm:$0xf]
        %v5412 = vld [vmem:[%s11 + $0x34] sm:$0xf]
        %v5413 = vld [vmem:[%s11 + $0x38] sm:$0xf]
        %v5414 = vld [vmem:[%s11 + $0x3c] sm:$0xf]
        %v5415 = vld [vmem:[%s11 + $0x40] sm:$0xf]
        %v5416 = vld [vmem:[%s11 + $0x44] sm:$0xf]
        %v5417 = vld [vmem:[%s11 + $0x48] sm:$0xf]
        %v5418 = vld [vmem:[%s11 + $0x4c] sm:$0xf]
        %v5419 = vld [vmem:[%s11 + $0x50] sm:$0xf]
        %v5420 = vld [vmem:[%s11 + $0x54] sm:$0xf]
        %v5421 = vld [vmem:[%s11 + $0x58] sm:$0xf]
        %v5422 = vld [vmem:[%s11 + $0x5c] sm:$0xf]
        %v5423 = vld [vmem:[%s11 + $0x60] sm:$0xf]
        %v5424 = vld [vmem:[%s11 + $0x64] sm:$0xf]
        %v5425 = vld [vmem:[%s11 + $0x68] sm:$0xf]
        %v5426 = vld [vmem:[%s11 + $0x6c] sm:$0xf]
        %v5427 = vld [vmem:[%s11 + $0x70] sm:$0xf]
        %v5428 = vld [vmem:[%s11 + $0x74] sm:$0xf]
        %v5429 = vld [vmem:[%s11 + $0x78] sm:$0xf]
        %v5430 = vld [vmem:[%s11 + $0x7c] sm:$0xf]
        %v5431 = vld [vmem:[%s12] sm:$0x1]
        %v5464 = vunpack.c.l.b16 %v5399
        %v5465 = vunpack.c.l.b16 %v5400
        %v5466 = vunpack.c.l.b16 %v5401
        %v5467 = vunpack.c.l.b16 %v5402
        %v5468 = vunpack.c.l.b16 %v5403
        %v5469 = vunpack.c.l.b16 %v5404
        %v5470 = vunpack.c.l.b16 %v5405
        %v5471 = vunpack.c.l.b16 %v5406
        %v5472 = vunpack.c.l.b16 %v5407
        %v5473 = vunpack.c.l.b16 %v5408
        %v5474 = vunpack.c.l.b16 %v5409
        %v5475 = vunpack.c.l.b16 %v5410
        %v5476 = vunpack.c.l.b16 %v5411
        %v5477 = vunpack.c.l.b16 %v5412
        %v5478 = vunpack.c.l.b16 %v5413
        %v5479 = vunpack.c.l.b16 %v5414
        %v5480 = vunpack.c.l.b16 %v5415
        %v5481 = vunpack.c.l.b16 %v5416
        %v5482 = vunpack.c.l.b16 %v5417
        %v5483 = vunpack.c.l.b16 %v5418
        %v5484 = vunpack.c.l.b16 %v5419
        %v5485 = vunpack.c.l.b16 %v5420
        %v5486 = vunpack.c.l.b16 %v5421
        %v5487 = vunpack.c.l.b16 %v5422
        %v5488 = vunpack.c.l.b16 %v5423
        %v5489 = vunpack.c.l.b16 %v5424
        %v5490 = vunpack.c.l.b16 %v5425
        %v5491 = vunpack.c.l.b16 %v5426
        %v5492 = vunpack.c.l.b16 %v5427
        %v5493 = vunpack.c.l.b16 %v5428
        %v5494 = vunpack.c.l.b16 %v5429
        %v5495 = vunpack.c.l.b16 %v5430
        %v5496 = vpack.c.b16 %v5465, %v5464
        %v5497 = vpack.c.b16 %v5467, %v5466
        %v5498 = vpack.c.b16 %v5469, %v5468
        %v5499 = vpack.c.b16 %v5471, %v5470
        %v5500 = vpack.c.b16 %v5473, %v5472
        %v5501 = vpack.c.b16 %v5475, %v5474
        %v5502 = vpack.c.b16 %v5477, %v5476
        %v5503 = vpack.c.b16 %v5479, %v5478
        %v5504 = vpack.c.b16 %v5481, %v5480
        %v5505 = vpack.c.b16 %v5483, %v5482
        %v5506 = vpack.c.b16 %v5485, %v5484
        %v5507 = vpack.c.b16 %v5487, %v5486
        %v5508 = vpack.c.b16 %v5489, %v5488
        %v5509 = vpack.c.b16 %v5491, %v5490
        %v5510 = vpack.c.b16 %v5493, %v5492
        %v5511 = vpack.c.b16 %v5495, %v5494
        %5528 = vmatprep.subr.bf16.mxu0 0
        %5529 = vmatpush1.bf16.msra.mxu0 %v5496
        %5530 = vmatprep.subr.bf16.mxu0 0
        %5531 = vmatpush1.bf16.msra.mxu0 %v5497
        %5532 = vmatprep.subr.bf16.mxu0 0
        %5533 = vmatpush1.bf16.msra.mxu0 %v5498
        %5534 = vmatprep.subr.bf16.mxu0 0
        %5535 = vmatpush1.bf16.msra.mxu0 %v5499
        %5536 = vmatprep.subr.bf16.mxu0 0
        %5537 = vmatpush1.bf16.msra.mxu0 %v5500
        %5538 = vmatprep.subr.bf16.mxu0 0
        %5539 = vmatpush1.bf16.msra.mxu0 %v5501
        %5540 = vmatprep.subr.bf16.mxu0 0
        %5541 = vmatpush1.bf16.msra.mxu0 %v5502
        %5542 = vmatprep.subr.bf16.mxu0 0
        %5543 = vmatpush1.bf16.msra.mxu0 %v5503
        %5544 = vmatprep.subr.bf16.mxu0 0
        %5545 = vmatpush1.bf16.msra.mxu0 %v5504
        %5546 = vmatprep.subr.bf16.mxu0 0
        %5547 = vmatpush1.bf16.msra.mxu0 %v5505
        %5548 = vmatprep.subr.bf16.mxu0 0
        %5549 = vmatpush1.bf16.msra.mxu0 %v5506
        %5550 = vmatprep.subr.bf16.mxu0 0
        %5551 = vmatpush1.bf16.msra.mxu0 %v5507
        %5552 = vmatprep.subr.bf16.mxu0 0
        %5553 = vmatpush1.bf16.msra.mxu0 %v5508
        %5554 = vmatprep.subr.bf16.mxu0 0
        %5555 = vmatpush1.bf16.msra.mxu0 %v5509
        %5556 = vmatprep.subr.bf16.mxu0 0
        %5557 = vmatpush1.bf16.msra.mxu0 %v5510
        %5558 = vmatprep.subr.bf16.mxu0 0
        %5559 = vmatpush1.bf16.msra.mxu0 %v5511
        %5560 = vmatprep.mubr.bf16.mxu0 %v5398
        %5561 = vmatmul.mubr.bf16.gmra.mrb[0].mxu0 %v5397
        %v5562 = vpop.f32.mrb[0].mxu0
        %v5563 = vadd.f32 %v5431, %v5562
        %v5564 = vpop.f32.mrb[0].mxu0
        %v5565 = vpop.f32.mrb[0].mxu0
        %v5566 = vpop.f32.mrb[0].mxu0
        %5567 = vdwg.mxu0
        %vm5568 = vcmask 655360
        %5569 = vst.msk [vmem:[%s464] sm:$0x1] %vm5568, %v5563
      $region80: #{pointnet_cls_forward.2} parent=71 // pred_fallthru
        _
      %p5570 = scmp.lt.s32.totalorder %s28, 1
      %s5571 = scalar_select %p5570, %s28, 1
      %s5572 = scalar_lea.vmem %s13, %s5571
      // Predicated region
      $region81: #{pointnet_cls_forward.2} parent=71 // pred_check
        %p5573 = pneg %p334
      $region82: #{pointnet_cls_forward.2} parent=71 // pred_check_branch
        %5575 = sbr.rel (%p5573) target = $region84
      $region83: #{pointnet_cls_forward.2} parent=71 // pred_region
        _
      $region84: #{pointnet_cls_forward.2} parent=71 // pred_fallthru
        _
    $region72: #{pointnet_cls_forward.2} parent=5 // pred_fallthru
      _
    %p5576 = scmp.le.s32.totalorder 2, %s19
    // Predicated region
    $region85: #{pointnet_cls_forward.2} parent=5 // pred_check
      %p5577 = pneg %p5576
    $region86: #{pointnet_cls_forward.2} parent=5 // pred_check_branch
      %5579 = sbr.rel (%p5577) target = $region88
    $region87: #{pointnet_cls_forward.2} parent=5 // pred_region
      %s5580 = ssub.s32 %s19, 2
      // Predicated region
      $region89: #{pointnet_cls_forward.2} parent=87 // pred_check
        %p5581 = pneg %p340
      $region90: #{pointnet_cls_forward.2} parent=87 // pred_check_branch
        %5583 = sbr.rel (%p5581) target = $region92
      $region91: #{pointnet_cls_forward.2} parent=87 // pred_region
        %p5584 = scmp.lt.s32.totalorder %s30, 1
        %s5585 = scalar_select %p5584, %s30, 1
        %s5586 = scalar_lea.vmem %s13, %s5585
      $region92: #{pointnet_cls_forward.2} parent=87 // pred_fallthru
        _
    $region88: #{pointnet_cls_forward.2} parent=5 // pred_fallthru
      _
  $region6: #{pointnet_cls_forward.2} parent=0 // loop_footer
    %s23 = sadd.s32 1, %s19
  $region7: #{pointnet_cls_forward.2} parent=0 // loop_footer_branch
    %18 = sbr.rel target = $region3
  $region8: #{pointnet_cls_forward.2} parent=0 // loop_exit
    _

// kernel: pointnet_cls_forward.3
$region0: #{pointnet_cls_forward.3}
  #allocation0 [shape = 'u32[]', space=smem, size = 0x4, offset = 0x4, fixed_abs, tag = 'smem constant byte address 0x4 - core index']
  #allocation1 [shape = 'u32[144,128]{1,0:T(1,128)}', space=vmem, size = 0x12000, scoped, tag = 'internal scratch']
  #allocation2 [shape = 'f32[1,1024]{1,0:T(1,128)}', space=vmem, size = 0x1000, scoped, tag = 'scratch operand']
  %s0 = inlined_call_operand.vmem [shape: bf16[2,256,9], index: 0, kind: input, shape index: {}]
  %s1 = inlined_call_operand.vmem [shape: bf16[2,9,64], index: 1, kind: input, shape index: {}]
  %s2 = inlined_call_operand.vmem [shape: f32[1,64], index: 2, kind: input, shape index: {}]
  %s3 = inlined_call_operand.vmem [shape: bf16[64,128], index: 3, kind: input, shape index: {}]
  %s4 = inlined_call_operand.vmem [shape: f32[1,128], index: 4, kind: input, shape index: {}]
  %s5 = inlined_call_operand.vmem [shape: bf16[128,1024], index: 5, kind: input, shape index: {}]
  %s6 = inlined_call_operand.vmem [shape: f32[1,1024], index: 6, kind: input, shape index: {}]
  %s7 = inlined_call_operand.vmem [shape: bf16[1024,512], index: 7, kind: input, shape index: {}]
  %s8 = inlined_call_operand.vmem [shape: f32[1,512], index: 8, kind: input, shape index: {}]
  %s9 = inlined_call_operand.vmem [shape: bf16[512,256], index: 9, kind: input, shape index: {}]
  %s10 = inlined_call_operand.vmem [shape: f32[1,256], index: 10, kind: input, shape index: {}]
  %s11 = inlined_call_operand.vmem [shape: bf16[256,40], index: 11, kind: input, shape index: {}]
  %s12 = inlined_call_operand.vmem [shape: f32[1,40], index: 12, kind: input, shape index: {}]
  %s13 = inlined_call_operand.hbm [shape: f32[2,1,40], index: 13, kind: output, shape index: {}]
  %s14 = sld [smem:[#allocation0]]
  $region93: #{pointnet_cls_forward.3} parent=0
    _
  %s16 = ssub.s32 1, %s14
  %s17 = scalar_select 0, %s16, %s14
  $region1: #{pointnet_cls_forward.3} parent=0
    #allocation3 [shape = 'u8[1024]{0}', space=vmem, size = 0x400, scoped, tag = 'output window, operand 0']
    #allocation4 [shape = 's32[2]{0}', space=sflag, size = 0x8, scoped, tag = 'scoped memory for pointnet_cls_forward.3']
    %18 = vsyncpa [#allocation4], 0
    %s19 = scalar_lea.sflag [#allocation4], 1
    %20 = vsyncpa %s19, 0
    loop: start=0, step=1, limit=4
    $region2: #{pointnet_cls_forward.3} parent=1 // loop_pre_header
      _
    $region3: #{pointnet_cls_forward.3} parent=1 // loop_header
      %s22 = sphi 0, %s26
      %p23 = scmp.ge.s32.totalorder %s22, 4
      %s29 = sphi 0, %s41
      %s30 = sphi 0, %s37
      %s31 = sphi 0, %s29
      %s32 = sphi 0, %s30
      %s33 = sphi 0, %s31
      %s34 = sphi 0, %s32
      %s46 = sphi 0, %s48
      %s49 = sphi 0, %s46
      %s50 = sphi 0, %s49
      %s66 = sphi 0, %s50
      %s72 = sphi 0, %s74
      %s75 = sphi 0, %s72
      %s76 = sphi 0, %s75
      %s92 = sphi 0, %s76
      %s96 = sphi 0, %s96
      %s98 = sphi 0, %s96
      %s99 = sphi 0, %s98
      %s113 = sphi 0, %s99
      %s117 = sphi 0, %s117
      %s119 = sphi 0, %s117
      %s120 = sphi 0, %s119
      %s134 = sphi 0, %s120
      %s138 = sphi 0, %s138
      %s140 = sphi 0, %s138
      %s141 = sphi 0, %s140
      %s155 = sphi 0, %s141
      %s159 = sphi 0, %s159
      %s161 = sphi 0, %s159
      %s162 = sphi 0, %s161
      %s176 = sphi 0, %s162
      %s180 = sphi 0, %s180
      %s182 = sphi 0, %s180
      %s183 = sphi 0, %s182
      %s197 = sphi 0, %s183
      %s201 = sphi 0, %s201
      %s203 = sphi 0, %s201
      %s204 = sphi 0, %s203
      %s218 = sphi 0, %s204
      %s222 = sphi 0, %s222
      %s224 = sphi 0, %s222
      %s225 = sphi 0, %s224
      %s239 = sphi 0, %s225
      %s243 = sphi 0, %s243
      %s245 = sphi 0, %s243
      %s246 = sphi 0, %s245
      %s260 = sphi 0, %s246
      %s264 = sphi 0, %s264
      %s266 = sphi 0, %s264
      %s267 = sphi 0, %s266
      %s281 = sphi 0, %s267
      %s285 = sphi 0, %s285
      %s287 = sphi 0, %s285
      %s288 = sphi 0, %s287
      %s302 = sphi 0, %s288
      %s306 = sphi 0, %s306
      %s308 = sphi 0, %s306
      %s309 = sphi 0, %s308
      %s323 = sphi 0, %s309
      %s329 = sphi 0, %s331
      %s332 = sphi 0, %s329
      %s333 = sphi 0, %s332
      %s349 = sphi 0, %s333
    $region4: #{pointnet_cls_forward.3} parent=1 // loop_header_branch
      %25 = sbr.rel (%p23) target = $region8
    $region5: #{pointnet_cls_forward.3} parent=1 // loop_body
      %s27 = ssub.s32 %s22, 1
      %s28 = ssub.s32 %s22, 2
      %s35 = sadd.s32 1, %s30
      %p36 = scmp.ge.s32.totalorder %s35, 1
      %s37 = scalar_select %p36, 0, %s35
      %s38 = sadd.s32 1, %s29
      %s39 = scalar_select %p36, %s38, %s29
      %p40 = scmp.ge.s32.totalorder %s39, 2
      %s41 = scalar_select %p40, 0, %s39
      %s42 = ssub.s32 %s29, %s41
      %s43 = ssub.s32 %s30, %s37
      %s44 = sor.u32 %s42, %s43
      %p45 = scmp.eq.s32.totalorder %s44, 0
      %s47 = sadd.s32 %s46, 1
      %s48 = scalar_select %p45, %s46, %s47
      %p51 = pneg %p45
      %p52 = scmp.eq.s32.totalorder %s22, 1
      %p53 = por %p51, %p52
      %p54 = scmp.ne.s32.totalorder %s46, %s49
      %p55 = scmp.eq.s32.totalorder %s22, 0
      %p56 = por %p54, %p55
      %p57 = scmp.ne.s32.totalorder %s46, %s49
      %p58 = scmp.eq.s32.totalorder %s27, 1
      %p59 = por %p57, %p58
      %p60 = scmp.ne.s32.totalorder %s49, %s50
      %p61 = scmp.eq.s32.totalorder %s27, 0
      %p62 = por %p60, %p61
      %p63 = scmp.ne.s32.totalorder %s49, %s50
      %p64 = scmp.eq.s32.totalorder %s28, 1
      %p65 = por %p63, %p64
      %p67 = scmp.ne.s32.totalorder %s50, %s66
      %p68 = scmp.eq.s32.totalorder %s28, 0
      %p69 = por %p67, %p68
      %s70 = ssub.s32 %s29, %s41
      %p71 = scmp.eq.s32.totalorder %s70, 0
      %s73 = sadd.s32 %s72, 1
      %s74 = scalar_select %p71, %s72, %s73
      %p77 = pneg %p71
      %p78 = scmp.eq.s32.totalorder %s22, 1
      %p79 = por %p77, %p78
      %p80 = scmp.ne.s32.totalorder %s72, %s75
      %p81 = scmp.eq.s32.totalorder %s22, 0
      %p82 = por %p80, %p81
      %p83 = scmp.ne.s32.totalorder %s72, %s75
      %p84 = scmp.eq.s32.totalorder %s27, 1
      %p85 = por %p83, %p84
      %p86 = scmp.ne.s32.totalorder %s75, %s76
      %p87 = scmp.eq.s32.totalorder %s27, 0
      %p88 = por %p86, %p87
      %p89 = scmp.ne.s32.totalorder %s75, %s76
      %p90 = scmp.eq.s32.totalorder %s28, 1
      %p91 = por %p89, %p90
      %p93 = scmp.ne.s32.totalorder %s76, %s92
      %p94 = scmp.eq.s32.totalorder %s28, 0
      %p95 = por %p93, %p94
      %s97 = sadd.s32 %s96, 1
      %p100 = scmp.eq.s32.totalorder %s22, 1
      %p101 = scmp.ne.s32.totalorder %s96, %s98
      %p102 = scmp.eq.s32.totalorder %s22, 0
      %p103 = por %p101, %p102
      %p104 = scmp.ne.s32.totalorder %s96, %s98
      %p105 = scmp.eq.s32.totalorder %s27, 1
      %p106 = por %p104, %p105
      %p107 = scmp.ne.s32.totalorder %s98, %s99
      %p108 = scmp.eq.s32.totalorder %s27, 0
      %p109 = por %p107, %p108
      %p110 = scmp.ne.s32.totalorder %s98, %s99
      %p111 = scmp.eq.s32.totalorder %s28, 1
      %p112 = por %p110, %p111
      %p114 = scmp.ne.s32.totalorder %s99, %s113
      %p115 = scmp.eq.s32.totalorder %s28, 0
      %p116 = por %p114, %p115
      %s118 = sadd.s32 %s117, 1
      %p121 = scmp.eq.s32.totalorder %s22, 1
      %p122 = scmp.ne.s32.totalorder %s117, %s119
      %p123 = scmp.eq.s32.totalorder %s22, 0
      %p124 = por %p122, %p123
      %p125 = scmp.ne.s32.totalorder %s117, %s119
      %p126 = scmp.eq.s32.totalorder %s27, 1
      %p127 = por %p125, %p126
      %p128 = scmp.ne.s32.totalorder %s119, %s120
      %p129 = scmp.eq.s32.totalorder %s27, 0
      %p130 = por %p128, %p129
      %p131 = scmp.ne.s32.totalorder %s119, %s120
      %p132 = scmp.eq.s32.totalorder %s28, 1
      %p133 = por %p131, %p132
      %p135 = scmp.ne.s32.totalorder %s120, %s134
      %p136 = scmp.eq.s32.totalorder %s28, 0
      %p137 = por %p135, %p136
      %s139 = sadd.s32 %s138, 1
      %p142 = scmp.eq.s32.totalorder %s22, 1
      %p143 = scmp.ne.s32.totalorder %s138, %s140
      %p144 = scmp.eq.s32.totalorder %s22, 0
      %p145 = por %p143, %p144
      %p146 = scmp.ne.s32.totalorder %s138, %s140
      %p147 = scmp.eq.s32.totalorder %s27, 1
      %p148 = por %p146, %p147
      %p149 = scmp.ne.s32.totalorder %s140, %s141
      %p150 = scmp.eq.s32.totalorder %s27, 0
      %p151 = por %p149, %p150
      %p152 = scmp.ne.s32.totalorder %s140, %s141
      %p153 = scmp.eq.s32.totalorder %s28, 1
      %p154 = por %p152, %p153
      %p156 = scmp.ne.s32.totalorder %s141, %s155
      %p157 = scmp.eq.s32.totalorder %s28, 0
      %p158 = por %p156, %p157
      %s160 = sadd.s32 %s159, 1
      %p163 = scmp.eq.s32.totalorder %s22, 1
      %p164 = scmp.ne.s32.totalorder %s159, %s161
      %p165 = scmp.eq.s32.totalorder %s22, 0
      %p166 = por %p164, %p165
      %p167 = scmp.ne.s32.totalorder %s159, %s161
      %p168 = scmp.eq.s32.totalorder %s27, 1
      %p169 = por %p167, %p168
      %p170 = scmp.ne.s32.totalorder %s161, %s162
      %p171 = scmp.eq.s32.totalorder %s27, 0
      %p172 = por %p170, %p171
      %p173 = scmp.ne.s32.totalorder %s161, %s162
      %p174 = scmp.eq.s32.totalorder %s28, 1
      %p175 = por %p173, %p174
      %p177 = scmp.ne.s32.totalorder %s162, %s176
      %p178 = scmp.eq.s32.totalorder %s28, 0
      %p179 = por %p177, %p178
      %s181 = sadd.s32 %s180, 1
      %p184 = scmp.eq.s32.totalorder %s22, 1
      %p185 = scmp.ne.s32.totalorder %s180, %s182
      %p186 = scmp.eq.s32.totalorder %s22, 0
      %p187 = por %p185, %p186
      %p188 = scmp.ne.s32.totalorder %s180, %s182
      %p189 = scmp.eq.s32.totalorder %s27, 1
      %p190 = por %p188, %p189
      %p191 = scmp.ne.s32.totalorder %s182, %s183
      %p192 = scmp.eq.s32.totalorder %s27, 0
      %p193 = por %p191, %p192
      %p194 = scmp.ne.s32.totalorder %s182, %s183
      %p195 = scmp.eq.s32.totalorder %s28, 1
      %p196 = por %p194, %p195
      %p198 = scmp.ne.s32.totalorder %s183, %s197
      %p199 = scmp.eq.s32.totalorder %s28, 0
      %p200 = por %p198, %p199
      %s202 = sadd.s32 %s201, 1
      %p205 = scmp.eq.s32.totalorder %s22, 1
      %p206 = scmp.ne.s32.totalorder %s201, %s203
      %p207 = scmp.eq.s32.totalorder %s22, 0
      %p208 = por %p206, %p207
      %p209 = scmp.ne.s32.totalorder %s201, %s203
      %p210 = scmp.eq.s32.totalorder %s27, 1
      %p211 = por %p209, %p210
      %p212 = scmp.ne.s32.totalorder %s203, %s204
      %p213 = scmp.eq.s32.totalorder %s27, 0
      %p214 = por %p212, %p213
      %p215 = scmp.ne.s32.totalorder %s203, %s204
      %p216 = scmp.eq.s32.totalorder %s28, 1
      %p217 = por %p215, %p216
      %p219 = scmp.ne.s32.totalorder %s204, %s218
      %p220 = scmp.eq.s32.totalorder %s28, 0
      %p221 = por %p219, %p220
      %s223 = sadd.s32 %s222, 1
      %p226 = scmp.eq.s32.totalorder %s22, 1
      %p227 = scmp.ne.s32.totalorder %s222, %s224
      %p228 = scmp.eq.s32.totalorder %s22, 0
      %p229 = por %p227, %p228
      %p230 = scmp.ne.s32.totalorder %s222, %s224
      %p231 = scmp.eq.s32.totalorder %s27, 1
      %p232 = por %p230, %p231
      %p233 = scmp.ne.s32.totalorder %s224, %s225
      %p234 = scmp.eq.s32.totalorder %s27, 0
      %p235 = por %p233, %p234
      %p236 = scmp.ne.s32.totalorder %s224, %s225
      %p237 = scmp.eq.s32.totalorder %s28, 1
      %p238 = por %p236, %p237
      %p240 = scmp.ne.s32.totalorder %s225, %s239
      %p241 = scmp.eq.s32.totalorder %s28, 0
      %p242 = por %p240, %p241
      %s244 = sadd.s32 %s243, 1
      %p247 = scmp.eq.s32.totalorder %s22, 1
      %p248 = scmp.ne.s32.totalorder %s243, %s245
      %p249 = scmp.eq.s32.totalorder %s22, 0
      %p250 = por %p248, %p249
      %p251 = scmp.ne.s32.totalorder %s243, %s245
      %p252 = scmp.eq.s32.totalorder %s27, 1
      %p253 = por %p251, %p252
      %p254 = scmp.ne.s32.totalorder %s245, %s246
      %p255 = scmp.eq.s32.totalorder %s27, 0
      %p256 = por %p254, %p255
      %p257 = scmp.ne.s32.totalorder %s245, %s246
      %p258 = scmp.eq.s32.totalorder %s28, 1
      %p259 = por %p257, %p258
      %p261 = scmp.ne.s32.totalorder %s246, %s260
      %p262 = scmp.eq.s32.totalorder %s28, 0
      %p263 = por %p261, %p262
      %s265 = sadd.s32 %s264, 1
      %p268 = scmp.eq.s32.totalorder %s22, 1
      %p269 = scmp.ne.s32.totalorder %s264, %s266
      %p270 = scmp.eq.s32.totalorder %s22, 0
      %p271 = por %p269, %p270
      %p272 = scmp.ne.s32.totalorder %s264, %s266
      %p273 = scmp.eq.s32.totalorder %s27, 1
      %p274 = por %p272, %p273
      %p275 = scmp.ne.s32.totalorder %s266, %s267
      %p276 = scmp.eq.s32.totalorder %s27, 0
      %p277 = por %p275, %p276
      %p278 = scmp.ne.s32.totalorder %s266, %s267
      %p279 = scmp.eq.s32.totalorder %s28, 1
      %p280 = por %p278, %p279
      %p282 = scmp.ne.s32.totalorder %s267, %s281
      %p283 = scmp.eq.s32.totalorder %s28, 0
      %p284 = por %p282, %p283
      %s286 = sadd.s32 %s285, 1
      %p289 = scmp.eq.s32.totalorder %s22, 1
      %p290 = scmp.ne.s32.totalorder %s285, %s287
      %p291 = scmp.eq.s32.totalorder %s22, 0
      %p292 = por %p290, %p291
      %p293 = scmp.ne.s32.totalorder %s285, %s287
      %p294 = scmp.eq.s32.totalorder %s27, 1
      %p295 = por %p293, %p294
      %p296 = scmp.ne.s32.totalorder %s287, %s288
      %p297 = scmp.eq.s32.totalorder %s27, 0
      %p298 = por %p296, %p297
      %p299 = scmp.ne.s32.totalorder %s287, %s288
      %p300 = scmp.eq.s32.totalorder %s28, 1
      %p301 = por %p299, %p300
      %p303 = scmp.ne.s32.totalorder %s288, %s302
      %p304 = scmp.eq.s32.totalorder %s28, 0
      %p305 = por %p303, %p304
      %s307 = sadd.s32 %s306, 1
      %p310 = scmp.eq.s32.totalorder %s22, 1
      %p311 = scmp.ne.s32.totalorder %s306, %s308
      %p312 = scmp.eq.s32.totalorder %s22, 0
      %p313 = por %p311, %p312
      %p314 = scmp.ne.s32.totalorder %s306, %s308
      %p315 = scmp.eq.s32.totalorder %s27, 1
      %p316 = por %p314, %p315
      %p317 = scmp.ne.s32.totalorder %s308, %s309
      %p318 = scmp.eq.s32.totalorder %s27, 0
      %p319 = por %p317, %p318
      %p320 = scmp.ne.s32.totalorder %s308, %s309
      %p321 = scmp.eq.s32.totalorder %s28, 1
      %p322 = por %p320, %p321
      %p324 = scmp.ne.s32.totalorder %s309, %s323
      %p325 = scmp.eq.s32.totalorder %s28, 0
      %p326 = por %p324, %p325
      %s327 = ssub.s32 %s29, %s41
      %p328 = scmp.eq.s32.totalorder %s327, 0
      %s330 = sadd.s32 %s329, 1
      %s331 = scalar_select %p328, %s329, %s330
      %p334 = pneg %p328
      %p335 = scmp.eq.s32.totalorder %s22, 1
      %p336 = por %p334, %p335
      %p337 = scmp.ne.s32.totalorder %s329, %s332
      %p338 = scmp.eq.s32.totalorder %s22, 0
      %p339 = por %p337, %p338
      %p340 = scmp.ne.s32.totalorder %s329, %s332
      %p341 = scmp.eq.s32.totalorder %s27, 1
      %p342 = por %p340, %p341
      %p343 = scmp.ne.s32.totalorder %s332, %s333
      %p344 = scmp.eq.s32.totalorder %s27, 0
      %p345 = por %p343, %p344
      %p346 = scmp.ne.s32.totalorder %s332, %s333
      %p347 = scmp.eq.s32.totalorder %s28, 1
      %p348 = por %p346, %p347
      %p350 = scmp.ne.s32.totalorder %s333, %s349
      %p351 = scmp.eq.s32.totalorder %s28, 0
      %p352 = por %p350, %p351
      %p353 = scmp.le.s32.totalorder 1, %s22
      %p354 = scmp.lt.s32.totalorder %s22, 3
      %p355 = pnand %p353, %p354
      %p356 = pneg %p355
      // Predicated region
      $region9: #{pointnet_cls_forward.3} parent=5 // pred_check
        _
      $region10: #{pointnet_cls_forward.3} parent=5 // pred_check_branch
        %358 = sbr.rel (%p355) target = $region12
      $region11: #{pointnet_cls_forward.3} parent=5 // pred_region
        %s359 = ssub.s32 %s22, 1
        // Predicated region
        $region13: #{pointnet_cls_forward.3} parent=11 // pred_check
          %p360 = pneg %p109
        $region14: #{pointnet_cls_forward.3} parent=11 // pred_check_branch
          %362 = sbr.rel (%p360) target = $region16
        $region15: #{pointnet_cls_forward.3} parent=11 // pred_region
          _
        $region16: #{pointnet_cls_forward.3} parent=11 // pred_fallthru
          _
        // Predicated region
        $region17: #{pointnet_cls_forward.3} parent=11 // pred_check
          %p363 = pneg %p130
        $region18: #{pointnet_cls_forward.3} parent=11 // pred_check_branch
          %365 = sbr.rel (%p363) target = $region20
        $region19: #{pointnet_cls_forward.3} parent=11 // pred_region
          _
        $region20: #{pointnet_cls_forward.3} parent=11 // pred_fallthru
          _
        // Predicated region
        $region21: #{pointnet_cls_forward.3} parent=11 // pred_check
          %p366 = pneg %p151
        $region22: #{pointnet_cls_forward.3} parent=11 // pred_check_branch
          %368 = sbr.rel (%p366) target = $region24
        $region23: #{pointnet_cls_forward.3} parent=11 // pred_region
          _
        $region24: #{pointnet_cls_forward.3} parent=11 // pred_fallthru
          _
        // Predicated region
        $region25: #{pointnet_cls_forward.3} parent=11 // pred_check
          %p369 = pneg %p172
        $region26: #{pointnet_cls_forward.3} parent=11 // pred_check_branch
          %371 = sbr.rel (%p369) target = $region28
        $region27: #{pointnet_cls_forward.3} parent=11 // pred_region
          _
        $region28: #{pointnet_cls_forward.3} parent=11 // pred_fallthru
          _
        // Predicated region
        $region29: #{pointnet_cls_forward.3} parent=11 // pred_check
          %p372 = pneg %p193
        $region30: #{pointnet_cls_forward.3} parent=11 // pred_check_branch
          %374 = sbr.rel (%p372) target = $region32
        $region31: #{pointnet_cls_forward.3} parent=11 // pred_region
          _
        $region32: #{pointnet_cls_forward.3} parent=11 // pred_fallthru
          _
        // Predicated region
        $region33: #{pointnet_cls_forward.3} parent=11 // pred_check
          %p375 = pneg %p214
        $region34: #{pointnet_cls_forward.3} parent=11 // pred_check_branch
          %377 = sbr.rel (%p375) target = $region36
        $region35: #{pointnet_cls_forward.3} parent=11 // pred_region
          _
        $region36: #{pointnet_cls_forward.3} parent=11 // pred_fallthru
          _
        // Predicated region
        $region37: #{pointnet_cls_forward.3} parent=11 // pred_check
          %p378 = pneg %p235
        $region38: #{pointnet_cls_forward.3} parent=11 // pred_check_branch
          %380 = sbr.rel (%p378) target = $region40
        $region39: #{pointnet_cls_forward.3} parent=11 // pred_region
          _
        $region40: #{pointnet_cls_forward.3} parent=11 // pred_fallthru
          _
        // Predicated region
        $region41: #{pointnet_cls_forward.3} parent=11 // pred_check
          %p381 = pneg %p256
        $region42: #{pointnet_cls_forward.3} parent=11 // pred_check_branch
          %383 = sbr.rel (%p381) target = $region44
        $region43: #{pointnet_cls_forward.3} parent=11 // pred_region
          _
        $region44: #{pointnet_cls_forward.3} parent=11 // pred_fallthru
          _
        // Predicated region
        $region45: #{pointnet_cls_forward.3} parent=11 // pred_check
          %p384 = pneg %p277
        $region46: #{pointnet_cls_forward.3} parent=11 // pred_check_branch
          %386 = sbr.rel (%p384) target = $region48
        $region47: #{pointnet_cls_forward.3} parent=11 // pred_region
          _
        $region48: #{pointnet_cls_forward.3} parent=11 // pred_fallthru
          _
        // Predicated region
        $region49: #{pointnet_cls_forward.3} parent=11 // pred_check
          %p387 = pneg %p298
        $region50: #{pointnet_cls_forward.3} parent=11 // pred_check_branch
          %389 = sbr.rel (%p387) target = $region52
        $region51: #{pointnet_cls_forward.3} parent=11 // pred_region
          _
        $region52: #{pointnet_cls_forward.3} parent=11 // pred_fallthru
          _
        // Predicated region
        $region53: #{pointnet_cls_forward.3} parent=11 // pred_check
          %p390 = pneg %p319
        $region54: #{pointnet_cls_forward.3} parent=11 // pred_check_branch
          %392 = sbr.rel (%p390) target = $region56
        $region55: #{pointnet_cls_forward.3} parent=11 // pred_region
          _
        $region56: #{pointnet_cls_forward.3} parent=11 // pred_fallthru
          _
      $region12: #{pointnet_cls_forward.3} parent=5 // pred_fallthru
        _
      %p393 = scmp.lt.s32.totalorder %s22, 2
      // Predicated region
      $region57: #{pointnet_cls_forward.3} parent=5 // pred_check
        %p394 = pneg %p393
      $region58: #{pointnet_cls_forward.3} parent=5 // pred_check_branch
        %396 = sbr.rel (%p394) target = $region60
      $region59: #{pointnet_cls_forward.3} parent=5 // pred_region
        // Predicated region
        $region61: #{pointnet_cls_forward.3} parent=59 // pred_check
          %p397 = pneg %p56
        $region62: #{pointnet_cls_forward.3} parent=59 // pred_check_branch
          %399 = sbr.rel (%p397) target = $region64
        $region63: #{pointnet_cls_forward.3} parent=59 // pred_region
          %s400 = smul.u32 32, %s30
          %p401 = scmp.lt.s32.totalorder %s29, 1
          %s402 = scalar_select %p401, %s29, 1
          %p403 = scmp.lt.s32.totalorder %s400, 31
          %s404 = scalar_select %p403, %s400, 31
          %s405 = smul.addr %s402, 32
          %s406 = sadd.s32 %s404, %s405
          %s407 = smul.addr %s406, 4
          %s408 = scalar_lea.vmem %s0, %s407
          %s409 = smul.u32 32, %s30
        $region64: #{pointnet_cls_forward.3} parent=59 // pred_fallthru
          _
        // Predicated region
        $region65: #{pointnet_cls_forward.3} parent=59 // pred_check
          %p410 = pneg %p82
        $region66: #{pointnet_cls_forward.3} parent=59 // pred_check_branch
          %412 = sbr.rel (%p410) target = $region68
        $region67: #{pointnet_cls_forward.3} parent=59 // pred_region
          %p413 = scmp.lt.s32.totalorder %s29, 1
          %s414 = scalar_select %p413, %s29, 1
          %s415 = smul.addr %s414, 2
          %s416 = smul.addr %s415, 4
          %s417 = scalar_lea.vmem %s1, %s416
        $region68: #{pointnet_cls_forward.3} parent=59 // pred_fallthru
          _
      $region60: #{pointnet_cls_forward.3} parent=5 // pred_fallthru
        _
      %p418 = scmp.le.s32.totalorder 1, %s22
      %p419 = scmp.lt.s32.totalorder %s22, 3
      %p420 = pnand %p418, %p419
      %p421 = pneg %p420
      // Predicated region
      $region69: #{pointnet_cls_forward.3} parent=5 // pred_check
        _
      $region70: #{pointnet_cls_forward.3} parent=5 // pred_check_branch
        %423 = sbr.rel (%p420) target = $region72
      $region71: #{pointnet_cls_forward.3} parent=5 // pred_region
        %s424 = ssub.s32 %s22, 1
        %s425 = smul.u32 32, %s32
        %p426 = scmp.lt.s32.totalorder %s31, 1
        %s427 = scalar_select %p426, %s31, 1
        %p428 = scmp.lt.s32.totalorder %s425, 31
        %s429 = scalar_select %p428, %s425, 31
        %s430 = smul.addr %s427, 32
        %s431 = sadd.s32 %s429, %s430
        %s432 = smul.addr %s431, 4
        %s433 = scalar_lea.vmem %s0, %s432
        %p434 = pneg %p62
        %p435 = pneg %p59
        %p436 = scmp.lt.s32.totalorder %s31, 1
        %s437 = scalar_select %p436, %s31, 1
        %s438 = smul.addr %s437, 2
        %s439 = smul.addr %s438, 4
        %s440 = scalar_lea.vmem %s1, %s439
        %p441 = pneg %p88
        %p442 = pneg %p85
        %p443 = pneg %p109
        %p444 = pneg %p106
        %p445 = pneg %p130
        %p446 = pneg %p127
        %p447 = pneg %p151
        %p448 = pneg %p148
        %p449 = pneg %p172
        %p450 = pneg %p169
        %p451 = pneg %p193
        %p452 = pneg %p190
        %p453 = pneg %p214
        %p454 = pneg %p211
        %p455 = pneg %p235
        %p456 = pneg %p232
        %p457 = pneg %p256
        %p458 = pneg %p253
        %p459 = pneg %p277
        %p460 = pneg %p274
        %p461 = pneg %p298
        %p462 = pneg %p295
        %p463 = pneg %p319
        %p464 = pneg %p316
        %p465 = pneg %p345
        %p466 = pneg %p342
        %s467 = sand.u32 %s332, 1
        %s468 = scalar_lea.sflag [#allocation4], %s467
        %s469 = sand.u32 %s332, 1
        %s470 = scalar_lea.vmem [#allocation3], %s469
        %s471 = smul.u32 32, %s32
        %p472 = scmp.lt.s32.totalorder %s31, 1
        %s473 = scalar_select %p472, %s31, 1
        %p474 = scmp.lt.s32.totalorder %s471, 31
        %s475 = scalar_select %p474, %s471, 31
        %s476 = smul.addr %s473, 32
        %s477 = sadd.s32 %s475, %s476
        %s478 = smul.addr %s477, 4
        %s479 = scalar_lea.vmem %s0, %s478
        %s480 = smul.u32 32, %s32
        %p481 = scmp.lt.s32.totalorder %s31, 1
        %s482 = scalar_select %p481, %s31, 1
        %s483 = smul.addr %s482, 2
        %s484 = smul.addr %s483, 4
        %s485 = scalar_lea.vmem %s1, %s484
        %p487 = scmp.eq.s32.totalorder %s32, 0
        // Predicated region
        $region73: #{pointnet_cls_forward.3} parent=71 // pred_check
          %p488 = pneg %p487
        $region74: #{pointnet_cls_forward.3} parent=71 // pred_check_branch
          %490 = sbr.rel (%p488) target = $region76
        $region75: #{pointnet_cls_forward.3} parent=71 // pred_region
          %491 = vst [vmem:[#allocation2] sm:$0xff] -inf
        $region76: #{pointnet_cls_forward.3} parent=71 // pred_fallthru
          _
        %v492 = vld [vmem:[%s479] sm:$0xf]
        %v493 = vld [vmem:[%s479 + $0x4] sm:$0xf]
        %v494 = vld [vmem:[%s479 + $0x8] sm:$0xf]
        %v495 = vld [vmem:[%s479 + $0xc] sm:$0xf]
        %v496 = vld [vmem:[%s479 + $0x10] sm:$0xf]
        %v497 = vld [vmem:[%s479 + $0x14] sm:$0xf]
        %v498 = vld [vmem:[%s479 + $0x18] sm:$0xf]
        %v499 = vld [vmem:[%s479 + $0x1c] sm:$0xf]
        %v500 = vld [vmem:[%s479 + $0x20] sm:$0xf]
        %v501 = vld [vmem:[%s479 + $0x24] sm:$0xf]
        %v502 = vld [vmem:[%s479 + $0x28] sm:$0xf]
        %v503 = vld [vmem:[%s479 + $0x2c] sm:$0xf]
        %v504 = vld [vmem:[%s479 + $0x30] sm:$0xf]
        %v505 = vld [vmem:[%s479 + $0x34] sm:$0xf]
        %v506 = vld [vmem:[%s479 + $0x38] sm:$0xf]
        %v507 = vld [vmem:[%s479 + $0x3c] sm:$0xf]
        %v508 = vld [vmem:[%s479 + $0x40] sm:$0xf]
        %v509 = vld [vmem:[%s479 + $0x44] sm:$0xf]
        %v510 = vld [vmem:[%s479 + $0x48] sm:$0xf]
        %v511 = vld [vmem:[%s479 + $0x4c] sm:$0xf]
        %v512 = vld [vmem:[%s479 + $0x50] sm:$0xf]
        %v513 = vld [vmem:[%s479 + $0x54] sm:$0xf]
        %v514 = vld [vmem:[%s479 + $0x58] sm:$0xf]
        %v515 = vld [vmem:[%s479 + $0x5c] sm:$0xf]
        %v516 = vld [vmem:[%s479 + $0x60] sm:$0xf]
        %v517 = vld [vmem:[%s479 + $0x64] sm:$0xf]
        %v518 = vld [vmem:[%s479 + $0x68] sm:$0xf]
        %v519 = vld [vmem:[%s479 + $0x6c] sm:$0xf]
        %v520 = vld [vmem:[%s479 + $0x70] sm:$0xf]
        %v521 = vld [vmem:[%s479 + $0x74] sm:$0xf]
        %v522 = vld [vmem:[%s479 + $0x78] sm:$0xf]
        %v523 = vld [vmem:[%s479 + $0x7c] sm:$0xf]
        %v524 = vld [vmem:[%s485] sm:$0xf]
        %v525 = vld [vmem:[%s485 + $0x4] sm:$0x1]
        %v526 = vld [vmem:[%s2] sm:$0x1]
        %v528 = vlaneseq
        %v529 = vshrl.u32 %v528, 7
        %v530 = vsub.s32 0, %v529
        %v531 = vrot.slane %v526, %v530
        %v565 = vunpack.c.l.b16 %v492
        %v566 = vunpack.c.l.b16 %v493
        %v567 = vunpack.c.l.b16 %v494
        %v568 = vunpack.c.l.b16 %v495
        %v569 = vunpack.c.l.b16 %v496
        %v570 = vunpack.c.l.b16 %v497
        %v571 = vunpack.c.l.b16 %v498
        %v572 = vunpack.c.l.b16 %v499
        %v573 = vunpack.c.l.b16 %v500
        %v574 = vunpack.c.l.b16 %v501
        %v575 = vunpack.c.l.b16 %v502
        %v576 = vunpack.c.l.b16 %v503
        %v577 = vunpack.c.l.b16 %v504
        %v578 = vunpack.c.l.b16 %v505
        %v579 = vunpack.c.l.b16 %v506
        %v580 = vunpack.c.l.b16 %v507
        %v581 = vunpack.c.l.b16 %v508
        %v582 = vunpack.c.l.b16 %v509
        %v583 = vunpack.c.l.b16 %v510
        %v584 = vunpack.c.l.b16 %v511
        %v585 = vunpack.c.l.b16 %v512
        %v586 = vunpack.c.l.b16 %v513
        %v587 = vunpack.c.l.b16 %v514
        %v588 = vunpack.c.l.b16 %v515
        %v589 = vunpack.c.l.b16 %v516
        %v590 = vunpack.c.l.b16 %v517
        %v591 = vunpack.c.l.b16 %v518
        %v592 = vunpack.c.l.b16 %v519
        %v593 = vunpack.c.l.b16 %v520
        %v594 = vunpack.c.l.b16 %v521
        %v595 = vunpack.c.l.b16 %v522
        %v596 = vunpack.c.l.b16 %v523
        %v597 = vpack.c.b16 %v566, %v565
        %v598 = vpack.c.b16 %v568, %v567
        %v599 = vpack.c.b16 %v570, %v569
        %v600 = vpack.c.b16 %v572, %v571
        %v601 = vpack.c.b16 %v574, %v573
        %v602 = vpack.c.b16 %v576, %v575
        %v603 = vpack.c.b16 %v578, %v577
        %v604 = vpack.c.b16 %v580, %v579
        %v605 = vpack.c.b16 %v582, %v581
        %v606 = vpack.c.b16 %v584, %v583
        %v607 = vpack.c.b16 %v586, %v585
        %v608 = vpack.c.b16 %v588, %v587
        %v609 = vpack.c.b16 %v590, %v589
        %v610 = vpack.c.b16 %v592, %v591
        %v611 = vpack.c.b16 %v594, %v593
        %v612 = vpack.c.b16 %v596, %v595
        %v615 = vunpack.c.l.b16 %v524
        %v616 = vunpack.c.l.b16 %v525
        %v617 = vpack.c.b16 %v616, %v615
        %vm618 = vcmask 72704
        %v620 = vsel %vm618, %v597, 0
        %v623 = vsel %vm618, %v598, 0
        %v626 = vsel %vm618, %v599, 0
        %v629 = vsel %vm618, %v600, 0
        %v632 = vsel %vm618, %v601, 0
        %v635 = vsel %vm618, %v602, 0
        %v638 = vsel %vm618, %v603, 0
        %v641 = vsel %vm618, %v604, 0
        %v644 = vsel %vm618, %v605, 0
        %v647 = vsel %vm618, %v606, 0
        %v650 = vsel %vm618, %v607, 0
        %v653 = vsel %vm618, %v608, 0
        %v656 = vsel %vm618, %v609, 0
        %v659 = vsel %vm618, %v610, 0
        %v662 = vsel %vm618, %v611, 0
        %v665 = vsel %vm618, %v612, 0
        %vm667 = vcmask 1043456
        %vm668 = vcmask 1044480
        %v669 = vsel %vm667, 4294967295, 65535
        %v670 = vsel %vm668, %v669, 0
        %v672 = vand.u32 %v617, %v670
        %674 = vmatprep.subr.bf16.mxu0 0
        %675 = vmatpush1.bf16.msra.mxu0 %v672
        %676 = vmatprep.subr.bf16.mxu0 0
        %677 = vmatpush1.bf16.msra.mxu0 0
        %678 = vmatprep.subr.bf16.mxu0 0
        %679 = vmatpush1.bf16.msra.mxu0 0
        %680 = vmatprep.subr.bf16.mxu0 0
        %681 = vmatpush1.bf16.msra.mxu0 0
        %682 = vmatprep.subr.bf16.mxu0 0
        %683 = vmatpush1.bf16.msra.mxu0 0
        %684 = vmatprep.subr.bf16.mxu0 0
        %685 = vmatpush1.bf16.msra.mxu0 0
        %686 = vmatprep.subr.bf16.mxu0 0
        %687 = vmatpush1.bf16.msra.mxu0 0
        %688 = vmatprep.subr.bf16.mxu0 0
        %689 = vmatpush1.bf16.msra.mxu0 0
        %690 = vmatprep.subr.bf16.mxu0 0
        %691 = vmatpush1.bf16.msra.mxu0 0
        %692 = vmatprep.subr.bf16.mxu0 0
        %693 = vmatpush1.bf16.msra.mxu0 0
        %694 = vmatprep.subr.bf16.mxu0 0
        %695 = vmatpush1.bf16.msra.mxu0 0
        %696 = vmatprep.subr.bf16.mxu0 0
        %697 = vmatpush1.bf16.msra.mxu0 0
        %698 = vmatprep.subr.bf16.mxu0 0
        %699 = vmatpush1.bf16.msra.mxu0 0
        %700 = vmatprep.subr.bf16.mxu0 0
        %701 = vmatpush1.bf16.msra.mxu0 0
        %702 = vmatprep.subr.bf16.mxu0 0
        %703 = vmatpush1.bf16.msra.mxu0 0
        %704 = vmatprep.subr.bf16.mxu0 0
        %705 = vmatpush1.bf16.msra.mxu0 0
        %706 = vmatprep.mubr.bf16.mxu0 0
        %707 = vmatmul.mubr.bf16.gmra.mrb[0].mxu0 %v620
        %v708 = vpop.f32.mrb[0].mxu0
        %v709 = vadd.f32 %v531, %v708
        %v710 = vpop.f32.mrb[0].mxu0
        %v711 = vpop.f32.mrb[0].mxu0
        %v712 = vadd.f32 %v531, %v711
        %v713 = vpop.f32.mrb[0].mxu0
        %714 = vmatprep.mubr.bf16.mxu0 0
        %715 = vmatmul.mubr.bf16.gmra.mrb[0].mxu0 %v623
        %v716 = vpop.f32.mrb[0].mxu0
        %v717 = vadd.f32 %v531, %v716
        %v718 = vpop.f32.mrb[0].mxu0
        %v719 = vpop.f32.mrb[0].mxu0
        %v720 = vadd.f32 %v531, %v719
        %v721 = vpop.f32.mrb[0].mxu0
        %722 = vmatprep.mubr.bf16.mxu0 0
        %723 = vmatmul.mubr.bf16.gmra.mrb[0].mxu0 %v626
        %v724 = vpop.f32.mrb[0].mxu0
        %v725 = vadd.f32 %v531, %v724
        %v726 = vpop.f32.mrb[0].mxu0
        %v727 = vpop.f32.mrb[0].mxu0
        %v728 = vadd.f32 %v531, %v727
        %v729 = vpop.f32.mrb[0].mxu0
        %730 = vmatprep.mubr.bf16.mxu0 0
        %731 = vmatmul.mubr.bf16.gmra.mrb[0].mxu0 %v629
        %v732 = vpop.f32.mrb[0].mxu0
        %v733 = vadd.f32 %v531, %v732
        %v734 = vpop.f32.mrb[0].mxu0
        %v735 = vpop.f32.mrb[0].mxu0
        %v736 = vadd.f32 %v531, %v735
        %v737 = vpop.f32.mrb[0].mxu0
        %738 = vmatprep.mubr.bf16.mxu0 0
        %739 = vmatmul.mubr.bf16.gmra.mrb[0].mxu0 %v632
        %v740 = vpop.f32.mrb[0].mxu0
        %v741 = vadd.f32 %v531, %v740
        %v742 = vpop.f32.mrb[0].mxu0
        %v743 = vpop.f32.mrb[0].mxu0
        %v744 = vadd.f32 %v531, %v743
        %v745 = vpop.f32.mrb[0].mxu0
        %746 = vmatprep.mubr.bf16.mxu0 0
        %747 = vmatmul.mubr.bf16.gmra.mrb[0].mxu0 %v635
        %v748 = vpop.f32.mrb[0].mxu0
        %v749 = vadd.f32 %v531, %v748
        %v750 = vpop.f32.mrb[0].mxu0
        %v751 = vpop.f32.mrb[0].mxu0
        %v752 = vadd.f32 %v531, %v751
        %v753 = vpop.f32.mrb[0].mxu0
        %754 = vmatprep.mubr.bf16.mxu0 0
        %755 = vmatmul.mubr.bf16.gmra.mrb[0].mxu0 %v638
        %v756 = vpop.f32.mrb[0].mxu0
        %v757 = vadd.f32 %v531, %v756
        %v758 = vpop.f32.mrb[0].mxu0
        %v759 = vpop.f32.mrb[0].mxu0
        %v760 = vadd.f32 %v531, %v759
        %v761 = vpop.f32.mrb[0].mxu0
        %762 = vmatprep.mubr.bf16.mxu0 0
        %763 = vmatmul.mubr.bf16.gmra.mrb[0].mxu0 %v641
        %v764 = vpop.f32.mrb[0].mxu0
        %v765 = vadd.f32 %v531, %v764
        %v766 = vpop.f32.mrb[0].mxu0
        %v767 = vpop.f32.mrb[0].mxu0
        %v768 = vadd.f32 %v531, %v767
        %v769 = vpop.f32.mrb[0].mxu0
        %770 = vmatprep.mubr.bf16.mxu0 0
        %771 = vmatmul.mubr.bf16.gmra.mrb[0].mxu0 %v644
        %v772 = vpop.f32.mrb[0].mxu0
        %v773 = vadd.f32 %v531, %v772
        %v774 = vpop.f32.mrb[0].mxu0
        %v775 = vpop.f32.mrb[0].mxu0
        %v776 = vadd.f32 %v531, %v775
        %v777 = vpop.f32.mrb[0].mxu0
        %778 = vmatprep.mubr.bf16.mxu0 0
        %779 = vmatmul.mubr.bf16.gmra.mrb[0].mxu0 %v647
        %v780 = vpop.f32.mrb[0].mxu0
        %v781 = vadd.f32 %v531, %v780
        %v782 = vpop.f32.mrb[0].mxu0
        %v783 = vpop.f32.mrb[0].mxu0
        %v784 = vadd.f32 %v531, %v783
        %v785 = vpop.f32.mrb[0].mxu0
        %786 = vmatprep.mubr.bf16.mxu0 0
        %787 = vmatmul.mubr.bf16.gmra.mrb[0].mxu0 %v650
        %v788 = vpop.f32.mrb[0].mxu0
        %v789 = vadd.f32 %v531, %v788
        %v790 = vpop.f32.mrb[0].mxu0
        %v791 = vpop.f32.mrb[0].mxu0
        %v792 = vadd.f32 %v531, %v791
        %v793 = vpop.f32.mrb[0].mxu0
        %794 = vmatprep.mubr.bf16.mxu0 0
        %795 = vmatmul.mubr.bf16.gmra.mrb[0].mxu0 %v653
        %v796 = vpop.f32.mrb[0].mxu0
        %v797 = vadd.f32 %v531, %v796
        %v798 = vpop.f32.mrb[0].mxu0
        %v799 = vpop.f32.mrb[0].mxu0
        %v800 = vadd.f32 %v531, %v799
        %v801 = vpop.f32.mrb[0].mxu0
        %802 = vmatprep.mubr.bf16.mxu0 0
        %803 = vmatmul.mubr.bf16.gmra.mrb[0].mxu0 %v656
        %v804 = vpop.f32.mrb[0].mxu0
        %v805 = vadd.f32 %v531, %v804
        %v806 = vpop.f32.mrb[0].mxu0
        %v807 = vpop.f32.mrb[0].mxu0
        %v808 = vadd.f32 %v531, %v807
        %v809 = vpop.f32.mrb[0].mxu0
        %810 = vmatprep.mubr.bf16.mxu0 0
        %811 = vmatmul.mubr.bf16.gmra.mrb[0].mxu0 %v659
        %v812 = vpop.f32.mrb[0].mxu0
        %v813 = vadd.f32 %v531, %v812
        %v814 = vpop.f32.mrb[0].mxu0
        %v815 = vpop.f32.mrb[0].mxu0
        %v816 = vadd.f32 %v531, %v815
        %v817 = vpop.f32.mrb[0].mxu0
        %818 = vmatprep.mubr.bf16.mxu0 0
        %819 = vmatmul.mubr.bf16.gmra.mrb[0].mxu0 %v662
        %v820 = vpop.f32.mrb[0].mxu0
        %v821 = vadd.f32 %v531, %v820
        %v822 = vpop.f32.mrb[0].mxu0
        %v823 = vpop.f32.mrb[0].mxu0
        %v824 = vadd.f32 %v531, %v823
        %v825 = vpop.f32.mrb[0].mxu0
        %826 = vmatprep.mubr.bf16.mxu0 0
        %827 = vmatmul.mubr.bf16.gmra.mrb[0].mxu0 %v665
        %v828 = vpop.f32.mrb[0].mxu0
        %v829 = vadd.f32 %v531, %v828
        %v830 = vpop.f32.mrb[0].mxu0
        %v831 = vpop.f32.mrb[0].mxu0
        %v832 = vadd.f32 %v531, %v831
        %v833 = vpop.f32.mrb[0].mxu0
        %834 = vdwg.mxu0
        %v835 = vmax.f32 %v709, 0.0
        %v836 = vmax.f32 %v712, 0.0
        %v837 = vmax.f32 %v717, 0.0
        %v838 = vmax.f32 %v720, 0.0
        %v839 = vmax.f32 %v725, 0.0
        %v840 = vmax.f32 %v728, 0.0
        %v841 = vmax.f32 %v733, 0.0
        %v842 = vmax.f32 %v736, 0.0
        %v843 = vmax.f32 %v741, 0.0
        %v844 = vmax.f32 %v744, 0.0
        %v845 = vmax.f32 %v749, 0.0
        %v846 = vmax.f32 %v752, 0.0
        %v847 = vmax.f32 %v757, 0.0
        %v848 = vmax.f32 %v760, 0.0
        %v849 = vmax.f32 %v765, 0.0
        %v850 = vmax.f32 %v768, 0.0
        %v851 = vmax.f32 %v773, 0.0
        %v852 = vmax.f32 %v776, 0.0
        %v853 = vmax.f32 %v781, 0.0
        %v854 = vmax.f32 %v784, 0.0
        %v855 = vmax.f32 %v789, 0.0
        %v856 = vmax.f32 %v792, 0.0
        %v857 = vmax.f32 %v797, 0.0
        %v858 = vmax.f32 %v800, 0.0
        %v859 = vmax.f32 %v805, 0.0
        %v860 = vmax.f32 %v808, 0.0
        %v861 = vmax.f32 %v813, 0.0
        %v862 = vmax.f32 %v816, 0.0
        %v863 = vmax.f32 %v821, 0.0
        %v864 = vmax.f32 %v824, 0.0
        %v865 = vmax.f32 %v829, 0.0
        %v866 = vmax.f32 %v832, 0.0
        %v867 = vpack.c.bf16 %v836, %v835
        %v868 = vpack.c.bf16 %v838, %v837
        %v869 = vpack.c.bf16 %v840, %v839
        %v870 = vpack.c.bf16 %v842, %v841
        %v871 = vpack.c.bf16 %v844, %v843
        %v872 = vpack.c.bf16 %v846, %v845
        %v873 = vpack.c.bf16 %v848, %v847
        %v874 = vpack.c.bf16 %v850, %v849
        %v875 = vpack.c.bf16 %v852, %v851
        %v876 = vpack.c.bf16 %v854, %v853
        %v877 = vpack.c.bf16 %v856, %v855
        %v878 = vpack.c.bf16 %v858, %v857
        %v879 = vpack.c.bf16 %v860, %v859
        %v880 = vpack.c.bf16 %v862, %v861
        %v881 = vpack.c.bf16 %v864, %v863
        %v882 = vpack.c.bf16 %v866, %v865
        %v883 = vld [vmem:[%s3] sm:$0xf]
        %v884 = vld [vmem:[%s3 + $0x4] sm:$0xf]
        %v885 = vld [vmem:[%s3 + $0x8] sm:$0xf]
        %v886 = vld [vmem:[%s3 + $0xc] sm:$0xf]
        %v887 = vld [vmem:[%s3 + $0x10] sm:$0xf]
        %v888 = vld [vmem:[%s3 + $0x14] sm:$0xf]
        %v889 = vld [vmem:[%s3 + $0x18] sm:$0xf]
        %v890 = vld [vmem:[%s3 + $0x1c] sm:$0xf]
        %v891 = vld [vmem:[%s4] sm:$0x1]
        %v893 = vlaneseq
        %v894 = vshrl.u32 %v893, 7
        %v895 = vsub.s32 0, %v894
        %v896 = vrot.slane %v891, %v895
        %v906 = vunpack.c.l.b16 %v883
        %v907 = vunpack.c.l.b16 %v884
        %v908 = vunpack.c.l.b16 %v885
        %v909 = vunpack.c.l.b16 %v886
        %v910 = vunpack.c.l.b16 %v887
        %v911 = vunpack.c.l.b16 %v888
        %v912 = vunpack.c.l.b16 %v889
        %v913 = vunpack.c.l.b16 %v890
        %v914 = vpack.c.b16 %v907, %v906
        %v915 = vpack.c.b16 %v909, %v908
        %v916 = vpack.c.b16 %v911, %v910
        %v917 = vpack.c.b16 %v913, %v912
        %vm922 = vcmask 523264
        %v924 = vsel %vm922, %v867, 0
        %v927 = vsel %vm922, %v868, 0
        %v930 = vsel %vm922, %v869, 0
        %v933 = vsel %vm922, %v870, 0
        %v936 = vsel %vm922, %v871, 0
        %v939 = vsel %vm922, %v872, 0
        %v942 = vsel %vm922, %v873, 0
        %v945 = vsel %vm922, %v874, 0
        %v948 = vsel %vm922, %v875, 0
        %v951 = vsel %vm922, %v876, 0
        %v954 = vsel %vm922, %v877, 0
        %v957 = vsel %vm922, %v878, 0
        %v960 = vsel %vm922, %v879, 0
        %v963 = vsel %vm922, %v880, 0
        %v966 = vsel %vm922, %v881, 0
        %v969 = vsel %vm922, %v882, 0
        %971 = vmatprep.subr.bf16.mxu0 0
        %972 = vmatpush1.bf16.msra.mxu0 %v914
        %973 = vmatprep.subr.bf16.mxu0 0
        %974 = vmatpush1.bf16.msra.mxu0 %v915
        %975 = vmatprep.subr.bf16.mxu0 0
        %976 = vmatpush1.bf16.msra.mxu0 %v916
        %977 = vmatprep.subr.bf16.mxu0 0
        %978 = vmatpush1.bf16.msra.mxu0 %v917
        %979 = vmatprep.subr.bf16.mxu0 0
        %980 = vmatpush1.bf16.msra.mxu0 0
        %981 = vmatprep.subr.bf16.mxu0 0
        %982 = vmatpush1.bf16.msra.mxu0 0
        %983 = vmatprep.subr.bf16.mxu0 0
        %984 = vmatpush1.bf16.msra.mxu0 0
        %985 = vmatprep.subr.bf16.mxu0 0
        %986 = vmatpush1.bf16.msra.mxu0 0
        %987 = vmatprep.subr.bf16.mxu0 0
        %988 = vmatpush1.bf16.msra.mxu0 0
        %989 = vmatprep.subr.bf16.mxu0 0
        %990 = vmatpush1.bf16.msra.mxu0 0
        %991 = vmatprep.subr.bf16.mxu0 0
        %992 = vmatpush1.bf16.msra.mxu0 0
        %993 = vmatprep.subr.bf16.mxu0 0
        %994 = vmatpush1.bf16.msra.mxu0 0
        %995 = vmatprep.subr.bf16.mxu0 0
        %996 = vmatpush1.bf16.msra.mxu0 0
        %997 = vmatprep.subr.bf16.mxu0 0
        %998 = vmatpush1.bf16.msra.mxu0 0
        %999 = vmatprep.subr.bf16.mxu0 0
        %1000 = vmatpush1.bf16.msra.mxu0 0
        %1001 = vmatprep.subr.bf16.mxu0 0
        %1002 = vmatpush1.bf16.msra.mxu0 0
        %1003 = vmatprep.mubr.bf16.mxu0 0
        %1004 = vmatmul.mubr.bf16.gmra.mrb[0].mxu0 %v924
        %v1005 = vpop.f32.mrb[0].mxu0
        %v1006 = vadd.f32 %v896, %v1005
        %v1007 = vpop.f32.mrb[0].mxu0
        %v1008 = vpop.f32.mrb[0].mxu0
        %v1009 = vadd.f32 %v896, %v1008
        %v1010 = vpop.f32.mrb[0].mxu0
        %1011 = vmatprep.mubr.bf16.mxu0 0
        %1012 = vmatmul.mubr.bf16.gmra.mrb[0].mxu0 %v927
        %v1013 = vpop.f32.mrb[0].mxu0
        %v1014 = vadd.f32 %v896, %v1013
        %v1015 = vpop.f32.mrb[0].mxu0
        %v1016 = vpop.f32.mrb[0].mxu0
        %v1017 = vadd.f32 %v896, %v1016
        %v1018 = vpop.f32.mrb[0].mxu0
        %1019 = vmatprep.mubr.bf16.mxu0 0
        %1020 = vmatmul.mubr.bf16.gmra.mrb[0].mxu0 %v930
        %v1021 = vpop.f32.mrb[0].mxu0
        %v1022 = vadd.f32 %v896, %v1021
        %v1023 = vpop.f32.mrb[0].mxu0
        %v1024 = vpop.f32.mrb[0].mxu0
        %v1025 = vadd.f32 %v896, %v1024
        %v1026 = vpop.f32.mrb[0].mxu0
        %1027 = vmatprep.mubr.bf16.mxu0 0
        %1028 = vmatmul.mubr.bf16.gmra.mrb[0].mxu0 %v933
        %v1029 = vpop.f32.mrb[0].mxu0
        %v1030 = vadd.f32 %v896, %v1029
        %v1031 = vpop.f32.mrb[0].mxu0
        %v1032 = vpop.f32.mrb[0].mxu0
        %v1033 = vadd.f32 %v896, %v1032
        %v1034 = vpop.f32.mrb[0].mxu0
        %1035 = vmatprep.mubr.bf16.mxu0 0
        %1036 = vmatmul.mubr.bf16.gmra.mrb[0].mxu0 %v936
        %v1037 = vpop.f32.mrb[0].mxu0
        %v1038 = vadd.f32 %v896, %v1037
        %v1039 = vpop.f32.mrb[0].mxu0
        %v1040 = vpop.f32.mrb[0].mxu0
        %v1041 = vadd.f32 %v896, %v1040
        %v1042 = vpop.f32.mrb[0].mxu0
        %1043 = vmatprep.mubr.bf16.mxu0 0
        %1044 = vmatmul.mubr.bf16.gmra.mrb[0].mxu0 %v939
        %v1045 = vpop.f32.mrb[0].mxu0
        %v1046 = vadd.f32 %v896, %v1045
        %v1047 = vpop.f32.mrb[0].mxu0
        %v1048 = vpop.f32.mrb[0].mxu0
        %v1049 = vadd.f32 %v896, %v1048
        %v1050 = vpop.f32.mrb[0].mxu0
        %1051 = vmatprep.mubr.bf16.mxu0 0
        %1052 = vmatmul.mubr.bf16.gmra.mrb[0].mxu0 %v942
        %v1053 = vpop.f32.mrb[0].mxu0
        %v1054 = vadd.f32 %v896, %v1053
        %v1055 = vpop.f32.mrb[0].mxu0
        %v1056 = vpop.f32.mrb[0].mxu0
        %v1057 = vadd.f32 %v896, %v1056
        %v1058 = vpop.f32.mrb[0].mxu0
        %1059 = vmatprep.mubr.bf16.mxu0 0
        %1060 = vmatmul.mubr.bf16.gmra.mrb[0].mxu0 %v945
        %v1061 = vpop.f32.mrb[0].mxu0
        %v1062 = vadd.f32 %v896, %v1061
        %v1063 = vpop.f32.mrb[0].mxu0
        %v1064 = vpop.f32.mrb[0].mxu0
        %v1065 = vadd.f32 %v896, %v1064
        %v1066 = vpop.f32.mrb[0].mxu0
        %1067 = vmatprep.mubr.bf16.mxu0 0
        %1068 = vmatmul.mubr.bf16.gmra.mrb[0].mxu0 %v948
        %v1069 = vpop.f32.mrb[0].mxu0
        %v1070 = vadd.f32 %v896, %v1069
        %v1071 = vpop.f32.mrb[0].mxu0
        %v1072 = vpop.f32.mrb[0].mxu0
        %v1073 = vadd.f32 %v896, %v1072
        %v1074 = vpop.f32.mrb[0].mxu0
        %1075 = vmatprep.mubr.bf16.mxu0 0
        %1076 = vmatmul.mubr.bf16.gmra.mrb[0].mxu0 %v951
        %v1077 = vpop.f32.mrb[0].mxu0
        %v1078 = vadd.f32 %v896, %v1077
        %v1079 = vpop.f32.mrb[0].mxu0
        %v1080 = vpop.f32.mrb[0].mxu0
        %v1081 = vadd.f32 %v896, %v1080
        %v1082 = vpop.f32.mrb[0].mxu0
        %1083 = vmatprep.mubr.bf16.mxu0 0
        %1084 = vmatmul.mubr.bf16.gmra.mrb[0].mxu0 %v954
        %v1085 = vpop.f32.mrb[0].mxu0
        %v1086 = vadd.f32 %v896, %v1085
        %v1087 = vpop.f32.mrb[0].mxu0
        %v1088 = vpop.f32.mrb[0].mxu0
        %v1089 = vadd.f32 %v896, %v1088
        %v1090 = vpop.f32.mrb[0].mxu0
        %1091 = vmatprep.mubr.bf16.mxu0 0
        %1092 = vmatmul.mubr.bf16.gmra.mrb[0].mxu0 %v957
        %v1093 = vpop.f32.mrb[0].mxu0
        %v1094 = vadd.f32 %v896, %v1093
        %v1095 = vpop.f32.mrb[0].mxu0
        %v1096 = vpop.f32.mrb[0].mxu0
        %v1097 = vadd.f32 %v896, %v1096
        %v1098 = vpop.f32.mrb[0].mxu0
        %1099 = vmatprep.mubr.bf16.mxu0 0
        %1100 = vmatmul.mubr.bf16.gmra.mrb[0].mxu0 %v960
        %v1101 = vpop.f32.mrb[0].mxu0
        %v1102 = vadd.f32 %v896, %v1101
        %v1103 = vpop.f32.mrb[0].mxu0
        %v1104 = vpop.f32.mrb[0].mxu0
        %v1105 = vadd.f32 %v896, %v1104
        %v1106 = vpop.f32.mrb[0].mxu0
        %1107 = vmatprep.mubr.bf16.mxu0 0
        %1108 = vmatmul.mubr.bf16.gmra.mrb[0].mxu0 %v963
        %v1109 = vpop.f32.mrb[0].mxu0
        %v1110 = vadd.f32 %v896, %v1109
        %v1111 = vpop.f32.mrb[0].mxu0
        %v1112 = vpop.f32.mrb[0].mxu0
        %v1113 = vadd.f32 %v896, %v1112
        %v1114 = vpop.f32.mrb[0].mxu0
        %1115 = vmatprep.mubr.bf16.mxu0 0
        %1116 = vmatmul.mubr.bf16.gmra.mrb[0].mxu0 %v966
        %v1117 = vpop.f32.mrb[0].mxu0
        %v1118 = vadd.f32 %v896, %v1117
        %v1119 = vpop.f32.mrb[0].mxu0
        %v1120 = vpop.f32.mrb[0].mxu0
        %v1121 = vadd.f32 %v896, %v1120
        %v1122 = vpop.f32.mrb[0].mxu0
        %1123 = vmatprep.mubr.bf16.mxu0 0
        %1124 = vmatmul.mubr.bf16.gmra.mrb[0].mxu0 %v969
        %v1125 = vpop.f32.mrb[0].mxu0
        %v1126 = vadd.f32 %v896, %v1125
        %v1127 = vpop.f32.mrb[0].mxu0
        %v1128 = vpop.f32.mrb[0].mxu0
        %v1129 = vadd.f32 %v896, %v1128
        %v1130 = vpop.f32.mrb[0].mxu0
        %1131 = vdwg.mxu0
        %v1132 = vmax.f32 %v1006, 0.0
        %v1133 = vmax.f32 %v1009, 0.0
        %v1134 = vmax.f32 %v1014, 0.0
        %v1135 = vmax.f32 %v1017, 0.0
        %v1136 = vmax.f32 %v1022, 0.0
        %v1137 = vmax.f32 %v1025, 0.0
        %v1138 = vmax.f32 %v1030, 0.0
        %v1139 = vmax.f32 %v1033, 0.0
        %v1140 = vmax.f32 %v1038, 0.0
        %v1141 = vmax.f32 %v1041, 0.0
        %v1142 = vmax.f32 %v1046, 0.0
        %v1143 = vmax.f32 %v1049, 0.0
        %v1144 = vmax.f32 %v1054, 0.0
        %v1145 = vmax.f32 %v1057, 0.0
        %v1146 = vmax.f32 %v1062, 0.0
        %v1147 = vmax.f32 %v1065, 0.0
        %v1148 = vmax.f32 %v1070, 0.0
        %v1149 = vmax.f32 %v1073, 0.0
        %v1150 = vmax.f32 %v1078, 0.0
        %v1151 = vmax.f32 %v1081, 0.0
        %v1152 = vmax.f32 %v1086, 0.0
        %v1153 = vmax.f32 %v1089, 0.0
        %v1154 = vmax.f32 %v1094, 0.0
        %v1155 = vmax.f32 %v1097, 0.0
        %v1156 = vmax.f32 %v1102, 0.0
        %v1157 = vmax.f32 %v1105, 0.0
        %v1158 = vmax.f32 %v1110, 0.0
        %v1159 = vmax.f32 %v1113, 0.0
        %v1160 = vmax.f32 %v1118, 0.0
        %v1161 = vmax.f32 %v1121, 0.0
        %v1162 = vmax.f32 %v1126, 0.0
        %v1163 = vmax.f32 %v1129, 0.0
        %v1164 = vpack.c.bf16 %v1133, %v1132
        %v1165 = vpack.c.bf16 %v1135, %v1134
        %v1166 = vpack.c.bf16 %v1137, %v1136
        %v1167 = vpack.c.bf16 %v1139, %v1138
        %v1168 = vpack.c.bf16 %v1141, %v1140
        %v1169 = vpack.c.bf16 %v1143, %v1142
        %v1170 = vpack.c.bf16 %v1145, %v1144
        %v1171 = vpack.c.bf16 %v1147, %v1146
        %v1172 = vpack.c.bf16 %v1149, %v1148
        %v1173 = vpack.c.bf16 %v1151, %v1150
        %v1174 = vpack.c.bf16 %v1153, %v1152
        %v1175 = vpack.c.bf16 %v1155, %v1154
        %v1176 = vpack.c.bf16 %v1157, %v1156
        %v1177 = vpack.c.bf16 %v1159, %v1158
        %v1178 = vpack.c.bf16 %v1161, %v1160
        %v1179 = vpack.c.bf16 %v1163, %v1162
        %v1180 = vld [vmem:[%s5] sm:$0xff]
        %v1181 = vld [vmem:[%s5 + $0x8] sm:$0xff]
        %v1182 = vld [vmem:[%s5 + $0x10] sm:$0xff]
        %v1183 = vld [vmem:[%s5 + $0x18] sm:$0xff]
        %v1184 = vld [vmem:[%s5 + $0x20] sm:$0xff]
        %v1185 = vld [vmem:[%s5 + $0x28] sm:$0xff]
        %v1186 = vld [vmem:[%s5 + $0x30] sm:$0xff]
        %v1187 = vld [vmem:[%s5 + $0x38] sm:$0xff]
        %v1188 = vld [vmem:[%s5 + $0x40] sm:$0xff]
        %v1189 = vld [vmem:[%s5 + $0x48] sm:$0xff]
        %v1190 = vld [vmem:[%s5 + $0x50] sm:$0xff]
        %v1191 = vld [vmem:[%s5 + $0x58] sm:$0xff]
        %v1192 = vld [vmem:[%s5 + $0x60] sm:$0xff]
        %v1193 = vld [vmem:[%s5 + $0x68] sm:$0xff]
        %v1194 = vld [vmem:[%s5 + $0x70] sm:$0xff]
        %v1195 = vld [vmem:[%s5 + $0x78] sm:$0xff]
        %v1196 = vld [vmem:[%s5 + $0x80] sm:$0xff]
        %v1197 = vld [vmem:[%s5 + $0x88] sm:$0xff]
        %v1198 = vld [vmem:[%s5 + $0x90] sm:$0xff]
        %v1199 = vld [vmem:[%s5 + $0x98] sm:$0xff]
        %v1200 = vld [vmem:[%s5 + $0xa0] sm:$0xff]
        %v1201 = vld [vmem:[%s5 + $0xa8] sm:$0xff]
        %v1202 = vld [vmem:[%s5 + $0xb0] sm:$0xff]
        %v1203 = vld [vmem:[%s5 + $0xb8] sm:$0xff]
        %v1204 = vld [vmem:[%s5 + $0xc0] sm:$0xff]
        %v1205 = vld [vmem:[%s5 + $0xc8] sm:$0xff]
        %v1206 = vld [vmem:[%s5 + $0xd0] sm:$0xff]
        %v1207 = vld [vmem:[%s5 + $0xd8] sm:$0xff]
        %v1208 = vld [vmem:[%s5 + $0xe0] sm:$0xff]
        %v1209 = vld [vmem:[%s5 + $0xe8] sm:$0xff]
        %v1210 = vld [vmem:[%s5 + $0xf0] sm:$0xff]
        %v1211 = vld [vmem:[%s5 + $0xf8] sm:$0xff]
        %v1212 = vld [vmem:[%s5 + $0x100] sm:$0xff]
        %v1213 = vld [vmem:[%s5 + $0x108] sm:$0xff]
        %v1214 = vld [vmem:[%s5 + $0x110] sm:$0xff]
        %v1215 = vld [vmem:[%s5 + $0x118] sm:$0xff]
        %v1216 = vld [vmem:[%s5 + $0x120] sm:$0xff]
        %v1217 = vld [vmem:[%s5 + $0x128] sm:$0xff]
        %v1218 = vld [vmem:[%s5 + $0x130] sm:$0xff]
        %v1219 = vld [vmem:[%s5 + $0x138] sm:$0xff]
        %v1220 = vld [vmem:[%s5 + $0x140] sm:$0xff]
        %v1221 = vld [vmem:[%s5 + $0x148] sm:$0xff]
        %v1222 = vld [vmem:[%s5 + $0x150] sm:$0xff]
        %v1223 = vld [vmem:[%s5 + $0x158] sm:$0xff]
        %v1224 = vld [vmem:[%s5 + $0x160] sm:$0xff]
        %v1225 = vld [vmem:[%s5 + $0x168] sm:$0xff]
        %v1226 = vld [vmem:[%s5 + $0x170] sm:$0xff]
        %v1227 = vld [vmem:[%s5 + $0x178] sm:$0xff]
        %v1228 = vld [vmem:[%s5 + $0x180] sm:$0xff]
        %v1229 = vld [vmem:[%s5 + $0x188] sm:$0xff]
        %v1230 = vld [vmem:[%s5 + $0x190] sm:$0xff]
        %v1231 = vld [vmem:[%s5 + $0x198] sm:$0xff]
        %v1232 = vld [vmem:[%s5 + $0x1a0] sm:$0xff]
        %v1233 = vld [vmem:[%s5 + $0x1a8] sm:$0xff]
        %v1234 = vld [vmem:[%s5 + $0x1b0] sm:$0xff]
        %v1235 = vld [vmem:[%s5 + $0x1b8] sm:$0xff]
        %v1236 = vld [vmem:[%s5 + $0x1c0] sm:$0xff]
        %v1237 = vld [vmem:[%s5 + $0x1c8] sm:$0xff]
        %v1238 = vld [vmem:[%s5 + $0x1d0] sm:$0xff]
        %v1239 = vld [vmem:[%s5 + $0x1d8] sm:$0xff]
        %v1240 = vld [vmem:[%s5 + $0x1e0] sm:$0xff]
        %v1241 = vld [vmem:[%s5 + $0x1e8] sm:$0xff]
        %v1242 = vld [vmem:[%s5 + $0x1f0] sm:$0xff]
        %v1243 = vld [vmem:[%s5 + $0x1f8] sm:$0xff]
        %v1244 = vld [vmem:[%s6] sm:$0xff]
        %v1246 = vlaneseq
        %v1247 = vshrl.u32 %v1246, 7
        %v1248 = vsub.s32 0, %v1247
        %v1249 = vrot.slane %v1244, %v1248
        %v1250 = vlaneseq
        %v1251 = vshrl.u32 %v1250, 7
        %v1252 = vsub.s32 1, %v1251
        %v1253 = vrot.slane %v1244, %v1252
        %v1254 = vlaneseq
        %v1255 = vshrl.u32 %v1254, 7
        %v1256 = vsub.s32 2, %v1255
        %v1257 = vrot.slane %v1244, %v1256
        %v1258 = vlaneseq
        %v1259 = vshrl.u32 %v1258, 7
        %v1260 = vsub.s32 3, %v1259
        %v1261 = vrot.slane %v1244, %v1260
        %v1262 = vlaneseq
        %v1263 = vshrl.u32 %v1262, 7
        %v1264 = vsub.s32 4, %v1263
        %v1265 = vrot.slane %v1244, %v1264
        %v1266 = vlaneseq
        %v1267 = vshrl.u32 %v1266, 7
        %v1268 = vsub.s32 5, %v1267
        %v1269 = vrot.slane %v1244, %v1268
        %v1270 = vlaneseq
        %v1271 = vshrl.u32 %v1270, 7
        %v1272 = vsub.s32 6, %v1271
        %v1273 = vrot.slane %v1244, %v1272
        %v1274 = vlaneseq
        %v1275 = vshrl.u32 %v1274, 7
        %v1276 = vsub.s32 7, %v1275
        %v1277 = vrot.slane %v1244, %v1276
        %v1350 = vunpack.c.l.b16 %v1180
        %v1351 = vunpack.c.h.b16 %v1180
        %v1352 = vunpack.c.l.b16 %v1181
        %v1353 = vunpack.c.h.b16 %v1181
        %v1354 = vunpack.c.l.b16 %v1182
        %v1355 = vunpack.c.h.b16 %v1182
        %v1356 = vunpack.c.l.b16 %v1183
        %v1357 = vunpack.c.h.b16 %v1183
        %v1358 = vunpack.c.l.b16 %v1184
        %v1359 = vunpack.c.h.b16 %v1184
        %v1360 = vunpack.c.l.b16 %v1185
        %v1361 = vunpack.c.h.b16 %v1185
        %v1362 = vunpack.c.l.b16 %v1186
        %v1363 = vunpack.c.h.b16 %v1186
        %v1364 = vunpack.c.l.b16 %v1187
        %v1365 = vunpack.c.h.b16 %v1187
        %v1366 = vunpack.c.l.b16 %v1188
        %v1367 = vunpack.c.h.b16 %v1188
        %v1368 = vunpack.c.l.b16 %v1189
        %v1369 = vunpack.c.h.b16 %v1189
        %v1370 = vunpack.c.l.b16 %v1190
        %v1371 = vunpack.c.h.b16 %v1190
        %v1372 = vunpack.c.l.b16 %v1191
        %v1373 = vunpack.c.h.b16 %v1191
        %v1374 = vunpack.c.l.b16 %v1192
        %v1375 = vunpack.c.h.b16 %v1192
        %v1376 = vunpack.c.l.b16 %v1193
        %v1377 = vunpack.c.h.b16 %v1193
        %v1378 = vunpack.c.l.b16 %v1194
        %v1379 = vunpack.c.h.b16 %v1194
        %v1380 = vunpack.c.l.b16 %v1195
        %v1381 = vunpack.c.h.b16 %v1195
        %v1382 = vunpack.c.l.b16 %v1196
        %v1383 = vunpack.c.h.b16 %v1196
        %v1384 = vunpack.c.l.b16 %v1197
        %v1385 = vunpack.c.h.b16 %v1197
        %v1386 = vunpack.c.l.b16 %v1198
        %v1387 = vunpack.c.h.b16 %v1198
        %v1388 = vunpack.c.l.b16 %v1199
        %v1389 = vunpack.c.h.b16 %v1199
        %v1390 = vunpack.c.l.b16 %v1200
        %v1391 = vunpack.c.h.b16 %v1200
        %v1392 = vunpack.c.l.b16 %v1201
        %v1393 = vunpack.c.h.b16 %v1201
        %v1394 = vunpack.c.l.b16 %v1202
        %v1395 = vunpack.c.h.b16 %v1202
        %v1396 = vunpack.c.l.b16 %v1203
        %v1397 = vunpack.c.h.b16 %v1203
        %v1398 = vunpack.c.l.b16 %v1204
        %v1399 = vunpack.c.h.b16 %v1204
        %v1400 = vunpack.c.l.b16 %v1205
        %v1401 = vunpack.c.h.b16 %v1205
        %v1402 = vunpack.c.l.b16 %v1206
        %v1403 = vunpack.c.h.b16 %v1206
        %v1404 = vunpack.c.l.b16 %v1207
        %v1405 = vunpack.c.h.b16 %v1207
        %v1406 = vunpack.c.l.b16 %v1208
        %v1407 = vunpack.c.h.b16 %v1208
        %v1408 = vunpack.c.l.b16 %v1209
        %v1409 = vunpack.c.h.b16 %v1209
        %v1410 = vunpack.c.l.b16 %v1210
        %v1411 = vunpack.c.h.b16 %v1210
        %v1412 = vunpack.c.l.b16 %v1211
        %v1413 = vunpack.c.h.b16 %v1211
        %v1414 = vunpack.c.l.b16 %v1212
        %v1415 = vunpack.c.h.b16 %v1212
        %v1416 = vunpack.c.l.b16 %v1213
        %v1417 = vunpack.c.h.b16 %v1213
        %v1418 = vunpack.c.l.b16 %v1214
        %v1419 = vunpack.c.h.b16 %v1214
        %v1420 = vunpack.c.l.b16 %v1215
        %v1421 = vunpack.c.h.b16 %v1215
        %v1422 = vunpack.c.l.b16 %v1216
        %v1423 = vunpack.c.h.b16 %v1216
        %v1424 = vunpack.c.l.b16 %v1217
        %v1425 = vunpack.c.h.b16 %v1217
        %v1426 = vunpack.c.l.b16 %v1218
        %v1427 = vunpack.c.h.b16 %v1218
        %v1428 = vunpack.c.l.b16 %v1219
        %v1429 = vunpack.c.h.b16 %v1219
        %v1430 = vunpack.c.l.b16 %v1220
        %v1431 = vunpack.c.h.b16 %v1220
        %v1432 = vunpack.c.l.b16 %v1221
        %v1433 = vunpack.c.h.b16 %v1221
        %v1434 = vunpack.c.l.b16 %v1222
        %v1435 = vunpack.c.h.b16 %v1222
        %v1436 = vunpack.c.l.b16 %v1223
        %v1437 = vunpack.c.h.b16 %v1223
        %v1438 = vunpack.c.l.b16 %v1224
        %v1439 = vunpack.c.h.b16 %v1224
        %v1440 = vunpack.c.l.b16 %v1225
        %v1441 = vunpack.c.h.b16 %v1225
        %v1442 = vunpack.c.l.b16 %v1226
        %v1443 = vunpack.c.h.b16 %v1226
        %v1444 = vunpack.c.l.b16 %v1227
        %v1445 = vunpack.c.h.b16 %v1227
        %v1446 = vunpack.c.l.b16 %v1228
        %v1447 = vunpack.c.h.b16 %v1228
        %v1448 = vunpack.c.l.b16 %v1229
        %v1449 = vunpack.c.h.b16 %v1229
        %v1450 = vunpack.c.l.b16 %v1230
        %v1451 = vunpack.c.h.b16 %v1230
        %v1452 = vunpack.c.l.b16 %v1231
        %v1453 = vunpack.c.h.b16 %v1231
        %v1454 = vunpack.c.l.b16 %v1232
        %v1455 = vunpack.c.h.b16 %v1232
        %v1456 = vunpack.c.l.b16 %v1233
        %v1457 = vunpack.c.h.b16 %v1233
        %v1458 = vunpack.c.l.b16 %v1234
        %v1459 = vunpack.c.h.b16 %v1234
        %v1460 = vunpack.c.l.b16 %v1235
        %v1461 = vunpack.c.h.b16 %v1235
        %v1462 = vunpack.c.l.b16 %v1236
        %v1463 = vunpack.c.h.b16 %v1236
        %v1464 = vunpack.c.l.b16 %v1237
        %v1465 = vunpack.c.h.b16 %v1237
        %v1466 = vunpack.c.l.b16 %v1238
        %v1467 = vunpack.c.h.b16 %v1238
        %v1468 = vunpack.c.l.b16 %v1239
        %v1469 = vunpack.c.h.b16 %v1239
        %v1470 = vunpack.c.l.b16 %v1240
        %v1471 = vunpack.c.h.b16 %v1240
        %v1472 = vunpack.c.l.b16 %v1241
        %v1473 = vunpack.c.h.b16 %v1241
        %v1474 = vunpack.c.l.b16 %v1242
        %v1475 = vunpack.c.h.b16 %v1242
        %v1476 = vunpack.c.l.b16 %v1243
        %v1477 = vunpack.c.h.b16 %v1243
        %v1478 = vpack.c.b16 %v1358, %v1350
        %v1479 = vpack.c.b16 %v1359, %v1351
        %v1480 = vpack.c.b16 %v1360, %v1352
        %v1481 = vpack.c.b16 %v1361, %v1353
        %v1482 = vpack.c.b16 %v1362, %v1354
        %v1483 = vpack.c.b16 %v1363, %v1355
        %v1484 = vpack.c.b16 %v1364, %v1356
        %v1485 = vpack.c.b16 %v1365, %v1357
        %v1486 = vpack.c.b16 %v1374, %v1366
        %v1487 = vpack.c.b16 %v1375, %v1367
        %v1488 = vpack.c.b16 %v1376, %v1368
        %v1489 = vpack.c.b16 %v1377, %v1369
        %v1490 = vpack.c.b16 %v1378, %v1370
        %v1491 = vpack.c.b16 %v1379, %v1371
        %v1492 = vpack.c.b16 %v1380, %v1372
        %v1493 = vpack.c.b16 %v1381, %v1373
        %v1494 = vpack.c.b16 %v1390, %v1382
        %v1495 = vpack.c.b16 %v1391, %v1383
        %v1496 = vpack.c.b16 %v1392, %v1384
        %v1497 = vpack.c.b16 %v1393, %v1385
        %v1498 = vpack.c.b16 %v1394, %v1386
        %v1499 = vpack.c.b16 %v1395, %v1387
        %v1500 = vpack.c.b16 %v1396, %v1388
        %v1501 = vpack.c.b16 %v1397, %v1389
        %v1502 = vpack.c.b16 %v1406, %v1398
        %v1503 = vpack.c.b16 %v1407, %v1399
        %v1504 = vpack.c.b16 %v1408, %v1400
        %v1505 = vpack.c.b16 %v1409, %v1401
        %v1506 = vpack.c.b16 %v1410, %v1402
        %v1507 = vpack.c.b16 %v1411, %v1403
        %v1508 = vpack.c.b16 %v1412, %v1404
        %v1509 = vpack.c.b16 %v1413, %v1405
        %v1510 = vpack.c.b16 %v1422, %v1414
        %v1511 = vpack.c.b16 %v1423, %v1415
        %v1512 = vpack.c.b16 %v1424, %v1416
        %v1513 = vpack.c.b16 %v1425, %v1417
        %v1514 = vpack.c.b16 %v1426, %v1418
        %v1515 = vpack.c.b16 %v1427, %v1419
        %v1516 = vpack.c.b16 %v1428, %v1420
        %v1517 = vpack.c.b16 %v1429, %v1421
        %v1518 = vpack.c.b16 %v1438, %v1430
        %v1519 = vpack.c.b16 %v1439, %v1431
        %v1520 = vpack.c.b16 %v1440, %v1432
        %v1521 = vpack.c.b16 %v1441, %v1433
        %v1522 = vpack.c.b16 %v1442, %v1434
        %v1523 = vpack.c.b16 %v1443, %v1435
        %v1524 = vpack.c.b16 %v1444, %v1436
        %v1525 = vpack.c.b16 %v1445, %v1437
        %v1526 = vpack.c.b16 %v1454, %v1446
        %v1527 = vpack.c.b16 %v1455, %v1447
        %v1528 = vpack.c.b16 %v1456, %v1448
        %v1529 = vpack.c.b16 %v1457, %v1449
        %v1530 = vpack.c.b16 %v1458, %v1450
        %v1531 = vpack.c.b16 %v1459, %v1451
        %v1532 = vpack.c.b16 %v1460, %v1452
        %v1533 = vpack.c.b16 %v1461, %v1453
        %v1534 = vpack.c.b16 %v1470, %v1462
        %v1535 = vpack.c.b16 %v1471, %v1463
        %v1536 = vpack.c.b16 %v1472, %v1464
        %v1537 = vpack.c.b16 %v1473, %v1465
        %v1538 = vpack.c.b16 %v1474, %v1466
        %v1539 = vpack.c.b16 %v1475, %v1467
        %v1540 = vpack.c.b16 %v1476, %v1468
        %v1541 = vpack.c.b16 %v1477, %v1469
        %1606 = vmatprep.subr.bf16.mxu0 %v1479
        %1607 = vmatpush1.bf16.msra.mxu0 %v1478
        %1608 = vmatprep.subr.bf16.mxu0 %v1487
        %1609 = vmatpush1.bf16.msra.mxu0 %v1486
        %1610 = vmatprep.subr.bf16.mxu0 %v1495
        %1611 = vmatpush1.bf16.msra.mxu0 %v1494
        %1612 = vmatprep.subr.bf16.mxu0 %v1503
        %1613 = vmatpush1.bf16.msra.mxu0 %v1502
        %1614 = vmatprep.subr.bf16.mxu0 %v1511
        %1615 = vmatpush1.bf16.msra.mxu0 %v1510
        %1616 = vmatprep.subr.bf16.mxu0 %v1519
        %1617 = vmatpush1.bf16.msra.mxu0 %v1518
        %1618 = vmatprep.subr.bf16.mxu0 %v1527
        %1619 = vmatpush1.bf16.msra.mxu0 %v1526
        %1620 = vmatprep.subr.bf16.mxu0 %v1535
        %1621 = vmatpush1.bf16.msra.mxu0 %v1534
        %1622 = vmatprep.subr.bf16.mxu0 0
        %1623 = vmatpush1.bf16.msra.mxu0 0
        %1624 = vmatprep.subr.bf16.mxu0 0
        %1625 = vmatpush1.bf16.msra.mxu0 0
        %1626 = vmatprep.subr.bf16.mxu0 0
        %1627 = vmatpush1.bf16.msra.mxu0 0
        %1628 = vmatprep.subr.bf16.mxu0 0
        %1629 = vmatpush1.bf16.msra.mxu0 0
        %1630 = vmatprep.subr.bf16.mxu0 0
        %1631 = vmatpush1.bf16.msra.mxu0 0
        %1632 = vmatprep.subr.bf16.mxu0 0
        %1633 = vmatpush1.bf16.msra.mxu0 0
        %1634 = vmatprep.subr.bf16.mxu0 0
        %1635 = vmatpush1.bf16.msra.mxu0 0
        %1636 = vmatprep.subr.bf16.mxu0 0
        %1637 = vmatpush1.bf16.msra.mxu0 0
        %1638 = vmatprep.mubr.bf16.mxu0 0
        %1639 = vmatmul.mubr.bf16.gmra.mrb[0].mxu0 %v1164
        %v1640 = vpop.f32.mrb[0].mxu0
        %v1641 = vadd.f32 %v1249, %v1640
        %v1642 = vpop.f32.mrb[0].mxu0
        %v1643 = vadd.f32 %v1253, %v1642
        %v1644 = vpop.f32.mrb[0].mxu0
        %v1645 = vadd.f32 %v1249, %v1644
        %v1646 = vpop.f32.mrb[0].mxu0
        %v1647 = vadd.f32 %v1253, %v1646
        %1648 = vmatprep.mubr.bf16.mxu0 0
        %1649 = vmatmul.mubr.bf16.gmra.mrb[0].mxu0 %v1165
        %v1650 = vpop.f32.mrb[0].mxu0
        %v1651 = vadd.f32 %v1249, %v1650
        %v1652 = vpop.f32.mrb[0].mxu0
        %v1653 = vadd.f32 %v1253, %v1652
        %v1654 = vpop.f32.mrb[0].mxu0
        %v1655 = vadd.f32 %v1249, %v1654
        %v1656 = vpop.f32.mrb[0].mxu0
        %v1657 = vadd.f32 %v1253, %v1656
        %1658 = vmatprep.mubr.bf16.mxu0 0
        %1659 = vmatmul.mubr.bf16.gmra.mrb[0].mxu0 %v1166
        %v1660 = vpop.f32.mrb[0].mxu0
        %v1661 = vadd.f32 %v1249, %v1660
        %v1662 = vpop.f32.mrb[0].mxu0
        %v1663 = vadd.f32 %v1253, %v1662
        %v1664 = vpop.f32.mrb[0].mxu0
        %v1665 = vadd.f32 %v1249, %v1664
        %v1666 = vpop.f32.mrb[0].mxu0
        %v1667 = vadd.f32 %v1253, %v1666
        %1668 = vmatprep.mubr.bf16.mxu0 0
        %1669 = vmatmul.mubr.bf16.gmra.mrb[0].mxu0 %v1167
        %v1670 = vpop.f32.mrb[0].mxu0
        %v1671 = vadd.f32 %v1249, %v1670
        %v1672 = vpop.f32.mrb[0].mxu0
        %v1673 = vadd.f32 %v1253, %v1672
        %v1674 = vpop.f32.mrb[0].mxu0
        %v1675 = vadd.f32 %v1249, %v1674
        %v1676 = vpop.f32.mrb[0].mxu0
        %v1677 = vadd.f32 %v1253, %v1676
        %1678 = vmatprep.mubr.bf16.mxu0 0
        %1679 = vmatmul.mubr.bf16.gmra.mrb[0].mxu0 %v1168
        %v1680 = vpop.f32.mrb[0].mxu0
        %v1681 = vadd.f32 %v1249, %v1680
        %v1682 = vpop.f32.mrb[0].mxu0
        %v1683 = vadd.f32 %v1253, %v1682
        %v1684 = vpop.f32.mrb[0].mxu0
        %v1685 = vadd.f32 %v1249, %v1684
        %v1686 = vpop.f32.mrb[0].mxu0
        %v1687 = vadd.f32 %v1253, %v1686
        %1688 = vmatprep.mubr.bf16.mxu0 0
        %1689 = vmatmul.mubr.bf16.gmra.mrb[0].mxu0 %v1169
        %v1690 = vpop.f32.mrb[0].mxu0
        %v1691 = vadd.f32 %v1249, %v1690
        %v1692 = vpop.f32.mrb[0].mxu0
        %v1693 = vadd.f32 %v1253, %v1692
        %v1694 = vpop.f32.mrb[0].mxu0
        %v1695 = vadd.f32 %v1249, %v1694
        %v1696 = vpop.f32.mrb[0].mxu0
        %v1697 = vadd.f32 %v1253, %v1696
        %1698 = vmatprep.mubr.bf16.mxu0 0
        %1699 = vmatmul.mubr.bf16.gmra.mrb[0].mxu0 %v1170
        %v1700 = vpop.f32.mrb[0].mxu0
        %v1701 = vadd.f32 %v1249, %v1700
        %v1702 = vpop.f32.mrb[0].mxu0
        %v1703 = vadd.f32 %v1253, %v1702
        %v1704 = vpop.f32.mrb[0].mxu0
        %v1705 = vadd.f32 %v1249, %v1704
        %v1706 = vpop.f32.mrb[0].mxu0
        %v1707 = vadd.f32 %v1253, %v1706
        %1708 = vmatprep.mubr.bf16.mxu0 0
        %1709 = vmatmul.mubr.bf16.gmra.mrb[0].mxu0 %v1171
        %v1710 = vpop.f32.mrb[0].mxu0
        %v1711 = vadd.f32 %v1249, %v1710
        %v1712 = vpop.f32.mrb[0].mxu0
        %v1713 = vadd.f32 %v1253, %v1712
        %v1714 = vpop.f32.mrb[0].mxu0
        %v1715 = vadd.f32 %v1249, %v1714
        %v1716 = vpop.f32.mrb[0].mxu0
        %v1717 = vadd.f32 %v1253, %v1716
        %1718 = vmatprep.mubr.bf16.mxu0 0
        %1719 = vmatmul.mubr.bf16.gmra.mrb[0].mxu0 %v1172
        %v1720 = vpop.f32.mrb[0].mxu0
        %v1721 = vadd.f32 %v1249, %v1720
        %v1722 = vpop.f32.mrb[0].mxu0
        %v1723 = vadd.f32 %v1253, %v1722
        %v1724 = vpop.f32.mrb[0].mxu0
        %v1725 = vadd.f32 %v1249, %v1724
        %v1726 = vpop.f32.mrb[0].mxu0
        %v1727 = vadd.f32 %v1253, %v1726
        %1728 = vmatprep.mubr.bf16.mxu0 0
        %1729 = vmatmul.mubr.bf16.gmra.mrb[0].mxu0 %v1173
        %v1730 = vpop.f32.mrb[0].mxu0
        %v1731 = vadd.f32 %v1249, %v1730
        %v1732 = vpop.f32.mrb[0].mxu0
        %v1733 = vadd.f32 %v1253, %v1732
        %v1734 = vpop.f32.mrb[0].mxu0
        %v1735 = vadd.f32 %v1249, %v1734
        %v1736 = vpop.f32.mrb[0].mxu0
        %v1737 = vadd.f32 %v1253, %v1736
        %1738 = vmatprep.mubr.bf16.mxu0 0
        %1739 = vmatmul.mubr.bf16.gmra.mrb[0].mxu0 %v1174
        %v1740 = vpop.f32.mrb[0].mxu0
        %v1741 = vadd.f32 %v1249, %v1740
        %v1742 = vpop.f32.mrb[0].mxu0
        %v1743 = vadd.f32 %v1253, %v1742
        %v1744 = vpop.f32.mrb[0].mxu0
        %v1745 = vadd.f32 %v1249, %v1744
        %v1746 = vpop.f32.mrb[0].mxu0
        %v1747 = vadd.f32 %v1253, %v1746
        %1748 = vmatprep.mubr.bf16.mxu0 0
        %1749 = vmatmul.mubr.bf16.gmra.mrb[0].mxu0 %v1175
        %v1750 = vpop.f32.mrb[0].mxu0
        %v1751 = vadd.f32 %v1249, %v1750
        %v1752 = vpop.f32.mrb[0].mxu0
        %v1753 = vadd.f32 %v1253, %v1752
        %v1754 = vpop.f32.mrb[0].mxu0
        %v1755 = vadd.f32 %v1249, %v1754
        %v1756 = vpop.f32.mrb[0].mxu0
        %v1757 = vadd.f32 %v1253, %v1756
        %1758 = vmatprep.mubr.bf16.mxu0 0
        %1759 = vmatmul.mubr.bf16.gmra.mrb[0].mxu0 %v1176
        %v1760 = vpop.f32.mrb[0].mxu0
        %v1761 = vadd.f32 %v1249, %v1760
        %v1762 = vpop.f32.mrb[0].mxu0
        %v1763 = vadd.f32 %v1253, %v1762
        %v1764 = vpop.f32.mrb[0].mxu0
        %v1765 = vadd.f32 %v1249, %v1764
        %v1766 = vpop.f32.mrb[0].mxu0
        %v1767 = vadd.f32 %v1253, %v1766
        %1768 = vmatprep.mubr.bf16.mxu0 0
        %1769 = vmatmul.mubr.bf16.gmra.mrb[0].mxu0 %v1177
        %v1770 = vpop.f32.mrb[0].mxu0
        %v1771 = vadd.f32 %v1249, %v1770
        %v1772 = vpop.f32.mrb[0].mxu0
        %v1773 = vadd.f32 %v1253, %v1772
        %v1774 = vpop.f32.mrb[0].mxu0
        %v1775 = vadd.f32 %v1249, %v1774
        %v1776 = vpop.f32.mrb[0].mxu0
        %v1777 = vadd.f32 %v1253, %v1776
        %1778 = vmatprep.mubr.bf16.mxu0 0
        %1779 = vmatmul.mubr.bf16.gmra.mrb[0].mxu0 %v1178
        %v1780 = vpop.f32.mrb[0].mxu0
        %v1781 = vadd.f32 %v1249, %v1780
        %v1782 = vpop.f32.mrb[0].mxu0
        %v1783 = vadd.f32 %v1253, %v1782
        %v1784 = vpop.f32.mrb[0].mxu0
        %v1785 = vadd.f32 %v1249, %v1784
        %v1786 = vpop.f32.mrb[0].mxu0
        %v1787 = vadd.f32 %v1253, %v1786
        %1788 = vmatprep.mubr.bf16.mxu0 0
        %1789 = vmatmul.mubr.bf16.gmra.mrb[0].mxu0 %v1179
        %v1790 = vpop.f32.mrb[0].mxu0
        %v1791 = vadd.f32 %v1249, %v1790
        %v1792 = vpop.f32.mrb[0].mxu0
        %v1793 = vadd.f32 %v1253, %v1792
        %v1794 = vpop.f32.mrb[0].mxu0
        %v1795 = vadd.f32 %v1249, %v1794
        %v1796 = vpop.f32.mrb[0].mxu0
        %v1797 = vadd.f32 %v1253, %v1796
        %1798 = vdwg.mxu0
        %1799 = vmatprep.subr.bf16.mxu0 %v1481
        %1800 = vmatpush1.bf16.msra.mxu0 %v1480
        %1801 = vmatprep.subr.bf16.mxu0 %v1489
        %1802 = vmatpush1.bf16.msra.mxu0 %v1488
        %1803 = vmatprep.subr.bf16.mxu0 %v1497
        %1804 = vmatpush1.bf16.msra.mxu0 %v1496
        %1805 = vmatprep.subr.bf16.mxu0 %v1505
        %1806 = vmatpush1.bf16.msra.mxu0 %v1504
        %1807 = vmatprep.subr.bf16.mxu0 %v1513
        %1808 = vmatpush1.bf16.msra.mxu0 %v1512
        %1809 = vmatprep.subr.bf16.mxu0 %v1521
        %1810 = vmatpush1.bf16.msra.mxu0 %v1520
        %1811 = vmatprep.subr.bf16.mxu0 %v1529
        %1812 = vmatpush1.bf16.msra.mxu0 %v1528
        %1813 = vmatprep.subr.bf16.mxu0 %v1537
        %1814 = vmatpush1.bf16.msra.mxu0 %v1536
        %1815 = vmatprep.subr.bf16.mxu0 0
        %1816 = vmatpush1.bf16.msra.mxu0 0
        %1817 = vmatprep.subr.bf16.mxu0 0
        %1818 = vmatpush1.bf16.msra.mxu0 0
        %1819 = vmatprep.subr.bf16.mxu0 0
        %1820 = vmatpush1.bf16.msra.mxu0 0
        %1821 = vmatprep.subr.bf16.mxu0 0
        %1822 = vmatpush1.bf16.msra.mxu0 0
        %1823 = vmatprep.subr.bf16.mxu0 0
        %1824 = vmatpush1.bf16.msra.mxu0 0
        %1825 = vmatprep.subr.bf16.mxu0 0
        %1826 = vmatpush1.bf16.msra.mxu0 0
        %1827 = vmatprep.subr.bf16.mxu0 0
        %1828 = vmatpush1.bf16.msra.mxu0 0
        %1829 = vmatprep.subr.bf16.mxu0 0
        %1830 = vmatpush1.bf16.msra.mxu0 0
        %1831 = vmatprep.mubr.bf16.mxu0 0
        %1832 = vmatmul.mubr.bf16.gmra.mrb[0].mxu0 %v1164
        %v1833 = vpop.f32.mrb[0].mxu0
        %v1834 = vadd.f32 %v1257, %v1833
        %v1835 = vpop.f32.mrb[0].mxu0
        %v1836 = vadd.f32 %v1261, %v1835
        %v1837 = vpop.f32.mrb[0].mxu0
        %v1838 = vadd.f32 %v1257, %v1837
        %v1839 = vpop.f32.mrb[0].mxu0
        %v1840 = vadd.f32 %v1261, %v1839
        %1841 = vmatprep.mubr.bf16.mxu0 0
        %1842 = vmatmul.mubr.bf16.gmra.mrb[0].mxu0 %v1165
        %v1843 = vpop.f32.mrb[0].mxu0
        %v1844 = vadd.f32 %v1257, %v1843
        %v1845 = vpop.f32.mrb[0].mxu0
        %v1846 = vadd.f32 %v1261, %v1845
        %v1847 = vpop.f32.mrb[0].mxu0
        %v1848 = vadd.f32 %v1257, %v1847
        %v1849 = vpop.f32.mrb[0].mxu0
        %v1850 = vadd.f32 %v1261, %v1849
        %1851 = vmatprep.mubr.bf16.mxu0 0
        %1852 = vmatmul.mubr.bf16.gmra.mrb[0].mxu0 %v1166
        %v1853 = vpop.f32.mrb[0].mxu0
        %v1854 = vadd.f32 %v1257, %v1853
        %v1855 = vpop.f32.mrb[0].mxu0
        %v1856 = vadd.f32 %v1261, %v1855
        %v1857 = vpop.f32.mrb[0].mxu0
        %v1858 = vadd.f32 %v1257, %v1857
        %v1859 = vpop.f32.mrb[0].mxu0
        %v1860 = vadd.f32 %v1261, %v1859
        %1861 = vmatprep.mubr.bf16.mxu0 0
        %1862 = vmatmul.mubr.bf16.gmra.mrb[0].mxu0 %v1167
        %v1863 = vpop.f32.mrb[0].mxu0
        %v1864 = vadd.f32 %v1257, %v1863
        %v1865 = vpop.f32.mrb[0].mxu0
        %v1866 = vadd.f32 %v1261, %v1865
        %v1867 = vpop.f32.mrb[0].mxu0
        %v1868 = vadd.f32 %v1257, %v1867
        %v1869 = vpop.f32.mrb[0].mxu0
        %v1870 = vadd.f32 %v1261, %v1869
        %1871 = vmatprep.mubr.bf16.mxu0 0
        %1872 = vmatmul.mubr.bf16.gmra.mrb[0].mxu0 %v1168
        %v1873 = vpop.f32.mrb[0].mxu0
        %v1874 = vadd.f32 %v1257, %v1873
        %v1875 = vpop.f32.mrb[0].mxu0
        %v1876 = vadd.f32 %v1261, %v1875
        %v1877 = vpop.f32.mrb[0].mxu0
        %v1878 = vadd.f32 %v1257, %v1877
        %v1879 = vpop.f32.mrb[0].mxu0
        %v1880 = vadd.f32 %v1261, %v1879
        %1881 = vmatprep.mubr.bf16.mxu0 0
        %1882 = vmatmul.mubr.bf16.gmra.mrb[0].mxu0 %v1169
        %v1883 = vpop.f32.mrb[0].mxu0
        %v1884 = vadd.f32 %v1257, %v1883
        %v1885 = vpop.f32.mrb[0].mxu0
        %v1886 = vadd.f32 %v1261, %v1885
        %v1887 = vpop.f32.mrb[0].mxu0
        %v1888 = vadd.f32 %v1257, %v1887
        %v1889 = vpop.f32.mrb[0].mxu0
        %v1890 = vadd.f32 %v1261, %v1889
        %1891 = vmatprep.mubr.bf16.mxu0 0
        %1892 = vmatmul.mubr.bf16.gmra.mrb[0].mxu0 %v1170
        %v1893 = vpop.f32.mrb[0].mxu0
        %v1894 = vadd.f32 %v1257, %v1893
        %v1895 = vpop.f32.mrb[0].mxu0
        %v1896 = vadd.f32 %v1261, %v1895
        %v1897 = vpop.f32.mrb[0].mxu0
        %v1898 = vadd.f32 %v1257, %v1897
        %v1899 = vpop.f32.mrb[0].mxu0
        %v1900 = vadd.f32 %v1261, %v1899
        %1901 = vmatprep.mubr.bf16.mxu0 0
        %1902 = vmatmul.mubr.bf16.gmra.mrb[0].mxu0 %v1171
        %v1903 = vpop.f32.mrb[0].mxu0
        %v1904 = vadd.f32 %v1257, %v1903
        %v1905 = vpop.f32.mrb[0].mxu0
        %v1906 = vadd.f32 %v1261, %v1905
        %v1907 = vpop.f32.mrb[0].mxu0
        %v1908 = vadd.f32 %v1257, %v1907
        %v1909 = vpop.f32.mrb[0].mxu0
        %v1910 = vadd.f32 %v1261, %v1909
        %1911 = vmatprep.mubr.bf16.mxu0 0
        %1912 = vmatmul.mubr.bf16.gmra.mrb[0].mxu0 %v1172
        %v1913 = vpop.f32.mrb[0].mxu0
        %v1914 = vadd.f32 %v1257, %v1913
        %v1915 = vpop.f32.mrb[0].mxu0
        %v1916 = vadd.f32 %v1261, %v1915
        %v1917 = vpop.f32.mrb[0].mxu0
        %v1918 = vadd.f32 %v1257, %v1917
        %v1919 = vpop.f32.mrb[0].mxu0
        %v1920 = vadd.f32 %v1261, %v1919
        %1921 = vmatprep.mubr.bf16.mxu0 0
        %1922 = vmatmul.mubr.bf16.gmra.mrb[0].mxu0 %v1173
        %v1923 = vpop.f32.mrb[0].mxu0
        %v1924 = vadd.f32 %v1257, %v1923
        %v1925 = vpop.f32.mrb[0].mxu0
        %v1926 = vadd.f32 %v1261, %v1925
        %v1927 = vpop.f32.mrb[0].mxu0
        %v1928 = vadd.f32 %v1257, %v1927
        %v1929 = vpop.f32.mrb[0].mxu0
        %v1930 = vadd.f32 %v1261, %v1929
        %1931 = vmatprep.mubr.bf16.mxu0 0
        %1932 = vmatmul.mubr.bf16.gmra.mrb[0].mxu0 %v1174
        %v1933 = vpop.f32.mrb[0].mxu0
        %v1934 = vadd.f32 %v1257, %v1933
        %v1935 = vpop.f32.mrb[0].mxu0
        %v1936 = vadd.f32 %v1261, %v1935
        %v1937 = vpop.f32.mrb[0].mxu0
        %v1938 = vadd.f32 %v1257, %v1937
        %v1939 = vpop.f32.mrb[0].mxu0
        %v1940 = vadd.f32 %v1261, %v1939
        %1941 = vmatprep.mubr.bf16.mxu0 0
        %1942 = vmatmul.mubr.bf16.gmra.mrb[0].mxu0 %v1175
        %v1943 = vpop.f32.mrb[0].mxu0
        %v1944 = vadd.f32 %v1257, %v1943
        %v1945 = vpop.f32.mrb[0].mxu0
        %v1946 = vadd.f32 %v1261, %v1945
        %v1947 = vpop.f32.mrb[0].mxu0
        %v1948 = vadd.f32 %v1257, %v1947
        %v1949 = vpop.f32.mrb[0].mxu0
        %v1950 = vadd.f32 %v1261, %v1949
        %1951 = vmatprep.mubr.bf16.mxu0 0
        %1952 = vmatmul.mubr.bf16.gmra.mrb[0].mxu0 %v1176
        %v1953 = vpop.f32.mrb[0].mxu0
        %v1954 = vadd.f32 %v1257, %v1953
        %v1955 = vpop.f32.mrb[0].mxu0
        %v1956 = vadd.f32 %v1261, %v1955
        %v1957 = vpop.f32.mrb[0].mxu0
        %v1958 = vadd.f32 %v1257, %v1957
        %v1959 = vpop.f32.mrb[0].mxu0
        %v1960 = vadd.f32 %v1261, %v1959
        %1961 = vmatprep.mubr.bf16.mxu0 0
        %1962 = vmatmul.mubr.bf16.gmra.mrb[0].mxu0 %v1177
        %v1963 = vpop.f32.mrb[0].mxu0
        %v1964 = vadd.f32 %v1257, %v1963
        %v1965 = vpop.f32.mrb[0].mxu0
        %v1966 = vadd.f32 %v1261, %v1965
        %v1967 = vpop.f32.mrb[0].mxu0
        %v1968 = vadd.f32 %v1257, %v1967
        %v1969 = vpop.f32.mrb[0].mxu0
        %v1970 = vadd.f32 %v1261, %v1969
        %1971 = vmatprep.mubr.bf16.mxu0 0
        %1972 = vmatmul.mubr.bf16.gmra.mrb[0].mxu0 %v1178
        %v1973 = vpop.f32.mrb[0].mxu0
        %v1974 = vadd.f32 %v1257, %v1973
        %v1975 = vpop.f32.mrb[0].mxu0
        %v1976 = vadd.f32 %v1261, %v1975
        %v1977 = vpop.f32.mrb[0].mxu0
        %v1978 = vadd.f32 %v1257, %v1977
        %v1979 = vpop.f32.mrb[0].mxu0
        %v1980 = vadd.f32 %v1261, %v1979
        %1981 = vmatprep.mubr.bf16.mxu0 0
        %1982 = vmatmul.mubr.bf16.gmra.mrb[0].mxu0 %v1179
        %v1983 = vpop.f32.mrb[0].mxu0
        %v1984 = vadd.f32 %v1257, %v1983
        %v1985 = vpop.f32.mrb[0].mxu0
        %v1986 = vadd.f32 %v1261, %v1985
        %v1987 = vpop.f32.mrb[0].mxu0
        %v1988 = vadd.f32 %v1257, %v1987
        %v1989 = vpop.f32.mrb[0].mxu0
        %v1990 = vadd.f32 %v1261, %v1989
        %1991 = vdwg.mxu0
        %1992 = vmatprep.subr.bf16.mxu0 %v1483
        %1993 = vmatpush1.bf16.msra.mxu0 %v1482
        %1994 = vmatprep.subr.bf16.mxu0 %v1491
        %1995 = vmatpush1.bf16.msra.mxu0 %v1490
        %1996 = vmatprep.subr.bf16.mxu0 %v1499
        %1997 = vmatpush1.bf16.msra.mxu0 %v1498
        %1998 = vmatprep.subr.bf16.mxu0 %v1507
        %1999 = vmatpush1.bf16.msra.mxu0 %v1506
        %2000 = vmatprep.subr.bf16.mxu0 %v1515
        %2001 = vmatpush1.bf16.msra.mxu0 %v1514
        %2002 = vmatprep.subr.bf16.mxu0 %v1523
        %2003 = vmatpush1.bf16.msra.mxu0 %v1522
        %2004 = vmatprep.subr.bf16.mxu0 %v1531
        %2005 = vmatpush1.bf16.msra.mxu0 %v1530
        %2006 = vmatprep.subr.bf16.mxu0 %v1539
        %2007 = vmatpush1.bf16.msra.mxu0 %v1538
        %2008 = vmatprep.subr.bf16.mxu0 0
        %2009 = vmatpush1.bf16.msra.mxu0 0
        %2010 = vmatprep.subr.bf16.mxu0 0
        %2011 = vmatpush1.bf16.msra.mxu0 0
        %2012 = vmatprep.subr.bf16.mxu0 0
        %2013 = vmatpush1.bf16.msra.mxu0 0
        %2014 = vmatprep.subr.bf16.mxu0 0
        %2015 = vmatpush1.bf16.msra.mxu0 0
        %2016 = vmatprep.subr.bf16.mxu0 0
        %2017 = vmatpush1.bf16.msra.mxu0 0
        %2018 = vmatprep.subr.bf16.mxu0 0
        %2019 = vmatpush1.bf16.msra.mxu0 0
        %2020 = vmatprep.subr.bf16.mxu0 0
        %2021 = vmatpush1.bf16.msra.mxu0 0
        %2022 = vmatprep.subr.bf16.mxu0 0
        %2023 = vmatpush1.bf16.msra.mxu0 0
        %2024 = vmatprep.mubr.bf16.mxu0 0
        %2025 = vmatmul.mubr.bf16.gmra.mrb[0].mxu0 %v1164
        %v2026 = vpop.f32.mrb[0].mxu0
        %v2027 = vadd.f32 %v1265, %v2026
        %v2028 = vpop.f32.mrb[0].mxu0
        %v2029 = vadd.f32 %v1269, %v2028
        %v2030 = vpop.f32.mrb[0].mxu0
        %v2031 = vadd.f32 %v1265, %v2030
        %v2032 = vpop.f32.mrb[0].mxu0
        %v2033 = vadd.f32 %v1269, %v2032
        %2034 = vmatprep.mubr.bf16.mxu0 0
        %2035 = vmatmul.mubr.bf16.gmra.mrb[0].mxu0 %v1165
        %v2036 = vpop.f32.mrb[0].mxu0
        %v2037 = vadd.f32 %v1265, %v2036
        %v2038 = vpop.f32.mrb[0].mxu0
        %v2039 = vadd.f32 %v1269, %v2038
        %v2040 = vpop.f32.mrb[0].mxu0
        %v2041 = vadd.f32 %v1265, %v2040
        %v2042 = vpop.f32.mrb[0].mxu0
        %v2043 = vadd.f32 %v1269, %v2042
        %2044 = vmatprep.mubr.bf16.mxu0 0
        %2045 = vmatmul.mubr.bf16.gmra.mrb[0].mxu0 %v1166
        %v2046 = vpop.f32.mrb[0].mxu0
        %v2047 = vadd.f32 %v1265, %v2046
        %v2048 = vpop.f32.mrb[0].mxu0
        %v2049 = vadd.f32 %v1269, %v2048
        %v2050 = vpop.f32.mrb[0].mxu0
        %v2051 = vadd.f32 %v1265, %v2050
        %v2052 = vpop.f32.mrb[0].mxu0
        %v2053 = vadd.f32 %v1269, %v2052
        %2054 = vmatprep.mubr.bf16.mxu0 0
        %2055 = vmatmul.mubr.bf16.gmra.mrb[0].mxu0 %v1167
        %v2056 = vpop.f32.mrb[0].mxu0
        %v2057 = vadd.f32 %v1265, %v2056
        %v2058 = vpop.f32.mrb[0].mxu0
        %v2059 = vadd.f32 %v1269, %v2058
        %v2060 = vpop.f32.mrb[0].mxu0
        %v2061 = vadd.f32 %v1265, %v2060
        %v2062 = vpop.f32.mrb[0].mxu0
        %v2063 = vadd.f32 %v1269, %v2062
        %2064 = vmatprep.mubr.bf16.mxu0 0
        %2065 = vmatmul.mubr.bf16.gmra.mrb[0].mxu0 %v1168
        %v2066 = vpop.f32.mrb[0].mxu0
        %v2067 = vadd.f32 %v1265, %v2066
        %v2068 = vpop.f32.mrb[0].mxu0
        %v2069 = vadd.f32 %v1269, %v2068
        %v2070 = vpop.f32.mrb[0].mxu0
        %v2071 = vadd.f32 %v1265, %v2070
        %v2072 = vpop.f32.mrb[0].mxu0
        %v2073 = vadd.f32 %v1269, %v2072
        %2074 = vmatprep.mubr.bf16.mxu0 0
        %2075 = vmatmul.mubr.bf16.gmra.mrb[0].mxu0 %v1169
        %v2076 = vpop.f32.mrb[0].mxu0
        %v2077 = vadd.f32 %v1265, %v2076
        %v2078 = vpop.f32.mrb[0].mxu0
        %v2079 = vadd.f32 %v1269, %v2078
        %v2080 = vpop.f32.mrb[0].mxu0
        %v2081 = vadd.f32 %v1265, %v2080
        %v2082 = vpop.f32.mrb[0].mxu0
        %v2083 = vadd.f32 %v1269, %v2082
        %2084 = vmatprep.mubr.bf16.mxu0 0
        %2085 = vmatmul.mubr.bf16.gmra.mrb[0].mxu0 %v1170
        %v2086 = vpop.f32.mrb[0].mxu0
        %v2087 = vadd.f32 %v1265, %v2086
        %v2088 = vpop.f32.mrb[0].mxu0
        %v2089 = vadd.f32 %v1269, %v2088
        %v2090 = vpop.f32.mrb[0].mxu0
        %v2091 = vadd.f32 %v1265, %v2090
        %v2092 = vpop.f32.mrb[0].mxu0
        %v2093 = vadd.f32 %v1269, %v2092
        %2094 = vmatprep.mubr.bf16.mxu0 0
        %2095 = vmatmul.mubr.bf16.gmra.mrb[0].mxu0 %v1171
        %v2096 = vpop.f32.mrb[0].mxu0
        %v2097 = vadd.f32 %v1265, %v2096
        %v2098 = vpop.f32.mrb[0].mxu0
        %v2099 = vadd.f32 %v1269, %v2098
        %v2100 = vpop.f32.mrb[0].mxu0
        %v2101 = vadd.f32 %v1265, %v2100
        %v2102 = vpop.f32.mrb[0].mxu0
        %v2103 = vadd.f32 %v1269, %v2102
        %2104 = vmatprep.mubr.bf16.mxu0 0
        %2105 = vmatmul.mubr.bf16.gmra.mrb[0].mxu0 %v1172
        %v2106 = vpop.f32.mrb[0].mxu0
        %v2107 = vadd.f32 %v1265, %v2106
        %v2108 = vpop.f32.mrb[0].mxu0
        %v2109 = vadd.f32 %v1269, %v2108
        %v2110 = vpop.f32.mrb[0].mxu0
        %v2111 = vadd.f32 %v1265, %v2110
        %v2112 = vpop.f32.mrb[0].mxu0
        %v2113 = vadd.f32 %v1269, %v2112
        %2114 = vmatprep.mubr.bf16.mxu0 0
        %2115 = vmatmul.mubr.bf16.gmra.mrb[0].mxu0 %v1173
        %v2116 = vpop.f32.mrb[0].mxu0
        %v2117 = vadd.f32 %v1265, %v2116
        %v2118 = vpop.f32.mrb[0].mxu0
        %v2119 = vadd.f32 %v1269, %v2118
        %v2120 = vpop.f32.mrb[0].mxu0
        %v2121 = vadd.f32 %v1265, %v2120
        %v2122 = vpop.f32.mrb[0].mxu0
        %v2123 = vadd.f32 %v1269, %v2122
        %2124 = vmatprep.mubr.bf16.mxu0 0
        %2125 = vmatmul.mubr.bf16.gmra.mrb[0].mxu0 %v1174
        %v2126 = vpop.f32.mrb[0].mxu0
        %v2127 = vadd.f32 %v1265, %v2126
        %v2128 = vpop.f32.mrb[0].mxu0
        %v2129 = vadd.f32 %v1269, %v2128
        %v2130 = vpop.f32.mrb[0].mxu0
        %v2131 = vadd.f32 %v1265, %v2130
        %v2132 = vpop.f32.mrb[0].mxu0
        %v2133 = vadd.f32 %v1269, %v2132
        %2134 = vmatprep.mubr.bf16.mxu0 0
        %2135 = vmatmul.mubr.bf16.gmra.mrb[0].mxu0 %v1175
        %v2136 = vpop.f32.mrb[0].mxu0
        %v2137 = vadd.f32 %v1265, %v2136
        %v2138 = vpop.f32.mrb[0].mxu0
        %v2139 = vadd.f32 %v1269, %v2138
        %v2140 = vpop.f32.mrb[0].mxu0
        %v2141 = vadd.f32 %v1265, %v2140
        %v2142 = vpop.f32.mrb[0].mxu0
        %v2143 = vadd.f32 %v1269, %v2142
        %2144 = vmatprep.mubr.bf16.mxu0 0
        %2145 = vmatmul.mubr.bf16.gmra.mrb[0].mxu0 %v1176
        %v2146 = vpop.f32.mrb[0].mxu0
        %v2147 = vadd.f32 %v1265, %v2146
        %v2148 = vpop.f32.mrb[0].mxu0
        %v2149 = vadd.f32 %v1269, %v2148
        %v2150 = vpop.f32.mrb[0].mxu0
        %v2151 = vadd.f32 %v1265, %v2150
        %v2152 = vpop.f32.mrb[0].mxu0
        %v2153 = vadd.f32 %v1269, %v2152
        %2154 = vmatprep.mubr.bf16.mxu0 0
        %2155 = vmatmul.mubr.bf16.gmra.mrb[0].mxu0 %v1177
        %v2156 = vpop.f32.mrb[0].mxu0
        %v2157 = vadd.f32 %v1265, %v2156
        %v2158 = vpop.f32.mrb[0].mxu0
        %v2159 = vadd.f32 %v1269, %v2158
        %v2160 = vpop.f32.mrb[0].mxu0
        %v2161 = vadd.f32 %v1265, %v2160
        %v2162 = vpop.f32.mrb[0].mxu0
        %v2163 = vadd.f32 %v1269, %v2162
        %2164 = vmatprep.mubr.bf16.mxu0 0
        %2165 = vmatmul.mubr.bf16.gmra.mrb[0].mxu0 %v1178
        %v2166 = vpop.f32.mrb[0].mxu0
        %v2167 = vadd.f32 %v1265, %v2166
        %v2168 = vpop.f32.mrb[0].mxu0
        %v2169 = vadd.f32 %v1269, %v2168
        %v2170 = vpop.f32.mrb[0].mxu0
        %v2171 = vadd.f32 %v1265, %v2170
        %v2172 = vpop.f32.mrb[0].mxu0
        %v2173 = vadd.f32 %v1269, %v2172
        %2174 = vmatprep.mubr.bf16.mxu0 0
        %2175 = vmatmul.mubr.bf16.gmra.mrb[0].mxu0 %v1179
        %v2176 = vpop.f32.mrb[0].mxu0
        %v2177 = vadd.f32 %v1265, %v2176
        %v2178 = vpop.f32.mrb[0].mxu0
        %v2179 = vadd.f32 %v1269, %v2178
        %v2180 = vpop.f32.mrb[0].mxu0
        %v2181 = vadd.f32 %v1265, %v2180
        %v2182 = vpop.f32.mrb[0].mxu0
        %v2183 = vadd.f32 %v1269, %v2182
        %2184 = vdwg.mxu0
        %2185 = vmatprep.subr.bf16.mxu0 %v1485
        %2186 = vmatpush1.bf16.msra.mxu0 %v1484
        %2187 = vmatprep.subr.bf16.mxu0 %v1493
        %2188 = vmatpush1.bf16.msra.mxu0 %v1492
        %2189 = vmatprep.subr.bf16.mxu0 %v1501
        %2190 = vmatpush1.bf16.msra.mxu0 %v1500
        %2191 = vmatprep.subr.bf16.mxu0 %v1509
        %2192 = vmatpush1.bf16.msra.mxu0 %v1508
        %2193 = vmatprep.subr.bf16.mxu0 %v1517
        %2194 = vmatpush1.bf16.msra.mxu0 %v1516
        %2195 = vmatprep.subr.bf16.mxu0 %v1525
        %2196 = vmatpush1.bf16.msra.mxu0 %v1524
        %2197 = vmatprep.subr.bf16.mxu0 %v1533
        %2198 = vmatpush1.bf16.msra.mxu0 %v1532
        %2199 = vmatprep.subr.bf16.mxu0 %v1541
        %2200 = vmatpush1.bf16.msra.mxu0 %v1540
        %2201 = vmatprep.subr.bf16.mxu0 0
        %2202 = vmatpush1.bf16.msra.mxu0 0
        %2203 = vmatprep.subr.bf16.mxu0 0
        %2204 = vmatpush1.bf16.msra.mxu0 0
        %2205 = vmatprep.subr.bf16.mxu0 0
        %2206 = vmatpush1.bf16.msra.mxu0 0
        %2207 = vmatprep.subr.bf16.mxu0 0
        %2208 = vmatpush1.bf16.msra.mxu0 0
        %2209 = vmatprep.subr.bf16.mxu0 0
        %2210 = vmatpush1.bf16.msra.mxu0 0
        %2211 = vmatprep.subr.bf16.mxu0 0
        %2212 = vmatpush1.bf16.msra.mxu0 0
        %2213 = vmatprep.subr.bf16.mxu0 0
        %2214 = vmatpush1.bf16.msra.mxu0 0
        %2215 = vmatprep.subr.bf16.mxu0 0
        %2216 = vmatpush1.bf16.msra.mxu0 0
        %2217 = vmatprep.mubr.bf16.mxu0 0
        %2218 = vmatmul.mubr.bf16.gmra.mrb[0].mxu0 %v1164
        %v2219 = vpop.f32.mrb[0].mxu0
        %v2220 = vadd.f32 %v1273, %v2219
        %v2221 = vpop.f32.mrb[0].mxu0
        %v2222 = vadd.f32 %v1277, %v2221
        %v2223 = vpop.f32.mrb[0].mxu0
        %v2224 = vadd.f32 %v1273, %v2223
        %v2225 = vpop.f32.mrb[0].mxu0
        %v2226 = vadd.f32 %v1277, %v2225
        %2227 = vmatprep.mubr.bf16.mxu0 0
        %2228 = vmatmul.mubr.bf16.gmra.mrb[0].mxu0 %v1165
        %v2229 = vpop.f32.mrb[0].mxu0
        %v2230 = vadd.f32 %v1273, %v2229
        %v2231 = vpop.f32.mrb[0].mxu0
        %v2232 = vadd.f32 %v1277, %v2231
        %v2233 = vpop.f32.mrb[0].mxu0
        %v2234 = vadd.f32 %v1273, %v2233
        %v2235 = vpop.f32.mrb[0].mxu0
        %v2236 = vadd.f32 %v1277, %v2235
        %2237 = vmatprep.mubr.bf16.mxu0 0
        %2238 = vmatmul.mubr.bf16.gmra.mrb[0].mxu0 %v1166
        %v2239 = vpop.f32.mrb[0].mxu0
        %v2240 = vadd.f32 %v1273, %v2239
        %v2241 = vpop.f32.mrb[0].mxu0
        %v2242 = vadd.f32 %v1277, %v2241
        %v2243 = vpop.f32.mrb[0].mxu0
        %v2244 = vadd.f32 %v1273, %v2243
        %v2245 = vpop.f32.mrb[0].mxu0
        %v2246 = vadd.f32 %v1277, %v2245
        %2247 = vmatprep.mubr.bf16.mxu0 0
        %2248 = vmatmul.mubr.bf16.gmra.mrb[0].mxu0 %v1167
        %v2249 = vpop.f32.mrb[0].mxu0
        %v2250 = vadd.f32 %v1273, %v2249
        %v2251 = vpop.f32.mrb[0].mxu0
        %v2252 = vadd.f32 %v1277, %v2251
        %v2253 = vpop.f32.mrb[0].mxu0
        %v2254 = vadd.f32 %v1273, %v2253
        %v2255 = vpop.f32.mrb[0].mxu0
        %v2256 = vadd.f32 %v1277, %v2255
        %2257 = vmatprep.mubr.bf16.mxu0 0
        %2258 = vmatmul.mubr.bf16.gmra.mrb[0].mxu0 %v1168
        %v2259 = vpop.f32.mrb[0].mxu0
        %v2260 = vadd.f32 %v1273, %v2259
        %v2261 = vpop.f32.mrb[0].mxu0
        %v2262 = vadd.f32 %v1277, %v2261
        %v2263 = vpop.f32.mrb[0].mxu0
        %v2264 = vadd.f32 %v1273, %v2263
        %v2265 = vpop.f32.mrb[0].mxu0
        %v2266 = vadd.f32 %v1277, %v2265
        %2267 = vmatprep.mubr.bf16.mxu0 0
        %2268 = vmatmul.mubr.bf16.gmra.mrb[0].mxu0 %v1169
        %v2269 = vpop.f32.mrb[0].mxu0
        %v2270 = vadd.f32 %v1273, %v2269
        %v2271 = vpop.f32.mrb[0].mxu0
        %v2272 = vadd.f32 %v1277, %v2271
        %v2273 = vpop.f32.mrb[0].mxu0
        %v2274 = vadd.f32 %v1273, %v2273
        %v2275 = vpop.f32.mrb[0].mxu0
        %v2276 = vadd.f32 %v1277, %v2275
        %2277 = vmatprep.mubr.bf16.mxu0 0
        %2278 = vmatmul.mubr.bf16.gmra.mrb[0].mxu0 %v1170
        %v2279 = vpop.f32.mrb[0].mxu0
        %v2280 = vadd.f32 %v1273, %v2279
        %v2281 = vpop.f32.mrb[0].mxu0
        %v2282 = vadd.f32 %v1277, %v2281
        %v2283 = vpop.f32.mrb[0].mxu0
        %v2284 = vadd.f32 %v1273, %v2283
        %v2285 = vpop.f32.mrb[0].mxu0
        %v2286 = vadd.f32 %v1277, %v2285
        %2287 = vmatprep.mubr.bf16.mxu0 0
        %2288 = vmatmul.mubr.bf16.gmra.mrb[0].mxu0 %v1171
        %v2289 = vpop.f32.mrb[0].mxu0
        %v2290 = vadd.f32 %v1273, %v2289
        %v2291 = vpop.f32.mrb[0].mxu0
        %v2292 = vadd.f32 %v1277, %v2291
        %v2293 = vpop.f32.mrb[0].mxu0
        %v2294 = vadd.f32 %v1273, %v2293
        %v2295 = vpop.f32.mrb[0].mxu0
        %v2296 = vadd.f32 %v1277, %v2295
        %2297 = vmatprep.mubr.bf16.mxu0 0
        %2298 = vmatmul.mubr.bf16.gmra.mrb[0].mxu0 %v1172
        %v2299 = vpop.f32.mrb[0].mxu0
        %v2300 = vadd.f32 %v1273, %v2299
        %v2301 = vpop.f32.mrb[0].mxu0
        %v2302 = vadd.f32 %v1277, %v2301
        %v2303 = vpop.f32.mrb[0].mxu0
        %v2304 = vadd.f32 %v1273, %v2303
        %v2305 = vpop.f32.mrb[0].mxu0
        %v2306 = vadd.f32 %v1277, %v2305
        %2307 = vmatprep.mubr.bf16.mxu0 0
        %2308 = vmatmul.mubr.bf16.gmra.mrb[0].mxu0 %v1173
        %v2309 = vpop.f32.mrb[0].mxu0
        %v2310 = vadd.f32 %v1273, %v2309
        %v2311 = vpop.f32.mrb[0].mxu0
        %v2312 = vadd.f32 %v1277, %v2311
        %v2313 = vpop.f32.mrb[0].mxu0
        %v2314 = vadd.f32 %v1273, %v2313
        %v2315 = vpop.f32.mrb[0].mxu0
        %v2316 = vadd.f32 %v1277, %v2315
        %2317 = vmatprep.mubr.bf16.mxu0 0
        %2318 = vmatmul.mubr.bf16.gmra.mrb[0].mxu0 %v1174
        %v2319 = vpop.f32.mrb[0].mxu0
        %v2320 = vadd.f32 %v1273, %v2319
        %v2321 = vpop.f32.mrb[0].mxu0
        %v2322 = vadd.f32 %v1277, %v2321
        %v2323 = vpop.f32.mrb[0].mxu0
        %v2324 = vadd.f32 %v1273, %v2323
        %v2325 = vpop.f32.mrb[0].mxu0
        %v2326 = vadd.f32 %v1277, %v2325
        %2327 = vmatprep.mubr.bf16.mxu0 0
        %2328 = vmatmul.mubr.bf16.gmra.mrb[0].mxu0 %v1175
        %v2329 = vpop.f32.mrb[0].mxu0
        %v2330 = vadd.f32 %v1273, %v2329
        %v2331 = vpop.f32.mrb[0].mxu0
        %v2332 = vadd.f32 %v1277, %v2331
        %v2333 = vpop.f32.mrb[0].mxu0
        %v2334 = vadd.f32 %v1273, %v2333
        %v2335 = vpop.f32.mrb[0].mxu0
        %v2336 = vadd.f32 %v1277, %v2335
        %2337 = vmatprep.mubr.bf16.mxu0 0
        %2338 = vmatmul.mubr.bf16.gmra.mrb[0].mxu0 %v1176
        %v2339 = vpop.f32.mrb[0].mxu0
        %v2340 = vadd.f32 %v1273, %v2339
        %v2341 = vpop.f32.mrb[0].mxu0
        %v2342 = vadd.f32 %v1277, %v2341
        %v2343 = vpop.f32.mrb[0].mxu0
        %v2344 = vadd.f32 %v1273, %v2343
        %v2345 = vpop.f32.mrb[0].mxu0
        %v2346 = vadd.f32 %v1277, %v2345
        %2347 = vmatprep.mubr.bf16.mxu0 0
        %2348 = vmatmul.mubr.bf16.gmra.mrb[0].mxu0 %v1177
        %v2349 = vpop.f32.mrb[0].mxu0
        %v2350 = vadd.f32 %v1273, %v2349
        %v2351 = vpop.f32.mrb[0].mxu0
        %v2352 = vadd.f32 %v1277, %v2351
        %v2353 = vpop.f32.mrb[0].mxu0
        %v2354 = vadd.f32 %v1273, %v2353
        %v2355 = vpop.f32.mrb[0].mxu0
        %v2356 = vadd.f32 %v1277, %v2355
        %2357 = vmatprep.mubr.bf16.mxu0 0
        %2358 = vmatmul.mubr.bf16.gmra.mrb[0].mxu0 %v1178
        %v2359 = vpop.f32.mrb[0].mxu0
        %v2360 = vadd.f32 %v1273, %v2359
        %v2361 = vpop.f32.mrb[0].mxu0
        %v2362 = vadd.f32 %v1277, %v2361
        %v2363 = vpop.f32.mrb[0].mxu0
        %v2364 = vadd.f32 %v1273, %v2363
        %v2365 = vpop.f32.mrb[0].mxu0
        %v2366 = vadd.f32 %v1277, %v2365
        %2367 = vmatprep.mubr.bf16.mxu0 0
        %2368 = vmatmul.mubr.bf16.gmra.mrb[0].mxu0 %v1179
        %v2369 = vpop.f32.mrb[0].mxu0
        %v2370 = vadd.f32 %v1273, %v2369
        %v2371 = vpop.f32.mrb[0].mxu0
        %v2372 = vadd.f32 %v1277, %v2371
        %v2373 = vpop.f32.mrb[0].mxu0
        %v2374 = vadd.f32 %v1273, %v2373
        %v2375 = vpop.f32.mrb[0].mxu0
        %v2376 = vadd.f32 %v1277, %v2375
        %2377 = vdwg.mxu0
        %v2378 = vmax.f32 %v1641, %v1645
        %v2379 = vmax.f32 %v2378, %v1651
        %v2380 = vmax.f32 %v2379, %v1655
        %v2381 = vmax.f32 %v2380, %v1661
        %v2382 = vmax.f32 %v2381, %v1665
        %v2383 = vmax.f32 %v2382, %v1671
        %v2384 = vmax.f32 %v2383, %v1675
        %v2385 = vmax.f32 %v2384, %v1681
        %v2386 = vmax.f32 %v2385, %v1685
        %v2387 = vmax.f32 %v2386, %v1691
        %v2388 = vmax.f32 %v2387, %v1695
        %v2389 = vmax.f32 %v2388, %v1701
        %v2390 = vmax.f32 %v2389, %v1705
        %v2391 = vmax.f32 %v2390, %v1711
        %v2392 = vmax.f32 %v2391, %v1715
        %v2393 = vmax.f32 %v2392, %v1721
        %v2394 = vmax.f32 %v2393, %v1725
        %v2395 = vmax.f32 %v2394, %v1731
        %v2396 = vmax.f32 %v2395, %v1735
        %v2397 = vmax.f32 %v2396, %v1741
        %v2398 = vmax.f32 %v2397, %v1745
        %v2399 = vmax.f32 %v2398, %v1751
        %v2400 = vmax.f32 %v2399, %v1755
        %v2401 = vmax.f32 %v2400, %v1761
        %v2402 = vmax.f32 %v2401, %v1765
        %v2403 = vmax.f32 %v2402, %v1771
        %v2404 = vmax.f32 %v2403, %v1775
        %v2405 = vmax.f32 %v2404, %v1781
        %v2406 = vmax.f32 %v2405, %v1785
        %v2407 = vmax.f32 %v2406, %v1791
        %v2408 = vmax.f32 %v2407, %v1795
        %v2409 = vrot.slane %v2408, 4
        %v2410 = vmax.f32 %v2408, %v2409
        %v2411 = vrot.slane %v2410, 2
        %v2412 = vmax.f32 %v2410, %v2411
        %v2413 = vrot.slane %v2412, 1
        %v2414 = vmax.f32 %v2412, %v2413
        %v2415 = vmax.f32 %v1643, %v1647
        %v2416 = vmax.f32 %v2415, %v1653
        %v2417 = vmax.f32 %v2416, %v1657
        %v2418 = vmax.f32 %v2417, %v1663
        %v2419 = vmax.f32 %v2418, %v1667
        %v2420 = vmax.f32 %v2419, %v1673
        %v2421 = vmax.f32 %v2420, %v1677
        %v2422 = vmax.f32 %v2421, %v1683
        %v2423 = vmax.f32 %v2422, %v1687
        %v2424 = vmax.f32 %v2423, %v1693
        %v2425 = vmax.f32 %v2424, %v1697
        %v2426 = vmax.f32 %v2425, %v1703
        %v2427 = vmax.f32 %v2426, %v1707
        %v2428 = vmax.f32 %v2427, %v1713
        %v2429 = vmax.f32 %v2428, %v1717
        %v2430 = vmax.f32 %v2429, %v1723
        %v2431 = vmax.f32 %v2430, %v1727
        %v2432 = vmax.f32 %v2431, %v1733
        %v2433 = vmax.f32 %v2432, %v1737
        %v2434 = vmax.f32 %v2433, %v1743
        %v2435 = vmax.f32 %v2434, %v1747
        %v2436 = vmax.f32 %v2435, %v1753
        %v2437 = vmax.f32 %v2436, %v1757
        %v2438 = vmax.f32 %v2437, %v1763
        %v2439 = vmax.f32 %v2438, %v1767
        %v2440 = vmax.f32 %v2439, %v1773
        %v2441 = vmax.f32 %v2440, %v1777
        %v2442 = vmax.f32 %v2441, %v1783
        %v2443 = vmax.f32 %v2442, %v1787
        %v2444 = vmax.f32 %v2443, %v1793
        %v2445 = vmax.f32 %v2444, %v1797
        %v2446 = vrot.slane %v2445, 4
        %v2447 = vmax.f32 %v2445, %v2446
        %v2448 = vrot.slane %v2447, 2
        %v2449 = vmax.f32 %v2447, %v2448
        %v2450 = vrot.slane %v2449, 1
        %v2451 = vmax.f32 %v2449, %v2450
        %v2452 = vmax.f32 %v1834, %v1838
        %v2453 = vmax.f32 %v2452, %v1844
        %v2454 = vmax.f32 %v2453, %v1848
        %v2455 = vmax.f32 %v2454, %v1854
        %v2456 = vmax.f32 %v2455, %v1858
        %v2457 = vmax.f32 %v2456, %v1864
        %v2458 = vmax.f32 %v2457, %v1868
        %v2459 = vmax.f32 %v2458, %v1874
        %v2460 = vmax.f32 %v2459, %v1878
        %v2461 = vmax.f32 %v2460, %v1884
        %v2462 = vmax.f32 %v2461, %v1888
        %v2463 = vmax.f32 %v2462, %v1894
        %v2464 = vmax.f32 %v2463, %v1898
        %v2465 = vmax.f32 %v2464, %v1904
        %v2466 = vmax.f32 %v2465, %v1908
        %v2467 = vmax.f32 %v2466, %v1914
        %v2468 = vmax.f32 %v2467, %v1918
        %v2469 = vmax.f32 %v2468, %v1924
        %v2470 = vmax.f32 %v2469, %v1928
        %v2471 = vmax.f32 %v2470, %v1934
        %v2472 = vmax.f32 %v2471, %v1938
        %v2473 = vmax.f32 %v2472, %v1944
        %v2474 = vmax.f32 %v2473, %v1948
        %v2475 = vmax.f32 %v2474, %v1954
        %v2476 = vmax.f32 %v2475, %v1958
        %v2477 = vmax.f32 %v2476, %v1964
        %v2478 = vmax.f32 %v2477, %v1968
        %v2479 = vmax.f32 %v2478, %v1974
        %v2480 = vmax.f32 %v2479, %v1978
        %v2481 = vmax.f32 %v2480, %v1984
        %v2482 = vmax.f32 %v2481, %v1988
        %v2483 = vrot.slane %v2482, 4
        %v2484 = vmax.f32 %v2482, %v2483
        %v2485 = vrot.slane %v2484, 2
        %v2486 = vmax.f32 %v2484, %v2485
        %v2487 = vrot.slane %v2486, 1
        %v2488 = vmax.f32 %v2486, %v2487
        %v2489 = vmax.f32 %v1836, %v1840
        %v2490 = vmax.f32 %v2489, %v1846
        %v2491 = vmax.f32 %v2490, %v1850
        %v2492 = vmax.f32 %v2491, %v1856
        %v2493 = vmax.f32 %v2492, %v1860
        %v2494 = vmax.f32 %v2493, %v1866
        %v2495 = vmax.f32 %v2494, %v1870
        %v2496 = vmax.f32 %v2495, %v1876
        %v2497 = vmax.f32 %v2496, %v1880
        %v2498 = vmax.f32 %v2497, %v1886
        %v2499 = vmax.f32 %v2498, %v1890
        %v2500 = vmax.f32 %v2499, %v1896
        %v2501 = vmax.f32 %v2500, %v1900
        %v2502 = vmax.f32 %v2501, %v1906
        %v2503 = vmax.f32 %v2502, %v1910
        %v2504 = vmax.f32 %v2503, %v1916
        %v2505 = vmax.f32 %v2504, %v1920
        %v2506 = vmax.f32 %v2505, %v1926
        %v2507 = vmax.f32 %v2506, %v1930
        %v2508 = vmax.f32 %v2507, %v1936
        %v2509 = vmax.f32 %v2508, %v1940
        %v2510 = vmax.f32 %v2509, %v1946
        %v2511 = vmax.f32 %v2510, %v1950
        %v2512 = vmax.f32 %v2511, %v1956
        %v2513 = vmax.f32 %v2512, %v1960
        %v2514 = vmax.f32 %v2513, %v1966
        %v2515 = vmax.f32 %v2514, %v1970
        %v2516 = vmax.f32 %v2515, %v1976
        %v2517 = vmax.f32 %v2516, %v1980
        %v2518 = vmax.f32 %v2517, %v1986
        %v2519 = vmax.f32 %v2518, %v1990
        %v2520 = vrot.slane %v2519, 4
        %v2521 = vmax.f32 %v2519, %v2520
        %v2522 = vrot.slane %v2521, 2
        %v2523 = vmax.f32 %v2521, %v2522
        %v2524 = vrot.slane %v2523, 1
        %v2525 = vmax.f32 %v2523, %v2524
        %v2526 = vmax.f32 %v2027, %v2031
        %v2527 = vmax.f32 %v2526, %v2037
        %v2528 = vmax.f32 %v2527, %v2041
        %v2529 = vmax.f32 %v2528, %v2047
        %v2530 = vmax.f32 %v2529, %v2051
        %v2531 = vmax.f32 %v2530, %v2057
        %v2532 = vmax.f32 %v2531, %v2061
        %v2533 = vmax.f32 %v2532, %v2067
        %v2534 = vmax.f32 %v2533, %v2071
        %v2535 = vmax.f32 %v2534, %v2077
        %v2536 = vmax.f32 %v2535, %v2081
        %v2537 = vmax.f32 %v2536, %v2087
        %v2538 = vmax.f32 %v2537, %v2091
        %v2539 = vmax.f32 %v2538, %v2097
        %v2540 = vmax.f32 %v2539, %v2101
        %v2541 = vmax.f32 %v2540, %v2107
        %v2542 = vmax.f32 %v2541, %v2111
        %v2543 = vmax.f32 %v2542, %v2117
        %v2544 = vmax.f32 %v2543, %v2121
        %v2545 = vmax.f32 %v2544, %v2127
        %v2546 = vmax.f32 %v2545, %v2131
        %v2547 = vmax.f32 %v2546, %v2137
        %v2548 = vmax.f32 %v2547, %v2141
        %v2549 = vmax.f32 %v2548, %v2147
        %v2550 = vmax.f32 %v2549, %v2151
        %v2551 = vmax.f32 %v2550, %v2157
        %v2552 = vmax.f32 %v2551, %v2161
        %v2553 = vmax.f32 %v2552, %v2167
        %v2554 = vmax.f32 %v2553, %v2171
        %v2555 = vmax.f32 %v2554, %v2177
        %v2556 = vmax.f32 %v2555, %v2181
        %v2557 = vrot.slane %v2556, 4
        %v2558 = vmax.f32 %v2556, %v2557
        %v2559 = vrot.slane %v2558, 2
        %v2560 = vmax.f32 %v2558, %v2559
        %v2561 = vrot.slane %v2560, 1
        %v2562 = vmax.f32 %v2560, %v2561
        %v2563 = vmax.f32 %v2029, %v2033
        %v2564 = vmax.f32 %v2563, %v2039
        %v2565 = vmax.f32 %v2564, %v2043
        %v2566 = vmax.f32 %v2565, %v2049
        %v2567 = vmax.f32 %v2566, %v2053
        %v2568 = vmax.f32 %v2567, %v2059
        %v2569 = vmax.f32 %v2568, %v2063
        %v2570 = vmax.f32 %v2569, %v2069
        %v2571 = vmax.f32 %v2570, %v2073
        %v2572 = vmax.f32 %v2571, %v2079
        %v2573 = vmax.f32 %v2572, %v2083
        %v2574 = vmax.f32 %v2573, %v2089
        %v2575 = vmax.f32 %v2574, %v2093
        %v2576 = vmax.f32 %v2575, %v2099
        %v2577 = vmax.f32 %v2576, %v2103
        %v2578 = vmax.f32 %v2577, %v2109
        %v2579 = vmax.f32 %v2578, %v2113
        %v2580 = vmax.f32 %v2579, %v2119
        %v2581 = vmax.f32 %v2580, %v2123
        %v2582 = vmax.f32 %v2581, %v2129
        %v2583 = vmax.f32 %v2582, %v2133
        %v2584 = vmax.f32 %v2583, %v2139
        %v2585 = vmax.f32 %v2584, %v2143
        %v2586 = vmax.f32 %v2585, %v2149
        %v2587 = vmax.f32 %v2586, %v2153
        %v2588 = vmax.f32 %v2587, %v2159
        %v2589 = vmax.f32 %v2588, %v2163
        %v2590 = vmax.f32 %v2589, %v2169
        %v2591 = vmax.f32 %v2590, %v2173
        %v2592 = vmax.f32 %v2591, %v2179
        %v2593 = vmax.f32 %v2592, %v2183
        %v2594 = vrot.slane %v2593, 4
        %v2595 = vmax.f32 %v2593, %v2594
        %v2596 = vrot.slane %v2595, 2
        %v2597 = vmax.f32 %v2595, %v2596
        %v2598 = vrot.slane %v2597, 1
        %v2599 = vmax.f32 %v2597, %v2598
        %v2600 = vmax.f32 %v2220, %v2224
        %v2601 = vmax.f32 %v2600, %v2230
        %v2602 = vmax.f32 %v2601, %v2234
        %v2603 = vmax.f32 %v2602, %v2240
        %v2604 = vmax.f32 %v2603, %v2244
        %v2605 = vmax.f32 %v2604, %v2250
        %v2606 = vmax.f32 %v2605, %v2254
        %v2607 = vmax.f32 %v2606, %v2260
        %v2608 = vmax.f32 %v2607, %v2264
        %v2609 = vmax.f32 %v2608, %v2270
        %v2610 = vmax.f32 %v2609, %v2274
        %v2611 = vmax.f32 %v2610, %v2280
        %v2612 = vmax.f32 %v2611, %v2284
        %v2613 = vmax.f32 %v2612, %v2290
        %v2614 = vmax.f32 %v2613, %v2294
        %v2615 = vmax.f32 %v2614, %v2300
        %v2616 = vmax.f32 %v2615, %v2304
        %v2617 = vmax.f32 %v2616, %v2310
        %v2618 = vmax.f32 %v2617, %v2314
        %v2619 = vmax.f32 %v2618, %v2320
        %v2620 = vmax.f32 %v2619, %v2324
        %v2621 = vmax.f32 %v2620, %v2330
        %v2622 = vmax.f32 %v2621, %v2334
        %v2623 = vmax.f32 %v2622, %v2340
        %v2624 = vmax.f32 %v2623, %v2344
        %v2625 = vmax.f32 %v2624, %v2350
        %v2626 = vmax.f32 %v2625, %v2354
        %v2627 = vmax.f32 %v2626, %v2360
        %v2628 = vmax.f32 %v2627, %v2364
        %v2629 = vmax.f32 %v2628, %v2370
        %v2630 = vmax.f32 %v2629, %v2374
        %v2631 = vrot.slane %v2630, 4
        %v2632 = vmax.f32 %v2630, %v2631
        %v2633 = vrot.slane %v2632, 2
        %v2634 = vmax.f32 %v2632, %v2633
        %v2635 = vrot.slane %v2634, 1
        %v2636 = vmax.f32 %v2634, %v2635
        %v2637 = vmax.f32 %v2222, %v2226
        %v2638 = vmax.f32 %v2637, %v2232
        %v2639 = vmax.f32 %v2638, %v2236
        %v2640 = vmax.f32 %v2639, %v2242
        %v2641 = vmax.f32 %v2640, %v2246
        %v2642 = vmax.f32 %v2641, %v2252
        %v2643 = vmax.f32 %v2642, %v2256
        %v2644 = vmax.f32 %v2643, %v2262
        %v2645 = vmax.f32 %v2644, %v2266
        %v2646 = vmax.f32 %v2645, %v2272
        %v2647 = vmax.f32 %v2646, %v2276
        %v2648 = vmax.f32 %v2647, %v2282
        %v2649 = vmax.f32 %v2648, %v2286
        %v2650 = vmax.f32 %v2649, %v2292
        %v2651 = vmax.f32 %v2650, %v2296
        %v2652 = vmax.f32 %v2651, %v2302
        %v2653 = vmax.f32 %v2652, %v2306
        %v2654 = vmax.f32 %v2653, %v2312
        %v2655 = vmax.f32 %v2654, %v2316
        %v2656 = vmax.f32 %v2655, %v2322
        %v2657 = vmax.f32 %v2656, %v2326
        %v2658 = vmax.f32 %v2657, %v2332
        %v2659 = vmax.f32 %v2658, %v2336
        %v2660 = vmax.f32 %v2659, %v2342
        %v2661 = vmax.f32 %v2660, %v2346
        %v2662 = vmax.f32 %v2661, %v2352
        %v2663 = vmax.f32 %v2662, %v2356
        %v2664 = vmax.f32 %v2663, %v2362
        %v2665 = vmax.f32 %v2664, %v2366
        %v2666 = vmax.f32 %v2665, %v2372
        %v2667 = vmax.f32 %v2666, %v2376
        %v2668 = vrot.slane %v2667, 4
        %v2669 = vmax.f32 %v2667, %v2668
        %v2670 = vrot.slane %v2669, 2
        %v2671 = vmax.f32 %v2669, %v2670
        %v2672 = vrot.slane %v2671, 1
        %v2673 = vmax.f32 %v2671, %v2672
        %v2674 = vld [vmem:[#allocation2] sm:$0xff]
        %v2683 = vcombine.low %v2414, %v2451
        %v2684 = vcombine.low %v2488, %v2525
        %v2685 = vcombine.low %v2562, %v2599
        %v2686 = vcombine.low %v2636, %v2673
        %v2688 = vunpack.c.l.s4 1966171168
        %v2689 = vunpack.c.0.s8 %v2688
        %v2690 = vlaneseq
        %v2691 = vshrl.u32 %v2690, 7
        %v2692 = vsub.s32 %v2689, %v2691
        %v2693 = vrot.slane %v2683, %v2692
        %v2695 = vunpack.c.l.s4 1966171168
        %v2696 = vunpack.c.0.s8 %v2695
        %v2697 = vlaneseq
        %v2698 = vshrl.u32 %v2697, 7
        %v2699 = vsub.s32 %v2696, %v2698
        %v2700 = vrot.slane %v2684, %v2699
        %v2702 = vunpack.c.l.s4 1966171168
        %v2703 = vunpack.c.0.s8 %v2702
        %v2704 = vlaneseq
        %v2705 = vshrl.u32 %v2704, 7
        %v2706 = vsub.s32 %v2703, %v2705
        %v2707 = vrot.slane %v2685, %v2706
        %v2709 = vunpack.c.l.s4 1966171168
        %v2710 = vunpack.c.0.s8 %v2709
        %v2711 = vlaneseq
        %v2712 = vshrl.u32 %v2711, 7
        %v2713 = vsub.s32 %v2710, %v2712
        %v2714 = vrot.slane %v2686, %v2713
        %v2715 = vcombine.low %v2693, %v2700
        %v2716 = vcombine.low %v2707, %v2714
        %v2718 = vunpack.c.l.s4 1966171168
        %v2719 = vunpack.c.0.s8 %v2718
        %v2720 = vlaneseq
        %v2721 = vshrl.u32 %v2720, 7
        %v2722 = vsub.s32 %v2719, %v2721
        %v2723 = vrot.slane %v2715, %v2722
        %v2725 = vunpack.c.l.s4 1966171168
        %v2726 = vunpack.c.0.s8 %v2725
        %v2727 = vlaneseq
        %v2728 = vshrl.u32 %v2727, 7
        %v2729 = vsub.s32 %v2726, %v2728
        %v2730 = vrot.slane %v2716, %v2729
        %v2731 = vcombine.low %v2723, %v2730
        %v2733 = vmax.f32 %v2674, %v2731
        %2734 = vst [vmem:[#allocation2] sm:$0xff] %v2733
        // Predicated region
        $region77: #{pointnet_cls_forward.3} parent=71 // pred_check
          %p2735 = pneg %p487
        $region78: #{pointnet_cls_forward.3} parent=71 // pred_check_branch
          %2737 = sbr.rel (%p2735) target = $region80
        $region79: #{pointnet_cls_forward.3} parent=71 // pred_region
          %v2738 = vld [vmem:[#allocation2] sm:$0xff]
          %v2740 = vlaneseq
          %v2741 = vshrl.u32 %v2740, 7
          %v2742 = vsub.s32 0, %v2741
          %v2743 = vrot.slane %v2738, %v2742
          %v2744 = vlaneseq
          %v2745 = vshrl.u32 %v2744, 7
          %v2746 = vsub.s32 1, %v2745
          %v2747 = vrot.slane %v2738, %v2746
          %v2748 = vlaneseq
          %v2749 = vshrl.u32 %v2748, 7
          %v2750 = vsub.s32 2, %v2749
          %v2751 = vrot.slane %v2738, %v2750
          %v2752 = vlaneseq
          %v2753 = vshrl.u32 %v2752, 7
          %v2754 = vsub.s32 3, %v2753
          %v2755 = vrot.slane %v2738, %v2754
          %v2756 = vlaneseq
          %v2757 = vshrl.u32 %v2756, 7
          %v2758 = vsub.s32 4, %v2757
          %v2759 = vrot.slane %v2738, %v2758
          %v2760 = vlaneseq
          %v2761 = vshrl.u32 %v2760, 7
          %v2762 = vsub.s32 5, %v2761
          %v2763 = vrot.slane %v2738, %v2762
          %v2764 = vlaneseq
          %v2765 = vshrl.u32 %v2764, 7
          %v2766 = vsub.s32 6, %v2765
          %v2767 = vrot.slane %v2738, %v2766
          %v2768 = vlaneseq
          %v2769 = vshrl.u32 %v2768, 7
          %v2770 = vsub.s32 7, %v2769
          %v2771 = vrot.slane %v2738, %v2770
          %v2780 = vpack.c.bf16 %v2743, %v2743
          %v2781 = vpack.c.bf16 %v2747, %v2747
          %v2782 = vpack.c.bf16 %v2751, %v2751
          %v2783 = vpack.c.bf16 %v2755, %v2755
          %v2784 = vpack.c.bf16 %v2759, %v2759
          %v2785 = vpack.c.bf16 %v2763, %v2763
          %v2786 = vpack.c.bf16 %v2767, %v2767
          %v2787 = vpack.c.bf16 %v2771, %v2771
          %v2788 = vld [vmem:[%s7] sm:$0xff]
          %v2789 = vld [vmem:[%s7 + $0x8] sm:$0xff]
          %v2790 = vld [vmem:[%s7 + $0x10] sm:$0xff]
          %v2791 = vld [vmem:[%s7 + $0x18] sm:$0xff]
          %v2792 = vld [vmem:[%s7 + $0x20] sm:$0xff]
          %v2793 = vld [vmem:[%s7 + $0x28] sm:$0xff]
          %v2794 = vld [vmem:[%s7 + $0x30] sm:$0xff]
          %v2795 = vld [vmem:[%s7 + $0x38] sm:$0xff]
          %v2796 = vld [vmem:[%s7 + $0x40] sm:$0xff]
          %v2797 = vld [vmem:[%s7 + $0x48] sm:$0xff]
          %v2798 = vld [vmem:[%s7 + $0x50] sm:$0xff]
          %v2799 = vld [vmem:[%s7 + $0x58] sm:$0xff]
          %v2800 = vld [vmem:[%s7 + $0x60] sm:$0xff]
          %v2801 = vld [vmem:[%s7 + $0x68] sm:$0xff]
          %v2802 = vld [vmem:[%s7 + $0x70] sm:$0xff]
          %v2803 = vld [vmem:[%s7 + $0x78] sm:$0xff]
          %v2804 = vld [vmem:[%s7 + $0x80] sm:$0xff]
          %v2805 = vld [vmem:[%s7 + $0x88] sm:$0xff]
          %v2806 = vld [vmem:[%s7 + $0x90] sm:$0xff]
          %v2807 = vld [vmem:[%s7 + $0x98] sm:$0xff]
          %v2808 = vld [vmem:[%s7 + $0xa0] sm:$0xff]
          %v2809 = vld [vmem:[%s7 + $0xa8] sm:$0xff]
          %v2810 = vld [vmem:[%s7 + $0xb0] sm:$0xff]
          %v2811 = vld [vmem:[%s7 + $0xb8] sm:$0xff]
          %v2812 = vld [vmem:[%s7 + $0xc0] sm:$0xff]
          %v2813 = vld [vmem:[%s7 + $0xc8] sm:$0xff]
          %v2814 = vld [vmem:[%s7 + $0xd0] sm:$0xff]
          %v2815 = vld [vmem:[%s7 + $0xd8] sm:$0xff]
          %v2816 = vld [vmem:[%s7 + $0xe0] sm:$0xff]
          %v2817 = vld [vmem:[%s7 + $0xe8] sm:$0xff]
          %v2818 = vld [vmem:[%s7 + $0xf0] sm:$0xff]
          %v2819 = vld [vmem:[%s7 + $0xf8] sm:$0xff]
          %v2820 = vld [vmem:[%s7 + $0x100] sm:$0xff]
          %v2821 = vld [vmem:[%s7 + $0x108] sm:$0xff]
          %v2822 = vld [vmem:[%s7 + $0x110] sm:$0xff]
          %v2823 = vld [vmem:[%s7 + $0x118] sm:$0xff]
          %v2824 = vld [vmem:[%s7 + $0x120] sm:$0xff]
          %v2825 = vld [vmem:[%s7 + $0x128] sm:$0xff]
          %v2826 = vld [vmem:[%s7 + $0x130] sm:$0xff]
          %v2827 = vld [vmem:[%s7 + $0x138] sm:$0xff]
          %v2828 = vld [vmem:[%s7 + $0x140] sm:$0xff]
          %v2829 = vld [vmem:[%s7 + $0x148] sm:$0xff]
          %v2830 = vld [vmem:[%s7 + $0x150] sm:$0xff]
          %v2831 = vld [vmem:[%s7 + $0x158] sm:$0xff]
          %v2832 = vld [vmem:[%s7 + $0x160] sm:$0xff]
          %v2833 = vld [vmem:[%s7 + $0x168] sm:$0xff]
          %v2834 = vld [vmem:[%s7 + $0x170] sm:$0xff]
          %v2835 = vld [vmem:[%s7 + $0x178] sm:$0xff]
          %v2836 = vld [vmem:[%s7 + $0x180] sm:$0xff]
          %v2837 = vld [vmem:[%s7 + $0x188] sm:$0xff]
          %v2838 = vld [vmem:[%s7 + $0x190] sm:$0xff]
          %v2839 = vld [vmem:[%s7 + $0x198] sm:$0xff]
          %v2840 = vld [vmem:[%s7 + $0x1a0] sm:$0xff]
          %v2841 = vld [vmem:[%s7 + $0x1a8] sm:$0xff]
          %v2842 = vld [vmem:[%s7 + $0x1b0] sm:$0xff]
          %v2843 = vld [vmem:[%s7 + $0x1b8] sm:$0xff]
          %v2844 = vld [vmem:[%s7 + $0x1c0] sm:$0xff]
          %v2845 = vld [vmem:[%s7 + $0x1c8] sm:$0xff]
          %v2846 = vld [vmem:[%s7 + $0x1d0] sm:$0xff]
          %v2847 = vld [vmem:[%s7 + $0x1d8] sm:$0xff]
          %v2848 = vld [vmem:[%s7 + $0x1e0] sm:$0xff]
          %v2849 = vld [vmem:[%s7 + $0x1e8] sm:$0xff]
          %v2850 = vld [vmem:[%s7 + $0x1f0] sm:$0xff]
          %v2851 = vld [vmem:[%s7 + $0x1f8] sm:$0xff]
          %v2852 = vld [vmem:[%s7 + $0x200] sm:$0xff]
          %v2853 = vld [vmem:[%s7 + $0x208] sm:$0xff]
          %v2854 = vld [vmem:[%s7 + $0x210] sm:$0xff]
          %v2855 = vld [vmem:[%s7 + $0x218] sm:$0xff]
          %v2856 = vld [vmem:[%s7 + $0x220] sm:$0xff]
          %v2857 = vld [vmem:[%s7 + $0x228] sm:$0xff]
          %v2858 = vld [vmem:[%s7 + $0x230] sm:$0xff]
          %v2859 = vld [vmem:[%s7 + $0x238] sm:$0xff]
          %v2860 = vld [vmem:[%s7 + $0x240] sm:$0xff]
          %v2861 = vld [vmem:[%s7 + $0x248] sm:$0xff]
          %v2862 = vld [vmem:[%s7 + $0x250] sm:$0xff]
          %v2863 = vld [vmem:[%s7 + $0x258] sm:$0xff]
          %v2864 = vld [vmem:[%s7 + $0x260] sm:$0xff]
          %v2865 = vld [vmem:[%s7 + $0x268] sm:$0xff]
          %v2866 = vld [vmem:[%s7 + $0x270] sm:$0xff]
          %v2867 = vld [vmem:[%s7 + $0x278] sm:$0xff]
          %v2868 = vld [vmem:[%s7 + $0x280] sm:$0xff]
          %v2869 = vld [vmem:[%s7 + $0x288] sm:$0xff]
          %v2870 = vld [vmem:[%s7 + $0x290] sm:$0xff]
          %v2871 = vld [vmem:[%s7 + $0x298] sm:$0xff]
          %v2872 = vld [vmem:[%s7 + $0x2a0] sm:$0xff]
          %v2873 = vld [vmem:[%s7 + $0x2a8] sm:$0xff]
          %v2874 = vld [vmem:[%s7 + $0x2b0] sm:$0xff]
          %v2875 = vld [vmem:[%s7 + $0x2b8] sm:$0xff]
          %v2876 = vld [vmem:[%s7 + $0x2c0] sm:$0xff]
          %v2877 = vld [vmem:[%s7 + $0x2c8] sm:$0xff]
          %v2878 = vld [vmem:[%s7 + $0x2d0] sm:$0xff]
          %v2879 = vld [vmem:[%s7 + $0x2d8] sm:$0xff]
          %v2880 = vld [vmem:[%s7 + $0x2e0] sm:$0xff]
          %v2881 = vld [vmem:[%s7 + $0x2e8] sm:$0xff]
          %v2882 = vld [vmem:[%s7 + $0x2f0] sm:$0xff]
          %v2883 = vld [vmem:[%s7 + $0x2f8] sm:$0xff]
          %v2884 = vld [vmem:[%s7 + $0x300] sm:$0xff]
          %v2885 = vld [vmem:[%s7 + $0x308] sm:$0xff]
          %v2886 = vld [vmem:[%s7 + $0x310] sm:$0xff]
          %v2887 = vld [vmem:[%s7 + $0x318] sm:$0xff]
          %v2888 = vld [vmem:[%s7 + $0x320] sm:$0xff]
          %v2889 = vld [vmem:[%s7 + $0x328] sm:$0xff]
          %v2890 = vld [vmem:[%s7 + $0x330] sm:$0xff]
          %v2891 = vld [vmem:[%s7 + $0x338] sm:$0xff]
          %v2892 = vld [vmem:[%s7 + $0x340] sm:$0xff]
          %v2893 = vld [vmem:[%s7 + $0x348] sm:$0xff]
          %v2894 = vld [vmem:[%s7 + $0x350] sm:$0xff]
          %v2895 = vld [vmem:[%s7 + $0x358] sm:$0xff]
          %v2896 = vld [vmem:[%s7 + $0x360] sm:$0xff]
          %v2897 = vld [vmem:[%s7 + $0x368] sm:$0xff]
          %v2898 = vld [vmem:[%s7 + $0x370] sm:$0xff]
          %v2899 = vld [vmem:[%s7 + $0x378] sm:$0xff]
          %v2900 = vld [vmem:[%s7 + $0x380] sm:$0xff]
          %v2901 = vld [vmem:[%s7 + $0x388] sm:$0xff]
          %v2902 = vld [vmem:[%s7 + $0x390] sm:$0xff]
          %v2903 = vld [vmem:[%s7 + $0x398] sm:$0xff]
          %v2904 = vld [vmem:[%s7 + $0x3a0] sm:$0xff]
          %v2905 = vld [vmem:[%s7 + $0x3a8] sm:$0xff]
          %v2906 = vld [vmem:[%s7 + $0x3b0] sm:$0xff]
          %v2907 = vld [vmem:[%s7 + $0x3b8] sm:$0xff]
          %v2908 = vld [vmem:[%s7 + $0x3c0] sm:$0xff]
          %v2909 = vld [vmem:[%s7 + $0x3c8] sm:$0xff]
          %v2910 = vld [vmem:[%s7 + $0x3d0] sm:$0xff]
          %v2911 = vld [vmem:[%s7 + $0x3d8] sm:$0xff]
          %v2912 = vld [vmem:[%s7 + $0x3e0] sm:$0xff]
          %v2913 = vld [vmem:[%s7 + $0x3e8] sm:$0xff]
          %v2914 = vld [vmem:[%s7 + $0x3f0] sm:$0xff]
          %v2915 = vld [vmem:[%s7 + $0x3f8] sm:$0xff]
          %v2916 = vld [vmem:[%s7 + $0x400] sm:$0xff]
          %v2917 = vld [vmem:[%s7 + $0x408] sm:$0xff]
          %v2918 = vld [vmem:[%s7 + $0x410] sm:$0xff]
          %v2919 = vld [vmem:[%s7 + $0x418] sm:$0xff]
          %v2920 = vld [vmem:[%s7 + $0x420] sm:$0xff]
          %v2921 = vld [vmem:[%s7 + $0x428] sm:$0xff]
          %v2922 = vld [vmem:[%s7 + $0x430] sm:$0xff]
          %v2923 = vld [vmem:[%s7 + $0x438] sm:$0xff]
          %v2924 = vld [vmem:[%s7 + $0x440] sm:$0xff]
          %v2925 = vld [vmem:[%s7 + $0x448] sm:$0xff]
          %v2926 = vld [vmem:[%s7 + $0x450] sm:$0xff]
          %v2927 = vld [vmem:[%s7 + $0x458] sm:$0xff]
          %v2928 = vld [vmem:[%s7 + $0x460] sm:$0xff]
          %v2929 = vld [vmem:[%s7 + $0x468] sm:$0xff]
          %v2930 = vld [vmem:[%s7 + $0x470] sm:$0xff]
          %v2931 = vld [vmem:[%s7 + $0x478] sm:$0xff]
          %v2932 = vld [vmem:[%s7 + $0x480] sm:$0xff]
          %v2933 = vld [vmem:[%s7 + $0x488] sm:$0xff]
          %v2934 = vld [vmem:[%s7 + $0x490] sm:$0xff]
          %v2935 = vld [vmem:[%s7 + $0x498] sm:$0xff]
          %v2936 = vld [vmem:[%s7 + $0x4a0] sm:$0xff]
          %v2937 = vld [vmem:[%s7 + $0x4a8] sm:$0xff]
          %v2938 = vld [vmem:[%s7 + $0x4b0] sm:$0xff]
          %v2939 = vld [vmem:[%s7 + $0x4b8] sm:$0xff]
          %v2940 = vld [vmem:[%s7 + $0x4c0] sm:$0xff]
          %v2941 = vld [vmem:[%s7 + $0x4c8] sm:$0xff]
          %v2942 = vld [vmem:[%s7 + $0x4d0] sm:$0xff]
          %v2943 = vld [vmem:[%s7 + $0x4d8] sm:$0xff]
          %v2944 = vld [vmem:[%s7 + $0x4e0] sm:$0xff]
          %v2945 = vld [vmem:[%s7 + $0x4e8] sm:$0xff]
          %v2946 = vld [vmem:[%s7 + $0x4f0] sm:$0xff]
          %v2947 = vld [vmem:[%s7 + $0x4f8] sm:$0xff]
          %v2948 = vld [vmem:[%s7 + $0x500] sm:$0xff]
          %v2949 = vld [vmem:[%s7 + $0x508] sm:$0xff]
          %v2950 = vld [vmem:[%s7 + $0x510] sm:$0xff]
          %v2951 = vld [vmem:[%s7 + $0x518] sm:$0xff]
          %v2952 = vld [vmem:[%s7 + $0x520] sm:$0xff]
          %v2953 = vld [vmem:[%s7 + $0x528] sm:$0xff]
          %v2954 = vld [vmem:[%s7 + $0x530] sm:$0xff]
          %v2955 = vld [vmem:[%s7 + $0x538] sm:$0xff]
          %v2956 = vld [vmem:[%s7 + $0x540] sm:$0xff]
          %v2957 = vld [vmem:[%s7 + $0x548] sm:$0xff]
          %v2958 = vld [vmem:[%s7 + $0x550] sm:$0xff]
          %v2959 = vld [vmem:[%s7 + $0x558] sm:$0xff]
          %v2960 = vld [vmem:[%s7 + $0x560] sm:$0xff]
          %v2961 = vld [vmem:[%s7 + $0x568] sm:$0xff]
          %v2962 = vld [vmem:[%s7 + $0x570] sm:$0xff]
          %v2963 = vld [vmem:[%s7 + $0x578] sm:$0xff]
          %v2964 = vld [vmem:[%s7 + $0x580] sm:$0xff]
          %v2965 = vld [vmem:[%s7 + $0x588] sm:$0xff]
          %v2966 = vld [vmem:[%s7 + $0x590] sm:$0xff]
          %v2967 = vld [vmem:[%s7 + $0x598] sm:$0xff]
          %v2968 = vld [vmem:[%s7 + $0x5a0] sm:$0xff]
          %v2969 = vld [vmem:[%s7 + $0x5a8] sm:$0xff]
          %v2970 = vld [vmem:[%s7 + $0x5b0] sm:$0xff]
          %v2971 = vld [vmem:[%s7 + $0x5b8] sm:$0xff]
          %v2972 = vld [vmem:[%s7 + $0x5c0] sm:$0xff]
          %v2973 = vld [vmem:[%s7 + $0x5c8] sm:$0xff]
          %v2974 = vld [vmem:[%s7 + $0x5d0] sm:$0xff]
          %v2975 = vld [vmem:[%s7 + $0x5d8] sm:$0xff]
          %v2976 = vld [vmem:[%s7 + $0x5e0] sm:$0xff]
          %v2977 = vld [vmem:[%s7 + $0x5e8] sm:$0xff]
          %v2978 = vld [vmem:[%s7 + $0x5f0] sm:$0xff]
          %v2979 = vld [vmem:[%s7 + $0x5f8] sm:$0xff]
          %v2980 = vld [vmem:[%s7 + $0x600] sm:$0xff]
          %v2981 = vld [vmem:[%s7 + $0x608] sm:$0xff]
          %v2982 = vld [vmem:[%s7 + $0x610] sm:$0xff]
          %v2983 = vld [vmem:[%s7 + $0x618] sm:$0xff]
          %v2984 = vld [vmem:[%s7 + $0x620] sm:$0xff]
          %v2985 = vld [vmem:[%s7 + $0x628] sm:$0xff]
          %v2986 = vld [vmem:[%s7 + $0x630] sm:$0xff]
          %v2987 = vld [vmem:[%s7 + $0x638] sm:$0xff]
          %v2988 = vld [vmem:[%s7 + $0x640] sm:$0xff]
          %v2989 = vld [vmem:[%s7 + $0x648] sm:$0xff]
          %v2990 = vld [vmem:[%s7 + $0x650] sm:$0xff]
          %v2991 = vld [vmem:[%s7 + $0x658] sm:$0xff]
          %v2992 = vld [vmem:[%s7 + $0x660] sm:$0xff]
          %v2993 = vld [vmem:[%s7 + $0x668] sm:$0xff]
          %v2994 = vld [vmem:[%s7 + $0x670] sm:$0xff]
          %v2995 = vld [vmem:[%s7 + $0x678] sm:$0xff]
          %v2996 = vld [vmem:[%s7 + $0x680] sm:$0xff]
          %v2997 = vld [vmem:[%s7 + $0x688] sm:$0xff]
          %v2998 = vld [vmem:[%s7 + $0x690] sm:$0xff]
          %v2999 = vld [vmem:[%s7 + $0x698] sm:$0xff]
          %v3000 = vld [vmem:[%s7 + $0x6a0] sm:$0xff]
          %v3001 = vld [vmem:[%s7 + $0x6a8] sm:$0xff]
          %v3002 = vld [vmem:[%s7 + $0x6b0] sm:$0xff]
          %v3003 = vld [vmem:[%s7 + $0x6b8] sm:$0xff]
          %v3004 = vld [vmem:[%s7 + $0x6c0] sm:$0xff]
          %v3005 = vld [vmem:[%s7 + $0x6c8] sm:$0xff]
          %v3006 = vld [vmem:[%s7 + $0x6d0] sm:$0xff]
          %v3007 = vld [vmem:[%s7 + $0x6d8] sm:$0xff]
          %v3008 = vld [vmem:[%s7 + $0x6e0] sm:$0xff]
          %v3009 = vld [vmem:[%s7 + $0x6e8] sm:$0xff]
          %v3010 = vld [vmem:[%s7 + $0x6f0] sm:$0xff]
          %v3011 = vld [vmem:[%s7 + $0x6f8] sm:$0xff]
          %v3012 = vld [vmem:[%s7 + $0x700] sm:$0xff]
          %v3013 = vld [vmem:[%s7 + $0x708] sm:$0xff]
          %v3014 = vld [vmem:[%s7 + $0x710] sm:$0xff]
          %v3015 = vld [vmem:[%s7 + $0x718] sm:$0xff]
          %v3016 = vld [vmem:[%s7 + $0x720] sm:$0xff]
          %v3017 = vld [vmem:[%s7 + $0x728] sm:$0xff]
          %v3018 = vld [vmem:[%s7 + $0x730] sm:$0xff]
          %v3019 = vld [vmem:[%s7 + $0x738] sm:$0xff]
          %v3020 = vld [vmem:[%s7 + $0x740] sm:$0xff]
          %v3021 = vld [vmem:[%s7 + $0x748] sm:$0xff]
          %v3022 = vld [vmem:[%s7 + $0x750] sm:$0xff]
          %v3023 = vld [vmem:[%s7 + $0x758] sm:$0xff]
          %v3024 = vld [vmem:[%s7 + $0x760] sm:$0xff]
          %v3025 = vld [vmem:[%s7 + $0x768] sm:$0xff]
          %v3026 = vld [vmem:[%s7 + $0x770] sm:$0xff]
          %v3027 = vld [vmem:[%s7 + $0x778] sm:$0xff]
          %v3028 = vld [vmem:[%s7 + $0x780] sm:$0xff]
          %v3029 = vld [vmem:[%s7 + $0x788] sm:$0xff]
          %v3030 = vld [vmem:[%s7 + $0x790] sm:$0xff]
          %v3031 = vld [vmem:[%s7 + $0x798] sm:$0xff]
          %v3032 = vld [vmem:[%s7 + $0x7a0] sm:$0xff]
          %v3033 = vld [vmem:[%s7 + $0x7a8] sm:$0xff]
          %v3034 = vld [vmem:[%s7 + $0x7b0] sm:$0xff]
          %v3035 = vld [vmem:[%s7 + $0x7b8] sm:$0xff]
          %v3036 = vld [vmem:[%s7 + $0x7c0] sm:$0xff]
          %v3037 = vld [vmem:[%s7 + $0x7c8] sm:$0xff]
          %v3038 = vld [vmem:[%s7 + $0x7d0] sm:$0xff]
          %v3039 = vld [vmem:[%s7 + $0x7d8] sm:$0xff]
          %v3040 = vld [vmem:[%s7 + $0x7e0] sm:$0xff]
          %v3041 = vld [vmem:[%s7 + $0x7e8] sm:$0xff]
          %v3042 = vld [vmem:[%s7 + $0x7f0] sm:$0xff]
          %v3043 = vld [vmem:[%s7 + $0x7f8] sm:$0xff]
          %v3044 = vld [vmem:[%s8] sm:$0xf]
          %v3301 = vunpack.c.l.b16 %v2788
          %v3302 = vunpack.c.h.b16 %v2788
          %v3303 = vunpack.c.l.b16 %v2789
          %v3304 = vunpack.c.h.b16 %v2789
          %v3305 = vunpack.c.l.b16 %v2790
          %v3306 = vunpack.c.h.b16 %v2790
          %v3307 = vunpack.c.l.b16 %v2791
          %v3308 = vunpack.c.h.b16 %v2791
          %v3309 = vunpack.c.l.b16 %v2792
          %v3310 = vunpack.c.h.b16 %v2792
          %v3311 = vunpack.c.l.b16 %v2793
          %v3312 = vunpack.c.h.b16 %v2793
          %v3313 = vunpack.c.l.b16 %v2794
          %v3314 = vunpack.c.h.b16 %v2794
          %v3315 = vunpack.c.l.b16 %v2795
          %v3316 = vunpack.c.h.b16 %v2795
          %v3317 = vunpack.c.l.b16 %v2796
          %v3318 = vunpack.c.h.b16 %v2796
          %v3319 = vunpack.c.l.b16 %v2797
          %v3320 = vunpack.c.h.b16 %v2797
          %v3321 = vunpack.c.l.b16 %v2798
          %v3322 = vunpack.c.h.b16 %v2798
          %v3323 = vunpack.c.l.b16 %v2799
          %v3324 = vunpack.c.h.b16 %v2799
          %v3325 = vunpack.c.l.b16 %v2800
          %v3326 = vunpack.c.h.b16 %v2800
          %v3327 = vunpack.c.l.b16 %v2801
          %v3328 = vunpack.c.h.b16 %v2801
          %v3329 = vunpack.c.l.b16 %v2802
          %v3330 = vunpack.c.h.b16 %v2802
          %v3331 = vunpack.c.l.b16 %v2803
          %v3332 = vunpack.c.h.b16 %v2803
          %v3333 = vunpack.c.l.b16 %v2804
          %v3334 = vunpack.c.h.b16 %v2804
          %v3335 = vunpack.c.l.b16 %v2805
          %v3336 = vunpack.c.h.b16 %v2805
          %v3337 = vunpack.c.l.b16 %v2806
          %v3338 = vunpack.c.h.b16 %v2806
          %v3339 = vunpack.c.l.b16 %v2807
          %v3340 = vunpack.c.h.b16 %v2807
          %v3341 = vunpack.c.l.b16 %v2808
          %v3342 = vunpack.c.h.b16 %v2808
          %v3343 = vunpack.c.l.b16 %v2809
          %v3344 = vunpack.c.h.b16 %v2809
          %v3345 = vunpack.c.l.b16 %v2810
          %v3346 = vunpack.c.h.b16 %v2810
          %v3347 = vunpack.c.l.b16 %v2811
          %v3348 = vunpack.c.h.b16 %v2811
          %v3349 = vunpack.c.l.b16 %v2812
          %v3350 = vunpack.c.h.b16 %v2812
          %v3351 = vunpack.c.l.b16 %v2813
          %v3352 = vunpack.c.h.b16 %v2813
          %v3353 = vunpack.c.l.b16 %v2814
          %v3354 = vunpack.c.h.b16 %v2814
          %v3355 = vunpack.c.l.b16 %v2815
          %v3356 = vunpack.c.h.b16 %v2815
          %v3357 = vunpack.c.l.b16 %v2816
          %v3358 = vunpack.c.h.b16 %v2816
          %v3359 = vunpack.c.l.b16 %v2817
          %v3360 = vunpack.c.h.b16 %v2817
          %v3361 = vunpack.c.l.b16 %v2818
          %v3362 = vunpack.c.h.b16 %v2818
          %v3363 = vunpack.c.l.b16 %v2819
          %v3364 = vunpack.c.h.b16 %v2819
          %v3365 = vunpack.c.l.b16 %v2820
          %v3366 = vunpack.c.h.b16 %v2820
          %v3367 = vunpack.c.l.b16 %v2821
          %v3368 = vunpack.c.h.b16 %v2821
          %v3369 = vunpack.c.l.b16 %v2822
          %v3370 = vunpack.c.h.b16 %v2822
          %v3371 = vunpack.c.l.b16 %v2823
          %v3372 = vunpack.c.h.b16 %v2823
          %v3373 = vunpack.c.l.b16 %v2824
          %v3374 = vunpack.c.h.b16 %v2824
          %v3375 = vunpack.c.l.b16 %v2825
          %v3376 = vunpack.c.h.b16 %v2825
          %v3377 = vunpack.c.l.b16 %v2826
          %v3378 = vunpack.c.h.b16 %v2826
          %v3379 = vunpack.c.l.b16 %v2827
          %v3380 = vunpack.c.h.b16 %v2827
          %v3381 = vunpack.c.l.b16 %v2828
          %v3382 = vunpack.c.h.b16 %v2828
          %v3383 = vunpack.c.l.b16 %v2829
          %v3384 = vunpack.c.h.b16 %v2829
          %v3385 = vunpack.c.l.b16 %v2830
          %v3386 = vunpack.c.h.b16 %v2830
          %v3387 = vunpack.c.l.b16 %v2831
          %v3388 = vunpack.c.h.b16 %v2831
          %v3389 = vunpack.c.l.b16 %v2832
          %v3390 = vunpack.c.h.b16 %v2832
          %v3391 = vunpack.c.l.b16 %v2833
          %v3392 = vunpack.c.h.b16 %v2833
          %v3393 = vunpack.c.l.b16 %v2834
          %v3394 = vunpack.c.h.b16 %v2834
          %v3395 = vunpack.c.l.b16 %v2835
          %v3396 = vunpack.c.h.b16 %v2835
          %v3397 = vunpack.c.l.b16 %v2836
          %v3398 = vunpack.c.h.b16 %v2836
          %v3399 = vunpack.c.l.b16 %v2837
          %v3400 = vunpack.c.h.b16 %v2837
          %v3401 = vunpack.c.l.b16 %v2838
          %v3402 = vunpack.c.h.b16 %v2838
          %v3403 = vunpack.c.l.b16 %v2839
          %v3404 = vunpack.c.h.b16 %v2839
          %v3405 = vunpack.c.l.b16 %v2840
          %v3406 = vunpack.c.h.b16 %v2840
          %v3407 = vunpack.c.l.b16 %v2841
          %v3408 = vunpack.c.h.b16 %v2841
          %v3409 = vunpack.c.l.b16 %v2842
          %v3410 = vunpack.c.h.b16 %v2842
          %v3411 = vunpack.c.l.b16 %v2843
          %v3412 = vunpack.c.h.b16 %v2843
          %v3413 = vunpack.c.l.b16 %v2844
          %v3414 = vunpack.c.h.b16 %v2844
          %v3415 = vunpack.c.l.b16 %v2845
          %v3416 = vunpack.c.h.b16 %v2845
          %v3417 = vunpack.c.l.b16 %v2846
          %v3418 = vunpack.c.h.b16 %v2846
          %v3419 = vunpack.c.l.b16 %v2847
          %v3420 = vunpack.c.h.b16 %v2847
          %v3421 = vunpack.c.l.b16 %v2848
          %v3422 = vunpack.c.h.b16 %v2848
          %v3423 = vunpack.c.l.b16 %v2849
          %v3424 = vunpack.c.h.b16 %v2849
          %v3425 = vunpack.c.l.b16 %v2850
          %v3426 = vunpack.c.h.b16 %v2850
          %v3427 = vunpack.c.l.b16 %v2851
          %v3428 = vunpack.c.h.b16 %v2851
          %v3429 = vunpack.c.l.b16 %v2852
          %v3430 = vunpack.c.h.b16 %v2852
          %v3431 = vunpack.c.l.b16 %v2853
          %v3432 = vunpack.c.h.b16 %v2853
          %v3433 = vunpack.c.l.b16 %v2854
          %v3434 = vunpack.c.h.b16 %v2854
          %v3435 = vunpack.c.l.b16 %v2855
          %v3436 = vunpack.c.h.b16 %v2855
          %v3437 = vunpack.c.l.b16 %v2856
          %v3438 = vunpack.c.h.b16 %v2856
          %v3439 = vunpack.c.l.b16 %v2857
          %v3440 = vunpack.c.h.b16 %v2857
          %v3441 = vunpack.c.l.b16 %v2858
          %v3442 = vunpack.c.h.b16 %v2858
          %v3443 = vunpack.c.l.b16 %v2859
          %v3444 = vunpack.c.h.b16 %v2859
          %v3445 = vunpack.c.l.b16 %v2860
          %v3446 = vunpack.c.h.b16 %v2860
          %v3447 = vunpack.c.l.b16 %v2861
          %v3448 = vunpack.c.h.b16 %v2861
          %v3449 = vunpack.c.l.b16 %v2862
          %v3450 = vunpack.c.h.b16 %v2862
          %v3451 = vunpack.c.l.b16 %v2863
          %v3452 = vunpack.c.h.b16 %v2863
          %v3453 = vunpack.c.l.b16 %v2864
          %v3454 = vunpack.c.h.b16 %v2864
          %v3455 = vunpack.c.l.b16 %v2865
          %v3456 = vunpack.c.h.b16 %v2865
          %v3457 = vunpack.c.l.b16 %v2866
          %v3458 = vunpack.c.h.b16 %v2866
          %v3459 = vunpack.c.l.b16 %v2867
          %v3460 = vunpack.c.h.b16 %v2867
          %v3461 = vunpack.c.l.b16 %v2868
          %v3462 = vunpack.c.h.b16 %v2868
          %v3463 = vunpack.c.l.b16 %v2869
          %v3464 = vunpack.c.h.b16 %v2869
          %v3465 = vunpack.c.l.b16 %v2870
          %v3466 = vunpack.c.h.b16 %v2870
          %v3467 = vunpack.c.l.b16 %v2871
          %v3468 = vunpack.c.h.b16 %v2871
          %v3469 = vunpack.c.l.b16 %v2872
          %v3470 = vunpack.c.h.b16 %v2872
          %v3471 = vunpack.c.l.b16 %v2873
          %v3472 = vunpack.c.h.b16 %v2873
          %v3473 = vunpack.c.l.b16 %v2874
          %v3474 = vunpack.c.h.b16 %v2874
          %v3475 = vunpack.c.l.b16 %v2875
          %v3476 = vunpack.c.h.b16 %v2875
          %v3477 = vunpack.c.l.b16 %v2876
          %v3478 = vunpack.c.h.b16 %v2876
          %v3479 = vunpack.c.l.b16 %v2877
          %v3480 = vunpack.c.h.b16 %v2877
          %v3481 = vunpack.c.l.b16 %v2878
          %v3482 = vunpack.c.h.b16 %v2878
          %v3483 = vunpack.c.l.b16 %v2879
          %v3484 = vunpack.c.h.b16 %v2879
          %v3485 = vunpack.c.l.b16 %v2880
          %v3486 = vunpack.c.h.b16 %v2880
          %v3487 = vunpack.c.l.b16 %v2881
          %v3488 = vunpack.c.h.b16 %v2881
          %v3489 = vunpack.c.l.b16 %v2882
          %v3490 = vunpack.c.h.b16 %v2882
          %v3491 = vunpack.c.l.b16 %v2883
          %v3492 = vunpack.c.h.b16 %v2883
          %v3493 = vunpack.c.l.b16 %v2884
          %v3494 = vunpack.c.h.b16 %v2884
          %v3495 = vunpack.c.l.b16 %v2885
          %v3496 = vunpack.c.h.b16 %v2885
          %v3497 = vunpack.c.l.b16 %v2886
          %v3498 = vunpack.c.h.b16 %v2886
          %v3499 = vunpack.c.l.b16 %v2887
          %v3500 = vunpack.c.h.b16 %v2887
          %v3501 = vunpack.c.l.b16 %v2888
          %v3502 = vunpack.c.h.b16 %v2888
          %v3503 = vunpack.c.l.b16 %v2889
          %v3504 = vunpack.c.h.b16 %v2889
          %v3505 = vunpack.c.l.b16 %v2890
          %v3506 = vunpack.c.h.b16 %v2890
          %v3507 = vunpack.c.l.b16 %v2891
          %v3508 = vunpack.c.h.b16 %v2891
          %v3509 = vunpack.c.l.b16 %v2892
          %v3510 = vunpack.c.h.b16 %v2892
          %v3511 = vunpack.c.l.b16 %v2893
          %v3512 = vunpack.c.h.b16 %v2893
          %v3513 = vunpack.c.l.b16 %v2894
          %v3514 = vunpack.c.h.b16 %v2894
          %v3515 = vunpack.c.l.b16 %v2895
          %v3516 = vunpack.c.h.b16 %v2895
          %v3517 = vunpack.c.l.b16 %v2896
          %v3518 = vunpack.c.h.b16 %v2896
          %v3519 = vunpack.c.l.b16 %v2897
          %v3520 = vunpack.c.h.b16 %v2897
          %v3521 = vunpack.c.l.b16 %v2898
          %v3522 = vunpack.c.h.b16 %v2898
          %v3523 = vunpack.c.l.b16 %v2899
          %v3524 = vunpack.c.h.b16 %v2899
          %v3525 = vunpack.c.l.b16 %v2900
          %v3526 = vunpack.c.h.b16 %v2900
          %v3527 = vunpack.c.l.b16 %v2901
          %v3528 = vunpack.c.h.b16 %v2901
          %v3529 = vunpack.c.l.b16 %v2902
          %v3530 = vunpack.c.h.b16 %v2902
          %v3531 = vunpack.c.l.b16 %v2903
          %v3532 = vunpack.c.h.b16 %v2903
          %v3533 = vunpack.c.l.b16 %v2904
          %v3534 = vunpack.c.h.b16 %v2904
          %v3535 = vunpack.c.l.b16 %v2905
          %v3536 = vunpack.c.h.b16 %v2905
          %v3537 = vunpack.c.l.b16 %v2906
          %v3538 = vunpack.c.h.b16 %v2906
          %v3539 = vunpack.c.l.b16 %v2907
          %v3540 = vunpack.c.h.b16 %v2907
          %v3541 = vunpack.c.l.b16 %v2908
          %v3542 = vunpack.c.h.b16 %v2908
          %v3543 = vunpack.c.l.b16 %v2909
          %v3544 = vunpack.c.h.b16 %v2909
          %v3545 = vunpack.c.l.b16 %v2910
          %v3546 = vunpack.c.h.b16 %v2910
          %v3547 = vunpack.c.l.b16 %v2911
          %v3548 = vunpack.c.h.b16 %v2911
          %v3549 = vunpack.c.l.b16 %v2912
          %v3550 = vunpack.c.h.b16 %v2912
          %v3551 = vunpack.c.l.b16 %v2913
          %v3552 = vunpack.c.h.b16 %v2913
          %v3553 = vunpack.c.l.b16 %v2914
          %v3554 = vunpack.c.h.b16 %v2914
          %v3555 = vunpack.c.l.b16 %v2915
          %v3556 = vunpack.c.h.b16 %v2915
          %v3557 = vunpack.c.l.b16 %v2916
          %v3558 = vunpack.c.h.b16 %v2916
          %v3559 = vunpack.c.l.b16 %v2917
          %v3560 = vunpack.c.h.b16 %v2917
          %v3561 = vunpack.c.l.b16 %v2918
          %v3562 = vunpack.c.h.b16 %v2918
          %v3563 = vunpack.c.l.b16 %v2919
          %v3564 = vunpack.c.h.b16 %v2919
          %v3565 = vunpack.c.l.b16 %v2920
          %v3566 = vunpack.c.h.b16 %v2920
          %v3567 = vunpack.c.l.b16 %v2921
          %v3568 = vunpack.c.h.b16 %v2921
          %v3569 = vunpack.c.l.b16 %v2922
          %v3570 = vunpack.c.h.b16 %v2922
          %v3571 = vunpack.c.l.b16 %v2923
          %v3572 = vunpack.c.h.b16 %v2923
          %v3573 = vunpack.c.l.b16 %v2924
          %v3574 = vunpack.c.h.b16 %v2924
          %v3575 = vunpack.c.l.b16 %v2925
          %v3576 = vunpack.c.h.b16 %v2925
          %v3577 = vunpack.c.l.b16 %v2926
          %v3578 = vunpack.c.h.b16 %v2926
          %v3579 = vunpack.c.l.b16 %v2927
          %v3580 = vunpack.c.h.b16 %v2927
          %v3581 = vunpack.c.l.b16 %v2928
          %v3582 = vunpack.c.h.b16 %v2928
          %v3583 = vunpack.c.l.b16 %v2929
          %v3584 = vunpack.c.h.b16 %v2929
          %v3585 = vunpack.c.l.b16 %v2930
          %v3586 = vunpack.c.h.b16 %v2930
          %v3587 = vunpack.c.l.b16 %v2931
          %v3588 = vunpack.c.h.b16 %v2931
          %v3589 = vunpack.c.l.b16 %v2932
          %v3590 = vunpack.c.h.b16 %v2932
          %v3591 = vunpack.c.l.b16 %v2933
          %v3592 = vunpack.c.h.b16 %v2933
          %v3593 = vunpack.c.l.b16 %v2934
          %v3594 = vunpack.c.h.b16 %v2934
          %v3595 = vunpack.c.l.b16 %v2935
          %v3596 = vunpack.c.h.b16 %v2935
          %v3597 = vunpack.c.l.b16 %v2936
          %v3598 = vunpack.c.h.b16 %v2936
          %v3599 = vunpack.c.l.b16 %v2937
          %v3600 = vunpack.c.h.b16 %v2937
          %v3601 = vunpack.c.l.b16 %v2938
          %v3602 = vunpack.c.h.b16 %v2938
          %v3603 = vunpack.c.l.b16 %v2939
          %v3604 = vunpack.c.h.b16 %v2939
          %v3605 = vunpack.c.l.b16 %v2940
          %v3606 = vunpack.c.h.b16 %v2940
          %v3607 = vunpack.c.l.b16 %v2941
          %v3608 = vunpack.c.h.b16 %v2941
          %v3609 = vunpack.c.l.b16 %v2942
          %v3610 = vunpack.c.h.b16 %v2942
          %v3611 = vunpack.c.l.b16 %v2943
          %v3612 = vunpack.c.h.b16 %v2943
          %v3613 = vunpack.c.l.b16 %v2944
          %v3614 = vunpack.c.h.b16 %v2944
          %v3615 = vunpack.c.l.b16 %v2945
          %v3616 = vunpack.c.h.b16 %v2945
          %v3617 = vunpack.c.l.b16 %v2946
          %v3618 = vunpack.c.h.b16 %v2946
          %v3619 = vunpack.c.l.b16 %v2947
          %v3620 = vunpack.c.h.b16 %v2947
          %v3621 = vunpack.c.l.b16 %v2948
          %v3622 = vunpack.c.h.b16 %v2948
          %v3623 = vunpack.c.l.b16 %v2949
          %v3624 = vunpack.c.h.b16 %v2949
          %v3625 = vunpack.c.l.b16 %v2950
          %v3626 = vunpack.c.h.b16 %v2950
          %v3627 = vunpack.c.l.b16 %v2951
          %v3628 = vunpack.c.h.b16 %v2951
          %v3629 = vunpack.c.l.b16 %v2952
          %v3630 = vunpack.c.h.b16 %v2952
          %v3631 = vunpack.c.l.b16 %v2953
          %v3632 = vunpack.c.h.b16 %v2953
          %v3633 = vunpack.c.l.b16 %v2954
          %v3634 = vunpack.c.h.b16 %v2954
          %v3635 = vunpack.c.l.b16 %v2955
          %v3636 = vunpack.c.h.b16 %v2955
          %v3637 = vunpack.c.l.b16 %v2956
          %v3638 = vunpack.c.h.b16 %v2956
          %v3639 = vunpack.c.l.b16 %v2957
          %v3640 = vunpack.c.h.b16 %v2957
          %v3641 = vunpack.c.l.b16 %v2958
          %v3642 = vunpack.c.h.b16 %v2958
          %v3643 = vunpack.c.l.b16 %v2959
          %v3644 = vunpack.c.h.b16 %v2959
          %v3645 = vunpack.c.l.b16 %v2960
          %v3646 = vunpack.c.h.b16 %v2960
          %v3647 = vunpack.c.l.b16 %v2961
          %v3648 = vunpack.c.h.b16 %v2961
          %v3649 = vunpack.c.l.b16 %v2962
          %v3650 = vunpack.c.h.b16 %v2962
          %v3651 = vunpack.c.l.b16 %v2963
          %v3652 = vunpack.c.h.b16 %v2963
          %v3653 = vunpack.c.l.b16 %v2964
          %v3654 = vunpack.c.h.b16 %v2964
          %v3655 = vunpack.c.l.b16 %v2965
          %v3656 = vunpack.c.h.b16 %v2965
          %v3657 = vunpack.c.l.b16 %v2966
          %v3658 = vunpack.c.h.b16 %v2966
          %v3659 = vunpack.c.l.b16 %v2967
          %v3660 = vunpack.c.h.b16 %v2967
          %v3661 = vunpack.c.l.b16 %v2968
          %v3662 = vunpack.c.h.b16 %v2968
          %v3663 = vunpack.c.l.b16 %v2969
          %v3664 = vunpack.c.h.b16 %v2969
          %v3665 = vunpack.c.l.b16 %v2970
          %v3666 = vunpack.c.h.b16 %v2970
          %v3667 = vunpack.c.l.b16 %v2971
          %v3668 = vunpack.c.h.b16 %v2971
          %v3669 = vunpack.c.l.b16 %v2972
          %v3670 = vunpack.c.h.b16 %v2972
          %v3671 = vunpack.c.l.b16 %v2973
          %v3672 = vunpack.c.h.b16 %v2973
          %v3673 = vunpack.c.l.b16 %v2974
          %v3674 = vunpack.c.h.b16 %v2974
          %v3675 = vunpack.c.l.b16 %v2975
          %v3676 = vunpack.c.h.b16 %v2975
          %v3677 = vunpack.c.l.b16 %v2976
          %v3678 = vunpack.c.h.b16 %v2976
          %v3679 = vunpack.c.l.b16 %v2977
          %v3680 = vunpack.c.h.b16 %v2977
          %v3681 = vunpack.c.l.b16 %v2978
          %v3682 = vunpack.c.h.b16 %v2978
          %v3683 = vunpack.c.l.b16 %v2979
          %v3684 = vunpack.c.h.b16 %v2979
          %v3685 = vunpack.c.l.b16 %v2980
          %v3686 = vunpack.c.h.b16 %v2980
          %v3687 = vunpack.c.l.b16 %v2981
          %v3688 = vunpack.c.h.b16 %v2981
          %v3689 = vunpack.c.l.b16 %v2982
          %v3690 = vunpack.c.h.b16 %v2982
          %v3691 = vunpack.c.l.b16 %v2983
          %v3692 = vunpack.c.h.b16 %v2983
          %v3693 = vunpack.c.l.b16 %v2984
          %v3694 = vunpack.c.h.b16 %v2984
          %v3695 = vunpack.c.l.b16 %v2985
          %v3696 = vunpack.c.h.b16 %v2985
          %v3697 = vunpack.c.l.b16 %v2986
          %v3698 = vunpack.c.h.b16 %v2986
          %v3699 = vunpack.c.l.b16 %v2987
          %v3700 = vunpack.c.h.b16 %v2987
          %v3701 = vunpack.c.l.b16 %v2988
          %v3702 = vunpack.c.h.b16 %v2988
          %v3703 = vunpack.c.l.b16 %v2989
          %v3704 = vunpack.c.h.b16 %v2989
          %v3705 = vunpack.c.l.b16 %v2990
          %v3706 = vunpack.c.h.b16 %v2990
          %v3707 = vunpack.c.l.b16 %v2991
          %v3708 = vunpack.c.h.b16 %v2991
          %v3709 = vunpack.c.l.b16 %v2992
          %v3710 = vunpack.c.h.b16 %v2992
          %v3711 = vunpack.c.l.b16 %v2993
          %v3712 = vunpack.c.h.b16 %v2993
          %v3713 = vunpack.c.l.b16 %v2994
          %v3714 = vunpack.c.h.b16 %v2994
          %v3715 = vunpack.c.l.b16 %v2995
          %v3716 = vunpack.c.h.b16 %v2995
          %v3717 = vunpack.c.l.b16 %v2996
          %v3718 = vunpack.c.h.b16 %v2996
          %v3719 = vunpack.c.l.b16 %v2997
          %v3720 = vunpack.c.h.b16 %v2997
          %v3721 = vunpack.c.l.b16 %v2998
          %v3722 = vunpack.c.h.b16 %v2998
          %v3723 = vunpack.c.l.b16 %v2999
          %v3724 = vunpack.c.h.b16 %v2999
          %v3725 = vunpack.c.l.b16 %v3000
          %v3726 = vunpack.c.h.b16 %v3000
          %v3727 = vunpack.c.l.b16 %v3001
          %v3728 = vunpack.c.h.b16 %v3001
          %v3729 = vunpack.c.l.b16 %v3002
          %v3730 = vunpack.c.h.b16 %v3002
          %v3731 = vunpack.c.l.b16 %v3003
          %v3732 = vunpack.c.h.b16 %v3003
          %v3733 = vunpack.c.l.b16 %v3004
          %v3734 = vunpack.c.h.b16 %v3004
          %v3735 = vunpack.c.l.b16 %v3005
          %v3736 = vunpack.c.h.b16 %v3005
          %v3737 = vunpack.c.l.b16 %v3006
          %v3738 = vunpack.c.h.b16 %v3006
          %v3739 = vunpack.c.l.b16 %v3007
          %v3740 = vunpack.c.h.b16 %v3007
          %v3741 = vunpack.c.l.b16 %v3008
          %v3742 = vunpack.c.h.b16 %v3008
          %v3743 = vunpack.c.l.b16 %v3009
          %v3744 = vunpack.c.h.b16 %v3009
          %v3745 = vunpack.c.l.b16 %v3010
          %v3746 = vunpack.c.h.b16 %v3010
          %v3747 = vunpack.c.l.b16 %v3011
          %v3748 = vunpack.c.h.b16 %v3011
          %v3749 = vunpack.c.l.b16 %v3012
          %v3750 = vunpack.c.h.b16 %v3012
          %v3751 = vunpack.c.l.b16 %v3013
          %v3752 = vunpack.c.h.b16 %v3013
          %v3753 = vunpack.c.l.b16 %v3014
          %v3754 = vunpack.c.h.b16 %v3014
          %v3755 = vunpack.c.l.b16 %v3015
          %v3756 = vunpack.c.h.b16 %v3015
          %v3757 = vunpack.c.l.b16 %v3016
          %v3758 = vunpack.c.h.b16 %v3016
          %v3759 = vunpack.c.l.b16 %v3017
          %v3760 = vunpack.c.h.b16 %v3017
          %v3761 = vunpack.c.l.b16 %v3018
          %v3762 = vunpack.c.h.b16 %v3018
          %v3763 = vunpack.c.l.b16 %v3019
          %v3764 = vunpack.c.h.b16 %v3019
          %v3765 = vunpack.c.l.b16 %v3020
          %v3766 = vunpack.c.h.b16 %v3020
          %v3767 = vunpack.c.l.b16 %v3021
          %v3768 = vunpack.c.h.b16 %v3021
          %v3769 = vunpack.c.l.b16 %v3022
          %v3770 = vunpack.c.h.b16 %v3022
          %v3771 = vunpack.c.l.b16 %v3023
          %v3772 = vunpack.c.h.b16 %v3023
          %v3773 = vunpack.c.l.b16 %v3024
          %v3774 = vunpack.c.h.b16 %v3024
          %v3775 = vunpack.c.l.b16 %v3025
          %v3776 = vunpack.c.h.b16 %v3025
          %v3777 = vunpack.c.l.b16 %v3026
          %v3778 = vunpack.c.h.b16 %v3026
          %v3779 = vunpack.c.l.b16 %v3027
          %v3780 = vunpack.c.h.b16 %v3027
          %v3781 = vunpack.c.l.b16 %v3028
          %v3782 = vunpack.c.h.b16 %v3028
          %v3783 = vunpack.c.l.b16 %v3029
          %v3784 = vunpack.c.h.b16 %v3029
          %v3785 = vunpack.c.l.b16 %v3030
          %v3786 = vunpack.c.h.b16 %v3030
          %v3787 = vunpack.c.l.b16 %v3031
          %v3788 = vunpack.c.h.b16 %v3031
          %v3789 = vunpack.c.l.b16 %v3032
          %v3790 = vunpack.c.h.b16 %v3032
          %v3791 = vunpack.c.l.b16 %v3033
          %v3792 = vunpack.c.h.b16 %v3033
          %v3793 = vunpack.c.l.b16 %v3034
          %v3794 = vunpack.c.h.b16 %v3034
          %v3795 = vunpack.c.l.b16 %v3035
          %v3796 = vunpack.c.h.b16 %v3035
          %v3797 = vunpack.c.l.b16 %v3036
          %v3798 = vunpack.c.h.b16 %v3036
          %v3799 = vunpack.c.l.b16 %v3037
          %v3800 = vunpack.c.h.b16 %v3037
          %v3801 = vunpack.c.l.b16 %v3038
          %v3802 = vunpack.c.h.b16 %v3038
          %v3803 = vunpack.c.l.b16 %v3039
          %v3804 = vunpack.c.h.b16 %v3039
          %v3805 = vunpack.c.l.b16 %v3040
          %v3806 = vunpack.c.h.b16 %v3040
          %v3807 = vunpack.c.l.b16 %v3041
          %v3808 = vunpack.c.h.b16 %v3041
          %v3809 = vunpack.c.l.b16 %v3042
          %v3810 = vunpack.c.h.b16 %v3042
          %v3811 = vunpack.c.l.b16 %v3043
          %v3812 = vunpack.c.h.b16 %v3043
          %v3813 = vpack.c.b16 %v3305, %v3301
          %v3814 = vpack.c.b16 %v3306, %v3302
          %v3815 = vpack.c.b16 %v3307, %v3303
          %v3816 = vpack.c.b16 %v3308, %v3304
          %v3817 = vpack.c.b16 %v3313, %v3309
          %v3818 = vpack.c.b16 %v3314, %v3310
          %v3819 = vpack.c.b16 %v3315, %v3311
          %v3820 = vpack.c.b16 %v3316, %v3312
          %v3821 = vpack.c.b16 %v3321, %v3317
          %v3822 = vpack.c.b16 %v3322, %v3318
          %v3823 = vpack.c.b16 %v3323, %v3319
          %v3824 = vpack.c.b16 %v3324, %v3320
          %v3825 = vpack.c.b16 %v3329, %v3325
          %v3826 = vpack.c.b16 %v3330, %v3326
          %v3827 = vpack.c.b16 %v3331, %v3327
          %v3828 = vpack.c.b16 %v3332, %v3328
          %v3829 = vpack.c.b16 %v3337, %v3333
          %v3830 = vpack.c.b16 %v3338, %v3334
          %v3831 = vpack.c.b16 %v3339, %v3335
          %v3832 = vpack.c.b16 %v3340, %v3336
          %v3833 = vpack.c.b16 %v3345, %v3341
          %v3834 = vpack.c.b16 %v3346, %v3342
          %v3835 = vpack.c.b16 %v3347, %v3343
          %v3836 = vpack.c.b16 %v3348, %v3344
          %v3837 = vpack.c.b16 %v3353, %v3349
          %v3838 = vpack.c.b16 %v3354, %v3350
          %v3839 = vpack.c.b16 %v3355, %v3351
          %v3840 = vpack.c.b16 %v3356, %v3352
          %v3841 = vpack.c.b16 %v3361, %v3357
          %v3842 = vpack.c.b16 %v3362, %v3358
          %v3843 = vpack.c.b16 %v3363, %v3359
          %v3844 = vpack.c.b16 %v3364, %v3360
          %v3845 = vpack.c.b16 %v3369, %v3365
          %v3846 = vpack.c.b16 %v3370, %v3366
          %v3847 = vpack.c.b16 %v3371, %v3367
          %v3848 = vpack.c.b16 %v3372, %v3368
          %v3849 = vpack.c.b16 %v3377, %v3373
          %v3850 = vpack.c.b16 %v3378, %v3374
          %v3851 = vpack.c.b16 %v3379, %v3375
          %v3852 = vpack.c.b16 %v3380, %v3376
          %v3853 = vpack.c.b16 %v3385, %v3381
          %v3854 = vpack.c.b16 %v3386, %v3382
          %v3855 = vpack.c.b16 %v3387, %v3383
          %v3856 = vpack.c.b16 %v3388, %v3384
          %v3857 = vpack.c.b16 %v3393, %v3389
          %v3858 = vpack.c.b16 %v3394, %v3390
          %v3859 = vpack.c.b16 %v3395, %v3391
          %v3860 = vpack.c.b16 %v3396, %v3392
          %v3861 = vpack.c.b16 %v3401, %v3397
          %v3862 = vpack.c.b16 %v3402, %v3398
          %v3863 = vpack.c.b16 %v3403, %v3399
          %v3864 = vpack.c.b16 %v3404, %v3400
          %v3865 = vpack.c.b16 %v3409, %v3405
          %v3866 = vpack.c.b16 %v3410, %v3406
          %v3867 = vpack.c.b16 %v3411, %v3407
          %v3868 = vpack.c.b16 %v3412, %v3408
          %v3869 = vpack.c.b16 %v3417, %v3413
          %v3870 = vpack.c.b16 %v3418, %v3414
          %v3871 = vpack.c.b16 %v3419, %v3415
          %v3872 = vpack.c.b16 %v3420, %v3416
          %v3873 = vpack.c.b16 %v3425, %v3421
          %v3874 = vpack.c.b16 %v3426, %v3422
          %v3875 = vpack.c.b16 %v3427, %v3423
          %v3876 = vpack.c.b16 %v3428, %v3424
          %v3877 = vpack.c.b16 %v3433, %v3429
          %v3878 = vpack.c.b16 %v3434, %v3430
          %v3879 = vpack.c.b16 %v3435, %v3431
          %v3880 = vpack.c.b16 %v3436, %v3432
          %v3881 = vpack.c.b16 %v3441, %v3437
          %v3882 = vpack.c.b16 %v3442, %v3438
          %v3883 = vpack.c.b16 %v3443, %v3439
          %v3884 = vpack.c.b16 %v3444, %v3440
          %v3885 = vpack.c.b16 %v3449, %v3445
          %v3886 = vpack.c.b16 %v3450, %v3446
          %v3887 = vpack.c.b16 %v3451, %v3447
          %v3888 = vpack.c.b16 %v3452, %v3448
          %v3889 = vpack.c.b16 %v3457, %v3453
          %v3890 = vpack.c.b16 %v3458, %v3454
          %v3891 = vpack.c.b16 %v3459, %v3455
          %v3892 = vpack.c.b16 %v3460, %v3456
          %v3893 = vpack.c.b16 %v3465, %v3461
          %v3894 = vpack.c.b16 %v3466, %v3462
          %v3895 = vpack.c.b16 %v3467, %v3463
          %v3896 = vpack.c.b16 %v3468, %v3464
          %v3897 = vpack.c.b16 %v3473, %v3469
          %v3898 = vpack.c.b16 %v3474, %v3470
          %v3899 = vpack.c.b16 %v3475, %v3471
          %v3900 = vpack.c.b16 %v3476, %v3472
          %v3901 = vpack.c.b16 %v3481, %v3477
          %v3902 = vpack.c.b16 %v3482, %v3478
          %v3903 = vpack.c.b16 %v3483, %v3479
          %v3904 = vpack.c.b16 %v3484, %v3480
          %v3905 = vpack.c.b16 %v3489, %v3485
          %v3906 = vpack.c.b16 %v3490, %v3486
          %v3907 = vpack.c.b16 %v3491, %v3487
          %v3908 = vpack.c.b16 %v3492, %v3488
          %v3909 = vpack.c.b16 %v3497, %v3493
          %v3910 = vpack.c.b16 %v3498, %v3494
          %v3911 = vpack.c.b16 %v3499, %v3495
          %v3912 = vpack.c.b16 %v3500, %v3496
          %v3913 = vpack.c.b16 %v3505, %v3501
          %v3914 = vpack.c.b16 %v3506, %v3502
          %v3915 = vpack.c.b16 %v3507, %v3503
          %v3916 = vpack.c.b16 %v3508, %v3504
          %v3917 = vpack.c.b16 %v3513, %v3509
          %v3918 = vpack.c.b16 %v3514, %v3510
          %v3919 = vpack.c.b16 %v3515, %v3511
          %v3920 = vpack.c.b16 %v3516, %v3512
          %v3921 = vpack.c.b16 %v3521, %v3517
          %v3922 = vpack.c.b16 %v3522, %v3518
          %v3923 = vpack.c.b16 %v3523, %v3519
          %v3924 = vpack.c.b16 %v3524, %v3520
          %v3925 = vpack.c.b16 %v3529, %v3525
          %v3926 = vpack.c.b16 %v3530, %v3526
          %v3927 = vpack.c.b16 %v3531, %v3527
          %v3928 = vpack.c.b16 %v3532, %v3528
          %v3929 = vpack.c.b16 %v3537, %v3533
          %v3930 = vpack.c.b16 %v3538, %v3534
          %v3931 = vpack.c.b16 %v3539, %v3535
          %v3932 = vpack.c.b16 %v3540, %v3536
          %v3933 = vpack.c.b16 %v3545, %v3541
          %v3934 = vpack.c.b16 %v3546, %v3542
          %v3935 = vpack.c.b16 %v3547, %v3543
          %v3936 = vpack.c.b16 %v3548, %v3544
          %v3937 = vpack.c.b16 %v3553, %v3549
          %v3938 = vpack.c.b16 %v3554, %v3550
          %v3939 = vpack.c.b16 %v3555, %v3551
          %v3940 = vpack.c.b16 %v3556, %v3552
          %v3941 = vpack.c.b16 %v3561, %v3557
          %v3942 = vpack.c.b16 %v3562, %v3558
          %v3943 = vpack.c.b16 %v3563, %v3559
          %v3944 = vpack.c.b16 %v3564, %v3560
          %v3945 = vpack.c.b16 %v3569, %v3565
          %v3946 = vpack.c.b16 %v3570, %v3566
          %v3947 = vpack.c.b16 %v3571, %v3567
          %v3948 = vpack.c.b16 %v3572, %v3568
          %v3949 = vpack.c.b16 %v3577, %v3573
          %v3950 = vpack.c.b16 %v3578, %v3574
          %v3951 = vpack.c.b16 %v3579, %v3575
          %v3952 = vpack.c.b16 %v3580, %v3576
          %v3953 = vpack.c.b16 %v3585, %v3581
          %v3954 = vpack.c.b16 %v3586, %v3582
          %v3955 = vpack.c.b16 %v3587, %v3583
          %v3956 = vpack.c.b16 %v3588, %v3584
          %v3957 = vpack.c.b16 %v3593, %v3589
          %v3958 = vpack.c.b16 %v3594, %v3590
          %v3959 = vpack.c.b16 %v3595, %v3591
          %v3960 = vpack.c.b16 %v3596, %v3592
          %v3961 = vpack.c.b16 %v3601, %v3597
          %v3962 = vpack.c.b16 %v3602, %v3598
          %v3963 = vpack.c.b16 %v3603, %v3599
          %v3964 = vpack.c.b16 %v3604, %v3600
          %v3965 = vpack.c.b16 %v3609, %v3605
          %v3966 = vpack.c.b16 %v3610, %v3606
          %v3967 = vpack.c.b16 %v3611, %v3607
          %v3968 = vpack.c.b16 %v3612, %v3608
          %v3969 = vpack.c.b16 %v3617, %v3613
          %v3970 = vpack.c.b16 %v3618, %v3614
          %v3971 = vpack.c.b16 %v3619, %v3615
          %v3972 = vpack.c.b16 %v3620, %v3616
          %v3973 = vpack.c.b16 %v3625, %v3621
          %v3974 = vpack.c.b16 %v3626, %v3622
          %v3975 = vpack.c.b16 %v3627, %v3623
          %v3976 = vpack.c.b16 %v3628, %v3624
          %v3977 = vpack.c.b16 %v3633, %v3629
          %v3978 = vpack.c.b16 %v3634, %v3630
          %v3979 = vpack.c.b16 %v3635, %v3631
          %v3980 = vpack.c.b16 %v3636, %v3632
          %v3981 = vpack.c.b16 %v3641, %v3637
          %v3982 = vpack.c.b16 %v3642, %v3638
          %v3983 = vpack.c.b16 %v3643, %v3639
          %v3984 = vpack.c.b16 %v3644, %v3640
          %v3985 = vpack.c.b16 %v3649, %v3645
          %v3986 = vpack.c.b16 %v3650, %v3646
          %v3987 = vpack.c.b16 %v3651, %v3647
          %v3988 = vpack.c.b16 %v3652, %v3648
          %v3989 = vpack.c.b16 %v3657, %v3653
          %v3990 = vpack.c.b16 %v3658, %v3654
          %v3991 = vpack.c.b16 %v3659, %v3655
          %v3992 = vpack.c.b16 %v3660, %v3656
          %v3993 = vpack.c.b16 %v3665, %v3661
          %v3994 = vpack.c.b16 %v3666, %v3662
          %v3995 = vpack.c.b16 %v3667, %v3663
          %v3996 = vpack.c.b16 %v3668, %v3664
          %v3997 = vpack.c.b16 %v3673, %v3669
          %v3998 = vpack.c.b16 %v3674, %v3670
          %v3999 = vpack.c.b16 %v3675, %v3671
          %v4000 = vpack.c.b16 %v3676, %v3672
          %v4001 = vpack.c.b16 %v3681, %v3677
          %v4002 = vpack.c.b16 %v3682, %v3678
          %v4003 = vpack.c.b16 %v3683, %v3679
          %v4004 = vpack.c.b16 %v3684, %v3680
          %v4005 = vpack.c.b16 %v3689, %v3685
          %v4006 = vpack.c.b16 %v3690, %v3686
          %v4007 = vpack.c.b16 %v3691, %v3687
          %v4008 = vpack.c.b16 %v3692, %v3688
          %v4009 = vpack.c.b16 %v3697, %v3693
          %v4010 = vpack.c.b16 %v3698, %v3694
          %v4011 = vpack.c.b16 %v3699, %v3695
          %v4012 = vpack.c.b16 %v3700, %v3696
          %v4013 = vpack.c.b16 %v3705, %v3701
          %v4014 = vpack.c.b16 %v3706, %v3702
          %v4015 = vpack.c.b16 %v3707, %v3703
          %v4016 = vpack.c.b16 %v3708, %v3704
          %v4017 = vpack.c.b16 %v3713, %v3709
          %v4018 = vpack.c.b16 %v3714, %v3710
          %v4019 = vpack.c.b16 %v3715, %v3711
          %v4020 = vpack.c.b16 %v3716, %v3712
          %v4021 = vpack.c.b16 %v3721, %v3717
          %v4022 = vpack.c.b16 %v3722, %v3718
          %v4023 = vpack.c.b16 %v3723, %v3719
          %v4024 = vpack.c.b16 %v3724, %v3720
          %v4025 = vpack.c.b16 %v3729, %v3725
          %v4026 = vpack.c.b16 %v3730, %v3726
          %v4027 = vpack.c.b16 %v3731, %v3727
          %v4028 = vpack.c.b16 %v3732, %v3728
          %v4029 = vpack.c.b16 %v3737, %v3733
          %v4030 = vpack.c.b16 %v3738, %v3734
          %v4031 = vpack.c.b16 %v3739, %v3735
          %v4032 = vpack.c.b16 %v3740, %v3736
          %v4033 = vpack.c.b16 %v3745, %v3741
          %v4034 = vpack.c.b16 %v3746, %v3742
          %v4035 = vpack.c.b16 %v3747, %v3743
          %v4036 = vpack.c.b16 %v3748, %v3744
          %v4037 = vpack.c.b16 %v3753, %v3749
          %v4038 = vpack.c.b16 %v3754, %v3750
          %v4039 = vpack.c.b16 %v3755, %v3751
          %v4040 = vpack.c.b16 %v3756, %v3752
          %v4041 = vpack.c.b16 %v3761, %v3757
          %v4042 = vpack.c.b16 %v3762, %v3758
          %v4043 = vpack.c.b16 %v3763, %v3759
          %v4044 = vpack.c.b16 %v3764, %v3760
          %v4045 = vpack.c.b16 %v3769, %v3765
          %v4046 = vpack.c.b16 %v3770, %v3766
          %v4047 = vpack.c.b16 %v3771, %v3767
          %v4048 = vpack.c.b16 %v3772, %v3768
          %v4049 = vpack.c.b16 %v3777, %v3773
          %v4050 = vpack.c.b16 %v3778, %v3774
          %v4051 = vpack.c.b16 %v3779, %v3775
          %v4052 = vpack.c.b16 %v3780, %v3776
          %v4053 = vpack.c.b16 %v3785, %v3781
          %v4054 = vpack.c.b16 %v3786, %v3782
          %v4055 = vpack.c.b16 %v3787, %v3783
          %v4056 = vpack.c.b16 %v3788, %v3784
          %v4057 = vpack.c.b16 %v3793, %v3789
          %v4058 = vpack.c.b16 %v3794, %v3790
          %v4059 = vpack.c.b16 %v3795, %v3791
          %v4060 = vpack.c.b16 %v3796, %v3792
          %v4061 = vpack.c.b16 %v3801, %v3797
          %v4062 = vpack.c.b16 %v3802, %v3798
          %v4063 = vpack.c.b16 %v3803, %v3799
          %v4064 = vpack.c.b16 %v3804, %v3800
          %v4065 = vpack.c.b16 %v3809, %v3805
          %v4066 = vpack.c.b16 %v3810, %v3806
          %v4067 = vpack.c.b16 %v3811, %v3807
          %v4068 = vpack.c.b16 %v3812, %v3808
          %v4326 = vlaneseq
          %v4327 = vshrl.u32 %v4326, 7
          %v4328 = vsub.s32 0, %v4327
          %v4329 = vrot.slane %v3044, %v4328
          %v4330 = vlaneseq
          %v4331 = vshrl.u32 %v4330, 7
          %v4332 = vsub.s32 1, %v4331
          %v4333 = vrot.slane %v3044, %v4332
          %v4334 = vlaneseq
          %v4335 = vshrl.u32 %v4334, 7
          %v4336 = vsub.s32 2, %v4335
          %v4337 = vrot.slane %v3044, %v4336
          %v4338 = vlaneseq
          %v4339 = vshrl.u32 %v4338, 7
          %v4340 = vsub.s32 3, %v4339
          %v4341 = vrot.slane %v3044, %v4340
          %4346 = vmatprep.subr.bf16.mxu0 %v3814
          %4347 = vmatpush1.bf16.msra.mxu0 %v3813
          %4348 = vmatprep.subr.bf16.mxu0 %v3818
          %4349 = vmatpush1.bf16.msra.mxu0 %v3817
          %4350 = vmatprep.subr.bf16.mxu0 %v3822
          %4351 = vmatpush1.bf16.msra.mxu0 %v3821
          %4352 = vmatprep.subr.bf16.mxu0 %v3826
          %4353 = vmatpush1.bf16.msra.mxu0 %v3825
          %4354 = vmatprep.subr.bf16.mxu0 %v3830
          %4355 = vmatpush1.bf16.msra.mxu0 %v3829
          %4356 = vmatprep.subr.bf16.mxu0 %v3834
          %4357 = vmatpush1.bf16.msra.mxu0 %v3833
          %4358 = vmatprep.subr.bf16.mxu0 %v3838
          %4359 = vmatpush1.bf16.msra.mxu0 %v3837
          %4360 = vmatprep.subr.bf16.mxu0 %v3842
          %4361 = vmatpush1.bf16.msra.mxu0 %v3841
          %4362 = vmatprep.subr.bf16.mxu0 %v3846
          %4363 = vmatpush1.bf16.msra.mxu0 %v3845
          %4364 = vmatprep.subr.bf16.mxu0 %v3850
          %4365 = vmatpush1.bf16.msra.mxu0 %v3849
          %4366 = vmatprep.subr.bf16.mxu0 %v3854
          %4367 = vmatpush1.bf16.msra.mxu0 %v3853
          %4368 = vmatprep.subr.bf16.mxu0 %v3858
          %4369 = vmatpush1.bf16.msra.mxu0 %v3857
          %4370 = vmatprep.subr.bf16.mxu0 %v3862
          %4371 = vmatpush1.bf16.msra.mxu0 %v3861
          %4372 = vmatprep.subr.bf16.mxu0 %v3866
          %4373 = vmatpush1.bf16.msra.mxu0 %v3865
          %4374 = vmatprep.subr.bf16.mxu0 %v3870
          %4375 = vmatpush1.bf16.msra.mxu0 %v3869
          %4376 = vmatprep.subr.bf16.mxu0 %v3874
          %4377 = vmatpush1.bf16.msra.mxu0 %v3873
          %4378 = vmatprep.mubr.bf16.mxu0 %v2781
          %4379 = vmatmul.mubr.bf16.gmra.mrb[0].mxu0 %v2780
          %v4380 = vpop.f32.mrb[0].mxu0
          %v4381 = vadd.f32 %v4329, %v4380
          %v4382 = vpop.f32.mrb[0].mxu0
          %v4383 = vadd.f32 %v4333, %v4382
          %v4384 = vpop.f32.mrb[0].mxu0
          %v4385 = vpop.f32.mrb[0].mxu0
          %4386 = vdwg.mxu0
          %4387 = vmatprep.subr.bf16.mxu0 %v3878
          %4388 = vmatpush1.bf16.msra.mxu0 %v3877
          %4389 = vmatprep.subr.bf16.mxu0 %v3882
          %4390 = vmatpush1.bf16.msra.mxu0 %v3881
          %4391 = vmatprep.subr.bf16.mxu0 %v3886
          %4392 = vmatpush1.bf16.msra.mxu0 %v3885
          %4393 = vmatprep.subr.bf16.mxu0 %v3890
          %4394 = vmatpush1.bf16.msra.mxu0 %v3889
          %4395 = vmatprep.subr.bf16.mxu0 %v3894
          %4396 = vmatpush1.bf16.msra.mxu0 %v3893
          %4397 = vmatprep.subr.bf16.mxu0 %v3898
          %4398 = vmatpush1.bf16.msra.mxu0 %v3897
          %4399 = vmatprep.subr.bf16.mxu0 %v3902
          %4400 = vmatpush1.bf16.msra.mxu0 %v3901
          %4401 = vmatprep.subr.bf16.mxu0 %v3906
          %4402 = vmatpush1.bf16.msra.mxu0 %v3905
          %4403 = vmatprep.subr.bf16.mxu0 %v3910
          %4404 = vmatpush1.bf16.msra.mxu0 %v3909
          %4405 = vmatprep.subr.bf16.mxu0 %v3914
          %4406 = vmatpush1.bf16.msra.mxu0 %v3913
          %4407 = vmatprep.subr.bf16.mxu0 %v3918
          %4408 = vmatpush1.bf16.msra.mxu0 %v3917
          %4409 = vmatprep.subr.bf16.mxu0 %v3922
          %4410 = vmatpush1.bf16.msra.mxu0 %v3921
          %4411 = vmatprep.subr.bf16.mxu0 %v3926
          %4412 = vmatpush1.bf16.msra.mxu0 %v3925
          %4413 = vmatprep.subr.bf16.mxu0 %v3930
          %4414 = vmatpush1.bf16.msra.mxu0 %v3929
          %4415 = vmatprep.subr.bf16.mxu0 %v3934
          %4416 = vmatpush1.bf16.msra.mxu0 %v3933
          %4417 = vmatprep.subr.bf16.mxu0 %v3938
          %4418 = vmatpush1.bf16.msra.mxu0 %v3937
          %4419 = vmatprep.mubr.bf16.mxu0 %v2783
          %4420 = vmatmul.mubr.bf16.gmra.mrb[0].mxu0 %v2782
          %v4421 = vpop.f32.mrb[0].mxu0
          %v4422 = vadd.f32 %v4381, %v4421
          %v4423 = vpop.f32.mrb[0].mxu0
          %v4424 = vadd.f32 %v4383, %v4423
          %v4425 = vpop.f32.mrb[0].mxu0
          %v4426 = vpop.f32.mrb[0].mxu0
          %4427 = vdwg.mxu0
          %4428 = vmatprep.subr.bf16.mxu0 %v3942
          %4429 = vmatpush1.bf16.msra.mxu0 %v3941
          %4430 = vmatprep.subr.bf16.mxu0 %v3946
          %4431 = vmatpush1.bf16.msra.mxu0 %v3945
          %4432 = vmatprep.subr.bf16.mxu0 %v3950
          %4433 = vmatpush1.bf16.msra.mxu0 %v3949
          %4434 = vmatprep.subr.bf16.mxu0 %v3954
          %4435 = vmatpush1.bf16.msra.mxu0 %v3953
          %4436 = vmatprep.subr.bf16.mxu0 %v3958
          %4437 = vmatpush1.bf16.msra.mxu0 %v3957
          %4438 = vmatprep.subr.bf16.mxu0 %v3962
          %4439 = vmatpush1.bf16.msra.mxu0 %v3961
          %4440 = vmatprep.subr.bf16.mxu0 %v3966
          %4441 = vmatpush1.bf16.msra.mxu0 %v3965
          %4442 = vmatprep.subr.bf16.mxu0 %v3970
          %4443 = vmatpush1.bf16.msra.mxu0 %v3969
          %4444 = vmatprep.subr.bf16.mxu0 %v3974
          %4445 = vmatpush1.bf16.msra.mxu0 %v3973
          %4446 = vmatprep.subr.bf16.mxu0 %v3978
          %4447 = vmatpush1.bf16.msra.mxu0 %v3977
          %4448 = vmatprep.subr.bf16.mxu0 %v3982
          %4449 = vmatpush1.bf16.msra.mxu0 %v3981
          %4450 = vmatprep.subr.bf16.mxu0 %v3986
          %4451 = vmatpush1.bf16.msra.mxu0 %v3985
          %4452 = vmatprep.subr.bf16.mxu0 %v3990
          %4453 = vmatpush1.bf16.msra.mxu0 %v3989
          %4454 = vmatprep.subr.bf16.mxu0 %v3994
          %4455 = vmatpush1.bf16.msra.mxu0 %v3993
          %4456 = vmatprep.subr.bf16.mxu0 %v3998
          %4457 = vmatpush1.bf16.msra.mxu0 %v3997
          %4458 = vmatprep.subr.bf16.mxu0 %v4002
          %4459 = vmatpush1.bf16.msra.mxu0 %v4001
          %4460 = vmatprep.mubr.bf16.mxu0 %v2785
          %4461 = vmatmul.mubr.bf16.gmra.mrb[0].mxu0 %v2784
          %v4462 = vpop.f32.mrb[0].mxu0
          %v4463 = vadd.f32 %v4422, %v4462
          %v4464 = vpop.f32.mrb[0].mxu0
          %v4465 = vadd.f32 %v4424, %v4464
          %v4466 = vpop.f32.mrb[0].mxu0
          %v4467 = vpop.f32.mrb[0].mxu0
          %4468 = vdwg.mxu0
          %4469 = vmatprep.subr.bf16.mxu0 %v4006
          %4470 = vmatpush1.bf16.msra.mxu0 %v4005
          %4471 = vmatprep.subr.bf16.mxu0 %v4010
          %4472 = vmatpush1.bf16.msra.mxu0 %v4009
          %4473 = vmatprep.subr.bf16.mxu0 %v4014
          %4474 = vmatpush1.bf16.msra.mxu0 %v4013
          %4475 = vmatprep.subr.bf16.mxu0 %v4018
          %4476 = vmatpush1.bf16.msra.mxu0 %v4017
          %4477 = vmatprep.subr.bf16.mxu0 %v4022
          %4478 = vmatpush1.bf16.msra.mxu0 %v4021
          %4479 = vmatprep.subr.bf16.mxu0 %v4026
          %4480 = vmatpush1.bf16.msra.mxu0 %v4025
          %4481 = vmatprep.subr.bf16.mxu0 %v4030
          %4482 = vmatpush1.bf16.msra.mxu0 %v4029
          %4483 = vmatprep.subr.bf16.mxu0 %v4034
          %4484 = vmatpush1.bf16.msra.mxu0 %v4033
          %4485 = vmatprep.subr.bf16.mxu0 %v4038
          %4486 = vmatpush1.bf16.msra.mxu0 %v4037
          %4487 = vmatprep.subr.bf16.mxu0 %v4042
          %4488 = vmatpush1.bf16.msra.mxu0 %v4041
          %4489 = vmatprep.subr.bf16.mxu0 %v4046
          %4490 = vmatpush1.bf16.msra.mxu0 %v4045
          %4491 = vmatprep.subr.bf16.mxu0 %v4050
          %4492 = vmatpush1.bf16.msra.mxu0 %v4049
          %4493 = vmatprep.subr.bf16.mxu0 %v4054
          %4494 = vmatpush1.bf16.msra.mxu0 %v4053
          %4495 = vmatprep.subr.bf16.mxu0 %v4058
          %4496 = vmatpush1.bf16.msra.mxu0 %v4057
          %4497 = vmatprep.subr.bf16.mxu0 %v4062
          %4498 = vmatpush1.bf16.msra.mxu0 %v4061
          %4499 = vmatprep.subr.bf16.mxu0 %v4066
          %4500 = vmatpush1.bf16.msra.mxu0 %v4065
          %4501 = vmatprep.mubr.bf16.mxu0 %v2787
          %4502 = vmatmul.mubr.bf16.gmra.mrb[0].mxu0 %v2786
          %v4503 = vpop.f32.mrb[0].mxu0
          %v4504 = vadd.f32 %v4463, %v4503
          %v4505 = vpop.f32.mrb[0].mxu0
          %v4506 = vadd.f32 %v4465, %v4505
          %v4507 = vpop.f32.mrb[0].mxu0
          %v4508 = vpop.f32.mrb[0].mxu0
          %4509 = vdwg.mxu0
          %4510 = vmatprep.subr.bf16.mxu0 %v3816
          %4511 = vmatpush1.bf16.msra.mxu0 %v3815
          %4512 = vmatprep.subr.bf16.mxu0 %v3820
          %4513 = vmatpush1.bf16.msra.mxu0 %v3819
          %4514 = vmatprep.subr.bf16.mxu0 %v3824
          %4515 = vmatpush1.bf16.msra.mxu0 %v3823
          %4516 = vmatprep.subr.bf16.mxu0 %v3828
          %4517 = vmatpush1.bf16.msra.mxu0 %v3827
          %4518 = vmatprep.subr.bf16.mxu0 %v3832
          %4519 = vmatpush1.bf16.msra.mxu0 %v3831
          %4520 = vmatprep.subr.bf16.mxu0 %v3836
          %4521 = vmatpush1.bf16.msra.mxu0 %v3835
          %4522 = vmatprep.subr.bf16.mxu0 %v3840
          %4523 = vmatpush1.bf16.msra.mxu0 %v3839
          %4524 = vmatprep.subr.bf16.mxu0 %v3844
          %4525 = vmatpush1.bf16.msra.mxu0 %v3843
          %4526 = vmatprep.subr.bf16.mxu0 %v3848
          %4527 = vmatpush1.bf16.msra.mxu0 %v3847
          %4528 = vmatprep.subr.bf16.mxu0 %v3852
          %4529 = vmatpush1.bf16.msra.mxu0 %v3851
          %4530 = vmatprep.subr.bf16.mxu0 %v3856
          %4531 = vmatpush1.bf16.msra.mxu0 %v3855
          %4532 = vmatprep.subr.bf16.mxu0 %v3860
          %4533 = vmatpush1.bf16.msra.mxu0 %v3859
          %4534 = vmatprep.subr.bf16.mxu0 %v3864
          %4535 = vmatpush1.bf16.msra.mxu0 %v3863
          %4536 = vmatprep.subr.bf16.mxu0 %v3868
          %4537 = vmatpush1.bf16.msra.mxu0 %v3867
          %4538 = vmatprep.subr.bf16.mxu0 %v3872
          %4539 = vmatpush1.bf16.msra.mxu0 %v3871
          %4540 = vmatprep.subr.bf16.mxu0 %v3876
          %4541 = vmatpush1.bf16.msra.mxu0 %v3875
          %4542 = vmatprep.mubr.bf16.mxu0 %v2781
          %4543 = vmatmul.mubr.bf16.gmra.mrb[0].mxu0 %v2780
          %v4544 = vpop.f32.mrb[0].mxu0
          %v4545 = vadd.f32 %v4337, %v4544
          %v4546 = vpop.f32.mrb[0].mxu0
          %v4547 = vadd.f32 %v4341, %v4546
          %v4548 = vpop.f32.mrb[0].mxu0
          %v4549 = vpop.f32.mrb[0].mxu0
          %4550 = vdwg.mxu0
          %4551 = vmatprep.subr.bf16.mxu0 %v3880
          %4552 = vmatpush1.bf16.msra.mxu0 %v3879
          %4553 = vmatprep.subr.bf16.mxu0 %v3884
          %4554 = vmatpush1.bf16.msra.mxu0 %v3883
          %4555 = vmatprep.subr.bf16.mxu0 %v3888
          %4556 = vmatpush1.bf16.msra.mxu0 %v3887
          %4557 = vmatprep.subr.bf16.mxu0 %v3892
          %4558 = vmatpush1.bf16.msra.mxu0 %v3891
          %4559 = vmatprep.subr.bf16.mxu0 %v3896
          %4560 = vmatpush1.bf16.msra.mxu0 %v3895
          %4561 = vmatprep.subr.bf16.mxu0 %v3900
          %4562 = vmatpush1.bf16.msra.mxu0 %v3899
          %4563 = vmatprep.subr.bf16.mxu0 %v3904
          %4564 = vmatpush1.bf16.msra.mxu0 %v3903
          %4565 = vmatprep.subr.bf16.mxu0 %v3908
          %4566 = vmatpush1.bf16.msra.mxu0 %v3907
          %4567 = vmatprep.subr.bf16.mxu0 %v3912
          %4568 = vmatpush1.bf16.msra.mxu0 %v3911
          %4569 = vmatprep.subr.bf16.mxu0 %v3916
          %4570 = vmatpush1.bf16.msra.mxu0 %v3915
          %4571 = vmatprep.subr.bf16.mxu0 %v3920
          %4572 = vmatpush1.bf16.msra.mxu0 %v3919
          %4573 = vmatprep.subr.bf16.mxu0 %v3924
          %4574 = vmatpush1.bf16.msra.mxu0 %v3923
          %4575 = vmatprep.subr.bf16.mxu0 %v3928
          %4576 = vmatpush1.bf16.msra.mxu0 %v3927
          %4577 = vmatprep.subr.bf16.mxu0 %v3932
          %4578 = vmatpush1.bf16.msra.mxu0 %v3931
          %4579 = vmatprep.subr.bf16.mxu0 %v3936
          %4580 = vmatpush1.bf16.msra.mxu0 %v3935
          %4581 = vmatprep.subr.bf16.mxu0 %v3940
          %4582 = vmatpush1.bf16.msra.mxu0 %v3939
          %4583 = vmatprep.mubr.bf16.mxu0 %v2783
          %4584 = vmatmul.mubr.bf16.gmra.mrb[0].mxu0 %v2782
          %v4585 = vpop.f32.mrb[0].mxu0
          %v4586 = vadd.f32 %v4545, %v4585
          %v4587 = vpop.f32.mrb[0].mxu0
          %v4588 = vadd.f32 %v4547, %v4587
          %v4589 = vpop.f32.mrb[0].mxu0
          %v4590 = vpop.f32.mrb[0].mxu0
          %4591 = vdwg.mxu0
          %4592 = vmatprep.subr.bf16.mxu0 %v3944
          %4593 = vmatpush1.bf16.msra.mxu0 %v3943
          %4594 = vmatprep.subr.bf16.mxu0 %v3948
          %4595 = vmatpush1.bf16.msra.mxu0 %v3947
          %4596 = vmatprep.subr.bf16.mxu0 %v3952
          %4597 = vmatpush1.bf16.msra.mxu0 %v3951
          %4598 = vmatprep.subr.bf16.mxu0 %v3956
          %4599 = vmatpush1.bf16.msra.mxu0 %v3955
          %4600 = vmatprep.subr.bf16.mxu0 %v3960
          %4601 = vmatpush1.bf16.msra.mxu0 %v3959
          %4602 = vmatprep.subr.bf16.mxu0 %v3964
          %4603 = vmatpush1.bf16.msra.mxu0 %v3963
          %4604 = vmatprep.subr.bf16.mxu0 %v3968
          %4605 = vmatpush1.bf16.msra.mxu0 %v3967
          %4606 = vmatprep.subr.bf16.mxu0 %v3972
          %4607 = vmatpush1.bf16.msra.mxu0 %v3971
          %4608 = vmatprep.subr.bf16.mxu0 %v3976
          %4609 = vmatpush1.bf16.msra.mxu0 %v3975
          %4610 = vmatprep.subr.bf16.mxu0 %v3980
          %4611 = vmatpush1.bf16.msra.mxu0 %v3979
          %4612 = vmatprep.subr.bf16.mxu0 %v3984
          %4613 = vmatpush1.bf16.msra.mxu0 %v3983
          %4614 = vmatprep.subr.bf16.mxu0 %v3988
          %4615 = vmatpush1.bf16.msra.mxu0 %v3987
          %4616 = vmatprep.subr.bf16.mxu0 %v3992
          %4617 = vmatpush1.bf16.msra.mxu0 %v3991
          %4618 = vmatprep.subr.bf16.mxu0 %v3996
          %4619 = vmatpush1.bf16.msra.mxu0 %v3995
          %4620 = vmatprep.subr.bf16.mxu0 %v4000
          %4621 = vmatpush1.bf16.msra.mxu0 %v3999
          %4622 = vmatprep.subr.bf16.mxu0 %v4004
          %4623 = vmatpush1.bf16.msra.mxu0 %v4003
          %4624 = vmatprep.mubr.bf16.mxu0 %v2785
          %4625 = vmatmul.mubr.bf16.gmra.mrb[0].mxu0 %v2784
          %v4626 = vpop.f32.mrb[0].mxu0
          %v4627 = vadd.f32 %v4586, %v4626
          %v4628 = vpop.f32.mrb[0].mxu0
          %v4629 = vadd.f32 %v4588, %v4628
          %v4630 = vpop.f32.mrb[0].mxu0
          %v4631 = vpop.f32.mrb[0].mxu0
          %4632 = vdwg.mxu0
          %4633 = vmatprep.subr.bf16.mxu0 %v4008
          %4634 = vmatpush1.bf16.msra.mxu0 %v4007
          %4635 = vmatprep.subr.bf16.mxu0 %v4012
          %4636 = vmatpush1.bf16.msra.mxu0 %v4011
          %4637 = vmatprep.subr.bf16.mxu0 %v4016
          %4638 = vmatpush1.bf16.msra.mxu0 %v4015
          %4639 = vmatprep.subr.bf16.mxu0 %v4020
          %4640 = vmatpush1.bf16.msra.mxu0 %v4019
          %4641 = vmatprep.subr.bf16.mxu0 %v4024
          %4642 = vmatpush1.bf16.msra.mxu0 %v4023
          %4643 = vmatprep.subr.bf16.mxu0 %v4028
          %4644 = vmatpush1.bf16.msra.mxu0 %v4027
          %4645 = vmatprep.subr.bf16.mxu0 %v4032
          %4646 = vmatpush1.bf16.msra.mxu0 %v4031
          %4647 = vmatprep.subr.bf16.mxu0 %v4036
          %4648 = vmatpush1.bf16.msra.mxu0 %v4035
          %4649 = vmatprep.subr.bf16.mxu0 %v4040
          %4650 = vmatpush1.bf16.msra.mxu0 %v4039
          %4651 = vmatprep.subr.bf16.mxu0 %v4044
          %4652 = vmatpush1.bf16.msra.mxu0 %v4043
          %4653 = vmatprep.subr.bf16.mxu0 %v4048
          %4654 = vmatpush1.bf16.msra.mxu0 %v4047
          %4655 = vmatprep.subr.bf16.mxu0 %v4052
          %4656 = vmatpush1.bf16.msra.mxu0 %v4051
          %4657 = vmatprep.subr.bf16.mxu0 %v4056
          %4658 = vmatpush1.bf16.msra.mxu0 %v4055
          %4659 = vmatprep.subr.bf16.mxu0 %v4060
          %4660 = vmatpush1.bf16.msra.mxu0 %v4059
          %4661 = vmatprep.subr.bf16.mxu0 %v4064
          %4662 = vmatpush1.bf16.msra.mxu0 %v4063
          %4663 = vmatprep.subr.bf16.mxu0 %v4068
          %4664 = vmatpush1.bf16.msra.mxu0 %v4067
          %4665 = vmatprep.mubr.bf16.mxu0 %v2787
          %4666 = vmatmul.mubr.bf16.gmra.mrb[0].mxu0 %v2786
          %v4667 = vpop.f32.mrb[0].mxu0
          %v4668 = vadd.f32 %v4627, %v4667
          %v4669 = vpop.f32.mrb[0].mxu0
          %v4670 = vadd.f32 %v4629, %v4669
          %v4671 = vpop.f32.mrb[0].mxu0
          %v4672 = vpop.f32.mrb[0].mxu0
          %4673 = vdwg.mxu0
          %v4674 = vmax.f32 %v4504, 0.0
          %v4675 = vmax.f32 %v4506, 0.0
          %v4676 = vmax.f32 %v4668, 0.0
          %v4677 = vmax.f32 %v4670, 0.0
          %v4678 = vpack.c.bf16 %v4674, %v4674
          %v4679 = vpack.c.bf16 %v4675, %v4675
          %v4680 = vpack.c.bf16 %v4676, %v4676
          %v4681 = vpack.c.bf16 %v4677, %v4677
          %v4682 = vld [vmem:[%s9] sm:$0xff]
          %v4683 = vld [vmem:[%s9 + $0x8] sm:$0xff]
          %v4684 = vld [vmem:[%s9 + $0x10] sm:$0xff]
          %v4685 = vld [vmem:[%s9 + $0x18] sm:$0xff]
          %v4686 = vld [vmem:[%s9 + $0x20] sm:$0xff]
          %v4687 = vld [vmem:[%s9 + $0x28] sm:$0xff]
          %v4688 = vld [vmem:[%s9 + $0x30] sm:$0xff]
          %v4689 = vld [vmem:[%s9 + $0x38] sm:$0xff]
          %v4690 = vld [vmem:[%s9 + $0x40] sm:$0xff]
          %v4691 = vld [vmem:[%s9 + $0x48] sm:$0xff]
          %v4692 = vld [vmem:[%s9 + $0x50] sm:$0xff]
          %v4693 = vld [vmem:[%s9 + $0x58] sm:$0xff]
          %v4694 = vld [vmem:[%s9 + $0x60] sm:$0xff]
          %v4695 = vld [vmem:[%s9 + $0x68] sm:$0xff]
          %v4696 = vld [vmem:[%s9 + $0x70] sm:$0xff]
          %v4697 = vld [vmem:[%s9 + $0x78] sm:$0xff]
          %v4698 = vld [vmem:[%s9 + $0x80] sm:$0xff]
          %v4699 = vld [vmem:[%s9 + $0x88] sm:$0xff]
          %v4700 = vld [vmem:[%s9 + $0x90] sm:$0xff]
          %v4701 = vld [vmem:[%s9 + $0x98] sm:$0xff]
          %v4702 = vld [vmem:[%s9 + $0xa0] sm:$0xff]
          %v4703 = vld [vmem:[%s9 + $0xa8] sm:$0xff]
          %v4704 = vld [vmem:[%s9 + $0xb0] sm:$0xff]
          %v4705 = vld [vmem:[%s9 + $0xb8] sm:$0xff]
          %v4706 = vld [vmem:[%s9 + $0xc0] sm:$0xff]
          %v4707 = vld [vmem:[%s9 + $0xc8] sm:$0xff]
          %v4708 = vld [vmem:[%s9 + $0xd0] sm:$0xff]
          %v4709 = vld [vmem:[%s9 + $0xd8] sm:$0xff]
          %v4710 = vld [vmem:[%s9 + $0xe0] sm:$0xff]
          %v4711 = vld [vmem:[%s9 + $0xe8] sm:$0xff]
          %v4712 = vld [vmem:[%s9 + $0xf0] sm:$0xff]
          %v4713 = vld [vmem:[%s9 + $0xf8] sm:$0xff]
          %v4714 = vld [vmem:[%s9 + $0x100] sm:$0xff]
          %v4715 = vld [vmem:[%s9 + $0x108] sm:$0xff]
          %v4716 = vld [vmem:[%s9 + $0x110] sm:$0xff]
          %v4717 = vld [vmem:[%s9 + $0x118] sm:$0xff]
          %v4718 = vld [vmem:[%s9 + $0x120] sm:$0xff]
          %v4719 = vld [vmem:[%s9 + $0x128] sm:$0xff]
          %v4720 = vld [vmem:[%s9 + $0x130] sm:$0xff]
          %v4721 = vld [vmem:[%s9 + $0x138] sm:$0xff]
          %v4722 = vld [vmem:[%s9 + $0x140] sm:$0xff]
          %v4723 = vld [vmem:[%s9 + $0x148] sm:$0xff]
          %v4724 = vld [vmem:[%s9 + $0x150] sm:$0xff]
          %v4725 = vld [vmem:[%s9 + $0x158] sm:$0xff]
          %v4726 = vld [vmem:[%s9 + $0x160] sm:$0xff]
          %v4727 = vld [vmem:[%s9 + $0x168] sm:$0xff]
          %v4728 = vld [vmem:[%s9 + $0x170] sm:$0xff]
          %v4729 = vld [vmem:[%s9 + $0x178] sm:$0xff]
          %v4730 = vld [vmem:[%s9 + $0x180] sm:$0xff]
          %v4731 = vld [vmem:[%s9 + $0x188] sm:$0xff]
          %v4732 = vld [vmem:[%s9 + $0x190] sm:$0xff]
          %v4733 = vld [vmem:[%s9 + $0x198] sm:$0xff]
          %v4734 = vld [vmem:[%s9 + $0x1a0] sm:$0xff]
          %v4735 = vld [vmem:[%s9 + $0x1a8] sm:$0xff]
          %v4736 = vld [vmem:[%s9 + $0x1b0] sm:$0xff]
          %v4737 = vld [vmem:[%s9 + $0x1b8] sm:$0xff]
          %v4738 = vld [vmem:[%s9 + $0x1c0] sm:$0xff]
          %v4739 = vld [vmem:[%s9 + $0x1c8] sm:$0xff]
          %v4740 = vld [vmem:[%s9 + $0x1d0] sm:$0xff]
          %v4741 = vld [vmem:[%s9 + $0x1d8] sm:$0xff]
          %v4742 = vld [vmem:[%s9 + $0x1e0] sm:$0xff]
          %v4743 = vld [vmem:[%s9 + $0x1e8] sm:$0xff]
          %v4744 = vld [vmem:[%s9 + $0x1f0] sm:$0xff]
          %v4745 = vld [vmem:[%s9 + $0x1f8] sm:$0xff]
          %v4746 = vld [vmem:[%s10] sm:$0x3]
          %v4811 = vunpack.c.l.b16 %v4682
          %v4812 = vunpack.c.h.b16 %v4682
          %v4813 = vunpack.c.l.b16 %v4683
          %v4814 = vunpack.c.h.b16 %v4683
          %v4815 = vunpack.c.l.b16 %v4684
          %v4816 = vunpack.c.h.b16 %v4684
          %v4817 = vunpack.c.l.b16 %v4685
          %v4818 = vunpack.c.h.b16 %v4685
          %v4819 = vunpack.c.l.b16 %v4686
          %v4820 = vunpack.c.h.b16 %v4686
          %v4821 = vunpack.c.l.b16 %v4687
          %v4822 = vunpack.c.h.b16 %v4687
          %v4823 = vunpack.c.l.b16 %v4688
          %v4824 = vunpack.c.h.b16 %v4688
          %v4825 = vunpack.c.l.b16 %v4689
          %v4826 = vunpack.c.h.b16 %v4689
          %v4827 = vunpack.c.l.b16 %v4690
          %v4828 = vunpack.c.h.b16 %v4690
          %v4829 = vunpack.c.l.b16 %v4691
          %v4830 = vunpack.c.h.b16 %v4691
          %v4831 = vunpack.c.l.b16 %v4692
          %v4832 = vunpack.c.h.b16 %v4692
          %v4833 = vunpack.c.l.b16 %v4693
          %v4834 = vunpack.c.h.b16 %v4693
          %v4835 = vunpack.c.l.b16 %v4694
          %v4836 = vunpack.c.h.b16 %v4694
          %v4837 = vunpack.c.l.b16 %v4695
          %v4838 = vunpack.c.h.b16 %v4695
          %v4839 = vunpack.c.l.b16 %v4696
          %v4840 = vunpack.c.h.b16 %v4696
          %v4841 = vunpack.c.l.b16 %v4697
          %v4842 = vunpack.c.h.b16 %v4697
          %v4843 = vunpack.c.l.b16 %v4698
          %v4844 = vunpack.c.h.b16 %v4698
          %v4845 = vunpack.c.l.b16 %v4699
          %v4846 = vunpack.c.h.b16 %v4699
          %v4847 = vunpack.c.l.b16 %v4700
          %v4848 = vunpack.c.h.b16 %v4700
          %v4849 = vunpack.c.l.b16 %v4701
          %v4850 = vunpack.c.h.b16 %v4701
          %v4851 = vunpack.c.l.b16 %v4702
          %v4852 = vunpack.c.h.b16 %v4702
          %v4853 = vunpack.c.l.b16 %v4703
          %v4854 = vunpack.c.h.b16 %v4703
          %v4855 = vunpack.c.l.b16 %v4704
          %v4856 = vunpack.c.h.b16 %v4704
          %v4857 = vunpack.c.l.b16 %v4705
          %v4858 = vunpack.c.h.b16 %v4705
          %v4859 = vunpack.c.l.b16 %v4706
          %v4860 = vunpack.c.h.b16 %v4706
          %v4861 = vunpack.c.l.b16 %v4707
          %v4862 = vunpack.c.h.b16 %v4707
          %v4863 = vunpack.c.l.b16 %v4708
          %v4864 = vunpack.c.h.b16 %v4708
          %v4865 = vunpack.c.l.b16 %v4709
          %v4866 = vunpack.c.h.b16 %v4709
          %v4867 = vunpack.c.l.b16 %v4710
          %v4868 = vunpack.c.h.b16 %v4710
          %v4869 = vunpack.c.l.b16 %v4711
          %v4870 = vunpack.c.h.b16 %v4711
          %v4871 = vunpack.c.l.b16 %v4712
          %v4872 = vunpack.c.h.b16 %v4712
          %v4873 = vunpack.c.l.b16 %v4713
          %v4874 = vunpack.c.h.b16 %v4713
          %v4875 = vunpack.c.l.b16 %v4714
          %v4876 = vunpack.c.h.b16 %v4714
          %v4877 = vunpack.c.l.b16 %v4715
          %v4878 = vunpack.c.h.b16 %v4715
          %v4879 = vunpack.c.l.b16 %v4716
          %v4880 = vunpack.c.h.b16 %v4716
          %v4881 = vunpack.c.l.b16 %v4717
          %v4882 = vunpack.c.h.b16 %v4717
          %v4883 = vunpack.c.l.b16 %v4718
          %v4884 = vunpack.c.h.b16 %v4718
          %v4885 = vunpack.c.l.b16 %v4719
          %v4886 = vunpack.c.h.b16 %v4719
          %v4887 = vunpack.c.l.b16 %v4720
          %v4888 = vunpack.c.h.b16 %v4720
          %v4889 = vunpack.c.l.b16 %v4721
          %v4890 = vunpack.c.h.b16 %v4721
          %v4891 = vunpack.c.l.b16 %v4722
          %v4892 = vunpack.c.h.b16 %v4722
          %v4893 = vunpack.c.l.b16 %v4723
          %v4894 = vunpack.c.h.b16 %v4723
          %v4895 = vunpack.c.l.b16 %v4724
          %v4896 = vunpack.c.h.b16 %v4724
          %v4897 = vunpack.c.l.b16 %v4725
          %v4898 = vunpack.c.h.b16 %v4725
          %v4899 = vunpack.c.l.b16 %v4726
          %v4900 = vunpack.c.h.b16 %v4726
          %v4901 = vunpack.c.l.b16 %v4727
          %v4902 = vunpack.c.h.b16 %v4727
          %v4903 = vunpack.c.l.b16 %v4728
          %v4904 = vunpack.c.h.b16 %v4728
          %v4905 = vunpack.c.l.b16 %v4729
          %v4906 = vunpack.c.h.b16 %v4729
          %v4907 = vunpack.c.l.b16 %v4730
          %v4908 = vunpack.c.h.b16 %v4730
          %v4909 = vunpack.c.l.b16 %v4731
          %v4910 = vunpack.c.h.b16 %v4731
          %v4911 = vunpack.c.l.b16 %v4732
          %v4912 = vunpack.c.h.b16 %v4732
          %v4913 = vunpack.c.l.b16 %v4733
          %v4914 = vunpack.c.h.b16 %v4733
          %v4915 = vunpack.c.l.b16 %v4734
          %v4916 = vunpack.c.h.b16 %v4734
          %v4917 = vunpack.c.l.b16 %v4735
          %v4918 = vunpack.c.h.b16 %v4735
          %v4919 = vunpack.c.l.b16 %v4736
          %v4920 = vunpack.c.h.b16 %v4736
          %v4921 = vunpack.c.l.b16 %v4737
          %v4922 = vunpack.c.h.b16 %v4737
          %v4923 = vunpack.c.l.b16 %v4738
          %v4924 = vunpack.c.h.b16 %v4738
          %v4925 = vunpack.c.l.b16 %v4739
          %v4926 = vunpack.c.h.b16 %v4739
          %v4927 = vunpack.c.l.b16 %v4740
          %v4928 = vunpack.c.h.b16 %v4740
          %v4929 = vunpack.c.l.b16 %v4741
          %v4930 = vunpack.c.h.b16 %v4741
          %v4931 = vunpack.c.l.b16 %v4742
          %v4932 = vunpack.c.h.b16 %v4742
          %v4933 = vunpack.c.l.b16 %v4743
          %v4934 = vunpack.c.h.b16 %v4743
          %v4935 = vunpack.c.l.b16 %v4744
          %v4936 = vunpack.c.h.b16 %v4744
          %v4937 = vunpack.c.l.b16 %v4745
          %v4938 = vunpack.c.h.b16 %v4745
          %v4939 = vpack.c.b16 %v4813, %v4811
          %v4940 = vpack.c.b16 %v4814, %v4812
          %v4941 = vpack.c.b16 %v4817, %v4815
          %v4942 = vpack.c.b16 %v4818, %v4816
          %v4943 = vpack.c.b16 %v4821, %v4819
          %v4944 = vpack.c.b16 %v4822, %v4820
          %v4945 = vpack.c.b16 %v4825, %v4823
          %v4946 = vpack.c.b16 %v4826, %v4824
          %v4947 = vpack.c.b16 %v4829, %v4827
          %v4948 = vpack.c.b16 %v4830, %v4828
          %v4949 = vpack.c.b16 %v4833, %v4831
          %v4950 = vpack.c.b16 %v4834, %v4832
          %v4951 = vpack.c.b16 %v4837, %v4835
          %v4952 = vpack.c.b16 %v4838, %v4836
          %v4953 = vpack.c.b16 %v4841, %v4839
          %v4954 = vpack.c.b16 %v4842, %v4840
          %v4955 = vpack.c.b16 %v4845, %v4843
          %v4956 = vpack.c.b16 %v4846, %v4844
          %v4957 = vpack.c.b16 %v4849, %v4847
          %v4958 = vpack.c.b16 %v4850, %v4848
          %v4959 = vpack.c.b16 %v4853, %v4851
          %v4960 = vpack.c.b16 %v4854, %v4852
          %v4961 = vpack.c.b16 %v4857, %v4855
          %v4962 = vpack.c.b16 %v4858, %v4856
          %v4963 = vpack.c.b16 %v4861, %v4859
          %v4964 = vpack.c.b16 %v4862, %v4860
          %v4965 = vpack.c.b16 %v4865, %v4863
          %v4966 = vpack.c.b16 %v4866, %v4864
          %v4967 = vpack.c.b16 %v4869, %v4867
          %v4968 = vpack.c.b16 %v4870, %v4868
          %v4969 = vpack.c.b16 %v4873, %v4871
          %v4970 = vpack.c.b16 %v4874, %v4872
          %v4971 = vpack.c.b16 %v4877, %v4875
          %v4972 = vpack.c.b16 %v4878, %v4876
          %v4973 = vpack.c.b16 %v4881, %v4879
          %v4974 = vpack.c.b16 %v4882, %v4880
          %v4975 = vpack.c.b16 %v4885, %v4883
          %v4976 = vpack.c.b16 %v4886, %v4884
          %v4977 = vpack.c.b16 %v4889, %v4887
          %v4978 = vpack.c.b16 %v4890, %v4888
          %v4979 = vpack.c.b16 %v4893, %v4891
          %v4980 = vpack.c.b16 %v4894, %v4892
          %v4981 = vpack.c.b16 %v4897, %v4895
          %v4982 = vpack.c.b16 %v4898, %v4896
          %v4983 = vpack.c.b16 %v4901, %v4899
          %v4984 = vpack.c.b16 %v4902, %v4900
          %v4985 = vpack.c.b16 %v4905, %v4903
          %v4986 = vpack.c.b16 %v4906, %v4904
          %v4987 = vpack.c.b16 %v4909, %v4907
          %v4988 = vpack.c.b16 %v4910, %v4908
          %v4989 = vpack.c.b16 %v4913, %v4911
          %v4990 = vpack.c.b16 %v4914, %v4912
          %v4991 = vpack.c.b16 %v4917, %v4915
          %v4992 = vpack.c.b16 %v4918, %v4916
          %v4993 = vpack.c.b16 %v4921, %v4919
          %v4994 = vpack.c.b16 %v4922, %v4920
          %v4995 = vpack.c.b16 %v4925, %v4923
          %v4996 = vpack.c.b16 %v4926, %v4924
          %v4997 = vpack.c.b16 %v4929, %v4927
          %v4998 = vpack.c.b16 %v4930, %v4928
          %v4999 = vpack.c.b16 %v4933, %v4931
          %v5000 = vpack.c.b16 %v4934, %v4932
          %v5001 = vpack.c.b16 %v4937, %v4935
          %v5002 = vpack.c.b16 %v4938, %v4936
          %v5068 = vlaneseq
          %v5069 = vshrl.u32 %v5068, 7
          %v5070 = vsub.s32 0, %v5069
          %v5071 = vrot.slane %v4746, %v5070
          %v5072 = vlaneseq
          %v5073 = vshrl.u32 %v5072, 7
          %v5074 = vsub.s32 1, %v5073
          %v5075 = vrot.slane %v4746, %v5074
          %5078 = vmatprep.subr.bf16.mxu0 %v4940
          %5079 = vmatpush1.bf16.msra.mxu0 %v4939
          %5080 = vmatprep.subr.bf16.mxu0 %v4942
          %5081 = vmatpush1.bf16.msra.mxu0 %v4941
          %5082 = vmatprep.subr.bf16.mxu0 %v4944
          %5083 = vmatpush1.bf16.msra.mxu0 %v4943
          %5084 = vmatprep.subr.bf16.mxu0 %v4946
          %5085 = vmatpush1.bf16.msra.mxu0 %v4945
          %5086 = vmatprep.subr.bf16.mxu0 %v4948
          %5087 = vmatpush1.bf16.msra.mxu0 %v4947
          %5088 = vmatprep.subr.bf16.mxu0 %v4950
          %5089 = vmatpush1.bf16.msra.mxu0 %v4949
          %5090 = vmatprep.subr.bf16.mxu0 %v4952
          %5091 = vmatpush1.bf16.msra.mxu0 %v4951
          %5092 = vmatprep.subr.bf16.mxu0 %v4954
          %5093 = vmatpush1.bf16.msra.mxu0 %v4953
          %5094 = vmatprep.subr.bf16.mxu0 %v4956
          %5095 = vmatpush1.bf16.msra.mxu0 %v4955
          %5096 = vmatprep.subr.bf16.mxu0 %v4958
          %5097 = vmatpush1.bf16.msra.mxu0 %v4957
          %5098 = vmatprep.subr.bf16.mxu0 %v4960
          %5099 = vmatpush1.bf16.msra.mxu0 %v4959
          %5100 = vmatprep.subr.bf16.mxu0 %v4962
          %5101 = vmatpush1.bf16.msra.mxu0 %v4961
          %5102 = vmatprep.subr.bf16.mxu0 %v4964
          %5103 = vmatpush1.bf16.msra.mxu0 %v4963
          %5104 = vmatprep.subr.bf16.mxu0 %v4966
          %5105 = vmatpush1.bf16.msra.mxu0 %v4965
          %5106 = vmatprep.subr.bf16.mxu0 %v4968
          %5107 = vmatpush1.bf16.msra.mxu0 %v4967
          %5108 = vmatprep.subr.bf16.mxu0 %v4970
          %5109 = vmatpush1.bf16.msra.mxu0 %v4969
          %5110 = vmatprep.mubr.bf16.mxu0 %v4679
          %5111 = vmatmul.mubr.bf16.gmra.mrb[0].mxu0 %v4678
          %v5112 = vpop.f32.mrb[0].mxu0
          %v5113 = vadd.f32 %v5071, %v5112
          %v5114 = vpop.f32.mrb[0].mxu0
          %v5115 = vadd.f32 %v5075, %v5114
          %v5116 = vpop.f32.mrb[0].mxu0
          %v5117 = vpop.f32.mrb[0].mxu0
          %5118 = vdwg.mxu0
          %5119 = vmatprep.subr.bf16.mxu0 %v4972
          %5120 = vmatpush1.bf16.msra.mxu0 %v4971
          %5121 = vmatprep.subr.bf16.mxu0 %v4974
          %5122 = vmatpush1.bf16.msra.mxu0 %v4973
          %5123 = vmatprep.subr.bf16.mxu0 %v4976
          %5124 = vmatpush1.bf16.msra.mxu0 %v4975
          %5125 = vmatprep.subr.bf16.mxu0 %v4978
          %5126 = vmatpush1.bf16.msra.mxu0 %v4977
          %5127 = vmatprep.subr.bf16.mxu0 %v4980
          %5128 = vmatpush1.bf16.msra.mxu0 %v4979
          %5129 = vmatprep.subr.bf16.mxu0 %v4982
          %5130 = vmatpush1.bf16.msra.mxu0 %v4981
          %5131 = vmatprep.subr.bf16.mxu0 %v4984
          %5132 = vmatpush1.bf16.msra.mxu0 %v4983
          %5133 = vmatprep.subr.bf16.mxu0 %v4986
          %5134 = vmatpush1.bf16.msra.mxu0 %v4985
          %5135 = vmatprep.subr.bf16.mxu0 %v4988
          %5136 = vmatpush1.bf16.msra.mxu0 %v4987
          %5137 = vmatprep.subr.bf16.mxu0 %v4990
          %5138 = vmatpush1.bf16.msra.mxu0 %v4989
          %5139 = vmatprep.subr.bf16.mxu0 %v4992
          %5140 = vmatpush1.bf16.msra.mxu0 %v4991
          %5141 = vmatprep.subr.bf16.mxu0 %v4994
          %5142 = vmatpush1.bf16.msra.mxu0 %v4993
          %5143 = vmatprep.subr.bf16.mxu0 %v4996
          %5144 = vmatpush1.bf16.msra.mxu0 %v4995
          %5145 = vmatprep.subr.bf16.mxu0 %v4998
          %5146 = vmatpush1.bf16.msra.mxu0 %v4997
          %5147 = vmatprep.subr.bf16.mxu0 %v5000
          %5148 = vmatpush1.bf16.msra.mxu0 %v4999
          %5149 = vmatprep.subr.bf16.mxu0 %v5002
          %5150 = vmatpush1.bf16.msra.mxu0 %v5001
          %5151 = vmatprep.mubr.bf16.mxu0 %v4681
          %5152 = vmatmul.mubr.bf16.gmra.mrb[0].mxu0 %v4680
          %v5153 = vpop.f32.mrb[0].mxu0
          %v5154 = vadd.f32 %v5113, %v5153
          %v5155 = vpop.f32.mrb[0].mxu0
          %v5156 = vadd.f32 %v5115, %v5155
          %v5157 = vpop.f32.mrb[0].mxu0
          %v5158 = vpop.f32.mrb[0].mxu0
          %5159 = vdwg.mxu0
          %v5160 = vmax.f32 %v5154, 0.0
          %v5161 = vmax.f32 %v5156, 0.0
          %v5162 = vpack.c.bf16 %v5160, %v5160
          %v5163 = vpack.c.bf16 %v5161, %v5161
          %v5164 = vld [vmem:[%s11] sm:$0xf]
          %v5165 = vld [vmem:[%s11 + $0x4] sm:$0xf]
          %v5166 = vld [vmem:[%s11 + $0x8] sm:$0xf]
          %v5167 = vld [vmem:[%s11 + $0xc] sm:$0xf]
          %v5168 = vld [vmem:[%s11 + $0x10] sm:$0xf]
          %v5169 = vld [vmem:[%s11 + $0x14] sm:$0xf]
          %v5170 = vld [vmem:[%s11 + $0x18] sm:$0xf]
          %v5171 = vld [vmem:[%s11 + $0x1c] sm:$0xf]
          %v5172 = vld [vmem:[%s11 + $0x20] sm:$0xf]
          %v5173 = vld [vmem:[%s11 + $0x24] sm:$0xf]
          %v5174 = vld [vmem:[%s11 + $0x28] sm:$0xf]
          %v5175 = vld [vmem:[%s11 + $0x2c] sm:$0xf]
          %v5176 = vld [vmem:[%s11 + $0x30] sm:$0xf]
          %v5177 = vld [vmem:[%s11 + $0x34] sm:$0xf]
          %v5178 = vld [vmem:[%s11 + $0x38] sm:$0xf]
          %v5179 = vld [vmem:[%s11 + $0x3c] sm:$0xf]
          %v5180 = vld [vmem:[%s11 + $0x40] sm:$0xf]
          %v5181 = vld [vmem:[%s11 + $0x44] sm:$0xf]
          %v5182 = vld [vmem:[%s11 + $0x48] sm:$0xf]
          %v5183 = vld [vmem:[%s11 + $0x4c] sm:$0xf]
          %v5184 = vld [vmem:[%s11 + $0x50] sm:$0xf]
          %v5185 = vld [vmem:[%s11 + $0x54] sm:$0xf]
          %v5186 = vld [vmem:[%s11 + $0x58] sm:$0xf]
          %v5187 = vld [vmem:[%s11 + $0x5c] sm:$0xf]
          %v5188 = vld [vmem:[%s11 + $0x60] sm:$0xf]
          %v5189 = vld [vmem:[%s11 + $0x64] sm:$0xf]
          %v5190 = vld [vmem:[%s11 + $0x68] sm:$0xf]
          %v5191 = vld [vmem:[%s11 + $0x6c] sm:$0xf]
          %v5192 = vld [vmem:[%s11 + $0x70] sm:$0xf]
          %v5193 = vld [vmem:[%s11 + $0x74] sm:$0xf]
          %v5194 = vld [vmem:[%s11 + $0x78] sm:$0xf]
          %v5195 = vld [vmem:[%s11 + $0x7c] sm:$0xf]
          %v5196 = vld [vmem:[%s12] sm:$0x1]
          %v5229 = vunpack.c.l.b16 %v5164
          %v5230 = vunpack.c.l.b16 %v5165
          %v5231 = vunpack.c.l.b16 %v5166
          %v5232 = vunpack.c.l.b16 %v5167
          %v5233 = vunpack.c.l.b16 %v5168
          %v5234 = vunpack.c.l.b16 %v5169
          %v5235 = vunpack.c.l.b16 %v5170
          %v5236 = vunpack.c.l.b16 %v5171
          %v5237 = vunpack.c.l.b16 %v5172
          %v5238 = vunpack.c.l.b16 %v5173
          %v5239 = vunpack.c.l.b16 %v5174
          %v5240 = vunpack.c.l.b16 %v5175
          %v5241 = vunpack.c.l.b16 %v5176
          %v5242 = vunpack.c.l.b16 %v5177
          %v5243 = vunpack.c.l.b16 %v5178
          %v5244 = vunpack.c.l.b16 %v5179
          %v5245 = vunpack.c.l.b16 %v5180
          %v5246 = vunpack.c.l.b16 %v5181
          %v5247 = vunpack.c.l.b16 %v5182
          %v5248 = vunpack.c.l.b16 %v5183
          %v5249 = vunpack.c.l.b16 %v5184
          %v5250 = vunpack.c.l.b16 %v5185
          %v5251 = vunpack.c.l.b16 %v5186
          %v5252 = vunpack.c.l.b16 %v5187
          %v5253 = vunpack.c.l.b16 %v5188
          %v5254 = vunpack.c.l.b16 %v5189
          %v5255 = vunpack.c.l.b16 %v5190
          %v5256 = vunpack.c.l.b16 %v5191
          %v5257 = vunpack.c.l.b16 %v5192
          %v5258 = vunpack.c.l.b16 %v5193
          %v5259 = vunpack.c.l.b16 %v5194
          %v5260 = vunpack.c.l.b16 %v5195
          %v5261 = vpack.c.b16 %v5230, %v5229
          %v5262 = vpack.c.b16 %v5232, %v5231
          %v5263 = vpack.c.b16 %v5234, %v5233
          %v5264 = vpack.c.b16 %v5236, %v5235
          %v5265 = vpack.c.b16 %v5238, %v5237
          %v5266 = vpack.c.b16 %v5240, %v5239
          %v5267 = vpack.c.b16 %v5242, %v5241
          %v5268 = vpack.c.b16 %v5244, %v5243
          %v5269 = vpack.c.b16 %v5246, %v5245
          %v5270 = vpack.c.b16 %v5248, %v5247
          %v5271 = vpack.c.b16 %v5250, %v5249
          %v5272 = vpack.c.b16 %v5252, %v5251
          %v5273 = vpack.c.b16 %v5254, %v5253
          %v5274 = vpack.c.b16 %v5256, %v5255
          %v5275 = vpack.c.b16 %v5258, %v5257
          %v5276 = vpack.c.b16 %v5260, %v5259
          %5293 = vmatprep.subr.bf16.mxu0 0
          %5294 = vmatpush1.bf16.msra.mxu0 %v5261
          %5295 = vmatprep.subr.bf16.mxu0 0
          %5296 = vmatpush1.bf16.msra.mxu0 %v5262
          %5297 = vmatprep.subr.bf16.mxu0 0
          %5298 = vmatpush1.bf16.msra.mxu0 %v5263
          %5299 = vmatprep.subr.bf16.mxu0 0
          %5300 = vmatpush1.bf16.msra.mxu0 %v5264
          %5301 = vmatprep.subr.bf16.mxu0 0
          %5302 = vmatpush1.bf16.msra.mxu0 %v5265
          %5303 = vmatprep.subr.bf16.mxu0 0
          %5304 = vmatpush1.bf16.msra.mxu0 %v5266
          %5305 = vmatprep.subr.bf16.mxu0 0
          %5306 = vmatpush1.bf16.msra.mxu0 %v5267
          %5307 = vmatprep.subr.bf16.mxu0 0
          %5308 = vmatpush1.bf16.msra.mxu0 %v5268
          %5309 = vmatprep.subr.bf16.mxu0 0
          %5310 = vmatpush1.bf16.msra.mxu0 %v5269
          %5311 = vmatprep.subr.bf16.mxu0 0
          %5312 = vmatpush1.bf16.msra.mxu0 %v5270
          %5313 = vmatprep.subr.bf16.mxu0 0
          %5314 = vmatpush1.bf16.msra.mxu0 %v5271
          %5315 = vmatprep.subr.bf16.mxu0 0
          %5316 = vmatpush1.bf16.msra.mxu0 %v5272
          %5317 = vmatprep.subr.bf16.mxu0 0
          %5318 = vmatpush1.bf16.msra.mxu0 %v5273
          %5319 = vmatprep.subr.bf16.mxu0 0
          %5320 = vmatpush1.bf16.msra.mxu0 %v5274
          %5321 = vmatprep.subr.bf16.mxu0 0
          %5322 = vmatpush1.bf16.msra.mxu0 %v5275
          %5323 = vmatprep.subr.bf16.mxu0 0
          %5324 = vmatpush1.bf16.msra.mxu0 %v5276
          %5325 = vmatprep.mubr.bf16.mxu0 %v5163
          %5326 = vmatmul.mubr.bf16.gmra.mrb[0].mxu0 %v5162
          %v5327 = vpop.f32.mrb[0].mxu0
          %v5328 = vadd.f32 %v5196, %v5327
          %v5329 = vpop.f32.mrb[0].mxu0
          %v5330 = vpop.f32.mrb[0].mxu0
          %v5331 = vpop.f32.mrb[0].mxu0
          %5332 = vdwg.mxu0
          %vm5333 = vcmask 319488
          %v5334 = vsel %vm5333, %v5328, -inf
          %5335 = vmax.xlane.f32.xlu0 %v5334
          %v5336 = vpop.xlane.xlu0 %5335
          %v5337 = vsub.f32 %v5328, %v5336
          %v5338 = vmul.f32 %v5337, 1.442695
          %v5339 = vpow.pop %v5338
          %v5340 = vsel %vm5333, %v5339, 0.0
          %5341 = vadd.xlane.f32.xlu0 %v5340
          %v5342 = vpop.xlane.xlu0 %5341
          %v5343 = vlog2.pop %v5342
          %v5344 = vmul.f32 %v5343, 0.6931472
          %v5345 = vsub.f32 %v5337, %v5344
          %5346 = vst.msk [vmem:[%s470] sm:$0x1] %vm5333, %v5345
        $region80: #{pointnet_cls_forward.3} parent=71 // pred_fallthru
          _
        %s5347 = sand.u32 %s332, 1
        %s5348 = scalar_lea.sflag [#allocation4], %s5347
        %s5349 = sand.u32 %s332, 1
        %s5350 = scalar_lea.vmem [#allocation3], %s5349
        // Predicated region
        $region81: #{pointnet_cls_forward.3} parent=71 // pred_check
          %p5351 = pneg %p342
        $region82: #{pointnet_cls_forward.3} parent=71 // pred_check_branch
          %5353 = sbr.rel (%p5351) target = $region84
        $region83: #{pointnet_cls_forward.3} parent=71 // pred_region
          %s5355 = ssub.s32 16, 16
          %5356 = vsyncadd %s5348, %s5355
          %s5357 = smul.addr %s31, 16
          %s5358 = scalar_lea.hbm %s13, %s5357
          %s5360 = sshll.u32 %s5350, 4
          %s5361 = int_to_ptr.vmem [resolvable:$true] %s5360
          %5363 = dma.vmem_to_hbm [thread:$0]  %s5361, 16, %s5358, %s5348
        $region84: #{pointnet_cls_forward.3} parent=71 // pred_fallthru
          _
      $region72: #{pointnet_cls_forward.3} parent=5 // pred_fallthru
        _
      %p5364 = scmp.le.s32.totalorder 2, %s22
      // Predicated region
      $region85: #{pointnet_cls_forward.3} parent=5 // pred_check
        %p5365 = pneg %p5364
      $region86: #{pointnet_cls_forward.3} parent=5 // pred_check_branch
        %5367 = sbr.rel (%p5365) target = $region88
      $region87: #{pointnet_cls_forward.3} parent=5 // pred_region
        %s5368 = ssub.s32 %s22, 2
        // Predicated region
        $region89: #{pointnet_cls_forward.3} parent=87 // pred_check
          %p5369 = pneg %p348
        $region90: #{pointnet_cls_forward.3} parent=87 // pred_check_branch
          %5371 = sbr.rel (%p5369) target = $region92
        $region91: #{pointnet_cls_forward.3} parent=87 // pred_region
          %s5372 = sand.u32 %s333, 1
          %s5373 = scalar_lea.sflag [#allocation4], %s5372
          %s5374 = sand.u32 %s333, 1
          %s5375 = scalar_lea.vmem [#allocation3], %s5374
          %5376 = dma.done %s5373, 16
        $region92: #{pointnet_cls_forward.3} parent=87 // pred_fallthru
          _
      $region88: #{pointnet_cls_forward.3} parent=5 // pred_fallthru
        _
    $region6: #{pointnet_cls_forward.3} parent=1 // loop_footer
      %s26 = sadd.s32 1, %s22
    $region7: #{pointnet_cls_forward.3} parent=1 // loop_footer_branch
      %21 = sbr.rel target = $region3
    $region8: #{pointnet_cls_forward.3} parent=1 // loop_exit
      _
    %5377 = vsyncpa [#allocation4], 1
    %s5378 = scalar_lea.sflag [#allocation4], 1
    %5379 = vsyncpa %s5378, 1

</llo_original>
